<compile_context>
chip_gen: v5e
topology: v5e:2x2
jax: 0.10.0
libtpu: 0.0.40
codegen_flags: <defaults>
</compile_context>

<pallas_src>
import functools

import jax
import jax.numpy as jnp
from jax.experimental import pallas as pl
from jax.experimental.pallas import tpu as pltpu


# -----------------------------------------------------------------------------
# Fused Pallas kernel: conv1+BN+ReLU, MaxPool(3,2), layer1, layer2, fc1, fc2
# -----------------------------------------------------------------------------
def _amcnet_kernel(cols_ref, spool_ref, ssub_ref, w1_ref, l1w_ref, l2w_ref,
                   fc1w_ref, fc2w_ref, bias_ref, out_ref, *, B, L2):
    f32, bf16 = jnp.float32, jnp.bfloat16

    def mm(a, w):
        # bf16 MXU matmul, f32 accumulation.
        return jnp.dot(a.astype(bf16), w, preferred_element_type=f32)

    def gather(sel, x):
        # One-hot 0/1 f32 row gather on the MXU (selector built on host once).
        return jnp.dot(sel, x, preferred_element_type=f32,
                       precision=jax.lax.Precision.HIGHEST)

    def shift_dn(x):   # x[l-1, b] in l-major layout; zeros for l == 0
        return jnp.concatenate(
            [jnp.zeros((B, x.shape[1]), x.dtype), x[:-B]], axis=0)

    def shift_up(x):   # x[l+1, b] in l-major layout; zeros for l == L-1
        return jnp.concatenate(
            [x[B:], jnp.zeros((B, x.shape[1]), x.dtype)], axis=0)

    def conv3(x, w):
        # k=3, stride=1, pad=1 conv along l (pre-bias):
        # in-VMEM im2col (lane concat) + single matmul with K = 3*Cin.
        return mm(jnp.concatenate([shift_dn(x), x, shift_up(x)], axis=-1), w)

    def bias(i, c):
        return bias_ref[i:i + 1, :c]

    spool = spool_ref[...]          # (Lp*B, L1*B)  maxpool stride-2 selector
    ssub = ssub_ref[...]            # (L2*B, Lp*B)  layer2 stride-2 selector

    # ---- conv1(k=11, s=4, p=2) + BN1 + ReLU --------------------- (L1*B, 32)
    act = jnp.maximum(mm(cols_ref[0], w1_ref[...]) + bias(0, 32), 0.0)
    # ---- MaxPool1d(3, 2): max over taps (row shifts 0/B/2B), stride-2 pick --
    m = jnp.maximum(act, jnp.maximum(shift_up(act), shift_up(shift_up(act))))
    h0 = gather(spool, m)                                        # (Lp*B, 32)

    # ---- layer1: ResidualBlock(32 -> 64, stride=1) --------------------------
    t = jnp.maximum(conv3(h0, l1w_ref[0:96]) + bias(1, 64), 0.0)
    t = conv3(t, l1w_ref[96:288]) + bias(2, 64)
    sc = mm(h0, l1w_ref[288:320]) + bias(3, 64)                  # 1x1 shortcut
    h1 = jnp.maximum(t + sc, 0.0)                                # (Lp*B, 64)

    # ---- layer2: ResidualBlock(64 -> 128, stride=2) --------------------------
    # stride-2 conv == stride-1 conv at all positions, then even-position pick.
    u = jnp.maximum(gather(ssub, conv3(h1, l2w_ref[0:192])) + bias(4, 128), 0.0)
    v = conv3(u, l2w_ref[192:576]) + bias(5, 128)
    sc = mm(gather(ssub, h1), l2w_ref[576:640]) + bias(6, 128)   # 1x1, s=2
    h2 = jnp.maximum(v + sc, 0.0)                                # (L2*B, 128)

    # ---- fc1 + ReLU (+ Dropout(0.5): inference identity) + fc2 --------------
    # l-major rows => per-position slices are contiguous; lane-concat to the
    # channel-major flatten PyTorch's .view() expects (fc1 weights permuted on
    # host to match).
    hcat = jnp.concatenate([h2[l * B:(l + 1) * B] for l in range(L2)], axis=-1)
    hfc = jnp.maximum(mm(hcat, fc1w_ref[...]) + bias(7, 128), 0.0)
    out_ref[0] = mm(hfc, fc2w_ref[...]) + bias(8, 128)           # (B, 128)


# -----------------------------------------------------------------------------
# Host-side prep: tiny im2col for conv1, selectors, one-time parameter folding
# -----------------------------------------------------------------------------
def conv1_im2col(x, k=11, stride=4, pad=2):
    """x: (N, Cin, L) -> (N, Lo, Cin*k) with PyTorch window ordering."""
    N, C, L = x.shape
    xp = jnp.pad(x, ((0, 0), (0, 0), (pad, pad)))
    Lo = (L + 2 * pad - k) // stride + 1
    idx = jnp.arange(Lo)[:, None] * stride + jnp.arange(k)[None, :]   # (Lo, k)
    cols = xp[:, :, idx]                          # (N, Cin, Lo, k)
    cols = jnp.transpose(cols, (0, 2, 1, 3))      # (N, Lo, Cin, k)
    return cols.reshape(N, Lo, C * k)


def _stride2_selector(l_out, l_in, b):
    """One-hot (l_out*b, l_in*b): row l*b + s picks source row 2*l*b + s."""
    p = jnp.arange(l_out * b)
    src = 2 * (p // b) * b + (p % b)
    return jax.nn.one_hot(src, l_in * b, dtype=jnp.float32)


def _bn_fold(bn, eps=1e-5):
    inv = bn["gamma"] / jnp.sqrt(bn["var"] + eps)
    return inv, bn["beta"] - bn["mean"] * inv


def _pad_lanes(v, n=128):
    return jnp.pad(v, (0, n - v.shape[0]))


def prepare_params(raw):
    """Fold BN, transpose to channel-last matmul form, pack, cast to bf16."""
    bf16 = jnp.bfloat16
    p = {}

    # conv1 (32, Cin, 11) + bias, BN1 folded; matmul form (Cin*11, 32).
    inv1, bb1 = _bn_fold(raw["bn1"])
    w1 = raw["conv1_w"]
    Cout1, Cin1, K1 = w1.shape
    p["w1"] = (w1.reshape(Cout1, Cin1 * K1).T * inv1[None, :]).astype(bf16)
    b1 = bb1 + raw["conv1_b"] * inv1

    def conv3_fold(w, bn):              # (Cout, Cin, 3) -> (3*Cin, Cout)
        inv, bb = _bn_fold(bn)
        wm = jnp.transpose(w, (2, 1, 0)).reshape(w.shape[2] * w.shape[1],
                                                 w.shape[0]) * inv[None, :]
        return wm, bb

    def sc_fold(w, bn):                 # (Cout, Cin, 1) -> (Cin, Cout)
        inv, bb = _bn_fold(bn)
        return w[:, :, 0].T * inv[None, :], bb

    l1c1_w, l1c1_b = conv3_fold(raw["l1"]["conv1_w"], raw["l1"]["bn1"])
    l1c2_w, l1c2_b = conv3_fold(raw["l1"]["conv2_w"], raw["l1"]["bn2"])
    l1sc_w, l1sc_b = sc_fold(raw["l1"]["sc_w"], raw["l1"]["sc_bn"])
    p["l1_w"] = jnp.concatenate([l1c1_w, l1c2_w, l1sc_w], axis=0).astype(bf16)

    l2c1_w, l2c1_b = conv3_fold(raw["l2"]["conv1_w"], raw["l2"]["bn1"])
    l2c2_w, l2c2_b = conv3_fold(raw["l2"]["conv2_w"], raw["l2"]["bn2"])
    l2sc_w, l2sc_b = sc_fold(raw["l2"]["sc_w"], raw["l2"]["sc_bn"])
    p["l2_w"] = jnp.concatenate([l2c1_w, l2c2_w, l2sc_w], axis=0).astype(bf16)

    # fc1: permute columns from PyTorch channel-major flatten (c*L2 + l) to the
    # (l, c) row order produced by the in-kernel lane concat.
    fc1_w = raw["fc1_w"]                              # (128, 128*L2)
    Cfin = raw["l2"]["conv2_w"].shape[0]              # 128
    L2 = fc1_w.shape[1] // Cfin                       # 10
    p["fc1_w"] = jnp.transpose(fc1_w.reshape(fc1_w.shape[0], Cfin, L2),
                               (2, 1, 0)).reshape(Cfin * L2,
                                                  fc1_w.shape[0]).astype(bf16)

    # fc2: zero-pad outputs to 128 lanes (lane-dense stores); slice outside.
    fc2_w = raw["fc2_w"]                              # (fixed_len, 128)
    assert fc2_w.shape[0] <= 128, "fixed_len > 128 needs a wider output block"
    p["fc2_w"] = (jnp.zeros((128, 128), jnp.float32)
                  .at[:, :fc2_w.shape[0]].set(fc2_w.T)).astype(bf16)
    fc2_b = _pad_lanes(raw["fc2_b"], 128)

    # Pack all 9 bias vectors (lane-padded to 128) into one (9, 128) f32 array.
    p["bias"] = jnp.stack([_pad_lanes(b, 128) for b in
                           (b1, l1c1_b, l1c2_b, l1sc_b,
                            l2c1_b, l2c2_b, l2sc_b,
                            raw["fc1_b"], fc2_b)], axis=0)
    return p


# -----------------------------------------------------------------------------
# Forward wrapper: one pallas_call over blocks of B samples
# -----------------------------------------------------------------------------
def _const_index_map(ndim):
    return lambda g: (0,) * ndim


def amcnet1d_forward(p, x, *, fixed_len=100, block_b=8):
    """x: (N, Cin, L) float32 (PyTorch NCW). Returns (N, fixed_len)."""
    N = x.shape[0]
    cols = conv1_im2col(x, k=11, stride=4, pad=2)     # (N, L1, Cin*11), tiny
    _, L1, CK = cols.shape
    Lp = (L1 - 3) // 2 + 1                            # after MaxPool1d(3, 2)
    L2 = (Lp + 2 - 3) // 2 + 1                        # after layer2 stride-2
    assert p["fc1_w"].shape[0] == 128 * L2, "input length inconsistent with fc1"

    B = min(block_b, N)
    G = -(-N // B)
    Np = G * B
    if Np != N:
        cols = jnp.pad(cols, ((0, Np - N), (0, 0), (0, 0)))
    # l-major within each block of B samples: row = l*B + b.
    cols = cols.reshape(G, B, L1, CK).transpose(0, 2, 1, 3).reshape(G, L1 * B, CK)

    s_pool = _stride2_selector(Lp, L1, B)             # (Lp*B, L1*B)
    s_sub = _stride2_selector(L2, Lp, B)              # (L2*B, Lp*B)

    args = (cols, s_pool, s_sub, p["w1"], p["l1_w"], p["l2_w"],
            p["fc1_w"], p["fc2_w"], p["bias"])
    in_specs = [pl.BlockSpec((1, L1 * B, CK), lambda g: (g, 0, 0))]
    in_specs += [pl.BlockSpec(a.shape, _const_index_map(a.ndim)) for a in args[1:]]
    out_specs = pl.BlockSpec((1, B, 128), lambda g: (g, 0, 0))

    flops = int(2 * Np * (L1 * CK * 32
                          + Lp * (96 * 64 + 192 * 64 + 32 * 64)
                          + Lp * 192 * 128
                          + L2 * (384 * 128 + 64 * 128)
                          + L2 * 128 * 128 + 128 * 128))
    bytes_accessed = int(cols.size * 4 + Np * 128 * 4
                         + sum(int(a.size) * a.dtype.itemsize for a in args[1:]))

    kernel = functools.partial(_amcnet_kernel, B=B, L2=L2)
    out = pl.pallas_call(
        kernel,
        grid=(G,),
        in_specs=in_specs,
        out_specs=out_specs,
        out_shape=jax.ShapeDtypeStruct((G, B, 128), jnp.float32),
        compiler_params=pltpu.CompilerParams(dimension_semantics=("parallel",)),
        cost_estimate=pl.CostEstimate(flops=flops, transcendentals=0,
                                      bytes_accessed=bytes_accessed),
    )(*args)
    return out.reshape(Np, 128)[:N, :fixed_len]


# -----------------------------------------------------------------------------
# Parameter init (random, deterministic) mirroring the PyTorch module layout
# -----------------------------------------------------------------------------
def init_raw_params(key, num_channels=1, fixed_len=100):
    keys = iter(jax.random.split(key, 64))

    def nrm(shape, scale=0.05):
        return scale * jax.random.normal(next(keys), shape, dtype=jnp.float32)

    def bn(c):
        return dict(gamma=1.0 + nrm((c,)), beta=nrm((c,)),
                    mean=nrm((c,)), var=1.0 + jnp.abs(nrm((c,))))

    return {
        "conv1_w": nrm((32, num_channels, 11)),
        "conv1_b": nrm((32,)),
        "bn1": bn(32),
        "l1": dict(conv1_w=nrm((64, 32, 3)), bn1=bn(64),
                   conv2_w=nrm((64, 64, 3)), bn2=bn(64),
                   sc_w=nrm((64, 32, 1)), sc_bn=bn(64)),
        "l2": dict(conv1_w=nrm((128, 64, 3)), bn1=bn(128),
                   conv2_w=nrm((128, 128, 3)), bn2=bn(128),
                   sc_w=nrm((128, 64, 1)), sc_bn=bn(128)),
        "fc1_w": nrm((128, 128 * 10)),
        "fc1_b": nrm((128,)),
        "fc2_w": nrm((fixed_len, 128)),
        "fc2_b": nrm((fixed_len,)),
    }


if __name__ == "__main__":
    key = jax.random.PRNGKey(0)
    pkey, xkey = jax.random.split(key)
    raw = init_raw_params(pkey, num_channels=1, fixed_len=100)
    params = prepare_params(raw)

    # L=160: conv1 -> 39, maxpool -> 19, layer1 -> 19, layer2 -> 10 (128*10 flatten).
    N, C, L = 16, 1, 160
    x = jax.random.normal(xkey, (N, C, L), dtype=jnp.float32)

    fwd = jax.jit(functools.partial(amcnet1d_forward, fixed_len=100, block_b=8))
    out = jax.block_until_ready(fwd(params, x))
    assert out.shape == (N, 100) and out.dtype == jnp.float32
    assert bool(jnp.isfinite(out).all())
    print("KERNEL_OK")
</pallas_src>

<mosaic_0001>
module attributes {stable_mosaic.version = 11 : i64} {
  func.func @_amcnet_kernel(%arg0: i32, %arg1: memref<1x312x11xf32, #tpu.memory_space<vmem>>, %arg2: memref<152x312xf32, #tpu.memory_space<vmem>>, %arg3: memref<80x152xf32, #tpu.memory_space<vmem>>, %arg4: memref<11x32xbf16, #tpu.memory_space<vmem>>, %arg5: memref<320x64xbf16, #tpu.memory_space<vmem>>, %arg6: memref<640x128xbf16, #tpu.memory_space<vmem>>, %arg7: memref<1280x128xbf16, #tpu.memory_space<vmem>>, %arg8: memref<128x128xbf16, #tpu.memory_space<vmem>>, %arg9: memref<9x128xf32, #tpu.memory_space<vmem>>, %arg10: memref<1x8x128xf32, #tpu.memory_space<vmem>>) attributes {dimension_semantics = [#tpu.dimension_semantics<parallel>], iteration_bounds = array<i64: 2>, scalar_prefetch = 0 : i64, scratch_operands = 0 : i64, tpu.core_type = #tpu.core_type<tc>, window_params = [{transform_indices = @transform_0, window_bounds = array<i64: 1, 312, 11>}, {pipeline_mode = #tpu.pipeline_mode<synchronous>, transform_indices = @transform_1, window_bounds = array<i64: 152, 312>}, {pipeline_mode = #tpu.pipeline_mode<synchronous>, transform_indices = @transform_2, window_bounds = array<i64: 80, 152>}, {pipeline_mode = #tpu.pipeline_mode<synchronous>, transform_indices = @transform_3, window_bounds = array<i64: 11, 32>}, {pipeline_mode = #tpu.pipeline_mode<synchronous>, transform_indices = @transform_4, window_bounds = array<i64: 320, 64>}, {pipeline_mode = #tpu.pipeline_mode<synchronous>, transform_indices = @transform_5, window_bounds = array<i64: 640, 128>}, {pipeline_mode = #tpu.pipeline_mode<synchronous>, transform_indices = @transform_6, window_bounds = array<i64: 1280, 128>}, {pipeline_mode = #tpu.pipeline_mode<synchronous>, transform_indices = @transform_7, window_bounds = array<i64: 128, 128>}, {pipeline_mode = #tpu.pipeline_mode<synchronous>, transform_indices = @transform_8, window_bounds = array<i64: 9, 128>}, {transform_indices = @transform_9, window_bounds = array<i64: 1, 8, 128>}]} {
    %c0 = arith.constant 0 : index
    %c0_0 = arith.constant 0 : index
    %0 = vector.load %arg2[%c0, %c0_0] : memref<152x312xf32, #tpu.memory_space<vmem>>, vector<152x312xf32>
    %c0_1 = arith.constant 0 : index
    %c0_2 = arith.constant 0 : index
    %1 = vector.load %arg3[%c0_1, %c0_2] : memref<80x152xf32, #tpu.memory_space<vmem>>, vector<80x152xf32>
    %c0_3 = arith.constant 0 : index
    %c0_4 = arith.constant 0 : index
    %c0_5 = arith.constant 0 : index
    %2 = vector.load %arg1[%c0_3, %c0_4, %c0_5] : memref<1x312x11xf32, #tpu.memory_space<vmem>>, vector<1x312x11xf32>
    %3 = vector.shape_cast %2 : vector<1x312x11xf32> to vector<312x11xf32>
    %c0_6 = arith.constant 0 : index
    %c0_7 = arith.constant 0 : index
    %4 = vector.load %arg4[%c0_6, %c0_7] : memref<11x32xbf16, #tpu.memory_space<vmem>>, vector<11x32xbf16>
    %5 = arith.truncf %3 : vector<312x11xf32> to vector<312x11xbf16>
    %cst = arith.constant dense<0.000000e+00> : vector<312x32xf32>
    %6 = tpu.matmul %5, %4, %cst {dimension_numbers = #tpu.dot_dimension_numbers<[1], [0], [0], [1], [0, 0, 1, 1], [], []>} : vector<312x11xbf16>, vector<11x32xbf16>, vector<312x32xf32> -> vector<312x32xf32>
    %c0_8 = arith.constant 0 : index
    %c0_9 = arith.constant 0 : index
    %7 = vector.load %arg9[%c0_8, %c0_9] : memref<9x128xf32, #tpu.memory_space<vmem>>, vector<1x32xf32>
    %8 = vector.broadcast %7 : vector<1x32xf32> to vector<312x32xf32>
    %9 = arith.addf %6, %8 : vector<312x32xf32>
    %cst_10 = arith.constant 0.000000e+00 : f32
    %10 = vector.broadcast %cst_10 : f32 to vector<312x32xf32>
    %11 = arith.maximumf %9, %10 : vector<312x32xf32>
    %12 = vector.extract_strided_slice %11 {offsets = [8, 0], sizes = [304, 32], strides = [1, 1]} : vector<312x32xf32> to vector<304x32xf32>
    %cst_11 = arith.constant 0.000000e+00 : f32
    %13 = vector.broadcast %cst_11 : f32 to vector<8x32xf32>
    %14 = tpu.concatenate %12, %13 in 0 : vector<304x32xf32>, vector<8x32xf32> -> vector<312x32xf32>
    %15 = vector.extract_strided_slice %11 {offsets = [8, 0], sizes = [304, 32], strides = [1, 1]} : vector<312x32xf32> to vector<304x32xf32>
    %cst_12 = arith.constant 0.000000e+00 : f32
    %16 = vector.broadcast %cst_12 : f32 to vector<8x32xf32>
    %17 = tpu.concatenate %15, %16 in 0 : vector<304x32xf32>, vector<8x32xf32> -> vector<312x32xf32>
    %18 = vector.extract_strided_slice %17 {offsets = [8, 0], sizes = [304, 32], strides = [1, 1]} : vector<312x32xf32> to vector<304x32xf32>
    %cst_13 = arith.constant 0.000000e+00 : f32
    %19 = vector.broadcast %cst_13 : f32 to vector<8x32xf32>
    %20 = tpu.concatenate %18, %19 in 0 : vector<304x32xf32>, vector<8x32xf32> -> vector<312x32xf32>
    %21 = arith.maximumf %14, %20 : vector<312x32xf32>
    %22 = arith.maximumf %11, %21 : vector<312x32xf32>
    %cst_14 = arith.constant dense<0.000000e+00> : vector<152x32xf32>
    %23 = tpu.matmul %0, %22, %cst_14 {dimension_numbers = #tpu.dot_dimension_numbers<[1], [0], [0], [1], [0, 0, 1, 1], [], []>, precision = #tpu.contract_precision<fp32>} : vector<152x312xf32>, vector<312x32xf32>, vector<152x32xf32> -> vector<152x32xf32>
    %c0_15 = arith.constant 0 : index
    %c0_16 = arith.constant 0 : index
    %24 = vector.load %arg5[%c0_15, %c0_16] : memref<320x64xbf16, #tpu.memory_space<vmem>>, vector<96x64xbf16>
    %cst_17 = arith.constant 0.000000e+00 : f32
    %25 = vector.broadcast %cst_17 : f32 to vector<8x32xf32>
    %26 = vector.extract_strided_slice %23 {offsets = [0, 0], sizes = [144, 32], strides = [1, 1]} : vector<152x32xf32> to vector<144x32xf32>
    %27 = tpu.concatenate %25, %26 in 0 : vector<8x32xf32>, vector<144x32xf32> -> vector<152x32xf32>
    %28 = vector.extract_strided_slice %23 {offsets = [8, 0], sizes = [144, 32], strides = [1, 1]} : vector<152x32xf32> to vector<144x32xf32>
    %cst_18 = arith.constant 0.000000e+00 : f32
    %29 = vector.broadcast %cst_18 : f32 to vector<8x32xf32>
    %30 = tpu.concatenate %28, %29 in 0 : vector<144x32xf32>, vector<8x32xf32> -> vector<152x32xf32>
    %31 = tpu.concatenate %27, %23, %30 in 1 : vector<152x32xf32>, vector<152x32xf32>, vector<152x32xf32> -> vector<152x96xf32>
    %32 = arith.truncf %31 : vector<152x96xf32> to vector<152x96xbf16>
    %cst_19 = arith.constant dense<0.000000e+00> : vector<152x64xf32>
    %33 = tpu.matmul %32, %24, %cst_19 {dimension_numbers = #tpu.dot_dimension_numbers<[1], [0], [0], [1], [0, 0, 1, 1], [], []>} : vector<152x96xbf16>, vector<96x64xbf16>, vector<152x64xf32> -> vector<152x64xf32>
    %c1 = arith.constant 1 : index
    %c0_20 = arith.constant 0 : index
    %34 = vector.load %arg9[%c1, %c0_20] : memref<9x128xf32, #tpu.memory_space<vmem>>, vector<1x64xf32>
    %35 = vector.broadcast %34 : vector<1x64xf32> to vector<152x64xf32>
    %36 = arith.addf %33, %35 : vector<152x64xf32>
    %cst_21 = arith.constant 0.000000e+00 : f32
    %37 = vector.broadcast %cst_21 : f32 to vector<152x64xf32>
    %38 = arith.maximumf %36, %37 : vector<152x64xf32>
    %c96 = arith.constant 96 : index
    %c0_22 = arith.constant 0 : index
    %39 = vector.load %arg5[%c96, %c0_22] : memref<320x64xbf16, #tpu.memory_space<vmem>>, vector<192x64xbf16>
    %cst_23 = arith.constant 0.000000e+00 : f32
    %40 = vector.broadcast %cst_23 : f32 to vector<8x64xf32>
    %41 = vector.extract_strided_slice %38 {offsets = [0, 0], sizes = [144, 64], strides = [1, 1]} : vector<152x64xf32> to vector<144x64xf32>
    %42 = tpu.concatenate %40, %41 in 0 : vector<8x64xf32>, vector<144x64xf32> -> vector<152x64xf32>
    %43 = vector.extract_strided_slice %38 {offsets = [8, 0], sizes = [144, 64], strides = [1, 1]} : vector<152x64xf32> to vector<144x64xf32>
    %cst_24 = arith.constant 0.000000e+00 : f32
    %44 = vector.broadcast %cst_24 : f32 to vector<8x64xf32>
    %45 = tpu.concatenate %43, %44 in 0 : vector<144x64xf32>, vector<8x64xf32> -> vector<152x64xf32>
    %46 = tpu.concatenate %42, %38, %45 in 1 : vector<152x64xf32>, vector<152x64xf32>, vector<152x64xf32> -> vector<152x192xf32>
    %47 = arith.truncf %46 : vector<152x192xf32> to vector<152x192xbf16>
    %cst_25 = arith.constant dense<0.000000e+00> : vector<152x64xf32>
    %48 = tpu.matmul %47, %39, %cst_25 {dimension_numbers = #tpu.dot_dimension_numbers<[1], [0], [0], [1], [0, 0, 1, 1], [], []>} : vector<152x192xbf16>, vector<192x64xbf16>, vector<152x64xf32> -> vector<152x64xf32>
    %c2 = arith.constant 2 : index
    %c0_26 = arith.constant 0 : index
    %49 = vector.load %arg9[%c2, %c0_26] : memref<9x128xf32, #tpu.memory_space<vmem>>, vector<1x64xf32>
    %50 = vector.broadcast %49 : vector<1x64xf32> to vector<152x64xf32>
    %51 = arith.addf %48, %50 : vector<152x64xf32>
    %c288 = arith.constant 288 : index
    %c0_27 = arith.constant 0 : index
    %52 = vector.load %arg5[%c288, %c0_27] : memref<320x64xbf16, #tpu.memory_space<vmem>>, vector<32x64xbf16>
    %53 = arith.truncf %23 : vector<152x32xf32> to vector<152x32xbf16>
    %cst_28 = arith.constant dense<0.000000e+00> : vector<152x64xf32>
    %54 = tpu.matmul %53, %52, %cst_28 {dimension_numbers = #tpu.dot_dimension_numbers<[1], [0], [0], [1], [0, 0, 1, 1], [], []>} : vector<152x32xbf16>, vector<32x64xbf16>, vector<152x64xf32> -> vector<152x64xf32>
    %c3 = arith.constant 3 : index
    %c0_29 = arith.constant 0 : index
    %55 = vector.load %arg9[%c3, %c0_29] : memref<9x128xf32, #tpu.memory_space<vmem>>, vector<1x64xf32>
    %56 = vector.broadcast %55 : vector<1x64xf32> to vector<152x64xf32>
    %57 = arith.addf %54, %56 : vector<152x64xf32>
    %58 = arith.addf %51, %57 : vector<152x64xf32>
    %cst_30 = arith.constant 0.000000e+00 : f32
    %59 = vector.broadcast %cst_30 : f32 to vector<152x64xf32>
    %60 = arith.maximumf %58, %59 : vector<152x64xf32>
    %c0_31 = arith.constant 0 : index
    %c0_32 = arith.constant 0 : index
    %61 = vector.load %arg6[%c0_31, %c0_32] : memref<640x128xbf16, #tpu.memory_space<vmem>>, vector<192x128xbf16>
    %cst_33 = arith.constant 0.000000e+00 : f32
    %62 = vector.broadcast %cst_33 : f32 to vector<8x64xf32>
    %63 = vector.extract_strided_slice %60 {offsets = [0, 0], sizes = [144, 64], strides = [1, 1]} : vector<152x64xf32> to vector<144x64xf32>
    %64 = tpu.concatenate %62, %63 in 0 : vector<8x64xf32>, vector<144x64xf32> -> vector<152x64xf32>
    %65 = vector.extract_strided_slice %60 {offsets = [8, 0], sizes = [144, 64], strides = [1, 1]} : vector<152x64xf32> to vector<144x64xf32>
    %cst_34 = arith.constant 0.000000e+00 : f32
    %66 = vector.broadcast %cst_34 : f32 to vector<8x64xf32>
    %67 = tpu.concatenate %65, %66 in 0 : vector<144x64xf32>, vector<8x64xf32> -> vector<152x64xf32>
    %68 = tpu.concatenate %64, %60, %67 in 1 : vector<152x64xf32>, vector<152x64xf32>, vector<152x64xf32> -> vector<152x192xf32>
    %69 = arith.truncf %68 : vector<152x192xf32> to vector<152x192xbf16>
    %cst_35 = arith.constant dense<0.000000e+00> : vector<152x128xf32>
    %70 = tpu.matmul %69, %61, %cst_35 {dimension_numbers = #tpu.dot_dimension_numbers<[1], [0], [0], [1], [0, 0, 1, 1], [], []>} : vector<152x192xbf16>, vector<192x128xbf16>, vector<152x128xf32> -> vector<152x128xf32>
    %cst_36 = arith.constant dense<0.000000e+00> : vector<80x128xf32>
    %71 = tpu.matmul %1, %70, %cst_36 {dimension_numbers = #tpu.dot_dimension_numbers<[1], [0], [0], [1], [0, 0, 1, 1], [], []>, precision = #tpu.contract_precision<fp32>} : vector<80x152xf32>, vector<152x128xf32>, vector<80x128xf32> -> vector<80x128xf32>
    %c4 = arith.constant 4 : index
    %c0_37 = arith.constant 0 : index
    %72 = vector.load %arg9[%c4, %c0_37] : memref<9x128xf32, #tpu.memory_space<vmem>>, vector<1x128xf32>
    %73 = vector.broadcast %72 : vector<1x128xf32> to vector<80x128xf32>
    %74 = arith.addf %71, %73 : vector<80x128xf32>
    %cst_38 = arith.constant 0.000000e+00 : f32
    %75 = vector.broadcast %cst_38 : f32 to vector<80x128xf32>
    %76 = arith.maximumf %74, %75 : vector<80x128xf32>
    %c192 = arith.constant 192 : index
    %c0_39 = arith.constant 0 : index
    %77 = vector.load %arg6[%c192, %c0_39] : memref<640x128xbf16, #tpu.memory_space<vmem>>, vector<384x128xbf16>
    %cst_40 = arith.constant 0.000000e+00 : f32
    %78 = vector.broadcast %cst_40 : f32 to vector<8x128xf32>
    %79 = vector.extract_strided_slice %76 {offsets = [0, 0], sizes = [72, 128], strides = [1, 1]} : vector<80x128xf32> to vector<72x128xf32>
    %80 = tpu.concatenate %78, %79 in 0 : vector<8x128xf32>, vector<72x128xf32> -> vector<80x128xf32>
    %81 = vector.extract_strided_slice %76 {offsets = [8, 0], sizes = [72, 128], strides = [1, 1]} : vector<80x128xf32> to vector<72x128xf32>
    %cst_41 = arith.constant 0.000000e+00 : f32
    %82 = vector.broadcast %cst_41 : f32 to vector<8x128xf32>
    %83 = tpu.concatenate %81, %82 in 0 : vector<72x128xf32>, vector<8x128xf32> -> vector<80x128xf32>
    %84 = tpu.concatenate %80, %76, %83 in 1 : vector<80x128xf32>, vector<80x128xf32>, vector<80x128xf32> -> vector<80x384xf32>
    %85 = arith.truncf %84 : vector<80x384xf32> to vector<80x384xbf16>
    %cst_42 = arith.constant dense<0.000000e+00> : vector<80x128xf32>
    %86 = tpu.matmul %85, %77, %cst_42 {dimension_numbers = #tpu.dot_dimension_numbers<[1], [0], [0], [1], [0, 0, 1, 1], [], []>} : vector<80x384xbf16>, vector<384x128xbf16>, vector<80x128xf32> -> vector<80x128xf32>
    %c5 = arith.constant 5 : index
    %c0_43 = arith.constant 0 : index
    %87 = vector.load %arg9[%c5, %c0_43] : memref<9x128xf32, #tpu.memory_space<vmem>>, vector<1x128xf32>
    %88 = vector.broadcast %87 : vector<1x128xf32> to vector<80x128xf32>
    %89 = arith.addf %86, %88 : vector<80x128xf32>
    %cst_44 = arith.constant dense<0.000000e+00> : vector<80x64xf32>
    %90 = tpu.matmul %1, %60, %cst_44 {dimension_numbers = #tpu.dot_dimension_numbers<[1], [0], [0], [1], [0, 0, 1, 1], [], []>, precision = #tpu.contract_precision<fp32>} : vector<80x152xf32>, vector<152x64xf32>, vector<80x64xf32> -> vector<80x64xf32>
    %c576 = arith.constant 576 : index
    %c0_45 = arith.constant 0 : index
    %91 = vector.load %arg6[%c576, %c0_45] : memref<640x128xbf16, #tpu.memory_space<vmem>>, vector<64x128xbf16>
    %92 = arith.truncf %90 : vector<80x64xf32> to vector<80x64xbf16>
    %cst_46 = arith.constant dense<0.000000e+00> : vector<80x128xf32>
    %93 = tpu.matmul %92, %91, %cst_46 {dimension_numbers = #tpu.dot_dimension_numbers<[1], [0], [0], [1], [0, 0, 1, 1], [], []>} : vector<80x64xbf16>, vector<64x128xbf16>, vector<80x128xf32> -> vector<80x128xf32>
    %c6 = arith.constant 6 : index
    %c0_47 = arith.constant 0 : index
    %94 = vector.load %arg9[%c6, %c0_47] : memref<9x128xf32, #tpu.memory_space<vmem>>, vector<1x128xf32>
    %95 = vector.broadcast %94 : vector<1x128xf32> to vector<80x128xf32>
    %96 = arith.addf %93, %95 : vector<80x128xf32>
    %97 = arith.addf %89, %96 : vector<80x128xf32>
    %cst_48 = arith.constant 0.000000e+00 : f32
    %98 = vector.broadcast %cst_48 : f32 to vector<80x128xf32>
    %99 = arith.maximumf %97, %98 : vector<80x128xf32>
    %100 = vector.extract_strided_slice %99 {offsets = [0, 0], sizes = [8, 128], strides = [1, 1]} : vector<80x128xf32> to vector<8x128xf32>
    %101 = vector.extract_strided_slice %99 {offsets = [8, 0], sizes = [8, 128], strides = [1, 1]} : vector<80x128xf32> to vector<8x128xf32>
    %102 = vector.extract_strided_slice %99 {offsets = [16, 0], sizes = [8, 128], strides = [1, 1]} : vector<80x128xf32> to vector<8x128xf32>
    %103 = vector.extract_strided_slice %99 {offsets = [24, 0], sizes = [8, 128], strides = [1, 1]} : vector<80x128xf32> to vector<8x128xf32>
    %104 = vector.extract_strided_slice %99 {offsets = [32, 0], sizes = [8, 128], strides = [1, 1]} : vector<80x128xf32> to vector<8x128xf32>
    %105 = vector.extract_strided_slice %99 {offsets = [40, 0], sizes = [8, 128], strides = [1, 1]} : vector<80x128xf32> to vector<8x128xf32>
    %106 = vector.extract_strided_slice %99 {offsets = [48, 0], sizes = [8, 128], strides = [1, 1]} : vector<80x128xf32> to vector<8x128xf32>
    %107 = vector.extract_strided_slice %99 {offsets = [56, 0], sizes = [8, 128], strides = [1, 1]} : vector<80x128xf32> to vector<8x128xf32>
    %108 = vector.extract_strided_slice %99 {offsets = [64, 0], sizes = [8, 128], strides = [1, 1]} : vector<80x128xf32> to vector<8x128xf32>
    %109 = vector.extract_strided_slice %99 {offsets = [72, 0], sizes = [8, 128], strides = [1, 1]} : vector<80x128xf32> to vector<8x128xf32>
    %110 = tpu.concatenate %100, %101, %102, %103, %104, %105, %106, %107, %108, %109 in 1 : vector<8x128xf32>, vector<8x128xf32>, vector<8x128xf32>, vector<8x128xf32>, vector<8x128xf32>, vector<8x128xf32>, vector<8x128xf32>, vector<8x128xf32>, vector<8x128xf32>, vector<8x128xf32> -> vector<8x1280xf32>
    %c0_49 = arith.constant 0 : index
    %c0_50 = arith.constant 0 : index
    %111 = vector.load %arg7[%c0_49, %c0_50] : memref<1280x128xbf16, #tpu.memory_space<vmem>>, vector<1280x128xbf16>
    %112 = arith.truncf %110 : vector<8x1280xf32> to vector<8x1280xbf16>
    %cst_51 = arith.constant dense<0.000000e+00> : vector<8x128xf32>
    %113 = tpu.matmul %112, %111, %cst_51 {dimension_numbers = #tpu.dot_dimension_numbers<[1], [0], [0], [1], [0, 0, 1, 1], [], []>} : vector<8x1280xbf16>, vector<1280x128xbf16>, vector<8x128xf32> -> vector<8x128xf32>
    %c7 = arith.constant 7 : index
    %c0_52 = arith.constant 0 : index
    %114 = vector.load %arg9[%c7, %c0_52] : memref<9x128xf32, #tpu.memory_space<vmem>>, vector<1x128xf32>
    %115 = vector.broadcast %114 : vector<1x128xf32> to vector<8x128xf32>
    %116 = arith.addf %113, %115 : vector<8x128xf32>
    %cst_53 = arith.constant 0.000000e+00 : f32
    %117 = vector.broadcast %cst_53 : f32 to vector<8x128xf32>
    %118 = arith.maximumf %116, %117 : vector<8x128xf32>
    %c0_54 = arith.constant 0 : index
    %c0_55 = arith.constant 0 : index
    %119 = vector.load %arg8[%c0_54, %c0_55] : memref<128x128xbf16, #tpu.memory_space<vmem>>, vector<128x128xbf16>
    %120 = arith.truncf %118 : vector<8x128xf32> to vector<8x128xbf16>
    %cst_56 = arith.constant dense<0.000000e+00> : vector<8x128xf32>
    %121 = tpu.matmul %120, %119, %cst_56 {dimension_numbers = #tpu.dot_dimension_numbers<[1], [0], [0], [1], [0, 0, 1, 1], [], []>} : vector<8x128xbf16>, vector<128x128xbf16>, vector<8x128xf32> -> vector<8x128xf32>
    %c8 = arith.constant 8 : index
    %c0_57 = arith.constant 0 : index
    %122 = vector.load %arg9[%c8, %c0_57] : memref<9x128xf32, #tpu.memory_space<vmem>>, vector<1x128xf32>
    %123 = vector.broadcast %122 : vector<1x128xf32> to vector<8x128xf32>
    %124 = arith.addf %121, %123 : vector<8x128xf32>
    %c0_58 = arith.constant 0 : index
    %c0_59 = arith.constant 0 : index
    %c0_60 = arith.constant 0 : index
    %125 = vector.load %arg10[%c0_58, %c0_59, %c0_60] : memref<1x8x128xf32, #tpu.memory_space<vmem>>, vector<1x8x128xf32>
    %126 = vector.shape_cast %125 : vector<1x8x128xf32> to vector<8x128xf32>
    %127 = vector.shape_cast %124 : vector<8x128xf32> to vector<1x8x128xf32>
    tpu.vector_store %arg10[%c0_58, %c0_59, %c0_60], %127 {strides = array<i32>} : memref<1x8x128xf32, #tpu.memory_space<vmem>>, vector<1x8x128xf32>,
    return
  }
  func.func @transform_0(%arg0: i32) -> (i32, i32, i32) {
    %c0_i32 = arith.constant 0 : i32
    %c0_i32_0 = arith.constant 0 : i32
    %c0_i32_1 = arith.constant 0 : i32
    return %arg0, %c0_i32, %c0_i32_0 : i32, i32, i32
  }
  func.func @transform_1(%arg0: i32) -> (i32, i32) {
    %c0_i32 = arith.constant 0 : i32
    %c0_i32_0 = arith.constant 0 : i32
    %c0_i32_1 = arith.constant 0 : i32
    return %c0_i32, %c0_i32_0 : i32, i32
  }
  func.func @transform_2(%arg0: i32) -> (i32, i32) {
    %c0_i32 = arith.constant 0 : i32
    %c0_i32_0 = arith.constant 0 : i32
    %c0_i32_1 = arith.constant 0 : i32
    return %c0_i32, %c0_i32_0 : i32, i32
  }
  func.func @transform_3(%arg0: i32) -> (i32, i32) {
    %c0_i32 = arith.constant 0 : i32
    %c0_i32_0 = arith.constant 0 : i32
    %c0_i32_1 = arith.constant 0 : i32
    return %c0_i32, %c0_i32_0 : i32, i32
  }
  func.func @transform_4(%arg0: i32) -> (i32, i32) {
    %c0_i32 = arith.constant 0 : i32
    %c0_i32_0 = arith.constant 0 : i32
    %c0_i32_1 = arith.constant 0 : i32
    return %c0_i32, %c0_i32_0 : i32, i32
  }
  func.func @transform_5(%arg0: i32) -> (i32, i32) {
    %c0_i32 = arith.constant 0 : i32
    %c0_i32_0 = arith.constant 0 : i32
    %c0_i32_1 = arith.constant 0 : i32
    return %c0_i32, %c0_i32_0 : i32, i32
  }
  func.func @transform_6(%arg0: i32) -> (i32, i32) {
    %c0_i32 = arith.constant 0 : i32
    %c0_i32_0 = arith.constant 0 : i32
    %c0_i32_1 = arith.constant 0 : i32
    return %c0_i32, %c0_i32_0 : i32, i32
  }
  func.func @transform_7(%arg0: i32) -> (i32, i32) {
    %c0_i32 = arith.constant 0 : i32
    %c0_i32_0 = arith.constant 0 : i32
    %c0_i32_1 = arith.constant 0 : i32
    return %c0_i32, %c0_i32_0 : i32, i32
  }
  func.func @transform_8(%arg0: i32) -> (i32, i32) {
    %c0_i32 = arith.constant 0 : i32
    %c0_i32_0 = arith.constant 0 : i32
    %c0_i32_1 = arith.constant 0 : i32
    return %c0_i32, %c0_i32_0 : i32, i32
  }
  func.func @transform_9(%arg0: i32) -> (i32, i32, i32) {
    %c0_i32 = arith.constant 0 : i32
    %c0_i32_0 = arith.constant 0 : i32
    %c0_i32_1 = arith.constant 0 : i32
    return %arg0, %c0_i32, %c0_i32_0 : i32, i32, i32
  }
}

</mosaic_0001>

<llo_original>
// kernel: amcnet1d_forward.1
$region0: #{amcnet1d_forward.1}
  #allocation0 [shape = 'u32[]', space=smem, size = 0x4, offset = 0x4, fixed_abs, tag = 'smem constant byte address 0x4 - core index']
  #allocation1 [shape = 'u32[72,128]{1,0:T(1,128)}', space=vmem, size = 0x9000, scoped, tag = 'internal scratch']
  %s0 = inlined_call_operand.vmem [shape: f32[2,312,11], index: 0, kind: input, shape index: {}]
  %s1 = inlined_call_operand.vmem [shape: f32[152,312], index: 1, kind: input, shape index: {}]
  %s2 = inlined_call_operand.vmem [shape: f32[80,152], index: 2, kind: input, shape index: {}]
  %s3 = inlined_call_operand.vmem [shape: bf16[11,32], index: 3, kind: input, shape index: {}]
  %s4 = inlined_call_operand.vmem [shape: bf16[320,64], index: 4, kind: input, shape index: {}]
  %s5 = inlined_call_operand.vmem [shape: bf16[640,128], index: 5, kind: input, shape index: {}]
  %s6 = inlined_call_operand.vmem [shape: bf16[1280,128], index: 6, kind: input, shape index: {}]
  %s7 = inlined_call_operand.vmem [shape: bf16[128,128], index: 7, kind: input, shape index: {}]
  %s8 = inlined_call_operand.vmem [shape: f32[9,128], index: 8, kind: input, shape index: {}]
  %s9 = inlined_call_operand.hbm [shape: f32[2,8,128], index: 9, kind: output, shape index: {}]
  %s10 = sld [smem:[#allocation0]]
  $region69: #{amcnet1d_forward.1} parent=0
    _
  %s12 = ssub.s32 1, %s10
  %s13 = scalar_select 0, %s12, %s10
  $region1: #{amcnet1d_forward.1} parent=0
    #allocation2 [shape = 'u8[8192]{0}', space=vmem, size = 0x2000, scoped, tag = 'output window, operand 0']
    #allocation3 [shape = 's32[2]{0}', space=sflag, size = 0x8, scoped, tag = 'scoped memory for amcnet1d_forward.1']
    %14 = vsyncpa [#allocation3], 0
    %s15 = scalar_lea.sflag [#allocation3], 1
    %16 = vsyncpa %s15, 0
    loop: start=0, step=1, limit=4
    $region2: #{amcnet1d_forward.1} parent=1 // loop_pre_header
      _
    $region3: #{amcnet1d_forward.1} parent=1 // loop_header
      %s18 = sphi 0, %s22
      %p19 = scmp.ge.s32.totalorder %s18, 4
      %s28 = sphi 0, %s30
      %s31 = sphi 0, %s28
      %s32 = sphi 0, %s31
      %s48 = sphi 0, %s32
      %s52 = sphi 0, %s52
      %s54 = sphi 0, %s52
      %s55 = sphi 0, %s54
      %s69 = sphi 0, %s55
      %s73 = sphi 0, %s73
      %s75 = sphi 0, %s73
      %s76 = sphi 0, %s75
      %s90 = sphi 0, %s76
      %s94 = sphi 0, %s94
      %s96 = sphi 0, %s94
      %s97 = sphi 0, %s96
      %s111 = sphi 0, %s97
      %s115 = sphi 0, %s115
      %s117 = sphi 0, %s115
      %s118 = sphi 0, %s117
      %s132 = sphi 0, %s118
      %s136 = sphi 0, %s136
      %s138 = sphi 0, %s136
      %s139 = sphi 0, %s138
      %s153 = sphi 0, %s139
      %s157 = sphi 0, %s157
      %s159 = sphi 0, %s157
      %s160 = sphi 0, %s159
      %s174 = sphi 0, %s160
      %s178 = sphi 0, %s178
      %s180 = sphi 0, %s178
      %s181 = sphi 0, %s180
      %s195 = sphi 0, %s181
      %s199 = sphi 0, %s199
      %s201 = sphi 0, %s199
      %s202 = sphi 0, %s201
      %s216 = sphi 0, %s202
      %s222 = sphi 0, %s224
      %s225 = sphi 0, %s222
      %s226 = sphi 0, %s225
      %s242 = sphi 0, %s226
    $region4: #{amcnet1d_forward.1} parent=1 // loop_header_branch
      %21 = sbr.rel (%p19) target = $region8
    $region5: #{amcnet1d_forward.1} parent=1 // loop_body
      %s23 = ssub.s32 %s18, 1
      %s24 = ssub.s32 %s18, 2
      %s25 = sadd.s32 %s18, 1
      %s26 = ssub.s32 %s18, %s25
      %p27 = scmp.eq.s32.totalorder %s26, 0
      %s29 = sadd.s32 %s28, 1
      %s30 = scalar_select %p27, %s28, %s29
      %p33 = pneg %p27
      %p34 = scmp.eq.s32.totalorder %s18, 1
      %p35 = por %p33, %p34
      %p36 = scmp.ne.s32.totalorder %s28, %s31
      %p37 = scmp.eq.s32.totalorder %s18, 0
      %p38 = por %p36, %p37
      %p39 = scmp.ne.s32.totalorder %s28, %s31
      %p40 = scmp.eq.s32.totalorder %s23, 1
      %p41 = por %p39, %p40
      %p42 = scmp.ne.s32.totalorder %s31, %s32
      %p43 = scmp.eq.s32.totalorder %s23, 0
      %p44 = por %p42, %p43
      %p45 = scmp.ne.s32.totalorder %s31, %s32
      %p46 = scmp.eq.s32.totalorder %s24, 1
      %p47 = por %p45, %p46
      %p49 = scmp.ne.s32.totalorder %s32, %s48
      %p50 = scmp.eq.s32.totalorder %s24, 0
      %p51 = por %p49, %p50
      %s53 = sadd.s32 %s52, 1
      %p56 = scmp.eq.s32.totalorder %s18, 1
      %p57 = scmp.ne.s32.totalorder %s52, %s54
      %p58 = scmp.eq.s32.totalorder %s18, 0
      %p59 = por %p57, %p58
      %p60 = scmp.ne.s32.totalorder %s52, %s54
      %p61 = scmp.eq.s32.totalorder %s23, 1
      %p62 = por %p60, %p61
      %p63 = scmp.ne.s32.totalorder %s54, %s55
      %p64 = scmp.eq.s32.totalorder %s23, 0
      %p65 = por %p63, %p64
      %p66 = scmp.ne.s32.totalorder %s54, %s55
      %p67 = scmp.eq.s32.totalorder %s24, 1
      %p68 = por %p66, %p67
      %p70 = scmp.ne.s32.totalorder %s55, %s69
      %p71 = scmp.eq.s32.totalorder %s24, 0
      %p72 = por %p70, %p71
      %s74 = sadd.s32 %s73, 1
      %p77 = scmp.eq.s32.totalorder %s18, 1
      %p78 = scmp.ne.s32.totalorder %s73, %s75
      %p79 = scmp.eq.s32.totalorder %s18, 0
      %p80 = por %p78, %p79
      %p81 = scmp.ne.s32.totalorder %s73, %s75
      %p82 = scmp.eq.s32.totalorder %s23, 1
      %p83 = por %p81, %p82
      %p84 = scmp.ne.s32.totalorder %s75, %s76
      %p85 = scmp.eq.s32.totalorder %s23, 0
      %p86 = por %p84, %p85
      %p87 = scmp.ne.s32.totalorder %s75, %s76
      %p88 = scmp.eq.s32.totalorder %s24, 1
      %p89 = por %p87, %p88
      %p91 = scmp.ne.s32.totalorder %s76, %s90
      %p92 = scmp.eq.s32.totalorder %s24, 0
      %p93 = por %p91, %p92
      %s95 = sadd.s32 %s94, 1
      %p98 = scmp.eq.s32.totalorder %s18, 1
      %p99 = scmp.ne.s32.totalorder %s94, %s96
      %p100 = scmp.eq.s32.totalorder %s18, 0
      %p101 = por %p99, %p100
      %p102 = scmp.ne.s32.totalorder %s94, %s96
      %p103 = scmp.eq.s32.totalorder %s23, 1
      %p104 = por %p102, %p103
      %p105 = scmp.ne.s32.totalorder %s96, %s97
      %p106 = scmp.eq.s32.totalorder %s23, 0
      %p107 = por %p105, %p106
      %p108 = scmp.ne.s32.totalorder %s96, %s97
      %p109 = scmp.eq.s32.totalorder %s24, 1
      %p110 = por %p108, %p109
      %p112 = scmp.ne.s32.totalorder %s97, %s111
      %p113 = scmp.eq.s32.totalorder %s24, 0
      %p114 = por %p112, %p113
      %s116 = sadd.s32 %s115, 1
      %p119 = scmp.eq.s32.totalorder %s18, 1
      %p120 = scmp.ne.s32.totalorder %s115, %s117
      %p121 = scmp.eq.s32.totalorder %s18, 0
      %p122 = por %p120, %p121
      %p123 = scmp.ne.s32.totalorder %s115, %s117
      %p124 = scmp.eq.s32.totalorder %s23, 1
      %p125 = por %p123, %p124
      %p126 = scmp.ne.s32.totalorder %s117, %s118
      %p127 = scmp.eq.s32.totalorder %s23, 0
      %p128 = por %p126, %p127
      %p129 = scmp.ne.s32.totalorder %s117, %s118
      %p130 = scmp.eq.s32.totalorder %s24, 1
      %p131 = por %p129, %p130
      %p133 = scmp.ne.s32.totalorder %s118, %s132
      %p134 = scmp.eq.s32.totalorder %s24, 0
      %p135 = por %p133, %p134
      %s137 = sadd.s32 %s136, 1
      %p140 = scmp.eq.s32.totalorder %s18, 1
      %p141 = scmp.ne.s32.totalorder %s136, %s138
      %p142 = scmp.eq.s32.totalorder %s18, 0
      %p143 = por %p141, %p142
      %p144 = scmp.ne.s32.totalorder %s136, %s138
      %p145 = scmp.eq.s32.totalorder %s23, 1
      %p146 = por %p144, %p145
      %p147 = scmp.ne.s32.totalorder %s138, %s139
      %p148 = scmp.eq.s32.totalorder %s23, 0
      %p149 = por %p147, %p148
      %p150 = scmp.ne.s32.totalorder %s138, %s139
      %p151 = scmp.eq.s32.totalorder %s24, 1
      %p152 = por %p150, %p151
      %p154 = scmp.ne.s32.totalorder %s139, %s153
      %p155 = scmp.eq.s32.totalorder %s24, 0
      %p156 = por %p154, %p155
      %s158 = sadd.s32 %s157, 1
      %p161 = scmp.eq.s32.totalorder %s18, 1
      %p162 = scmp.ne.s32.totalorder %s157, %s159
      %p163 = scmp.eq.s32.totalorder %s18, 0
      %p164 = por %p162, %p163
      %p165 = scmp.ne.s32.totalorder %s157, %s159
      %p166 = scmp.eq.s32.totalorder %s23, 1
      %p167 = por %p165, %p166
      %p168 = scmp.ne.s32.totalorder %s159, %s160
      %p169 = scmp.eq.s32.totalorder %s23, 0
      %p170 = por %p168, %p169
      %p171 = scmp.ne.s32.totalorder %s159, %s160
      %p172 = scmp.eq.s32.totalorder %s24, 1
      %p173 = por %p171, %p172
      %p175 = scmp.ne.s32.totalorder %s160, %s174
      %p176 = scmp.eq.s32.totalorder %s24, 0
      %p177 = por %p175, %p176
      %s179 = sadd.s32 %s178, 1
      %p182 = scmp.eq.s32.totalorder %s18, 1
      %p183 = scmp.ne.s32.totalorder %s178, %s180
      %p184 = scmp.eq.s32.totalorder %s18, 0
      %p185 = por %p183, %p184
      %p186 = scmp.ne.s32.totalorder %s178, %s180
      %p187 = scmp.eq.s32.totalorder %s23, 1
      %p188 = por %p186, %p187
      %p189 = scmp.ne.s32.totalorder %s180, %s181
      %p190 = scmp.eq.s32.totalorder %s23, 0
      %p191 = por %p189, %p190
      %p192 = scmp.ne.s32.totalorder %s180, %s181
      %p193 = scmp.eq.s32.totalorder %s24, 1
      %p194 = por %p192, %p193
      %p196 = scmp.ne.s32.totalorder %s181, %s195
      %p197 = scmp.eq.s32.totalorder %s24, 0
      %p198 = por %p196, %p197
      %s200 = sadd.s32 %s199, 1
      %p203 = scmp.eq.s32.totalorder %s18, 1
      %p204 = scmp.ne.s32.totalorder %s199, %s201
      %p205 = scmp.eq.s32.totalorder %s18, 0
      %p206 = por %p204, %p205
      %p207 = scmp.ne.s32.totalorder %s199, %s201
      %p208 = scmp.eq.s32.totalorder %s23, 1
      %p209 = por %p207, %p208
      %p210 = scmp.ne.s32.totalorder %s201, %s202
      %p211 = scmp.eq.s32.totalorder %s23, 0
      %p212 = por %p210, %p211
      %p213 = scmp.ne.s32.totalorder %s201, %s202
      %p214 = scmp.eq.s32.totalorder %s24, 1
      %p215 = por %p213, %p214
      %p217 = scmp.ne.s32.totalorder %s202, %s216
      %p218 = scmp.eq.s32.totalorder %s24, 0
      %p219 = por %p217, %p218
      %s220 = ssub.s32 %s18, %s25
      %p221 = scmp.eq.s32.totalorder %s220, 0
      %s223 = sadd.s32 %s222, 1
      %s224 = scalar_select %p221, %s222, %s223
      %p227 = pneg %p221
      %p228 = scmp.eq.s32.totalorder %s18, 1
      %p229 = por %p227, %p228
      %p230 = scmp.ne.s32.totalorder %s222, %s225
      %p231 = scmp.eq.s32.totalorder %s18, 0
      %p232 = por %p230, %p231
      %p233 = scmp.ne.s32.totalorder %s222, %s225
      %p234 = scmp.eq.s32.totalorder %s23, 1
      %p235 = por %p233, %p234
      %p236 = scmp.ne.s32.totalorder %s225, %s226
      %p237 = scmp.eq.s32.totalorder %s23, 0
      %p238 = por %p236, %p237
      %p239 = scmp.ne.s32.totalorder %s225, %s226
      %p240 = scmp.eq.s32.totalorder %s24, 1
      %p241 = por %p239, %p240
      %p243 = scmp.ne.s32.totalorder %s226, %s242
      %p244 = scmp.eq.s32.totalorder %s24, 0
      %p245 = por %p243, %p244
      %p246 = scmp.le.s32.totalorder 1, %s18
      %p247 = scmp.lt.s32.totalorder %s18, 3
      %p248 = pnand %p246, %p247
      %p249 = pneg %p248
      // Predicated region
      $region9: #{amcnet1d_forward.1} parent=5 // pred_check
        _
      $region10: #{amcnet1d_forward.1} parent=5 // pred_check_branch
        %251 = sbr.rel (%p248) target = $region12
      $region11: #{amcnet1d_forward.1} parent=5 // pred_region
        %s252 = ssub.s32 %s18, 1
        // Predicated region
        $region13: #{amcnet1d_forward.1} parent=11 // pred_check
          %p253 = pneg %p65
        $region14: #{amcnet1d_forward.1} parent=11 // pred_check_branch
          %255 = sbr.rel (%p253) target = $region16
        $region15: #{amcnet1d_forward.1} parent=11 // pred_region
          _
        $region16: #{amcnet1d_forward.1} parent=11 // pred_fallthru
          _
        // Predicated region
        $region17: #{amcnet1d_forward.1} parent=11 // pred_check
          %p256 = pneg %p86
        $region18: #{amcnet1d_forward.1} parent=11 // pred_check_branch
          %258 = sbr.rel (%p256) target = $region20
        $region19: #{amcnet1d_forward.1} parent=11 // pred_region
          _
        $region20: #{amcnet1d_forward.1} parent=11 // pred_fallthru
          _
        // Predicated region
        $region21: #{amcnet1d_forward.1} parent=11 // pred_check
          %p259 = pneg %p107
        $region22: #{amcnet1d_forward.1} parent=11 // pred_check_branch
          %261 = sbr.rel (%p259) target = $region24
        $region23: #{amcnet1d_forward.1} parent=11 // pred_region
          _
        $region24: #{amcnet1d_forward.1} parent=11 // pred_fallthru
          _
        // Predicated region
        $region25: #{amcnet1d_forward.1} parent=11 // pred_check
          %p262 = pneg %p128
        $region26: #{amcnet1d_forward.1} parent=11 // pred_check_branch
          %264 = sbr.rel (%p262) target = $region28
        $region27: #{amcnet1d_forward.1} parent=11 // pred_region
          _
        $region28: #{amcnet1d_forward.1} parent=11 // pred_fallthru
          _
        // Predicated region
        $region29: #{amcnet1d_forward.1} parent=11 // pred_check
          %p265 = pneg %p149
        $region30: #{amcnet1d_forward.1} parent=11 // pred_check_branch
          %267 = sbr.rel (%p265) target = $region32
        $region31: #{amcnet1d_forward.1} parent=11 // pred_region
          _
        $region32: #{amcnet1d_forward.1} parent=11 // pred_fallthru
          _
        // Predicated region
        $region33: #{amcnet1d_forward.1} parent=11 // pred_check
          %p268 = pneg %p170
        $region34: #{amcnet1d_forward.1} parent=11 // pred_check_branch
          %270 = sbr.rel (%p268) target = $region36
        $region35: #{amcnet1d_forward.1} parent=11 // pred_region
          _
        $region36: #{amcnet1d_forward.1} parent=11 // pred_fallthru
          _
        // Predicated region
        $region37: #{amcnet1d_forward.1} parent=11 // pred_check
          %p271 = pneg %p191
        $region38: #{amcnet1d_forward.1} parent=11 // pred_check_branch
          %273 = sbr.rel (%p271) target = $region40
        $region39: #{amcnet1d_forward.1} parent=11 // pred_region
          _
        $region40: #{amcnet1d_forward.1} parent=11 // pred_fallthru
          _
        // Predicated region
        $region41: #{amcnet1d_forward.1} parent=11 // pred_check
          %p274 = pneg %p212
        $region42: #{amcnet1d_forward.1} parent=11 // pred_check_branch
          %276 = sbr.rel (%p274) target = $region44
        $region43: #{amcnet1d_forward.1} parent=11 // pred_region
          _
        $region44: #{amcnet1d_forward.1} parent=11 // pred_fallthru
          _
      $region12: #{amcnet1d_forward.1} parent=5 // pred_fallthru
        _
      %p277 = scmp.lt.s32.totalorder %s18, 2
      // Predicated region
      $region45: #{amcnet1d_forward.1} parent=5 // pred_check
        %p278 = pneg %p277
      $region46: #{amcnet1d_forward.1} parent=5 // pred_check_branch
        %280 = sbr.rel (%p278) target = $region48
      $region47: #{amcnet1d_forward.1} parent=5 // pred_region
        // Predicated region
        $region49: #{amcnet1d_forward.1} parent=47 // pred_check
          %p281 = pneg %p38
        $region50: #{amcnet1d_forward.1} parent=47 // pred_check_branch
          %283 = sbr.rel (%p281) target = $region52
        $region51: #{amcnet1d_forward.1} parent=47 // pred_region
          %p284 = scmp.lt.s32.totalorder %s18, 1
          %s285 = scalar_select %p284, %s18, 1
          %s286 = smul.addr %s285, 39
          %s287 = smul.addr %s286, 8
          %s288 = scalar_lea.vmem %s0, %s287
        $region52: #{amcnet1d_forward.1} parent=47 // pred_fallthru
          _
      $region48: #{amcnet1d_forward.1} parent=5 // pred_fallthru
        _
      %p289 = scmp.le.s32.totalorder 1, %s18
      %p290 = scmp.lt.s32.totalorder %s18, 3
      %p291 = pnand %p289, %p290
      %p292 = pneg %p291
      // Predicated region
      $region53: #{amcnet1d_forward.1} parent=5 // pred_check
        _
      $region54: #{amcnet1d_forward.1} parent=5 // pred_check_branch
        %294 = sbr.rel (%p291) target = $region56
      $region55: #{amcnet1d_forward.1} parent=5 // pred_region
        %s295 = ssub.s32 %s18, 1
        %p296 = scmp.lt.s32.totalorder %s23, 1
        %s297 = scalar_select %p296, %s23, 1
        %s298 = smul.addr %s297, 39
        %s299 = smul.addr %s298, 8
        %s300 = scalar_lea.vmem %s0, %s299
        %p301 = pneg %p44
        %p302 = pneg %p41
        %p303 = pneg %p65
        %p304 = pneg %p62
        %p305 = pneg %p86
        %p306 = pneg %p83
        %p307 = pneg %p107
        %p308 = pneg %p104
        %p309 = pneg %p128
        %p310 = pneg %p125
        %p311 = pneg %p149
        %p312 = pneg %p146
        %p313 = pneg %p170
        %p314 = pneg %p167
        %p315 = pneg %p191
        %p316 = pneg %p188
        %p317 = pneg %p212
        %p318 = pneg %p209
        %p319 = pneg %p238
        %p320 = pneg %p235
        %s321 = sand.u32 %s225, 1
        %s322 = scalar_lea.sflag [#allocation3], %s321
        %s323 = sand.u32 %s225, 1
        %s324 = smul.addr %s323, 8
        %s325 = scalar_lea.vmem [#allocation2], %s324
        %p326 = scmp.lt.s32.totalorder %s23, 1
        %s327 = scalar_select %p326, %s23, 1
        %s328 = smul.addr %s327, 39
        %s329 = smul.addr %s328, 8
        %s330 = scalar_lea.vmem %s0, %s329
        %v332 = vld [vmem:[%s1] sm:$0xff]
        %v333 = vld [vmem:[%s1 + $0x8] sm:$0xff]
        %v334 = vld [vmem:[%s1 + $0x10] sm:$0xff]
        %v335 = vld [vmem:[%s1 + $0x18] sm:$0xff]
        %v336 = vld [vmem:[%s1 + $0x20] sm:$0xff]
        %v337 = vld [vmem:[%s1 + $0x28] sm:$0xff]
        %v338 = vld [vmem:[%s1 + $0x30] sm:$0xff]
        %v339 = vld [vmem:[%s1 + $0x38] sm:$0xff]
        %v340 = vld [vmem:[%s1 + $0x40] sm:$0xff]
        %v341 = vld [vmem:[%s1 + $0x48] sm:$0xff]
        %v342 = vld [vmem:[%s1 + $0x50] sm:$0xff]
        %v343 = vld [vmem:[%s1 + $0x58] sm:$0xff]
        %v344 = vld [vmem:[%s1 + $0x60] sm:$0xff]
        %v345 = vld [vmem:[%s1 + $0x68] sm:$0xff]
        %v346 = vld [vmem:[%s1 + $0x70] sm:$0xff]
        %v347 = vld [vmem:[%s1 + $0x78] sm:$0xff]
        %v348 = vld [vmem:[%s1 + $0x80] sm:$0xff]
        %v349 = vld [vmem:[%s1 + $0x88] sm:$0xff]
        %v350 = vld [vmem:[%s1 + $0x90] sm:$0xff]
        %v351 = vld [vmem:[%s1 + $0x98] sm:$0xff]
        %v352 = vld [vmem:[%s1 + $0xa0] sm:$0xff]
        %v353 = vld [vmem:[%s1 + $0xa8] sm:$0xff]
        %v354 = vld [vmem:[%s1 + $0xb0] sm:$0xff]
        %v355 = vld [vmem:[%s1 + $0xb8] sm:$0xff]
        %v356 = vld [vmem:[%s1 + $0xc0] sm:$0xff]
        %v357 = vld [vmem:[%s1 + $0xc8] sm:$0xff]
        %v358 = vld [vmem:[%s1 + $0xd0] sm:$0xff]
        %v359 = vld [vmem:[%s1 + $0xd8] sm:$0xff]
        %v360 = vld [vmem:[%s1 + $0xe0] sm:$0xff]
        %v361 = vld [vmem:[%s1 + $0xe8] sm:$0xff]
        %v362 = vld [vmem:[%s1 + $0xf0] sm:$0xff]
        %v363 = vld [vmem:[%s1 + $0xf8] sm:$0xff]
        %v364 = vld [vmem:[%s1 + $0x100] sm:$0xff]
        %v365 = vld [vmem:[%s1 + $0x108] sm:$0xff]
        %v366 = vld [vmem:[%s1 + $0x110] sm:$0xff]
        %v367 = vld [vmem:[%s1 + $0x118] sm:$0xff]
        %v368 = vld [vmem:[%s1 + $0x120] sm:$0xff]
        %v369 = vld [vmem:[%s1 + $0x128] sm:$0xff]
        %v370 = vld [vmem:[%s1 + $0x130] sm:$0xff]
        %v371 = vld [vmem:[%s1 + $0x138] sm:$0xff]
        %v372 = vld [vmem:[%s1 + $0x140] sm:$0xff]
        %v373 = vld [vmem:[%s1 + $0x148] sm:$0xff]
        %v374 = vld [vmem:[%s1 + $0x150] sm:$0xff]
        %v375 = vld [vmem:[%s1 + $0x158] sm:$0xff]
        %v376 = vld [vmem:[%s1 + $0x160] sm:$0xff]
        %v377 = vld [vmem:[%s1 + $0x168] sm:$0xff]
        %v378 = vld [vmem:[%s1 + $0x170] sm:$0xff]
        %v379 = vld [vmem:[%s1 + $0x178] sm:$0xff]
        %v380 = vld [vmem:[%s1 + $0x180] sm:$0xff]
        %v381 = vld [vmem:[%s1 + $0x188] sm:$0xff]
        %v382 = vld [vmem:[%s1 + $0x190] sm:$0xff]
        %v383 = vld [vmem:[%s1 + $0x198] sm:$0xff]
        %v384 = vld [vmem:[%s1 + $0x1a0] sm:$0xff]
        %v385 = vld [vmem:[%s1 + $0x1a8] sm:$0xff]
        %v386 = vld [vmem:[%s1 + $0x1b0] sm:$0xff]
        %v387 = vld [vmem:[%s1 + $0x1b8] sm:$0xff]
        %v388 = vld [vmem:[%s1 + $0x1c0] sm:$0xff]
        %v389 = vld [vmem:[%s2] sm:$0xff]
        %v390 = vld [vmem:[%s2 + $0x8] sm:$0xff]
        %v391 = vld [vmem:[%s2 + $0x10] sm:$0xff]
        %v392 = vld [vmem:[%s2 + $0x18] sm:$0xff]
        %v393 = vld [vmem:[%s2 + $0x20] sm:$0xff]
        %v394 = vld [vmem:[%s2 + $0x28] sm:$0xff]
        %v395 = vld [vmem:[%s2 + $0x30] sm:$0xff]
        %v396 = vld [vmem:[%s2 + $0x38] sm:$0xff]
        %v397 = vld [vmem:[%s2 + $0x40] sm:$0xff]
        %v398 = vld [vmem:[%s2 + $0x48] sm:$0xff]
        %v399 = vld [vmem:[%s2 + $0x50] sm:$0xff]
        %v400 = vld [vmem:[%s2 + $0x58] sm:$0xff]
        %v401 = vld [vmem:[%s2 + $0x60] sm:$0xff]
        %v402 = vld [vmem:[%s2 + $0x68] sm:$0xff]
        %v403 = vld [vmem:[%s2 + $0x70] sm:$0xff]
        %v404 = vld [vmem:[%s2 + $0x78] sm:$0xff]
        %v405 = vld [vmem:[%s2 + $0x80] sm:$0xff]
        %v406 = vld [vmem:[%s2 + $0x88] sm:$0xff]
        %v407 = vld [vmem:[%s2 + $0x90] sm:$0xff]
        %v408 = vld [vmem:[%s2 + $0x98] sm:$0xff]
        %v409 = vld [vmem:[%s330] sm:$0xff]
        %v410 = vld [vmem:[%s330 + $0x8] sm:$0xff]
        %v411 = vld [vmem:[%s330 + $0x10] sm:$0xff]
        %v412 = vld [vmem:[%s330 + $0x18] sm:$0xff]
        %v413 = vld [vmem:[%s330 + $0x20] sm:$0xff]
        %v414 = vld [vmem:[%s330 + $0x28] sm:$0xff]
        %v415 = vld [vmem:[%s330 + $0x30] sm:$0xff]
        %v416 = vld [vmem:[%s330 + $0x38] sm:$0xff]
        %v417 = vld [vmem:[%s330 + $0x40] sm:$0xff]
        %v418 = vld [vmem:[%s330 + $0x48] sm:$0xff]
        %v419 = vld [vmem:[%s330 + $0x50] sm:$0xff]
        %v420 = vld [vmem:[%s330 + $0x58] sm:$0xff]
        %v421 = vld [vmem:[%s330 + $0x60] sm:$0xff]
        %v422 = vld [vmem:[%s330 + $0x68] sm:$0xff]
        %v423 = vld [vmem:[%s330 + $0x70] sm:$0xff]
        %v424 = vld [vmem:[%s330 + $0x78] sm:$0xff]
        %v425 = vld [vmem:[%s330 + $0x80] sm:$0xff]
        %v426 = vld [vmem:[%s330 + $0x88] sm:$0xff]
        %v427 = vld [vmem:[%s330 + $0x90] sm:$0xff]
        %v428 = vld [vmem:[%s330 + $0x98] sm:$0xff]
        %v429 = vld [vmem:[%s330 + $0xa0] sm:$0xff]
        %v430 = vld [vmem:[%s330 + $0xa8] sm:$0xff]
        %v431 = vld [vmem:[%s330 + $0xb0] sm:$0xff]
        %v432 = vld [vmem:[%s330 + $0xb8] sm:$0xff]
        %v433 = vld [vmem:[%s330 + $0xc0] sm:$0xff]
        %v434 = vld [vmem:[%s330 + $0xc8] sm:$0xff]
        %v435 = vld [vmem:[%s330 + $0xd0] sm:$0xff]
        %v436 = vld [vmem:[%s330 + $0xd8] sm:$0xff]
        %v437 = vld [vmem:[%s330 + $0xe0] sm:$0xff]
        %v438 = vld [vmem:[%s330 + $0xe8] sm:$0xff]
        %v439 = vld [vmem:[%s330 + $0xf0] sm:$0xff]
        %v440 = vld [vmem:[%s330 + $0xf8] sm:$0xff]
        %v441 = vld [vmem:[%s330 + $0x100] sm:$0xff]
        %v442 = vld [vmem:[%s330 + $0x108] sm:$0xff]
        %v443 = vld [vmem:[%s330 + $0x110] sm:$0xff]
        %v444 = vld [vmem:[%s330 + $0x118] sm:$0xff]
        %v445 = vld [vmem:[%s330 + $0x120] sm:$0xff]
        %v446 = vld [vmem:[%s330 + $0x128] sm:$0xff]
        %v447 = vld [vmem:[%s330 + $0x130] sm:$0xff]
        %v448 = vld [vmem:[%s3] sm:$0xf]
        %v449 = vld [vmem:[%s3 + $0x4] sm:$0x3]
        %v450 = vpack.c.bf16 %v410, %v409
        %v451 = vpack.c.bf16 %v412, %v411
        %v452 = vpack.c.bf16 %v414, %v413
        %v453 = vpack.c.bf16 %v416, %v415
        %v454 = vpack.c.bf16 %v418, %v417
        %v455 = vpack.c.bf16 %v420, %v419
        %v456 = vpack.c.bf16 %v422, %v421
        %v457 = vpack.c.bf16 %v424, %v423
        %v458 = vpack.c.bf16 %v426, %v425
        %v459 = vpack.c.bf16 %v428, %v427
        %v460 = vpack.c.bf16 %v430, %v429
        %v461 = vpack.c.bf16 %v432, %v431
        %v462 = vpack.c.bf16 %v434, %v433
        %v463 = vpack.c.bf16 %v436, %v435
        %v464 = vpack.c.bf16 %v438, %v437
        %v465 = vpack.c.bf16 %v440, %v439
        %v466 = vpack.c.bf16 %v442, %v441
        %v467 = vpack.c.bf16 %v444, %v443
        %v468 = vpack.c.bf16 %v446, %v445
        %v469 = vpack.c.bf16 %v447, %v447
        %v470 = vld [vmem:[%s8] sm:$0x1]
        %v471 = vperm.slane %v470, 0
        %v474 = vunpack.c.l.b16 %v448
        %v475 = vunpack.c.l.b16 %v449
        %v476 = vpack.c.b16 %v475, %v474
        %vm477 = vcmask 89088
        %v479 = vsel %vm477, %v450, 0
        %v482 = vsel %vm477, %v451, 0
        %v485 = vsel %vm477, %v452, 0
        %v488 = vsel %vm477, %v453, 0
        %v491 = vsel %vm477, %v454, 0
        %v494 = vsel %vm477, %v455, 0
        %v497 = vsel %vm477, %v456, 0
        %v500 = vsel %vm477, %v457, 0
        %v503 = vsel %vm477, %v458, 0
        %v506 = vsel %vm477, %v459, 0
        %v509 = vsel %vm477, %v460, 0
        %v512 = vsel %vm477, %v461, 0
        %v515 = vsel %vm477, %v462, 0
        %v518 = vsel %vm477, %v463, 0
        %v521 = vsel %vm477, %v464, 0
        %v524 = vsel %vm477, %v465, 0
        %v527 = vsel %vm477, %v466, 0
        %v530 = vsel %vm477, %v467, 0
        %v533 = vsel %vm477, %v468, 0
        %v536 = vsel %vm477, %v469, 0
        %vm538 = vcmask 1044480
        %vm539 = vcmask 1045504
        %v540 = vsel %vm538, 4294967295, 65535
        %v541 = vsel %vm539, %v540, 0
        %v543 = vand.u32 %v476, %v541
        %545 = vmatpush.bf16.msra.mxu0 0
        %546 = vmatpush.bf16.msra.mxu0 0
        %547 = vmatpush.bf16.msra.mxu0 0
        %548 = vmatpush.bf16.msra.mxu0 0
        %549 = vmatpush.bf16.msra.mxu0 0
        %550 = vmatpush.bf16.msra.mxu0 0
        %551 = vmatpush.bf16.msra.mxu0 0
        %552 = vmatpush.bf16.msra.mxu0 %v543
        %553 = vmatmul.bf16.gmra.mxu0 %v479
        %v554 = vpop.f32.mrf.mxu0
        %v555 = vadd.f32 %v471, %v554
        %v556 = vpop.f32.mrf.mxu0
        %v557 = vadd.f32 %v471, %v556
        %558 = vmatmul.bf16.gmra.mxu0 %v482
        %v559 = vpop.f32.mrf.mxu0
        %v560 = vadd.f32 %v471, %v559
        %v561 = vpop.f32.mrf.mxu0
        %v562 = vadd.f32 %v471, %v561
        %563 = vmatmul.bf16.gmra.mxu0 %v485
        %v564 = vpop.f32.mrf.mxu0
        %v565 = vadd.f32 %v471, %v564
        %v566 = vpop.f32.mrf.mxu0
        %v567 = vadd.f32 %v471, %v566
        %568 = vmatmul.bf16.gmra.mxu0 %v488
        %v569 = vpop.f32.mrf.mxu0
        %v570 = vadd.f32 %v471, %v569
        %v571 = vpop.f32.mrf.mxu0
        %v572 = vadd.f32 %v471, %v571
        %573 = vmatmul.bf16.gmra.mxu0 %v491
        %v574 = vpop.f32.mrf.mxu0
        %v575 = vadd.f32 %v471, %v574
        %v576 = vpop.f32.mrf.mxu0
        %v577 = vadd.f32 %v471, %v576
        %578 = vmatmul.bf16.gmra.mxu0 %v494
        %v579 = vpop.f32.mrf.mxu0
        %v580 = vadd.f32 %v471, %v579
        %v581 = vpop.f32.mrf.mxu0
        %v582 = vadd.f32 %v471, %v581
        %583 = vmatmul.bf16.gmra.mxu0 %v497
        %v584 = vpop.f32.mrf.mxu0
        %v585 = vadd.f32 %v471, %v584
        %v586 = vpop.f32.mrf.mxu0
        %v587 = vadd.f32 %v471, %v586
        %588 = vmatmul.bf16.gmra.mxu0 %v500
        %v589 = vpop.f32.mrf.mxu0
        %v590 = vadd.f32 %v471, %v589
        %v591 = vpop.f32.mrf.mxu0
        %v592 = vadd.f32 %v471, %v591
        %593 = vmatmul.bf16.gmra.mxu0 %v503
        %v594 = vpop.f32.mrf.mxu0
        %v595 = vadd.f32 %v471, %v594
        %v596 = vpop.f32.mrf.mxu0
        %v597 = vadd.f32 %v471, %v596
        %598 = vmatmul.bf16.gmra.mxu0 %v506
        %v599 = vpop.f32.mrf.mxu0
        %v600 = vadd.f32 %v471, %v599
        %v601 = vpop.f32.mrf.mxu0
        %v602 = vadd.f32 %v471, %v601
        %603 = vmatmul.bf16.gmra.mxu0 %v509
        %v604 = vpop.f32.mrf.mxu0
        %v605 = vadd.f32 %v471, %v604
        %v606 = vpop.f32.mrf.mxu0
        %v607 = vadd.f32 %v471, %v606
        %608 = vmatmul.bf16.gmra.mxu0 %v512
        %v609 = vpop.f32.mrf.mxu0
        %v610 = vadd.f32 %v471, %v609
        %v611 = vpop.f32.mrf.mxu0
        %v612 = vadd.f32 %v471, %v611
        %613 = vmatmul.bf16.gmra.mxu0 %v515
        %v614 = vpop.f32.mrf.mxu0
        %v615 = vadd.f32 %v471, %v614
        %v616 = vpop.f32.mrf.mxu0
        %v617 = vadd.f32 %v471, %v616
        %618 = vmatmul.bf16.gmra.mxu0 %v518
        %v619 = vpop.f32.mrf.mxu0
        %v620 = vadd.f32 %v471, %v619
        %v621 = vpop.f32.mrf.mxu0
        %v622 = vadd.f32 %v471, %v621
        %623 = vmatmul.bf16.gmra.mxu0 %v521
        %v624 = vpop.f32.mrf.mxu0
        %v625 = vadd.f32 %v471, %v624
        %v626 = vpop.f32.mrf.mxu0
        %v627 = vadd.f32 %v471, %v626
        %628 = vmatmul.bf16.gmra.mxu0 %v524
        %v629 = vpop.f32.mrf.mxu0
        %v630 = vadd.f32 %v471, %v629
        %v631 = vpop.f32.mrf.mxu0
        %v632 = vadd.f32 %v471, %v631
        %633 = vmatmul.bf16.gmra.mxu0 %v527
        %v634 = vpop.f32.mrf.mxu0
        %v635 = vadd.f32 %v471, %v634
        %v636 = vpop.f32.mrf.mxu0
        %v637 = vadd.f32 %v471, %v636
        %638 = vmatmul.bf16.gmra.mxu0 %v530
        %v639 = vpop.f32.mrf.mxu0
        %v640 = vadd.f32 %v471, %v639
        %v641 = vpop.f32.mrf.mxu0
        %v642 = vadd.f32 %v471, %v641
        %643 = vmatmul.bf16.gmra.mxu0 %v533
        %v644 = vpop.f32.mrf.mxu0
        %v645 = vadd.f32 %v471, %v644
        %v646 = vpop.f32.mrf.mxu0
        %v647 = vadd.f32 %v471, %v646
        %648 = vmatmul.bf16.gmra.mxu0 %v536
        %v649 = vpop.f32.mrf.mxu0
        %v650 = vadd.f32 %v471, %v649
        %v651 = vpop.f32.mrf.mxu0
        %652 = vdwg.mxu0
        %v653 = vmax.f32 %v555, 0.0
        %v654 = vmax.f32 %v557, 0.0
        %v655 = vmax.f32 %v560, 0.0
        %v656 = vmax.f32 %v562, 0.0
        %v657 = vmax.f32 %v565, 0.0
        %v658 = vmax.f32 %v567, 0.0
        %v659 = vmax.f32 %v570, 0.0
        %v660 = vmax.f32 %v572, 0.0
        %v661 = vmax.f32 %v575, 0.0
        %v662 = vmax.f32 %v577, 0.0
        %v663 = vmax.f32 %v580, 0.0
        %v664 = vmax.f32 %v582, 0.0
        %v665 = vmax.f32 %v585, 0.0
        %v666 = vmax.f32 %v587, 0.0
        %v667 = vmax.f32 %v590, 0.0
        %v668 = vmax.f32 %v592, 0.0
        %v669 = vmax.f32 %v595, 0.0
        %v670 = vmax.f32 %v597, 0.0
        %v671 = vmax.f32 %v600, 0.0
        %v672 = vmax.f32 %v602, 0.0
        %v673 = vmax.f32 %v605, 0.0
        %v674 = vmax.f32 %v607, 0.0
        %v675 = vmax.f32 %v610, 0.0
        %v676 = vmax.f32 %v612, 0.0
        %v677 = vmax.f32 %v615, 0.0
        %v678 = vmax.f32 %v617, 0.0
        %v679 = vmax.f32 %v620, 0.0
        %v680 = vmax.f32 %v622, 0.0
        %v681 = vmax.f32 %v625, 0.0
        %v682 = vmax.f32 %v627, 0.0
        %v683 = vmax.f32 %v630, 0.0
        %v684 = vmax.f32 %v632, 0.0
        %v685 = vmax.f32 %v635, 0.0
        %v686 = vmax.f32 %v637, 0.0
        %v687 = vmax.f32 %v640, 0.0
        %v688 = vmax.f32 %v642, 0.0
        %v689 = vmax.f32 %v645, 0.0
        %v690 = vmax.f32 %v647, 0.0
        %v691 = vmax.f32 %v650, 0.0
        %v692 = vmax.f32 %v654, %v655
        %v693 = vmax.f32 %v655, %v656
        %v694 = vmax.f32 %v656, %v657
        %v695 = vmax.f32 %v657, %v658
        %v696 = vmax.f32 %v658, %v659
        %v697 = vmax.f32 %v659, %v660
        %v698 = vmax.f32 %v660, %v661
        %v699 = vmax.f32 %v661, %v662
        %v700 = vmax.f32 %v662, %v663
        %v701 = vmax.f32 %v663, %v664
        %v702 = vmax.f32 %v664, %v665
        %v703 = vmax.f32 %v665, %v666
        %v704 = vmax.f32 %v666, %v667
        %v705 = vmax.f32 %v667, %v668
        %v706 = vmax.f32 %v668, %v669
        %v707 = vmax.f32 %v669, %v670
        %v708 = vmax.f32 %v670, %v671
        %v709 = vmax.f32 %v671, %v672
        %v710 = vmax.f32 %v672, %v673
        %v711 = vmax.f32 %v673, %v674
        %v712 = vmax.f32 %v674, %v675
        %v713 = vmax.f32 %v675, %v676
        %v714 = vmax.f32 %v676, %v677
        %v715 = vmax.f32 %v677, %v678
        %v716 = vmax.f32 %v678, %v679
        %v717 = vmax.f32 %v679, %v680
        %v718 = vmax.f32 %v680, %v681
        %v719 = vmax.f32 %v681, %v682
        %v720 = vmax.f32 %v682, %v683
        %v721 = vmax.f32 %v683, %v684
        %v722 = vmax.f32 %v684, %v685
        %v723 = vmax.f32 %v685, %v686
        %v724 = vmax.f32 %v686, %v687
        %v725 = vmax.f32 %v687, %v688
        %v726 = vmax.f32 %v688, %v689
        %v727 = vmax.f32 %v689, %v690
        %v728 = vmax.f32 %v690, %v691
        %v729 = vmax.f32 %v691, 0.0
        %v730 = vmax.f32 %v653, %v692
        %v731 = vmax.f32 %v654, %v693
        %v732 = vmax.f32 %v655, %v694
        %v733 = vmax.f32 %v656, %v695
        %v734 = vmax.f32 %v657, %v696
        %v735 = vmax.f32 %v658, %v697
        %v736 = vmax.f32 %v659, %v698
        %v737 = vmax.f32 %v660, %v699
        %v738 = vmax.f32 %v661, %v700
        %v739 = vmax.f32 %v662, %v701
        %v740 = vmax.f32 %v663, %v702
        %v741 = vmax.f32 %v664, %v703
        %v742 = vmax.f32 %v665, %v704
        %v743 = vmax.f32 %v666, %v705
        %v744 = vmax.f32 %v667, %v706
        %v745 = vmax.f32 %v668, %v707
        %v746 = vmax.f32 %v669, %v708
        %v747 = vmax.f32 %v670, %v709
        %v748 = vmax.f32 %v671, %v710
        %v749 = vmax.f32 %v672, %v711
        %v750 = vmax.f32 %v673, %v712
        %v751 = vmax.f32 %v674, %v713
        %v752 = vmax.f32 %v675, %v714
        %v753 = vmax.f32 %v676, %v715
        %v754 = vmax.f32 %v677, %v716
        %v755 = vmax.f32 %v678, %v717
        %v756 = vmax.f32 %v679, %v718
        %v757 = vmax.f32 %v680, %v719
        %v758 = vmax.f32 %v681, %v720
        %v759 = vmax.f32 %v682, %v721
        %v760 = vmax.f32 %v683, %v722
        %v761 = vmax.f32 %v684, %v723
        %v762 = vmax.f32 %v685, %v724
        %v763 = vmax.f32 %v686, %v725
        %v764 = vmax.f32 %v687, %v726
        %v765 = vmax.f32 %v688, %v727
        %v766 = vmax.f32 %v689, %v728
        %v767 = vmax.f32 %v690, %v729
        %vm768 = vcmask 457728
        %v770 = vsel %vm768, %v334, 0
        %v773 = vsel %vm768, %v337, 0
        %v776 = vsel %vm768, %v340, 0
        %v779 = vsel %vm768, %v343, 0
        %v782 = vsel %vm768, %v346, 0
        %v785 = vsel %vm768, %v349, 0
        %v788 = vsel %vm768, %v352, 0
        %v791 = vsel %vm768, %v355, 0
        %v794 = vsel %vm768, %v358, 0
        %v797 = vsel %vm768, %v361, 0
        %v800 = vsel %vm768, %v364, 0
        %v803 = vsel %vm768, %v367, 0
        %v806 = vsel %vm768, %v370, 0
        %v809 = vsel %vm768, %v373, 0
        %v812 = vsel %vm768, %v376, 0
        %v815 = vsel %vm768, %v379, 0
        %v818 = vsel %vm768, %v382, 0
        %v821 = vsel %vm768, %v385, 0
        %v824 = vsel %vm768, %v388, 0
        %v826 = vand.u32 %v745, 4294901760
        %827 = vmatpush.msra.mxu0 %v826
        %v828 = vand.u32 %v744, 4294901760
        %829 = vmatpush.msra.mxu0 %v828
        %v830 = vand.u32 %v743, 4294901760
        %831 = vmatpush.msra.mxu0 %v830
        %v832 = vand.u32 %v742, 4294901760
        %833 = vmatpush.msra.mxu0 %v832
        %v834 = vand.u32 %v741, 4294901760
        %835 = vmatpush.msra.mxu0 %v834
        %v836 = vand.u32 %v740, 4294901760
        %837 = vmatpush.msra.mxu0 %v836
        %v838 = vand.u32 %v739, 4294901760
        %839 = vmatpush.msra.mxu0 %v838
        %v840 = vand.u32 %v738, 4294901760
        %841 = vmatpush.msra.mxu0 %v840
        %v842 = vand.u32 %v737, 4294901760
        %843 = vmatpush.msra.mxu0 %v842
        %v844 = vand.u32 %v736, 4294901760
        %845 = vmatpush.msra.mxu0 %v844
        %v846 = vand.u32 %v735, 4294901760
        %847 = vmatpush.msra.mxu0 %v846
        %v848 = vand.u32 %v734, 4294901760
        %849 = vmatpush.msra.mxu0 %v848
        %v850 = vand.u32 %v733, 4294901760
        %851 = vmatpush.msra.mxu0 %v850
        %v852 = vand.u32 %v732, 4294901760
        %853 = vmatpush.msra.mxu0 %v852
        %v854 = vand.u32 %v731, 4294901760
        %855 = vmatpush.msra.mxu0 %v854
        %v856 = vand.u32 %v730, 4294901760
        %857 = vmatpush.msra.mxu0 %v856
        %v858 = vand.u32 %v332, 4294901760
        %v859 = vsub.f32 %v332, %v858
        %v860 = vand.u32 %v859, 4294901760
        %v861 = vsub.f32 %v859, %v860
        %v862 = vand.u32 %v861, 4294901760
        %863 = vmatmul.f32.gmra.mxu0 %v862
        %v864 = vpop.f32.mrf.mxu0
        %v865 = vadd.f32 0.0, %v864
        %v866 = vand.u32 %v335, 4294901760
        %v867 = vsub.f32 %v335, %v866
        %v868 = vand.u32 %v867, 4294901760
        %v869 = vsub.f32 %v867, %v868
        %v870 = vand.u32 %v869, 4294901760
        %871 = vmatmul.f32.gmra.mxu0 %v870
        %v872 = vpop.f32.mrf.mxu0
        %v873 = vadd.f32 0.0, %v872
        %v874 = vand.u32 %v338, 4294901760
        %v875 = vsub.f32 %v338, %v874
        %v876 = vand.u32 %v875, 4294901760
        %v877 = vsub.f32 %v875, %v876
        %v878 = vand.u32 %v877, 4294901760
        %879 = vmatmul.f32.gmra.mxu0 %v878
        %v880 = vpop.f32.mrf.mxu0
        %v881 = vadd.f32 0.0, %v880
        %v882 = vand.u32 %v341, 4294901760
        %v883 = vsub.f32 %v341, %v882
        %v884 = vand.u32 %v883, 4294901760
        %v885 = vsub.f32 %v883, %v884
        %v886 = vand.u32 %v885, 4294901760
        %887 = vmatmul.f32.gmra.mxu0 %v886
        %v888 = vpop.f32.mrf.mxu0
        %v889 = vadd.f32 0.0, %v888
        %v890 = vand.u32 %v344, 4294901760
        %v891 = vsub.f32 %v344, %v890
        %v892 = vand.u32 %v891, 4294901760
        %v893 = vsub.f32 %v891, %v892
        %v894 = vand.u32 %v893, 4294901760
        %895 = vmatmul.f32.gmra.mxu0 %v894
        %v896 = vpop.f32.mrf.mxu0
        %v897 = vadd.f32 0.0, %v896
        %v898 = vand.u32 %v347, 4294901760
        %v899 = vsub.f32 %v347, %v898
        %v900 = vand.u32 %v899, 4294901760
        %v901 = vsub.f32 %v899, %v900
        %v902 = vand.u32 %v901, 4294901760
        %903 = vmatmul.f32.gmra.mxu0 %v902
        %v904 = vpop.f32.mrf.mxu0
        %v905 = vadd.f32 0.0, %v904
        %v906 = vand.u32 %v350, 4294901760
        %v907 = vsub.f32 %v350, %v906
        %v908 = vand.u32 %v907, 4294901760
        %v909 = vsub.f32 %v907, %v908
        %v910 = vand.u32 %v909, 4294901760
        %911 = vmatmul.f32.gmra.mxu0 %v910
        %v912 = vpop.f32.mrf.mxu0
        %v913 = vadd.f32 0.0, %v912
        %v914 = vand.u32 %v353, 4294901760
        %v915 = vsub.f32 %v353, %v914
        %v916 = vand.u32 %v915, 4294901760
        %v917 = vsub.f32 %v915, %v916
        %v918 = vand.u32 %v917, 4294901760
        %919 = vmatmul.f32.gmra.mxu0 %v918
        %v920 = vpop.f32.mrf.mxu0
        %v921 = vadd.f32 0.0, %v920
        %v922 = vand.u32 %v356, 4294901760
        %v923 = vsub.f32 %v356, %v922
        %v924 = vand.u32 %v923, 4294901760
        %v925 = vsub.f32 %v923, %v924
        %v926 = vand.u32 %v925, 4294901760
        %927 = vmatmul.f32.gmra.mxu0 %v926
        %v928 = vpop.f32.mrf.mxu0
        %v929 = vadd.f32 0.0, %v928
        %v930 = vand.u32 %v359, 4294901760
        %v931 = vsub.f32 %v359, %v930
        %v932 = vand.u32 %v931, 4294901760
        %v933 = vsub.f32 %v931, %v932
        %v934 = vand.u32 %v933, 4294901760
        %935 = vmatmul.f32.gmra.mxu0 %v934
        %v936 = vpop.f32.mrf.mxu0
        %v937 = vadd.f32 0.0, %v936
        %v938 = vand.u32 %v362, 4294901760
        %v939 = vsub.f32 %v362, %v938
        %v940 = vand.u32 %v939, 4294901760
        %v941 = vsub.f32 %v939, %v940
        %v942 = vand.u32 %v941, 4294901760
        %943 = vmatmul.f32.gmra.mxu0 %v942
        %v944 = vpop.f32.mrf.mxu0
        %v945 = vadd.f32 0.0, %v944
        %v946 = vand.u32 %v365, 4294901760
        %v947 = vsub.f32 %v365, %v946
        %v948 = vand.u32 %v947, 4294901760
        %v949 = vsub.f32 %v947, %v948
        %v950 = vand.u32 %v949, 4294901760
        %951 = vmatmul.f32.gmra.mxu0 %v950
        %v952 = vpop.f32.mrf.mxu0
        %v953 = vadd.f32 0.0, %v952
        %v954 = vand.u32 %v368, 4294901760
        %v955 = vsub.f32 %v368, %v954
        %v956 = vand.u32 %v955, 4294901760
        %v957 = vsub.f32 %v955, %v956
        %v958 = vand.u32 %v957, 4294901760
        %959 = vmatmul.f32.gmra.mxu0 %v958
        %v960 = vpop.f32.mrf.mxu0
        %v961 = vadd.f32 0.0, %v960
        %v962 = vand.u32 %v371, 4294901760
        %v963 = vsub.f32 %v371, %v962
        %v964 = vand.u32 %v963, 4294901760
        %v965 = vsub.f32 %v963, %v964
        %v966 = vand.u32 %v965, 4294901760
        %967 = vmatmul.f32.gmra.mxu0 %v966
        %v968 = vpop.f32.mrf.mxu0
        %v969 = vadd.f32 0.0, %v968
        %v970 = vand.u32 %v374, 4294901760
        %v971 = vsub.f32 %v374, %v970
        %v972 = vand.u32 %v971, 4294901760
        %v973 = vsub.f32 %v971, %v972
        %v974 = vand.u32 %v973, 4294901760
        %975 = vmatmul.f32.gmra.mxu0 %v974
        %v976 = vpop.f32.mrf.mxu0
        %v977 = vadd.f32 0.0, %v976
        %v978 = vand.u32 %v377, 4294901760
        %v979 = vsub.f32 %v377, %v978
        %v980 = vand.u32 %v979, 4294901760
        %v981 = vsub.f32 %v979, %v980
        %v982 = vand.u32 %v981, 4294901760
        %983 = vmatmul.f32.gmra.mxu0 %v982
        %v984 = vpop.f32.mrf.mxu0
        %v985 = vadd.f32 0.0, %v984
        %v986 = vand.u32 %v380, 4294901760
        %v987 = vsub.f32 %v380, %v986
        %v988 = vand.u32 %v987, 4294901760
        %v989 = vsub.f32 %v987, %v988
        %v990 = vand.u32 %v989, 4294901760
        %991 = vmatmul.f32.gmra.mxu0 %v990
        %v992 = vpop.f32.mrf.mxu0
        %v993 = vadd.f32 0.0, %v992
        %v994 = vand.u32 %v383, 4294901760
        %v995 = vsub.f32 %v383, %v994
        %v996 = vand.u32 %v995, 4294901760
        %v997 = vsub.f32 %v995, %v996
        %v998 = vand.u32 %v997, 4294901760
        %999 = vmatmul.f32.gmra.mxu0 %v998
        %v1000 = vpop.f32.mrf.mxu0
        %v1001 = vadd.f32 0.0, %v1000
        %v1002 = vand.u32 %v386, 4294901760
        %v1003 = vsub.f32 %v386, %v1002
        %v1004 = vand.u32 %v1003, 4294901760
        %v1005 = vsub.f32 %v1003, %v1004
        %v1006 = vand.u32 %v1005, 4294901760
        %1007 = vmatmul.f32.gmra.mxu0 %v1006
        %v1008 = vpop.f32.mrf.mxu0
        %v1009 = vadd.f32 0.0, %v1008
        %1010 = vdwg.mxu0
        %v1011 = vand.u32 %v745, 4294901760
        %v1012 = vsub.f32 %v745, %v1011
        %v1013 = vand.u32 %v1012, 4294901760
        %v1014 = vsub.f32 %v1012, %v1013
        %v1015 = vand.u32 %v1014, 4294901760
        %1016 = vmatpush.msra.mxu0 %v1015
        %v1017 = vand.u32 %v744, 4294901760
        %v1018 = vsub.f32 %v744, %v1017
        %v1019 = vand.u32 %v1018, 4294901760
        %v1020 = vsub.f32 %v1018, %v1019
        %v1021 = vand.u32 %v1020, 4294901760
        %1022 = vmatpush.msra.mxu0 %v1021
        %v1023 = vand.u32 %v743, 4294901760
        %v1024 = vsub.f32 %v743, %v1023
        %v1025 = vand.u32 %v1024, 4294901760
        %v1026 = vsub.f32 %v1024, %v1025
        %v1027 = vand.u32 %v1026, 4294901760
        %1028 = vmatpush.msra.mxu0 %v1027
        %v1029 = vand.u32 %v742, 4294901760
        %v1030 = vsub.f32 %v742, %v1029
        %v1031 = vand.u32 %v1030, 4294901760
        %v1032 = vsub.f32 %v1030, %v1031
        %v1033 = vand.u32 %v1032, 4294901760
        %1034 = vmatpush.msra.mxu0 %v1033
        %v1035 = vand.u32 %v741, 4294901760
        %v1036 = vsub.f32 %v741, %v1035
        %v1037 = vand.u32 %v1036, 4294901760
        %v1038 = vsub.f32 %v1036, %v1037
        %v1039 = vand.u32 %v1038, 4294901760
        %1040 = vmatpush.msra.mxu0 %v1039
        %v1041 = vand.u32 %v740, 4294901760
        %v1042 = vsub.f32 %v740, %v1041
        %v1043 = vand.u32 %v1042, 4294901760
        %v1044 = vsub.f32 %v1042, %v1043
        %v1045 = vand.u32 %v1044, 4294901760
        %1046 = vmatpush.msra.mxu0 %v1045
        %v1047 = vand.u32 %v739, 4294901760
        %v1048 = vsub.f32 %v739, %v1047
        %v1049 = vand.u32 %v1048, 4294901760
        %v1050 = vsub.f32 %v1048, %v1049
        %v1051 = vand.u32 %v1050, 4294901760
        %1052 = vmatpush.msra.mxu0 %v1051
        %v1053 = vand.u32 %v738, 4294901760
        %v1054 = vsub.f32 %v738, %v1053
        %v1055 = vand.u32 %v1054, 4294901760
        %v1056 = vsub.f32 %v1054, %v1055
        %v1057 = vand.u32 %v1056, 4294901760
        %1058 = vmatpush.msra.mxu0 %v1057
        %v1059 = vand.u32 %v737, 4294901760
        %v1060 = vsub.f32 %v737, %v1059
        %v1061 = vand.u32 %v1060, 4294901760
        %v1062 = vsub.f32 %v1060, %v1061
        %v1063 = vand.u32 %v1062, 4294901760
        %1064 = vmatpush.msra.mxu0 %v1063
        %v1065 = vand.u32 %v736, 4294901760
        %v1066 = vsub.f32 %v736, %v1065
        %v1067 = vand.u32 %v1066, 4294901760
        %v1068 = vsub.f32 %v1066, %v1067
        %v1069 = vand.u32 %v1068, 4294901760
        %1070 = vmatpush.msra.mxu0 %v1069
        %v1071 = vand.u32 %v735, 4294901760
        %v1072 = vsub.f32 %v735, %v1071
        %v1073 = vand.u32 %v1072, 4294901760
        %v1074 = vsub.f32 %v1072, %v1073
        %v1075 = vand.u32 %v1074, 4294901760
        %1076 = vmatpush.msra.mxu0 %v1075
        %v1077 = vand.u32 %v734, 4294901760
        %v1078 = vsub.f32 %v734, %v1077
        %v1079 = vand.u32 %v1078, 4294901760
        %v1080 = vsub.f32 %v1078, %v1079
        %v1081 = vand.u32 %v1080, 4294901760
        %1082 = vmatpush.msra.mxu0 %v1081
        %v1083 = vand.u32 %v733, 4294901760
        %v1084 = vsub.f32 %v733, %v1083
        %v1085 = vand.u32 %v1084, 4294901760
        %v1086 = vsub.f32 %v1084, %v1085
        %v1087 = vand.u32 %v1086, 4294901760
        %1088 = vmatpush.msra.mxu0 %v1087
        %v1089 = vand.u32 %v732, 4294901760
        %v1090 = vsub.f32 %v732, %v1089
        %v1091 = vand.u32 %v1090, 4294901760
        %v1092 = vsub.f32 %v1090, %v1091
        %v1093 = vand.u32 %v1092, 4294901760
        %1094 = vmatpush.msra.mxu0 %v1093
        %v1095 = vand.u32 %v731, 4294901760
        %v1096 = vsub.f32 %v731, %v1095
        %v1097 = vand.u32 %v1096, 4294901760
        %v1098 = vsub.f32 %v1096, %v1097
        %v1099 = vand.u32 %v1098, 4294901760
        %1100 = vmatpush.msra.mxu0 %v1099
        %v1101 = vand.u32 %v730, 4294901760
        %v1102 = vsub.f32 %v730, %v1101
        %v1103 = vand.u32 %v1102, 4294901760
        %v1104 = vsub.f32 %v1102, %v1103
        %v1105 = vand.u32 %v1104, 4294901760
        %1106 = vmatpush.msra.mxu0 %v1105
        %v1107 = vand.u32 %v332, 4294901760
        %1108 = vmatmul.f32.gmra.mxu0 %v1107
        %v1109 = vpop.f32.mrf.mxu0
        %v1110 = vadd.f32 %v865, %v1109
        %v1111 = vand.u32 %v335, 4294901760
        %1112 = vmatmul.f32.gmra.mxu0 %v1111
        %v1113 = vpop.f32.mrf.mxu0
        %v1114 = vadd.f32 %v873, %v1113
        %v1115 = vand.u32 %v338, 4294901760
        %1116 = vmatmul.f32.gmra.mxu0 %v1115
        %v1117 = vpop.f32.mrf.mxu0
        %v1118 = vadd.f32 %v881, %v1117
        %v1119 = vand.u32 %v341, 4294901760
        %1120 = vmatmul.f32.gmra.mxu0 %v1119
        %v1121 = vpop.f32.mrf.mxu0
        %v1122 = vadd.f32 %v889, %v1121
        %v1123 = vand.u32 %v344, 4294901760
        %1124 = vmatmul.f32.gmra.mxu0 %v1123
        %v1125 = vpop.f32.mrf.mxu0
        %v1126 = vadd.f32 %v897, %v1125
        %v1127 = vand.u32 %v347, 4294901760
        %1128 = vmatmul.f32.gmra.mxu0 %v1127
        %v1129 = vpop.f32.mrf.mxu0
        %v1130 = vadd.f32 %v905, %v1129
        %v1131 = vand.u32 %v350, 4294901760
        %1132 = vmatmul.f32.gmra.mxu0 %v1131
        %v1133 = vpop.f32.mrf.mxu0
        %v1134 = vadd.f32 %v913, %v1133
        %v1135 = vand.u32 %v353, 4294901760
        %1136 = vmatmul.f32.gmra.mxu0 %v1135
        %v1137 = vpop.f32.mrf.mxu0
        %v1138 = vadd.f32 %v921, %v1137
        %v1139 = vand.u32 %v356, 4294901760
        %1140 = vmatmul.f32.gmra.mxu0 %v1139
        %v1141 = vpop.f32.mrf.mxu0
        %v1142 = vadd.f32 %v929, %v1141
        %v1143 = vand.u32 %v359, 4294901760
        %1144 = vmatmul.f32.gmra.mxu0 %v1143
        %v1145 = vpop.f32.mrf.mxu0
        %v1146 = vadd.f32 %v937, %v1145
        %v1147 = vand.u32 %v362, 4294901760
        %1148 = vmatmul.f32.gmra.mxu0 %v1147
        %v1149 = vpop.f32.mrf.mxu0
        %v1150 = vadd.f32 %v945, %v1149
        %v1151 = vand.u32 %v365, 4294901760
        %1152 = vmatmul.f32.gmra.mxu0 %v1151
        %v1153 = vpop.f32.mrf.mxu0
        %v1154 = vadd.f32 %v953, %v1153
        %v1155 = vand.u32 %v368, 4294901760
        %1156 = vmatmul.f32.gmra.mxu0 %v1155
        %v1157 = vpop.f32.mrf.mxu0
        %v1158 = vadd.f32 %v961, %v1157
        %v1159 = vand.u32 %v371, 4294901760
        %1160 = vmatmul.f32.gmra.mxu0 %v1159
        %v1161 = vpop.f32.mrf.mxu0
        %v1162 = vadd.f32 %v969, %v1161
        %v1163 = vand.u32 %v374, 4294901760
        %1164 = vmatmul.f32.gmra.mxu0 %v1163
        %v1165 = vpop.f32.mrf.mxu0
        %v1166 = vadd.f32 %v977, %v1165
        %v1167 = vand.u32 %v377, 4294901760
        %1168 = vmatmul.f32.gmra.mxu0 %v1167
        %v1169 = vpop.f32.mrf.mxu0
        %v1170 = vadd.f32 %v985, %v1169
        %v1171 = vand.u32 %v380, 4294901760
        %1172 = vmatmul.f32.gmra.mxu0 %v1171
        %v1173 = vpop.f32.mrf.mxu0
        %v1174 = vadd.f32 %v993, %v1173
        %v1175 = vand.u32 %v383, 4294901760
        %1176 = vmatmul.f32.gmra.mxu0 %v1175
        %v1177 = vpop.f32.mrf.mxu0
        %v1178 = vadd.f32 %v1001, %v1177
        %v1179 = vand.u32 %v386, 4294901760
        %1180 = vmatmul.f32.gmra.mxu0 %v1179
        %v1181 = vpop.f32.mrf.mxu0
        %v1182 = vadd.f32 %v1009, %v1181
        %1183 = vdwg.mxu0
        %v1184 = vand.u32 %v745, 4294901760
        %v1185 = vsub.f32 %v745, %v1184
        %1186 = vmatpush.msra.mxu0 %v1185
        %v1187 = vand.u32 %v744, 4294901760
        %v1188 = vsub.f32 %v744, %v1187
        %1189 = vmatpush.msra.mxu0 %v1188
        %v1190 = vand.u32 %v743, 4294901760
        %v1191 = vsub.f32 %v743, %v1190
        %1192 = vmatpush.msra.mxu0 %v1191
        %v1193 = vand.u32 %v742, 4294901760
        %v1194 = vsub.f32 %v742, %v1193
        %1195 = vmatpush.msra.mxu0 %v1194
        %v1196 = vand.u32 %v741, 4294901760
        %v1197 = vsub.f32 %v741, %v1196
        %1198 = vmatpush.msra.mxu0 %v1197
        %v1199 = vand.u32 %v740, 4294901760
        %v1200 = vsub.f32 %v740, %v1199
        %1201 = vmatpush.msra.mxu0 %v1200
        %v1202 = vand.u32 %v739, 4294901760
        %v1203 = vsub.f32 %v739, %v1202
        %1204 = vmatpush.msra.mxu0 %v1203
        %v1205 = vand.u32 %v738, 4294901760
        %v1206 = vsub.f32 %v738, %v1205
        %1207 = vmatpush.msra.mxu0 %v1206
        %v1208 = vand.u32 %v737, 4294901760
        %v1209 = vsub.f32 %v737, %v1208
        %1210 = vmatpush.msra.mxu0 %v1209
        %v1211 = vand.u32 %v736, 4294901760
        %v1212 = vsub.f32 %v736, %v1211
        %1213 = vmatpush.msra.mxu0 %v1212
        %v1214 = vand.u32 %v735, 4294901760
        %v1215 = vsub.f32 %v735, %v1214
        %1216 = vmatpush.msra.mxu0 %v1215
        %v1217 = vand.u32 %v734, 4294901760
        %v1218 = vsub.f32 %v734, %v1217
        %1219 = vmatpush.msra.mxu0 %v1218
        %v1220 = vand.u32 %v733, 4294901760
        %v1221 = vsub.f32 %v733, %v1220
        %1222 = vmatpush.msra.mxu0 %v1221
        %v1223 = vand.u32 %v732, 4294901760
        %v1224 = vsub.f32 %v732, %v1223
        %1225 = vmatpush.msra.mxu0 %v1224
        %v1226 = vand.u32 %v731, 4294901760
        %v1227 = vsub.f32 %v731, %v1226
        %1228 = vmatpush.msra.mxu0 %v1227
        %v1229 = vand.u32 %v730, 4294901760
        %v1230 = vsub.f32 %v730, %v1229
        %1231 = vmatpush.msra.mxu0 %v1230
        %v1232 = vand.u32 %v332, 4294901760
        %v1233 = vsub.f32 %v332, %v1232
        %1234 = vmatmul.f32.gmra.mxu0 %v1233
        %v1235 = vpop.f32.mrf.mxu0
        %v1236 = vadd.f32 %v1110, %v1235
        %v1237 = vand.u32 %v335, 4294901760
        %v1238 = vsub.f32 %v335, %v1237
        %1239 = vmatmul.f32.gmra.mxu0 %v1238
        %v1240 = vpop.f32.mrf.mxu0
        %v1241 = vadd.f32 %v1114, %v1240
        %v1242 = vand.u32 %v338, 4294901760
        %v1243 = vsub.f32 %v338, %v1242
        %1244 = vmatmul.f32.gmra.mxu0 %v1243
        %v1245 = vpop.f32.mrf.mxu0
        %v1246 = vadd.f32 %v1118, %v1245
        %v1247 = vand.u32 %v341, 4294901760
        %v1248 = vsub.f32 %v341, %v1247
        %1249 = vmatmul.f32.gmra.mxu0 %v1248
        %v1250 = vpop.f32.mrf.mxu0
        %v1251 = vadd.f32 %v1122, %v1250
        %v1252 = vand.u32 %v344, 4294901760
        %v1253 = vsub.f32 %v344, %v1252
        %1254 = vmatmul.f32.gmra.mxu0 %v1253
        %v1255 = vpop.f32.mrf.mxu0
        %v1256 = vadd.f32 %v1126, %v1255
        %v1257 = vand.u32 %v347, 4294901760
        %v1258 = vsub.f32 %v347, %v1257
        %1259 = vmatmul.f32.gmra.mxu0 %v1258
        %v1260 = vpop.f32.mrf.mxu0
        %v1261 = vadd.f32 %v1130, %v1260
        %v1262 = vand.u32 %v350, 4294901760
        %v1263 = vsub.f32 %v350, %v1262
        %1264 = vmatmul.f32.gmra.mxu0 %v1263
        %v1265 = vpop.f32.mrf.mxu0
        %v1266 = vadd.f32 %v1134, %v1265
        %v1267 = vand.u32 %v353, 4294901760
        %v1268 = vsub.f32 %v353, %v1267
        %1269 = vmatmul.f32.gmra.mxu0 %v1268
        %v1270 = vpop.f32.mrf.mxu0
        %v1271 = vadd.f32 %v1138, %v1270
        %v1272 = vand.u32 %v356, 4294901760
        %v1273 = vsub.f32 %v356, %v1272
        %1274 = vmatmul.f32.gmra.mxu0 %v1273
        %v1275 = vpop.f32.mrf.mxu0
        %v1276 = vadd.f32 %v1142, %v1275
        %v1277 = vand.u32 %v359, 4294901760
        %v1278 = vsub.f32 %v359, %v1277
        %1279 = vmatmul.f32.gmra.mxu0 %v1278
        %v1280 = vpop.f32.mrf.mxu0
        %v1281 = vadd.f32 %v1146, %v1280
        %v1282 = vand.u32 %v362, 4294901760
        %v1283 = vsub.f32 %v362, %v1282
        %1284 = vmatmul.f32.gmra.mxu0 %v1283
        %v1285 = vpop.f32.mrf.mxu0
        %v1286 = vadd.f32 %v1150, %v1285
        %v1287 = vand.u32 %v365, 4294901760
        %v1288 = vsub.f32 %v365, %v1287
        %1289 = vmatmul.f32.gmra.mxu0 %v1288
        %v1290 = vpop.f32.mrf.mxu0
        %v1291 = vadd.f32 %v1154, %v1290
        %v1292 = vand.u32 %v368, 4294901760
        %v1293 = vsub.f32 %v368, %v1292
        %1294 = vmatmul.f32.gmra.mxu0 %v1293
        %v1295 = vpop.f32.mrf.mxu0
        %v1296 = vadd.f32 %v1158, %v1295
        %v1297 = vand.u32 %v371, 4294901760
        %v1298 = vsub.f32 %v371, %v1297
        %1299 = vmatmul.f32.gmra.mxu0 %v1298
        %v1300 = vpop.f32.mrf.mxu0
        %v1301 = vadd.f32 %v1162, %v1300
        %v1302 = vand.u32 %v374, 4294901760
        %v1303 = vsub.f32 %v374, %v1302
        %1304 = vmatmul.f32.gmra.mxu0 %v1303
        %v1305 = vpop.f32.mrf.mxu0
        %v1306 = vadd.f32 %v1166, %v1305
        %v1307 = vand.u32 %v377, 4294901760
        %v1308 = vsub.f32 %v377, %v1307
        %1309 = vmatmul.f32.gmra.mxu0 %v1308
        %v1310 = vpop.f32.mrf.mxu0
        %v1311 = vadd.f32 %v1170, %v1310
        %v1312 = vand.u32 %v380, 4294901760
        %v1313 = vsub.f32 %v380, %v1312
        %1314 = vmatmul.f32.gmra.mxu0 %v1313
        %v1315 = vpop.f32.mrf.mxu0
        %v1316 = vadd.f32 %v1174, %v1315
        %v1317 = vand.u32 %v383, 4294901760
        %v1318 = vsub.f32 %v383, %v1317
        %1319 = vmatmul.f32.gmra.mxu0 %v1318
        %v1320 = vpop.f32.mrf.mxu0
        %v1321 = vadd.f32 %v1178, %v1320
        %v1322 = vand.u32 %v386, 4294901760
        %v1323 = vsub.f32 %v386, %v1322
        %1324 = vmatmul.f32.gmra.mxu0 %v1323
        %v1325 = vpop.f32.mrf.mxu0
        %v1326 = vadd.f32 %v1182, %v1325
        %1327 = vdwg.mxu0
        %v1328 = vand.u32 %v745, 4294901760
        %1329 = vmatpush.msra.mxu0 %v1328
        %v1330 = vand.u32 %v744, 4294901760
        %1331 = vmatpush.msra.mxu0 %v1330
        %v1332 = vand.u32 %v743, 4294901760
        %1333 = vmatpush.msra.mxu0 %v1332
        %v1334 = vand.u32 %v742, 4294901760
        %1335 = vmatpush.msra.mxu0 %v1334
        %v1336 = vand.u32 %v741, 4294901760
        %1337 = vmatpush.msra.mxu0 %v1336
        %v1338 = vand.u32 %v740, 4294901760
        %1339 = vmatpush.msra.mxu0 %v1338
        %v1340 = vand.u32 %v739, 4294901760
        %1341 = vmatpush.msra.mxu0 %v1340
        %v1342 = vand.u32 %v738, 4294901760
        %1343 = vmatpush.msra.mxu0 %v1342
        %v1344 = vand.u32 %v737, 4294901760
        %1345 = vmatpush.msra.mxu0 %v1344
        %v1346 = vand.u32 %v736, 4294901760
        %1347 = vmatpush.msra.mxu0 %v1346
        %v1348 = vand.u32 %v735, 4294901760
        %1349 = vmatpush.msra.mxu0 %v1348
        %v1350 = vand.u32 %v734, 4294901760
        %1351 = vmatpush.msra.mxu0 %v1350
        %v1352 = vand.u32 %v733, 4294901760
        %1353 = vmatpush.msra.mxu0 %v1352
        %v1354 = vand.u32 %v732, 4294901760
        %1355 = vmatpush.msra.mxu0 %v1354
        %v1356 = vand.u32 %v731, 4294901760
        %1357 = vmatpush.msra.mxu0 %v1356
        %v1358 = vand.u32 %v730, 4294901760
        %1359 = vmatpush.msra.mxu0 %v1358
        %v1360 = vand.u32 %v332, 4294901760
        %v1361 = vsub.f32 %v332, %v1360
        %v1362 = vand.u32 %v1361, 4294901760
        %1363 = vmatmul.f32.gmra.mxu0 %v1362
        %v1364 = vpop.f32.mrf.mxu0
        %v1365 = vadd.f32 %v1236, %v1364
        %v1366 = vand.u32 %v335, 4294901760
        %v1367 = vsub.f32 %v335, %v1366
        %v1368 = vand.u32 %v1367, 4294901760
        %1369 = vmatmul.f32.gmra.mxu0 %v1368
        %v1370 = vpop.f32.mrf.mxu0
        %v1371 = vadd.f32 %v1241, %v1370
        %v1372 = vand.u32 %v338, 4294901760
        %v1373 = vsub.f32 %v338, %v1372
        %v1374 = vand.u32 %v1373, 4294901760
        %1375 = vmatmul.f32.gmra.mxu0 %v1374
        %v1376 = vpop.f32.mrf.mxu0
        %v1377 = vadd.f32 %v1246, %v1376
        %v1378 = vand.u32 %v341, 4294901760
        %v1379 = vsub.f32 %v341, %v1378
        %v1380 = vand.u32 %v1379, 4294901760
        %1381 = vmatmul.f32.gmra.mxu0 %v1380
        %v1382 = vpop.f32.mrf.mxu0
        %v1383 = vadd.f32 %v1251, %v1382
        %v1384 = vand.u32 %v344, 4294901760
        %v1385 = vsub.f32 %v344, %v1384
        %v1386 = vand.u32 %v1385, 4294901760
        %1387 = vmatmul.f32.gmra.mxu0 %v1386
        %v1388 = vpop.f32.mrf.mxu0
        %v1389 = vadd.f32 %v1256, %v1388
        %v1390 = vand.u32 %v347, 4294901760
        %v1391 = vsub.f32 %v347, %v1390
        %v1392 = vand.u32 %v1391, 4294901760
        %1393 = vmatmul.f32.gmra.mxu0 %v1392
        %v1394 = vpop.f32.mrf.mxu0
        %v1395 = vadd.f32 %v1261, %v1394
        %v1396 = vand.u32 %v350, 4294901760
        %v1397 = vsub.f32 %v350, %v1396
        %v1398 = vand.u32 %v1397, 4294901760
        %1399 = vmatmul.f32.gmra.mxu0 %v1398
        %v1400 = vpop.f32.mrf.mxu0
        %v1401 = vadd.f32 %v1266, %v1400
        %v1402 = vand.u32 %v353, 4294901760
        %v1403 = vsub.f32 %v353, %v1402
        %v1404 = vand.u32 %v1403, 4294901760
        %1405 = vmatmul.f32.gmra.mxu0 %v1404
        %v1406 = vpop.f32.mrf.mxu0
        %v1407 = vadd.f32 %v1271, %v1406
        %v1408 = vand.u32 %v356, 4294901760
        %v1409 = vsub.f32 %v356, %v1408
        %v1410 = vand.u32 %v1409, 4294901760
        %1411 = vmatmul.f32.gmra.mxu0 %v1410
        %v1412 = vpop.f32.mrf.mxu0
        %v1413 = vadd.f32 %v1276, %v1412
        %v1414 = vand.u32 %v359, 4294901760
        %v1415 = vsub.f32 %v359, %v1414
        %v1416 = vand.u32 %v1415, 4294901760
        %1417 = vmatmul.f32.gmra.mxu0 %v1416
        %v1418 = vpop.f32.mrf.mxu0
        %v1419 = vadd.f32 %v1281, %v1418
        %v1420 = vand.u32 %v362, 4294901760
        %v1421 = vsub.f32 %v362, %v1420
        %v1422 = vand.u32 %v1421, 4294901760
        %1423 = vmatmul.f32.gmra.mxu0 %v1422
        %v1424 = vpop.f32.mrf.mxu0
        %v1425 = vadd.f32 %v1286, %v1424
        %v1426 = vand.u32 %v365, 4294901760
        %v1427 = vsub.f32 %v365, %v1426
        %v1428 = vand.u32 %v1427, 4294901760
        %1429 = vmatmul.f32.gmra.mxu0 %v1428
        %v1430 = vpop.f32.mrf.mxu0
        %v1431 = vadd.f32 %v1291, %v1430
        %v1432 = vand.u32 %v368, 4294901760
        %v1433 = vsub.f32 %v368, %v1432
        %v1434 = vand.u32 %v1433, 4294901760
        %1435 = vmatmul.f32.gmra.mxu0 %v1434
        %v1436 = vpop.f32.mrf.mxu0
        %v1437 = vadd.f32 %v1296, %v1436
        %v1438 = vand.u32 %v371, 4294901760
        %v1439 = vsub.f32 %v371, %v1438
        %v1440 = vand.u32 %v1439, 4294901760
        %1441 = vmatmul.f32.gmra.mxu0 %v1440
        %v1442 = vpop.f32.mrf.mxu0
        %v1443 = vadd.f32 %v1301, %v1442
        %v1444 = vand.u32 %v374, 4294901760
        %v1445 = vsub.f32 %v374, %v1444
        %v1446 = vand.u32 %v1445, 4294901760
        %1447 = vmatmul.f32.gmra.mxu0 %v1446
        %v1448 = vpop.f32.mrf.mxu0
        %v1449 = vadd.f32 %v1306, %v1448
        %v1450 = vand.u32 %v377, 4294901760
        %v1451 = vsub.f32 %v377, %v1450
        %v1452 = vand.u32 %v1451, 4294901760
        %1453 = vmatmul.f32.gmra.mxu0 %v1452
        %v1454 = vpop.f32.mrf.mxu0
        %v1455 = vadd.f32 %v1311, %v1454
        %v1456 = vand.u32 %v380, 4294901760
        %v1457 = vsub.f32 %v380, %v1456
        %v1458 = vand.u32 %v1457, 4294901760
        %1459 = vmatmul.f32.gmra.mxu0 %v1458
        %v1460 = vpop.f32.mrf.mxu0
        %v1461 = vadd.f32 %v1316, %v1460
        %v1462 = vand.u32 %v383, 4294901760
        %v1463 = vsub.f32 %v383, %v1462
        %v1464 = vand.u32 %v1463, 4294901760
        %1465 = vmatmul.f32.gmra.mxu0 %v1464
        %v1466 = vpop.f32.mrf.mxu0
        %v1467 = vadd.f32 %v1321, %v1466
        %v1468 = vand.u32 %v386, 4294901760
        %v1469 = vsub.f32 %v386, %v1468
        %v1470 = vand.u32 %v1469, 4294901760
        %1471 = vmatmul.f32.gmra.mxu0 %v1470
        %v1472 = vpop.f32.mrf.mxu0
        %v1473 = vadd.f32 %v1326, %v1472
        %1474 = vdwg.mxu0
        %v1475 = vand.u32 %v745, 4294901760
        %v1476 = vsub.f32 %v745, %v1475
        %v1477 = vand.u32 %v1476, 4294901760
        %1478 = vmatpush.msra.mxu0 %v1477
        %v1479 = vand.u32 %v744, 4294901760
        %v1480 = vsub.f32 %v744, %v1479
        %v1481 = vand.u32 %v1480, 4294901760
        %1482 = vmatpush.msra.mxu0 %v1481
        %v1483 = vand.u32 %v743, 4294901760
        %v1484 = vsub.f32 %v743, %v1483
        %v1485 = vand.u32 %v1484, 4294901760
        %1486 = vmatpush.msra.mxu0 %v1485
        %v1487 = vand.u32 %v742, 4294901760
        %v1488 = vsub.f32 %v742, %v1487
        %v1489 = vand.u32 %v1488, 4294901760
        %1490 = vmatpush.msra.mxu0 %v1489
        %v1491 = vand.u32 %v741, 4294901760
        %v1492 = vsub.f32 %v741, %v1491
        %v1493 = vand.u32 %v1492, 4294901760
        %1494 = vmatpush.msra.mxu0 %v1493
        %v1495 = vand.u32 %v740, 4294901760
        %v1496 = vsub.f32 %v740, %v1495
        %v1497 = vand.u32 %v1496, 4294901760
        %1498 = vmatpush.msra.mxu0 %v1497
        %v1499 = vand.u32 %v739, 4294901760
        %v1500 = vsub.f32 %v739, %v1499
        %v1501 = vand.u32 %v1500, 4294901760
        %1502 = vmatpush.msra.mxu0 %v1501
        %v1503 = vand.u32 %v738, 4294901760
        %v1504 = vsub.f32 %v738, %v1503
        %v1505 = vand.u32 %v1504, 4294901760
        %1506 = vmatpush.msra.mxu0 %v1505
        %v1507 = vand.u32 %v737, 4294901760
        %v1508 = vsub.f32 %v737, %v1507
        %v1509 = vand.u32 %v1508, 4294901760
        %1510 = vmatpush.msra.mxu0 %v1509
        %v1511 = vand.u32 %v736, 4294901760
        %v1512 = vsub.f32 %v736, %v1511
        %v1513 = vand.u32 %v1512, 4294901760
        %1514 = vmatpush.msra.mxu0 %v1513
        %v1515 = vand.u32 %v735, 4294901760
        %v1516 = vsub.f32 %v735, %v1515
        %v1517 = vand.u32 %v1516, 4294901760
        %1518 = vmatpush.msra.mxu0 %v1517
        %v1519 = vand.u32 %v734, 4294901760
        %v1520 = vsub.f32 %v734, %v1519
        %v1521 = vand.u32 %v1520, 4294901760
        %1522 = vmatpush.msra.mxu0 %v1521
        %v1523 = vand.u32 %v733, 4294901760
        %v1524 = vsub.f32 %v733, %v1523
        %v1525 = vand.u32 %v1524, 4294901760
        %1526 = vmatpush.msra.mxu0 %v1525
        %v1527 = vand.u32 %v732, 4294901760
        %v1528 = vsub.f32 %v732, %v1527
        %v1529 = vand.u32 %v1528, 4294901760
        %1530 = vmatpush.msra.mxu0 %v1529
        %v1531 = vand.u32 %v731, 4294901760
        %v1532 = vsub.f32 %v731, %v1531
        %v1533 = vand.u32 %v1532, 4294901760
        %1534 = vmatpush.msra.mxu0 %v1533
        %v1535 = vand.u32 %v730, 4294901760
        %v1536 = vsub.f32 %v730, %v1535
        %v1537 = vand.u32 %v1536, 4294901760
        %1538 = vmatpush.msra.mxu0 %v1537
        %v1539 = vand.u32 %v332, 4294901760
        %1540 = vmatmul.f32.gmra.mxu0 %v1539
        %v1541 = vpop.f32.mrf.mxu0
        %v1542 = vadd.f32 %v1365, %v1541
        %v1543 = vand.u32 %v335, 4294901760
        %1544 = vmatmul.f32.gmra.mxu0 %v1543
        %v1545 = vpop.f32.mrf.mxu0
        %v1546 = vadd.f32 %v1371, %v1545
        %v1547 = vand.u32 %v338, 4294901760
        %1548 = vmatmul.f32.gmra.mxu0 %v1547
        %v1549 = vpop.f32.mrf.mxu0
        %v1550 = vadd.f32 %v1377, %v1549
        %v1551 = vand.u32 %v341, 4294901760
        %1552 = vmatmul.f32.gmra.mxu0 %v1551
        %v1553 = vpop.f32.mrf.mxu0
        %v1554 = vadd.f32 %v1383, %v1553
        %v1555 = vand.u32 %v344, 4294901760
        %1556 = vmatmul.f32.gmra.mxu0 %v1555
        %v1557 = vpop.f32.mrf.mxu0
        %v1558 = vadd.f32 %v1389, %v1557
        %v1559 = vand.u32 %v347, 4294901760
        %1560 = vmatmul.f32.gmra.mxu0 %v1559
        %v1561 = vpop.f32.mrf.mxu0
        %v1562 = vadd.f32 %v1395, %v1561
        %v1563 = vand.u32 %v350, 4294901760
        %1564 = vmatmul.f32.gmra.mxu0 %v1563
        %v1565 = vpop.f32.mrf.mxu0
        %v1566 = vadd.f32 %v1401, %v1565
        %v1567 = vand.u32 %v353, 4294901760
        %1568 = vmatmul.f32.gmra.mxu0 %v1567
        %v1569 = vpop.f32.mrf.mxu0
        %v1570 = vadd.f32 %v1407, %v1569
        %v1571 = vand.u32 %v356, 4294901760
        %1572 = vmatmul.f32.gmra.mxu0 %v1571
        %v1573 = vpop.f32.mrf.mxu0
        %v1574 = vadd.f32 %v1413, %v1573
        %v1575 = vand.u32 %v359, 4294901760
        %1576 = vmatmul.f32.gmra.mxu0 %v1575
        %v1577 = vpop.f32.mrf.mxu0
        %v1578 = vadd.f32 %v1419, %v1577
        %v1579 = vand.u32 %v362, 4294901760
        %1580 = vmatmul.f32.gmra.mxu0 %v1579
        %v1581 = vpop.f32.mrf.mxu0
        %v1582 = vadd.f32 %v1425, %v1581
        %v1583 = vand.u32 %v365, 4294901760
        %1584 = vmatmul.f32.gmra.mxu0 %v1583
        %v1585 = vpop.f32.mrf.mxu0
        %v1586 = vadd.f32 %v1431, %v1585
        %v1587 = vand.u32 %v368, 4294901760
        %1588 = vmatmul.f32.gmra.mxu0 %v1587
        %v1589 = vpop.f32.mrf.mxu0
        %v1590 = vadd.f32 %v1437, %v1589
        %v1591 = vand.u32 %v371, 4294901760
        %1592 = vmatmul.f32.gmra.mxu0 %v1591
        %v1593 = vpop.f32.mrf.mxu0
        %v1594 = vadd.f32 %v1443, %v1593
        %v1595 = vand.u32 %v374, 4294901760
        %1596 = vmatmul.f32.gmra.mxu0 %v1595
        %v1597 = vpop.f32.mrf.mxu0
        %v1598 = vadd.f32 %v1449, %v1597
        %v1599 = vand.u32 %v377, 4294901760
        %1600 = vmatmul.f32.gmra.mxu0 %v1599
        %v1601 = vpop.f32.mrf.mxu0
        %v1602 = vadd.f32 %v1455, %v1601
        %v1603 = vand.u32 %v380, 4294901760
        %1604 = vmatmul.f32.gmra.mxu0 %v1603
        %v1605 = vpop.f32.mrf.mxu0
        %v1606 = vadd.f32 %v1461, %v1605
        %v1607 = vand.u32 %v383, 4294901760
        %1608 = vmatmul.f32.gmra.mxu0 %v1607
        %v1609 = vpop.f32.mrf.mxu0
        %v1610 = vadd.f32 %v1467, %v1609
        %v1611 = vand.u32 %v386, 4294901760
        %1612 = vmatmul.f32.gmra.mxu0 %v1611
        %v1613 = vpop.f32.mrf.mxu0
        %v1614 = vadd.f32 %v1473, %v1613
        %1615 = vdwg.mxu0
        %v1616 = vand.u32 %v745, 4294901760
        %1617 = vmatpush.msra.mxu0 %v1616
        %v1618 = vand.u32 %v744, 4294901760
        %1619 = vmatpush.msra.mxu0 %v1618
        %v1620 = vand.u32 %v743, 4294901760
        %1621 = vmatpush.msra.mxu0 %v1620
        %v1622 = vand.u32 %v742, 4294901760
        %1623 = vmatpush.msra.mxu0 %v1622
        %v1624 = vand.u32 %v741, 4294901760
        %1625 = vmatpush.msra.mxu0 %v1624
        %v1626 = vand.u32 %v740, 4294901760
        %1627 = vmatpush.msra.mxu0 %v1626
        %v1628 = vand.u32 %v739, 4294901760
        %1629 = vmatpush.msra.mxu0 %v1628
        %v1630 = vand.u32 %v738, 4294901760
        %1631 = vmatpush.msra.mxu0 %v1630
        %v1632 = vand.u32 %v737, 4294901760
        %1633 = vmatpush.msra.mxu0 %v1632
        %v1634 = vand.u32 %v736, 4294901760
        %1635 = vmatpush.msra.mxu0 %v1634
        %v1636 = vand.u32 %v735, 4294901760
        %1637 = vmatpush.msra.mxu0 %v1636
        %v1638 = vand.u32 %v734, 4294901760
        %1639 = vmatpush.msra.mxu0 %v1638
        %v1640 = vand.u32 %v733, 4294901760
        %1641 = vmatpush.msra.mxu0 %v1640
        %v1642 = vand.u32 %v732, 4294901760
        %1643 = vmatpush.msra.mxu0 %v1642
        %v1644 = vand.u32 %v731, 4294901760
        %1645 = vmatpush.msra.mxu0 %v1644
        %v1646 = vand.u32 %v730, 4294901760
        %1647 = vmatpush.msra.mxu0 %v1646
        %v1648 = vand.u32 %v332, 4294901760
        %1649 = vmatmul.f32.gmra.mxu0 %v1648
        %v1650 = vpop.f32.mrf.mxu0
        %v1651 = vadd.f32 %v1542, %v1650
        %v1652 = vand.u32 %v335, 4294901760
        %1653 = vmatmul.f32.gmra.mxu0 %v1652
        %v1654 = vpop.f32.mrf.mxu0
        %v1655 = vadd.f32 %v1546, %v1654
        %v1656 = vand.u32 %v338, 4294901760
        %1657 = vmatmul.f32.gmra.mxu0 %v1656
        %v1658 = vpop.f32.mrf.mxu0
        %v1659 = vadd.f32 %v1550, %v1658
        %v1660 = vand.u32 %v341, 4294901760
        %1661 = vmatmul.f32.gmra.mxu0 %v1660
        %v1662 = vpop.f32.mrf.mxu0
        %v1663 = vadd.f32 %v1554, %v1662
        %v1664 = vand.u32 %v344, 4294901760
        %1665 = vmatmul.f32.gmra.mxu0 %v1664
        %v1666 = vpop.f32.mrf.mxu0
        %v1667 = vadd.f32 %v1558, %v1666
        %v1668 = vand.u32 %v347, 4294901760
        %1669 = vmatmul.f32.gmra.mxu0 %v1668
        %v1670 = vpop.f32.mrf.mxu0
        %v1671 = vadd.f32 %v1562, %v1670
        %v1672 = vand.u32 %v350, 4294901760
        %1673 = vmatmul.f32.gmra.mxu0 %v1672
        %v1674 = vpop.f32.mrf.mxu0
        %v1675 = vadd.f32 %v1566, %v1674
        %v1676 = vand.u32 %v353, 4294901760
        %1677 = vmatmul.f32.gmra.mxu0 %v1676
        %v1678 = vpop.f32.mrf.mxu0
        %v1679 = vadd.f32 %v1570, %v1678
        %v1680 = vand.u32 %v356, 4294901760
        %1681 = vmatmul.f32.gmra.mxu0 %v1680
        %v1682 = vpop.f32.mrf.mxu0
        %v1683 = vadd.f32 %v1574, %v1682
        %v1684 = vand.u32 %v359, 4294901760
        %1685 = vmatmul.f32.gmra.mxu0 %v1684
        %v1686 = vpop.f32.mrf.mxu0
        %v1687 = vadd.f32 %v1578, %v1686
        %v1688 = vand.u32 %v362, 4294901760
        %1689 = vmatmul.f32.gmra.mxu0 %v1688
        %v1690 = vpop.f32.mrf.mxu0
        %v1691 = vadd.f32 %v1582, %v1690
        %v1692 = vand.u32 %v365, 4294901760
        %1693 = vmatmul.f32.gmra.mxu0 %v1692
        %v1694 = vpop.f32.mrf.mxu0
        %v1695 = vadd.f32 %v1586, %v1694
        %v1696 = vand.u32 %v368, 4294901760
        %1697 = vmatmul.f32.gmra.mxu0 %v1696
        %v1698 = vpop.f32.mrf.mxu0
        %v1699 = vadd.f32 %v1590, %v1698
        %v1700 = vand.u32 %v371, 4294901760
        %1701 = vmatmul.f32.gmra.mxu0 %v1700
        %v1702 = vpop.f32.mrf.mxu0
        %v1703 = vadd.f32 %v1594, %v1702
        %v1704 = vand.u32 %v374, 4294901760
        %1705 = vmatmul.f32.gmra.mxu0 %v1704
        %v1706 = vpop.f32.mrf.mxu0
        %v1707 = vadd.f32 %v1598, %v1706
        %v1708 = vand.u32 %v377, 4294901760
        %1709 = vmatmul.f32.gmra.mxu0 %v1708
        %v1710 = vpop.f32.mrf.mxu0
        %v1711 = vadd.f32 %v1602, %v1710
        %v1712 = vand.u32 %v380, 4294901760
        %1713 = vmatmul.f32.gmra.mxu0 %v1712
        %v1714 = vpop.f32.mrf.mxu0
        %v1715 = vadd.f32 %v1606, %v1714
        %v1716 = vand.u32 %v383, 4294901760
        %1717 = vmatmul.f32.gmra.mxu0 %v1716
        %v1718 = vpop.f32.mrf.mxu0
        %v1719 = vadd.f32 %v1610, %v1718
        %v1720 = vand.u32 %v386, 4294901760
        %1721 = vmatmul.f32.gmra.mxu0 %v1720
        %v1722 = vpop.f32.mrf.mxu0
        %v1723 = vadd.f32 %v1614, %v1722
        %1724 = vdwg.mxu0
        %v1725 = vand.u32 %v761, 4294901760
        %1726 = vmatpush.msra.mxu0 %v1725
        %v1727 = vand.u32 %v760, 4294901760
        %1728 = vmatpush.msra.mxu0 %v1727
        %v1729 = vand.u32 %v759, 4294901760
        %1730 = vmatpush.msra.mxu0 %v1729
        %v1731 = vand.u32 %v758, 4294901760
        %1732 = vmatpush.msra.mxu0 %v1731
        %v1733 = vand.u32 %v757, 4294901760
        %1734 = vmatpush.msra.mxu0 %v1733
        %v1735 = vand.u32 %v756, 4294901760
        %1736 = vmatpush.msra.mxu0 %v1735
        %v1737 = vand.u32 %v755, 4294901760
        %1738 = vmatpush.msra.mxu0 %v1737
        %v1739 = vand.u32 %v754, 4294901760
        %1740 = vmatpush.msra.mxu0 %v1739
        %v1741 = vand.u32 %v753, 4294901760
        %1742 = vmatpush.msra.mxu0 %v1741
        %v1743 = vand.u32 %v752, 4294901760
        %1744 = vmatpush.msra.mxu0 %v1743
        %v1745 = vand.u32 %v751, 4294901760
        %1746 = vmatpush.msra.mxu0 %v1745
        %v1747 = vand.u32 %v750, 4294901760
        %1748 = vmatpush.msra.mxu0 %v1747
        %v1749 = vand.u32 %v749, 4294901760
        %1750 = vmatpush.msra.mxu0 %v1749
        %v1751 = vand.u32 %v748, 4294901760
        %1752 = vmatpush.msra.mxu0 %v1751
        %v1753 = vand.u32 %v747, 4294901760
        %1754 = vmatpush.msra.mxu0 %v1753
        %v1755 = vand.u32 %v746, 4294901760
        %1756 = vmatpush.msra.mxu0 %v1755
        %v1757 = vand.u32 %v333, 4294901760
        %v1758 = vsub.f32 %v333, %v1757
        %v1759 = vand.u32 %v1758, 4294901760
        %v1760 = vsub.f32 %v1758, %v1759
        %v1761 = vand.u32 %v1760, 4294901760
        %1762 = vmatmul.f32.gmra.mxu0 %v1761
        %v1763 = vpop.f32.mrf.mxu0
        %v1764 = vadd.f32 %v1651, %v1763
        %v1765 = vand.u32 %v336, 4294901760
        %v1766 = vsub.f32 %v336, %v1765
        %v1767 = vand.u32 %v1766, 4294901760
        %v1768 = vsub.f32 %v1766, %v1767
        %v1769 = vand.u32 %v1768, 4294901760
        %1770 = vmatmul.f32.gmra.mxu0 %v1769
        %v1771 = vpop.f32.mrf.mxu0
        %v1772 = vadd.f32 %v1655, %v1771
        %v1773 = vand.u32 %v339, 4294901760
        %v1774 = vsub.f32 %v339, %v1773
        %v1775 = vand.u32 %v1774, 4294901760
        %v1776 = vsub.f32 %v1774, %v1775
        %v1777 = vand.u32 %v1776, 4294901760
        %1778 = vmatmul.f32.gmra.mxu0 %v1777
        %v1779 = vpop.f32.mrf.mxu0
        %v1780 = vadd.f32 %v1659, %v1779
        %v1781 = vand.u32 %v342, 4294901760
        %v1782 = vsub.f32 %v342, %v1781
        %v1783 = vand.u32 %v1782, 4294901760
        %v1784 = vsub.f32 %v1782, %v1783
        %v1785 = vand.u32 %v1784, 4294901760
        %1786 = vmatmul.f32.gmra.mxu0 %v1785
        %v1787 = vpop.f32.mrf.mxu0
        %v1788 = vadd.f32 %v1663, %v1787
        %v1789 = vand.u32 %v345, 4294901760
        %v1790 = vsub.f32 %v345, %v1789
        %v1791 = vand.u32 %v1790, 4294901760
        %v1792 = vsub.f32 %v1790, %v1791
        %v1793 = vand.u32 %v1792, 4294901760
        %1794 = vmatmul.f32.gmra.mxu0 %v1793
        %v1795 = vpop.f32.mrf.mxu0
        %v1796 = vadd.f32 %v1667, %v1795
        %v1797 = vand.u32 %v348, 4294901760
        %v1798 = vsub.f32 %v348, %v1797
        %v1799 = vand.u32 %v1798, 4294901760
        %v1800 = vsub.f32 %v1798, %v1799
        %v1801 = vand.u32 %v1800, 4294901760
        %1802 = vmatmul.f32.gmra.mxu0 %v1801
        %v1803 = vpop.f32.mrf.mxu0
        %v1804 = vadd.f32 %v1671, %v1803
        %v1805 = vand.u32 %v351, 4294901760
        %v1806 = vsub.f32 %v351, %v1805
        %v1807 = vand.u32 %v1806, 4294901760
        %v1808 = vsub.f32 %v1806, %v1807
        %v1809 = vand.u32 %v1808, 4294901760
        %1810 = vmatmul.f32.gmra.mxu0 %v1809
        %v1811 = vpop.f32.mrf.mxu0
        %v1812 = vadd.f32 %v1675, %v1811
        %v1813 = vand.u32 %v354, 4294901760
        %v1814 = vsub.f32 %v354, %v1813
        %v1815 = vand.u32 %v1814, 4294901760
        %v1816 = vsub.f32 %v1814, %v1815
        %v1817 = vand.u32 %v1816, 4294901760
        %1818 = vmatmul.f32.gmra.mxu0 %v1817
        %v1819 = vpop.f32.mrf.mxu0
        %v1820 = vadd.f32 %v1679, %v1819
        %v1821 = vand.u32 %v357, 4294901760
        %v1822 = vsub.f32 %v357, %v1821
        %v1823 = vand.u32 %v1822, 4294901760
        %v1824 = vsub.f32 %v1822, %v1823
        %v1825 = vand.u32 %v1824, 4294901760
        %1826 = vmatmul.f32.gmra.mxu0 %v1825
        %v1827 = vpop.f32.mrf.mxu0
        %v1828 = vadd.f32 %v1683, %v1827
        %v1829 = vand.u32 %v360, 4294901760
        %v1830 = vsub.f32 %v360, %v1829
        %v1831 = vand.u32 %v1830, 4294901760
        %v1832 = vsub.f32 %v1830, %v1831
        %v1833 = vand.u32 %v1832, 4294901760
        %1834 = vmatmul.f32.gmra.mxu0 %v1833
        %v1835 = vpop.f32.mrf.mxu0
        %v1836 = vadd.f32 %v1687, %v1835
        %v1837 = vand.u32 %v363, 4294901760
        %v1838 = vsub.f32 %v363, %v1837
        %v1839 = vand.u32 %v1838, 4294901760
        %v1840 = vsub.f32 %v1838, %v1839
        %v1841 = vand.u32 %v1840, 4294901760
        %1842 = vmatmul.f32.gmra.mxu0 %v1841
        %v1843 = vpop.f32.mrf.mxu0
        %v1844 = vadd.f32 %v1691, %v1843
        %v1845 = vand.u32 %v366, 4294901760
        %v1846 = vsub.f32 %v366, %v1845
        %v1847 = vand.u32 %v1846, 4294901760
        %v1848 = vsub.f32 %v1846, %v1847
        %v1849 = vand.u32 %v1848, 4294901760
        %1850 = vmatmul.f32.gmra.mxu0 %v1849
        %v1851 = vpop.f32.mrf.mxu0
        %v1852 = vadd.f32 %v1695, %v1851
        %v1853 = vand.u32 %v369, 4294901760
        %v1854 = vsub.f32 %v369, %v1853
        %v1855 = vand.u32 %v1854, 4294901760
        %v1856 = vsub.f32 %v1854, %v1855
        %v1857 = vand.u32 %v1856, 4294901760
        %1858 = vmatmul.f32.gmra.mxu0 %v1857
        %v1859 = vpop.f32.mrf.mxu0
        %v1860 = vadd.f32 %v1699, %v1859
        %v1861 = vand.u32 %v372, 4294901760
        %v1862 = vsub.f32 %v372, %v1861
        %v1863 = vand.u32 %v1862, 4294901760
        %v1864 = vsub.f32 %v1862, %v1863
        %v1865 = vand.u32 %v1864, 4294901760
        %1866 = vmatmul.f32.gmra.mxu0 %v1865
        %v1867 = vpop.f32.mrf.mxu0
        %v1868 = vadd.f32 %v1703, %v1867
        %v1869 = vand.u32 %v375, 4294901760
        %v1870 = vsub.f32 %v375, %v1869
        %v1871 = vand.u32 %v1870, 4294901760
        %v1872 = vsub.f32 %v1870, %v1871
        %v1873 = vand.u32 %v1872, 4294901760
        %1874 = vmatmul.f32.gmra.mxu0 %v1873
        %v1875 = vpop.f32.mrf.mxu0
        %v1876 = vadd.f32 %v1707, %v1875
        %v1877 = vand.u32 %v378, 4294901760
        %v1878 = vsub.f32 %v378, %v1877
        %v1879 = vand.u32 %v1878, 4294901760
        %v1880 = vsub.f32 %v1878, %v1879
        %v1881 = vand.u32 %v1880, 4294901760
        %1882 = vmatmul.f32.gmra.mxu0 %v1881
        %v1883 = vpop.f32.mrf.mxu0
        %v1884 = vadd.f32 %v1711, %v1883
        %v1885 = vand.u32 %v381, 4294901760
        %v1886 = vsub.f32 %v381, %v1885
        %v1887 = vand.u32 %v1886, 4294901760
        %v1888 = vsub.f32 %v1886, %v1887
        %v1889 = vand.u32 %v1888, 4294901760
        %1890 = vmatmul.f32.gmra.mxu0 %v1889
        %v1891 = vpop.f32.mrf.mxu0
        %v1892 = vadd.f32 %v1715, %v1891
        %v1893 = vand.u32 %v384, 4294901760
        %v1894 = vsub.f32 %v384, %v1893
        %v1895 = vand.u32 %v1894, 4294901760
        %v1896 = vsub.f32 %v1894, %v1895
        %v1897 = vand.u32 %v1896, 4294901760
        %1898 = vmatmul.f32.gmra.mxu0 %v1897
        %v1899 = vpop.f32.mrf.mxu0
        %v1900 = vadd.f32 %v1719, %v1899
        %v1901 = vand.u32 %v387, 4294901760
        %v1902 = vsub.f32 %v387, %v1901
        %v1903 = vand.u32 %v1902, 4294901760
        %v1904 = vsub.f32 %v1902, %v1903
        %v1905 = vand.u32 %v1904, 4294901760
        %1906 = vmatmul.f32.gmra.mxu0 %v1905
        %v1907 = vpop.f32.mrf.mxu0
        %v1908 = vadd.f32 %v1723, %v1907
        %1909 = vdwg.mxu0
        %v1910 = vand.u32 %v761, 4294901760
        %v1911 = vsub.f32 %v761, %v1910
        %v1912 = vand.u32 %v1911, 4294901760
        %v1913 = vsub.f32 %v1911, %v1912
        %v1914 = vand.u32 %v1913, 4294901760
        %1915 = vmatpush.msra.mxu0 %v1914
        %v1916 = vand.u32 %v760, 4294901760
        %v1917 = vsub.f32 %v760, %v1916
        %v1918 = vand.u32 %v1917, 4294901760
        %v1919 = vsub.f32 %v1917, %v1918
        %v1920 = vand.u32 %v1919, 4294901760
        %1921 = vmatpush.msra.mxu0 %v1920
        %v1922 = vand.u32 %v759, 4294901760
        %v1923 = vsub.f32 %v759, %v1922
        %v1924 = vand.u32 %v1923, 4294901760
        %v1925 = vsub.f32 %v1923, %v1924
        %v1926 = vand.u32 %v1925, 4294901760
        %1927 = vmatpush.msra.mxu0 %v1926
        %v1928 = vand.u32 %v758, 4294901760
        %v1929 = vsub.f32 %v758, %v1928
        %v1930 = vand.u32 %v1929, 4294901760
        %v1931 = vsub.f32 %v1929, %v1930
        %v1932 = vand.u32 %v1931, 4294901760
        %1933 = vmatpush.msra.mxu0 %v1932
        %v1934 = vand.u32 %v757, 4294901760
        %v1935 = vsub.f32 %v757, %v1934
        %v1936 = vand.u32 %v1935, 4294901760
        %v1937 = vsub.f32 %v1935, %v1936
        %v1938 = vand.u32 %v1937, 4294901760
        %1939 = vmatpush.msra.mxu0 %v1938
        %v1940 = vand.u32 %v756, 4294901760
        %v1941 = vsub.f32 %v756, %v1940
        %v1942 = vand.u32 %v1941, 4294901760
        %v1943 = vsub.f32 %v1941, %v1942
        %v1944 = vand.u32 %v1943, 4294901760
        %1945 = vmatpush.msra.mxu0 %v1944
        %v1946 = vand.u32 %v755, 4294901760
        %v1947 = vsub.f32 %v755, %v1946
        %v1948 = vand.u32 %v1947, 4294901760
        %v1949 = vsub.f32 %v1947, %v1948
        %v1950 = vand.u32 %v1949, 4294901760
        %1951 = vmatpush.msra.mxu0 %v1950
        %v1952 = vand.u32 %v754, 4294901760
        %v1953 = vsub.f32 %v754, %v1952
        %v1954 = vand.u32 %v1953, 4294901760
        %v1955 = vsub.f32 %v1953, %v1954
        %v1956 = vand.u32 %v1955, 4294901760
        %1957 = vmatpush.msra.mxu0 %v1956
        %v1958 = vand.u32 %v753, 4294901760
        %v1959 = vsub.f32 %v753, %v1958
        %v1960 = vand.u32 %v1959, 4294901760
        %v1961 = vsub.f32 %v1959, %v1960
        %v1962 = vand.u32 %v1961, 4294901760
        %1963 = vmatpush.msra.mxu0 %v1962
        %v1964 = vand.u32 %v752, 4294901760
        %v1965 = vsub.f32 %v752, %v1964
        %v1966 = vand.u32 %v1965, 4294901760
        %v1967 = vsub.f32 %v1965, %v1966
        %v1968 = vand.u32 %v1967, 4294901760
        %1969 = vmatpush.msra.mxu0 %v1968
        %v1970 = vand.u32 %v751, 4294901760
        %v1971 = vsub.f32 %v751, %v1970
        %v1972 = vand.u32 %v1971, 4294901760
        %v1973 = vsub.f32 %v1971, %v1972
        %v1974 = vand.u32 %v1973, 4294901760
        %1975 = vmatpush.msra.mxu0 %v1974
        %v1976 = vand.u32 %v750, 4294901760
        %v1977 = vsub.f32 %v750, %v1976
        %v1978 = vand.u32 %v1977, 4294901760
        %v1979 = vsub.f32 %v1977, %v1978
        %v1980 = vand.u32 %v1979, 4294901760
        %1981 = vmatpush.msra.mxu0 %v1980
        %v1982 = vand.u32 %v749, 4294901760
        %v1983 = vsub.f32 %v749, %v1982
        %v1984 = vand.u32 %v1983, 4294901760
        %v1985 = vsub.f32 %v1983, %v1984
        %v1986 = vand.u32 %v1985, 4294901760
        %1987 = vmatpush.msra.mxu0 %v1986
        %v1988 = vand.u32 %v748, 4294901760
        %v1989 = vsub.f32 %v748, %v1988
        %v1990 = vand.u32 %v1989, 4294901760
        %v1991 = vsub.f32 %v1989, %v1990
        %v1992 = vand.u32 %v1991, 4294901760
        %1993 = vmatpush.msra.mxu0 %v1992
        %v1994 = vand.u32 %v747, 4294901760
        %v1995 = vsub.f32 %v747, %v1994
        %v1996 = vand.u32 %v1995, 4294901760
        %v1997 = vsub.f32 %v1995, %v1996
        %v1998 = vand.u32 %v1997, 4294901760
        %1999 = vmatpush.msra.mxu0 %v1998
        %v2000 = vand.u32 %v746, 4294901760
        %v2001 = vsub.f32 %v746, %v2000
        %v2002 = vand.u32 %v2001, 4294901760
        %v2003 = vsub.f32 %v2001, %v2002
        %v2004 = vand.u32 %v2003, 4294901760
        %2005 = vmatpush.msra.mxu0 %v2004
        %v2006 = vand.u32 %v333, 4294901760
        %2007 = vmatmul.f32.gmra.mxu0 %v2006
        %v2008 = vpop.f32.mrf.mxu0
        %v2009 = vadd.f32 %v1764, %v2008
        %v2010 = vand.u32 %v336, 4294901760
        %2011 = vmatmul.f32.gmra.mxu0 %v2010
        %v2012 = vpop.f32.mrf.mxu0
        %v2013 = vadd.f32 %v1772, %v2012
        %v2014 = vand.u32 %v339, 4294901760
        %2015 = vmatmul.f32.gmra.mxu0 %v2014
        %v2016 = vpop.f32.mrf.mxu0
        %v2017 = vadd.f32 %v1780, %v2016
        %v2018 = vand.u32 %v342, 4294901760
        %2019 = vmatmul.f32.gmra.mxu0 %v2018
        %v2020 = vpop.f32.mrf.mxu0
        %v2021 = vadd.f32 %v1788, %v2020
        %v2022 = vand.u32 %v345, 4294901760
        %2023 = vmatmul.f32.gmra.mxu0 %v2022
        %v2024 = vpop.f32.mrf.mxu0
        %v2025 = vadd.f32 %v1796, %v2024
        %v2026 = vand.u32 %v348, 4294901760
        %2027 = vmatmul.f32.gmra.mxu0 %v2026
        %v2028 = vpop.f32.mrf.mxu0
        %v2029 = vadd.f32 %v1804, %v2028
        %v2030 = vand.u32 %v351, 4294901760
        %2031 = vmatmul.f32.gmra.mxu0 %v2030
        %v2032 = vpop.f32.mrf.mxu0
        %v2033 = vadd.f32 %v1812, %v2032
        %v2034 = vand.u32 %v354, 4294901760
        %2035 = vmatmul.f32.gmra.mxu0 %v2034
        %v2036 = vpop.f32.mrf.mxu0
        %v2037 = vadd.f32 %v1820, %v2036
        %v2038 = vand.u32 %v357, 4294901760
        %2039 = vmatmul.f32.gmra.mxu0 %v2038
        %v2040 = vpop.f32.mrf.mxu0
        %v2041 = vadd.f32 %v1828, %v2040
        %v2042 = vand.u32 %v360, 4294901760
        %2043 = vmatmul.f32.gmra.mxu0 %v2042
        %v2044 = vpop.f32.mrf.mxu0
        %v2045 = vadd.f32 %v1836, %v2044
        %v2046 = vand.u32 %v363, 4294901760
        %2047 = vmatmul.f32.gmra.mxu0 %v2046
        %v2048 = vpop.f32.mrf.mxu0
        %v2049 = vadd.f32 %v1844, %v2048
        %v2050 = vand.u32 %v366, 4294901760
        %2051 = vmatmul.f32.gmra.mxu0 %v2050
        %v2052 = vpop.f32.mrf.mxu0
        %v2053 = vadd.f32 %v1852, %v2052
        %v2054 = vand.u32 %v369, 4294901760
        %2055 = vmatmul.f32.gmra.mxu0 %v2054
        %v2056 = vpop.f32.mrf.mxu0
        %v2057 = vadd.f32 %v1860, %v2056
        %v2058 = vand.u32 %v372, 4294901760
        %2059 = vmatmul.f32.gmra.mxu0 %v2058
        %v2060 = vpop.f32.mrf.mxu0
        %v2061 = vadd.f32 %v1868, %v2060
        %v2062 = vand.u32 %v375, 4294901760
        %2063 = vmatmul.f32.gmra.mxu0 %v2062
        %v2064 = vpop.f32.mrf.mxu0
        %v2065 = vadd.f32 %v1876, %v2064
        %v2066 = vand.u32 %v378, 4294901760
        %2067 = vmatmul.f32.gmra.mxu0 %v2066
        %v2068 = vpop.f32.mrf.mxu0
        %v2069 = vadd.f32 %v1884, %v2068
        %v2070 = vand.u32 %v381, 4294901760
        %2071 = vmatmul.f32.gmra.mxu0 %v2070
        %v2072 = vpop.f32.mrf.mxu0
        %v2073 = vadd.f32 %v1892, %v2072
        %v2074 = vand.u32 %v384, 4294901760
        %2075 = vmatmul.f32.gmra.mxu0 %v2074
        %v2076 = vpop.f32.mrf.mxu0
        %v2077 = vadd.f32 %v1900, %v2076
        %v2078 = vand.u32 %v387, 4294901760
        %2079 = vmatmul.f32.gmra.mxu0 %v2078
        %v2080 = vpop.f32.mrf.mxu0
        %v2081 = vadd.f32 %v1908, %v2080
        %2082 = vdwg.mxu0
        %v2083 = vand.u32 %v761, 4294901760
        %v2084 = vsub.f32 %v761, %v2083
        %2085 = vmatpush.msra.mxu0 %v2084
        %v2086 = vand.u32 %v760, 4294901760
        %v2087 = vsub.f32 %v760, %v2086
        %2088 = vmatpush.msra.mxu0 %v2087
        %v2089 = vand.u32 %v759, 4294901760
        %v2090 = vsub.f32 %v759, %v2089
        %2091 = vmatpush.msra.mxu0 %v2090
        %v2092 = vand.u32 %v758, 4294901760
        %v2093 = vsub.f32 %v758, %v2092
        %2094 = vmatpush.msra.mxu0 %v2093
        %v2095 = vand.u32 %v757, 4294901760
        %v2096 = vsub.f32 %v757, %v2095
        %2097 = vmatpush.msra.mxu0 %v2096
        %v2098 = vand.u32 %v756, 4294901760
        %v2099 = vsub.f32 %v756, %v2098
        %2100 = vmatpush.msra.mxu0 %v2099
        %v2101 = vand.u32 %v755, 4294901760
        %v2102 = vsub.f32 %v755, %v2101
        %2103 = vmatpush.msra.mxu0 %v2102
        %v2104 = vand.u32 %v754, 4294901760
        %v2105 = vsub.f32 %v754, %v2104
        %2106 = vmatpush.msra.mxu0 %v2105
        %v2107 = vand.u32 %v753, 4294901760
        %v2108 = vsub.f32 %v753, %v2107
        %2109 = vmatpush.msra.mxu0 %v2108
        %v2110 = vand.u32 %v752, 4294901760
        %v2111 = vsub.f32 %v752, %v2110
        %2112 = vmatpush.msra.mxu0 %v2111
        %v2113 = vand.u32 %v751, 4294901760
        %v2114 = vsub.f32 %v751, %v2113
        %2115 = vmatpush.msra.mxu0 %v2114
        %v2116 = vand.u32 %v750, 4294901760
        %v2117 = vsub.f32 %v750, %v2116
        %2118 = vmatpush.msra.mxu0 %v2117
        %v2119 = vand.u32 %v749, 4294901760
        %v2120 = vsub.f32 %v749, %v2119
        %2121 = vmatpush.msra.mxu0 %v2120
        %v2122 = vand.u32 %v748, 4294901760
        %v2123 = vsub.f32 %v748, %v2122
        %2124 = vmatpush.msra.mxu0 %v2123
        %v2125 = vand.u32 %v747, 4294901760
        %v2126 = vsub.f32 %v747, %v2125
        %2127 = vmatpush.msra.mxu0 %v2126
        %v2128 = vand.u32 %v746, 4294901760
        %v2129 = vsub.f32 %v746, %v2128
        %2130 = vmatpush.msra.mxu0 %v2129
        %v2131 = vand.u32 %v333, 4294901760
        %v2132 = vsub.f32 %v333, %v2131
        %2133 = vmatmul.f32.gmra.mxu0 %v2132
        %v2134 = vpop.f32.mrf.mxu0
        %v2135 = vadd.f32 %v2009, %v2134
        %v2136 = vand.u32 %v336, 4294901760
        %v2137 = vsub.f32 %v336, %v2136
        %2138 = vmatmul.f32.gmra.mxu0 %v2137
        %v2139 = vpop.f32.mrf.mxu0
        %v2140 = vadd.f32 %v2013, %v2139
        %v2141 = vand.u32 %v339, 4294901760
        %v2142 = vsub.f32 %v339, %v2141
        %2143 = vmatmul.f32.gmra.mxu0 %v2142
        %v2144 = vpop.f32.mrf.mxu0
        %v2145 = vadd.f32 %v2017, %v2144
        %v2146 = vand.u32 %v342, 4294901760
        %v2147 = vsub.f32 %v342, %v2146
        %2148 = vmatmul.f32.gmra.mxu0 %v2147
        %v2149 = vpop.f32.mrf.mxu0
        %v2150 = vadd.f32 %v2021, %v2149
        %v2151 = vand.u32 %v345, 4294901760
        %v2152 = vsub.f32 %v345, %v2151
        %2153 = vmatmul.f32.gmra.mxu0 %v2152
        %v2154 = vpop.f32.mrf.mxu0
        %v2155 = vadd.f32 %v2025, %v2154
        %v2156 = vand.u32 %v348, 4294901760
        %v2157 = vsub.f32 %v348, %v2156
        %2158 = vmatmul.f32.gmra.mxu0 %v2157
        %v2159 = vpop.f32.mrf.mxu0
        %v2160 = vadd.f32 %v2029, %v2159
        %v2161 = vand.u32 %v351, 4294901760
        %v2162 = vsub.f32 %v351, %v2161
        %2163 = vmatmul.f32.gmra.mxu0 %v2162
        %v2164 = vpop.f32.mrf.mxu0
        %v2165 = vadd.f32 %v2033, %v2164
        %v2166 = vand.u32 %v354, 4294901760
        %v2167 = vsub.f32 %v354, %v2166
        %2168 = vmatmul.f32.gmra.mxu0 %v2167
        %v2169 = vpop.f32.mrf.mxu0
        %v2170 = vadd.f32 %v2037, %v2169
        %v2171 = vand.u32 %v357, 4294901760
        %v2172 = vsub.f32 %v357, %v2171
        %2173 = vmatmul.f32.gmra.mxu0 %v2172
        %v2174 = vpop.f32.mrf.mxu0
        %v2175 = vadd.f32 %v2041, %v2174
        %v2176 = vand.u32 %v360, 4294901760
        %v2177 = vsub.f32 %v360, %v2176
        %2178 = vmatmul.f32.gmra.mxu0 %v2177
        %v2179 = vpop.f32.mrf.mxu0
        %v2180 = vadd.f32 %v2045, %v2179
        %v2181 = vand.u32 %v363, 4294901760
        %v2182 = vsub.f32 %v363, %v2181
        %2183 = vmatmul.f32.gmra.mxu0 %v2182
        %v2184 = vpop.f32.mrf.mxu0
        %v2185 = vadd.f32 %v2049, %v2184
        %v2186 = vand.u32 %v366, 4294901760
        %v2187 = vsub.f32 %v366, %v2186
        %2188 = vmatmul.f32.gmra.mxu0 %v2187
        %v2189 = vpop.f32.mrf.mxu0
        %v2190 = vadd.f32 %v2053, %v2189
        %v2191 = vand.u32 %v369, 4294901760
        %v2192 = vsub.f32 %v369, %v2191
        %2193 = vmatmul.f32.gmra.mxu0 %v2192
        %v2194 = vpop.f32.mrf.mxu0
        %v2195 = vadd.f32 %v2057, %v2194
        %v2196 = vand.u32 %v372, 4294901760
        %v2197 = vsub.f32 %v372, %v2196
        %2198 = vmatmul.f32.gmra.mxu0 %v2197
        %v2199 = vpop.f32.mrf.mxu0
        %v2200 = vadd.f32 %v2061, %v2199
        %v2201 = vand.u32 %v375, 4294901760
        %v2202 = vsub.f32 %v375, %v2201
        %2203 = vmatmul.f32.gmra.mxu0 %v2202
        %v2204 = vpop.f32.mrf.mxu0
        %v2205 = vadd.f32 %v2065, %v2204
        %v2206 = vand.u32 %v378, 4294901760
        %v2207 = vsub.f32 %v378, %v2206
        %2208 = vmatmul.f32.gmra.mxu0 %v2207
        %v2209 = vpop.f32.mrf.mxu0
        %v2210 = vadd.f32 %v2069, %v2209
        %v2211 = vand.u32 %v381, 4294901760
        %v2212 = vsub.f32 %v381, %v2211
        %2213 = vmatmul.f32.gmra.mxu0 %v2212
        %v2214 = vpop.f32.mrf.mxu0
        %v2215 = vadd.f32 %v2073, %v2214
        %v2216 = vand.u32 %v384, 4294901760
        %v2217 = vsub.f32 %v384, %v2216
        %2218 = vmatmul.f32.gmra.mxu0 %v2217
        %v2219 = vpop.f32.mrf.mxu0
        %v2220 = vadd.f32 %v2077, %v2219
        %v2221 = vand.u32 %v387, 4294901760
        %v2222 = vsub.f32 %v387, %v2221
        %2223 = vmatmul.f32.gmra.mxu0 %v2222
        %v2224 = vpop.f32.mrf.mxu0
        %v2225 = vadd.f32 %v2081, %v2224
        %2226 = vdwg.mxu0
        %v2227 = vand.u32 %v761, 4294901760
        %2228 = vmatpush.msra.mxu0 %v2227
        %v2229 = vand.u32 %v760, 4294901760
        %2230 = vmatpush.msra.mxu0 %v2229
        %v2231 = vand.u32 %v759, 4294901760
        %2232 = vmatpush.msra.mxu0 %v2231
        %v2233 = vand.u32 %v758, 4294901760
        %2234 = vmatpush.msra.mxu0 %v2233
        %v2235 = vand.u32 %v757, 4294901760
        %2236 = vmatpush.msra.mxu0 %v2235
        %v2237 = vand.u32 %v756, 4294901760
        %2238 = vmatpush.msra.mxu0 %v2237
        %v2239 = vand.u32 %v755, 4294901760
        %2240 = vmatpush.msra.mxu0 %v2239
        %v2241 = vand.u32 %v754, 4294901760
        %2242 = vmatpush.msra.mxu0 %v2241
        %v2243 = vand.u32 %v753, 4294901760
        %2244 = vmatpush.msra.mxu0 %v2243
        %v2245 = vand.u32 %v752, 4294901760
        %2246 = vmatpush.msra.mxu0 %v2245
        %v2247 = vand.u32 %v751, 4294901760
        %2248 = vmatpush.msra.mxu0 %v2247
        %v2249 = vand.u32 %v750, 4294901760
        %2250 = vmatpush.msra.mxu0 %v2249
        %v2251 = vand.u32 %v749, 4294901760
        %2252 = vmatpush.msra.mxu0 %v2251
        %v2253 = vand.u32 %v748, 4294901760
        %2254 = vmatpush.msra.mxu0 %v2253
        %v2255 = vand.u32 %v747, 4294901760
        %2256 = vmatpush.msra.mxu0 %v2255
        %v2257 = vand.u32 %v746, 4294901760
        %2258 = vmatpush.msra.mxu0 %v2257
        %v2259 = vand.u32 %v333, 4294901760
        %v2260 = vsub.f32 %v333, %v2259
        %v2261 = vand.u32 %v2260, 4294901760
        %2262 = vmatmul.f32.gmra.mxu0 %v2261
        %v2263 = vpop.f32.mrf.mxu0
        %v2264 = vadd.f32 %v2135, %v2263
        %v2265 = vand.u32 %v336, 4294901760
        %v2266 = vsub.f32 %v336, %v2265
        %v2267 = vand.u32 %v2266, 4294901760
        %2268 = vmatmul.f32.gmra.mxu0 %v2267
        %v2269 = vpop.f32.mrf.mxu0
        %v2270 = vadd.f32 %v2140, %v2269
        %v2271 = vand.u32 %v339, 4294901760
        %v2272 = vsub.f32 %v339, %v2271
        %v2273 = vand.u32 %v2272, 4294901760
        %2274 = vmatmul.f32.gmra.mxu0 %v2273
        %v2275 = vpop.f32.mrf.mxu0
        %v2276 = vadd.f32 %v2145, %v2275
        %v2277 = vand.u32 %v342, 4294901760
        %v2278 = vsub.f32 %v342, %v2277
        %v2279 = vand.u32 %v2278, 4294901760
        %2280 = vmatmul.f32.gmra.mxu0 %v2279
        %v2281 = vpop.f32.mrf.mxu0
        %v2282 = vadd.f32 %v2150, %v2281
        %v2283 = vand.u32 %v345, 4294901760
        %v2284 = vsub.f32 %v345, %v2283
        %v2285 = vand.u32 %v2284, 4294901760
        %2286 = vmatmul.f32.gmra.mxu0 %v2285
        %v2287 = vpop.f32.mrf.mxu0
        %v2288 = vadd.f32 %v2155, %v2287
        %v2289 = vand.u32 %v348, 4294901760
        %v2290 = vsub.f32 %v348, %v2289
        %v2291 = vand.u32 %v2290, 4294901760
        %2292 = vmatmul.f32.gmra.mxu0 %v2291
        %v2293 = vpop.f32.mrf.mxu0
        %v2294 = vadd.f32 %v2160, %v2293
        %v2295 = vand.u32 %v351, 4294901760
        %v2296 = vsub.f32 %v351, %v2295
        %v2297 = vand.u32 %v2296, 4294901760
        %2298 = vmatmul.f32.gmra.mxu0 %v2297
        %v2299 = vpop.f32.mrf.mxu0
        %v2300 = vadd.f32 %v2165, %v2299
        %v2301 = vand.u32 %v354, 4294901760
        %v2302 = vsub.f32 %v354, %v2301
        %v2303 = vand.u32 %v2302, 4294901760
        %2304 = vmatmul.f32.gmra.mxu0 %v2303
        %v2305 = vpop.f32.mrf.mxu0
        %v2306 = vadd.f32 %v2170, %v2305
        %v2307 = vand.u32 %v357, 4294901760
        %v2308 = vsub.f32 %v357, %v2307
        %v2309 = vand.u32 %v2308, 4294901760
        %2310 = vmatmul.f32.gmra.mxu0 %v2309
        %v2311 = vpop.f32.mrf.mxu0
        %v2312 = vadd.f32 %v2175, %v2311
        %v2313 = vand.u32 %v360, 4294901760
        %v2314 = vsub.f32 %v360, %v2313
        %v2315 = vand.u32 %v2314, 4294901760
        %2316 = vmatmul.f32.gmra.mxu0 %v2315
        %v2317 = vpop.f32.mrf.mxu0
        %v2318 = vadd.f32 %v2180, %v2317
        %v2319 = vand.u32 %v363, 4294901760
        %v2320 = vsub.f32 %v363, %v2319
        %v2321 = vand.u32 %v2320, 4294901760
        %2322 = vmatmul.f32.gmra.mxu0 %v2321
        %v2323 = vpop.f32.mrf.mxu0
        %v2324 = vadd.f32 %v2185, %v2323
        %v2325 = vand.u32 %v366, 4294901760
        %v2326 = vsub.f32 %v366, %v2325
        %v2327 = vand.u32 %v2326, 4294901760
        %2328 = vmatmul.f32.gmra.mxu0 %v2327
        %v2329 = vpop.f32.mrf.mxu0
        %v2330 = vadd.f32 %v2190, %v2329
        %v2331 = vand.u32 %v369, 4294901760
        %v2332 = vsub.f32 %v369, %v2331
        %v2333 = vand.u32 %v2332, 4294901760
        %2334 = vmatmul.f32.gmra.mxu0 %v2333
        %v2335 = vpop.f32.mrf.mxu0
        %v2336 = vadd.f32 %v2195, %v2335
        %v2337 = vand.u32 %v372, 4294901760
        %v2338 = vsub.f32 %v372, %v2337
        %v2339 = vand.u32 %v2338, 4294901760
        %2340 = vmatmul.f32.gmra.mxu0 %v2339
        %v2341 = vpop.f32.mrf.mxu0
        %v2342 = vadd.f32 %v2200, %v2341
        %v2343 = vand.u32 %v375, 4294901760
        %v2344 = vsub.f32 %v375, %v2343
        %v2345 = vand.u32 %v2344, 4294901760
        %2346 = vmatmul.f32.gmra.mxu0 %v2345
        %v2347 = vpop.f32.mrf.mxu0
        %v2348 = vadd.f32 %v2205, %v2347
        %v2349 = vand.u32 %v378, 4294901760
        %v2350 = vsub.f32 %v378, %v2349
        %v2351 = vand.u32 %v2350, 4294901760
        %2352 = vmatmul.f32.gmra.mxu0 %v2351
        %v2353 = vpop.f32.mrf.mxu0
        %v2354 = vadd.f32 %v2210, %v2353
        %v2355 = vand.u32 %v381, 4294901760
        %v2356 = vsub.f32 %v381, %v2355
        %v2357 = vand.u32 %v2356, 4294901760
        %2358 = vmatmul.f32.gmra.mxu0 %v2357
        %v2359 = vpop.f32.mrf.mxu0
        %v2360 = vadd.f32 %v2215, %v2359
        %v2361 = vand.u32 %v384, 4294901760
        %v2362 = vsub.f32 %v384, %v2361
        %v2363 = vand.u32 %v2362, 4294901760
        %2364 = vmatmul.f32.gmra.mxu0 %v2363
        %v2365 = vpop.f32.mrf.mxu0
        %v2366 = vadd.f32 %v2220, %v2365
        %v2367 = vand.u32 %v387, 4294901760
        %v2368 = vsub.f32 %v387, %v2367
        %v2369 = vand.u32 %v2368, 4294901760
        %2370 = vmatmul.f32.gmra.mxu0 %v2369
        %v2371 = vpop.f32.mrf.mxu0
        %v2372 = vadd.f32 %v2225, %v2371
        %2373 = vdwg.mxu0
        %v2374 = vand.u32 %v761, 4294901760
        %v2375 = vsub.f32 %v761, %v2374
        %v2376 = vand.u32 %v2375, 4294901760
        %2377 = vmatpush.msra.mxu0 %v2376
        %v2378 = vand.u32 %v760, 4294901760
        %v2379 = vsub.f32 %v760, %v2378
        %v2380 = vand.u32 %v2379, 4294901760
        %2381 = vmatpush.msra.mxu0 %v2380
        %v2382 = vand.u32 %v759, 4294901760
        %v2383 = vsub.f32 %v759, %v2382
        %v2384 = vand.u32 %v2383, 4294901760
        %2385 = vmatpush.msra.mxu0 %v2384
        %v2386 = vand.u32 %v758, 4294901760
        %v2387 = vsub.f32 %v758, %v2386
        %v2388 = vand.u32 %v2387, 4294901760
        %2389 = vmatpush.msra.mxu0 %v2388
        %v2390 = vand.u32 %v757, 4294901760
        %v2391 = vsub.f32 %v757, %v2390
        %v2392 = vand.u32 %v2391, 4294901760
        %2393 = vmatpush.msra.mxu0 %v2392
        %v2394 = vand.u32 %v756, 4294901760
        %v2395 = vsub.f32 %v756, %v2394
        %v2396 = vand.u32 %v2395, 4294901760
        %2397 = vmatpush.msra.mxu0 %v2396
        %v2398 = vand.u32 %v755, 4294901760
        %v2399 = vsub.f32 %v755, %v2398
        %v2400 = vand.u32 %v2399, 4294901760
        %2401 = vmatpush.msra.mxu0 %v2400
        %v2402 = vand.u32 %v754, 4294901760
        %v2403 = vsub.f32 %v754, %v2402
        %v2404 = vand.u32 %v2403, 4294901760
        %2405 = vmatpush.msra.mxu0 %v2404
        %v2406 = vand.u32 %v753, 4294901760
        %v2407 = vsub.f32 %v753, %v2406
        %v2408 = vand.u32 %v2407, 4294901760
        %2409 = vmatpush.msra.mxu0 %v2408
        %v2410 = vand.u32 %v752, 4294901760
        %v2411 = vsub.f32 %v752, %v2410
        %v2412 = vand.u32 %v2411, 4294901760
        %2413 = vmatpush.msra.mxu0 %v2412
        %v2414 = vand.u32 %v751, 4294901760
        %v2415 = vsub.f32 %v751, %v2414
        %v2416 = vand.u32 %v2415, 4294901760
        %2417 = vmatpush.msra.mxu0 %v2416
        %v2418 = vand.u32 %v750, 4294901760
        %v2419 = vsub.f32 %v750, %v2418
        %v2420 = vand.u32 %v2419, 4294901760
        %2421 = vmatpush.msra.mxu0 %v2420
        %v2422 = vand.u32 %v749, 4294901760
        %v2423 = vsub.f32 %v749, %v2422
        %v2424 = vand.u32 %v2423, 4294901760
        %2425 = vmatpush.msra.mxu0 %v2424
        %v2426 = vand.u32 %v748, 4294901760
        %v2427 = vsub.f32 %v748, %v2426
        %v2428 = vand.u32 %v2427, 4294901760
        %2429 = vmatpush.msra.mxu0 %v2428
        %v2430 = vand.u32 %v747, 4294901760
        %v2431 = vsub.f32 %v747, %v2430
        %v2432 = vand.u32 %v2431, 4294901760
        %2433 = vmatpush.msra.mxu0 %v2432
        %v2434 = vand.u32 %v746, 4294901760
        %v2435 = vsub.f32 %v746, %v2434
        %v2436 = vand.u32 %v2435, 4294901760
        %2437 = vmatpush.msra.mxu0 %v2436
        %v2438 = vand.u32 %v333, 4294901760
        %2439 = vmatmul.f32.gmra.mxu0 %v2438
        %v2440 = vpop.f32.mrf.mxu0
        %v2441 = vadd.f32 %v2264, %v2440
        %v2442 = vand.u32 %v336, 4294901760
        %2443 = vmatmul.f32.gmra.mxu0 %v2442
        %v2444 = vpop.f32.mrf.mxu0
        %v2445 = vadd.f32 %v2270, %v2444
        %v2446 = vand.u32 %v339, 4294901760
        %2447 = vmatmul.f32.gmra.mxu0 %v2446
        %v2448 = vpop.f32.mrf.mxu0
        %v2449 = vadd.f32 %v2276, %v2448
        %v2450 = vand.u32 %v342, 4294901760
        %2451 = vmatmul.f32.gmra.mxu0 %v2450
        %v2452 = vpop.f32.mrf.mxu0
        %v2453 = vadd.f32 %v2282, %v2452
        %v2454 = vand.u32 %v345, 4294901760
        %2455 = vmatmul.f32.gmra.mxu0 %v2454
        %v2456 = vpop.f32.mrf.mxu0
        %v2457 = vadd.f32 %v2288, %v2456
        %v2458 = vand.u32 %v348, 4294901760
        %2459 = vmatmul.f32.gmra.mxu0 %v2458
        %v2460 = vpop.f32.mrf.mxu0
        %v2461 = vadd.f32 %v2294, %v2460
        %v2462 = vand.u32 %v351, 4294901760
        %2463 = vmatmul.f32.gmra.mxu0 %v2462
        %v2464 = vpop.f32.mrf.mxu0
        %v2465 = vadd.f32 %v2300, %v2464
        %v2466 = vand.u32 %v354, 4294901760
        %2467 = vmatmul.f32.gmra.mxu0 %v2466
        %v2468 = vpop.f32.mrf.mxu0
        %v2469 = vadd.f32 %v2306, %v2468
        %v2470 = vand.u32 %v357, 4294901760
        %2471 = vmatmul.f32.gmra.mxu0 %v2470
        %v2472 = vpop.f32.mrf.mxu0
        %v2473 = vadd.f32 %v2312, %v2472
        %v2474 = vand.u32 %v360, 4294901760
        %2475 = vmatmul.f32.gmra.mxu0 %v2474
        %v2476 = vpop.f32.mrf.mxu0
        %v2477 = vadd.f32 %v2318, %v2476
        %v2478 = vand.u32 %v363, 4294901760
        %2479 = vmatmul.f32.gmra.mxu0 %v2478
        %v2480 = vpop.f32.mrf.mxu0
        %v2481 = vadd.f32 %v2324, %v2480
        %v2482 = vand.u32 %v366, 4294901760
        %2483 = vmatmul.f32.gmra.mxu0 %v2482
        %v2484 = vpop.f32.mrf.mxu0
        %v2485 = vadd.f32 %v2330, %v2484
        %v2486 = vand.u32 %v369, 4294901760
        %2487 = vmatmul.f32.gmra.mxu0 %v2486
        %v2488 = vpop.f32.mrf.mxu0
        %v2489 = vadd.f32 %v2336, %v2488
        %v2490 = vand.u32 %v372, 4294901760
        %2491 = vmatmul.f32.gmra.mxu0 %v2490
        %v2492 = vpop.f32.mrf.mxu0
        %v2493 = vadd.f32 %v2342, %v2492
        %v2494 = vand.u32 %v375, 4294901760
        %2495 = vmatmul.f32.gmra.mxu0 %v2494
        %v2496 = vpop.f32.mrf.mxu0
        %v2497 = vadd.f32 %v2348, %v2496
        %v2498 = vand.u32 %v378, 4294901760
        %2499 = vmatmul.f32.gmra.mxu0 %v2498
        %v2500 = vpop.f32.mrf.mxu0
        %v2501 = vadd.f32 %v2354, %v2500
        %v2502 = vand.u32 %v381, 4294901760
        %2503 = vmatmul.f32.gmra.mxu0 %v2502
        %v2504 = vpop.f32.mrf.mxu0
        %v2505 = vadd.f32 %v2360, %v2504
        %v2506 = vand.u32 %v384, 4294901760
        %2507 = vmatmul.f32.gmra.mxu0 %v2506
        %v2508 = vpop.f32.mrf.mxu0
        %v2509 = vadd.f32 %v2366, %v2508
        %v2510 = vand.u32 %v387, 4294901760
        %2511 = vmatmul.f32.gmra.mxu0 %v2510
        %v2512 = vpop.f32.mrf.mxu0
        %v2513 = vadd.f32 %v2372, %v2512
        %2514 = vdwg.mxu0
        %v2515 = vand.u32 %v761, 4294901760
        %2516 = vmatpush.msra.mxu0 %v2515
        %v2517 = vand.u32 %v760, 4294901760
        %2518 = vmatpush.msra.mxu0 %v2517
        %v2519 = vand.u32 %v759, 4294901760
        %2520 = vmatpush.msra.mxu0 %v2519
        %v2521 = vand.u32 %v758, 4294901760
        %2522 = vmatpush.msra.mxu0 %v2521
        %v2523 = vand.u32 %v757, 4294901760
        %2524 = vmatpush.msra.mxu0 %v2523
        %v2525 = vand.u32 %v756, 4294901760
        %2526 = vmatpush.msra.mxu0 %v2525
        %v2527 = vand.u32 %v755, 4294901760
        %2528 = vmatpush.msra.mxu0 %v2527
        %v2529 = vand.u32 %v754, 4294901760
        %2530 = vmatpush.msra.mxu0 %v2529
        %v2531 = vand.u32 %v753, 4294901760
        %2532 = vmatpush.msra.mxu0 %v2531
        %v2533 = vand.u32 %v752, 4294901760
        %2534 = vmatpush.msra.mxu0 %v2533
        %v2535 = vand.u32 %v751, 4294901760
        %2536 = vmatpush.msra.mxu0 %v2535
        %v2537 = vand.u32 %v750, 4294901760
        %2538 = vmatpush.msra.mxu0 %v2537
        %v2539 = vand.u32 %v749, 4294901760
        %2540 = vmatpush.msra.mxu0 %v2539
        %v2541 = vand.u32 %v748, 4294901760
        %2542 = vmatpush.msra.mxu0 %v2541
        %v2543 = vand.u32 %v747, 4294901760
        %2544 = vmatpush.msra.mxu0 %v2543
        %v2545 = vand.u32 %v746, 4294901760
        %2546 = vmatpush.msra.mxu0 %v2545
        %v2547 = vand.u32 %v333, 4294901760
        %2548 = vmatmul.f32.gmra.mxu0 %v2547
        %v2549 = vpop.f32.mrf.mxu0
        %v2550 = vadd.f32 %v2441, %v2549
        %v2551 = vand.u32 %v336, 4294901760
        %2552 = vmatmul.f32.gmra.mxu0 %v2551
        %v2553 = vpop.f32.mrf.mxu0
        %v2554 = vadd.f32 %v2445, %v2553
        %v2555 = vand.u32 %v339, 4294901760
        %2556 = vmatmul.f32.gmra.mxu0 %v2555
        %v2557 = vpop.f32.mrf.mxu0
        %v2558 = vadd.f32 %v2449, %v2557
        %v2559 = vand.u32 %v342, 4294901760
        %2560 = vmatmul.f32.gmra.mxu0 %v2559
        %v2561 = vpop.f32.mrf.mxu0
        %v2562 = vadd.f32 %v2453, %v2561
        %v2563 = vand.u32 %v345, 4294901760
        %2564 = vmatmul.f32.gmra.mxu0 %v2563
        %v2565 = vpop.f32.mrf.mxu0
        %v2566 = vadd.f32 %v2457, %v2565
        %v2567 = vand.u32 %v348, 4294901760
        %2568 = vmatmul.f32.gmra.mxu0 %v2567
        %v2569 = vpop.f32.mrf.mxu0
        %v2570 = vadd.f32 %v2461, %v2569
        %v2571 = vand.u32 %v351, 4294901760
        %2572 = vmatmul.f32.gmra.mxu0 %v2571
        %v2573 = vpop.f32.mrf.mxu0
        %v2574 = vadd.f32 %v2465, %v2573
        %v2575 = vand.u32 %v354, 4294901760
        %2576 = vmatmul.f32.gmra.mxu0 %v2575
        %v2577 = vpop.f32.mrf.mxu0
        %v2578 = vadd.f32 %v2469, %v2577
        %v2579 = vand.u32 %v357, 4294901760
        %2580 = vmatmul.f32.gmra.mxu0 %v2579
        %v2581 = vpop.f32.mrf.mxu0
        %v2582 = vadd.f32 %v2473, %v2581
        %v2583 = vand.u32 %v360, 4294901760
        %2584 = vmatmul.f32.gmra.mxu0 %v2583
        %v2585 = vpop.f32.mrf.mxu0
        %v2586 = vadd.f32 %v2477, %v2585
        %v2587 = vand.u32 %v363, 4294901760
        %2588 = vmatmul.f32.gmra.mxu0 %v2587
        %v2589 = vpop.f32.mrf.mxu0
        %v2590 = vadd.f32 %v2481, %v2589
        %v2591 = vand.u32 %v366, 4294901760
        %2592 = vmatmul.f32.gmra.mxu0 %v2591
        %v2593 = vpop.f32.mrf.mxu0
        %v2594 = vadd.f32 %v2485, %v2593
        %v2595 = vand.u32 %v369, 4294901760
        %2596 = vmatmul.f32.gmra.mxu0 %v2595
        %v2597 = vpop.f32.mrf.mxu0
        %v2598 = vadd.f32 %v2489, %v2597
        %v2599 = vand.u32 %v372, 4294901760
        %2600 = vmatmul.f32.gmra.mxu0 %v2599
        %v2601 = vpop.f32.mrf.mxu0
        %v2602 = vadd.f32 %v2493, %v2601
        %v2603 = vand.u32 %v375, 4294901760
        %2604 = vmatmul.f32.gmra.mxu0 %v2603
        %v2605 = vpop.f32.mrf.mxu0
        %v2606 = vadd.f32 %v2497, %v2605
        %v2607 = vand.u32 %v378, 4294901760
        %2608 = vmatmul.f32.gmra.mxu0 %v2607
        %v2609 = vpop.f32.mrf.mxu0
        %v2610 = vadd.f32 %v2501, %v2609
        %v2611 = vand.u32 %v381, 4294901760
        %2612 = vmatmul.f32.gmra.mxu0 %v2611
        %v2613 = vpop.f32.mrf.mxu0
        %v2614 = vadd.f32 %v2505, %v2613
        %v2615 = vand.u32 %v384, 4294901760
        %2616 = vmatmul.f32.gmra.mxu0 %v2615
        %v2617 = vpop.f32.mrf.mxu0
        %v2618 = vadd.f32 %v2509, %v2617
        %v2619 = vand.u32 %v387, 4294901760
        %2620 = vmatmul.f32.gmra.mxu0 %v2619
        %v2621 = vpop.f32.mrf.mxu0
        %v2622 = vadd.f32 %v2513, %v2621
        %2623 = vdwg.mxu0
        %2624 = vmatpush.msra.mxu0 0.0
        %2625 = vmatpush.msra.mxu0 0.0
        %2626 = vmatpush.msra.mxu0 0.0
        %2627 = vmatpush.msra.mxu0 0.0
        %2628 = vmatpush.msra.mxu0 0.0
        %2629 = vmatpush.msra.mxu0 0.0
        %2630 = vmatpush.msra.mxu0 0.0
        %2631 = vmatpush.msra.mxu0 0.0
        %2632 = vmatpush.msra.mxu0 0.0
        %v2633 = vand.u32 %v729, 4294901760
        %2634 = vmatpush.msra.mxu0 %v2633
        %v2635 = vand.u32 %v767, 4294901760
        %2636 = vmatpush.msra.mxu0 %v2635
        %v2637 = vand.u32 %v766, 4294901760
        %2638 = vmatpush.msra.mxu0 %v2637
        %v2639 = vand.u32 %v765, 4294901760
        %2640 = vmatpush.msra.mxu0 %v2639
        %v2641 = vand.u32 %v764, 4294901760
        %2642 = vmatpush.msra.mxu0 %v2641
        %v2643 = vand.u32 %v763, 4294901760
        %2644 = vmatpush.msra.mxu0 %v2643
        %v2645 = vand.u32 %v762, 4294901760
        %2646 = vmatpush.msra.mxu0 %v2645
        %v2647 = vand.u32 %v770, 4294901760
        %v2648 = vsub.f32 %v770, %v2647
        %v2649 = vand.u32 %v2648, 4294901760
        %v2650 = vsub.f32 %v2648, %v2649
        %v2651 = vand.u32 %v2650, 4294901760
        %2652 = vmatmul.f32.gmra.mxu0 %v2651
        %v2653 = vpop.f32.mrf.mxu0
        %v2654 = vadd.f32 %v2550, %v2653
        %v2655 = vand.u32 %v773, 4294901760
        %v2656 = vsub.f32 %v773, %v2655
        %v2657 = vand.u32 %v2656, 4294901760
        %v2658 = vsub.f32 %v2656, %v2657
        %v2659 = vand.u32 %v2658, 4294901760
        %2660 = vmatmul.f32.gmra.mxu0 %v2659
        %v2661 = vpop.f32.mrf.mxu0
        %v2662 = vadd.f32 %v2554, %v2661
        %v2663 = vand.u32 %v776, 4294901760
        %v2664 = vsub.f32 %v776, %v2663
        %v2665 = vand.u32 %v2664, 4294901760
        %v2666 = vsub.f32 %v2664, %v2665
        %v2667 = vand.u32 %v2666, 4294901760
        %2668 = vmatmul.f32.gmra.mxu0 %v2667
        %v2669 = vpop.f32.mrf.mxu0
        %v2670 = vadd.f32 %v2558, %v2669
        %v2671 = vand.u32 %v779, 4294901760
        %v2672 = vsub.f32 %v779, %v2671
        %v2673 = vand.u32 %v2672, 4294901760
        %v2674 = vsub.f32 %v2672, %v2673
        %v2675 = vand.u32 %v2674, 4294901760
        %2676 = vmatmul.f32.gmra.mxu0 %v2675
        %v2677 = vpop.f32.mrf.mxu0
        %v2678 = vadd.f32 %v2562, %v2677
        %v2679 = vand.u32 %v782, 4294901760
        %v2680 = vsub.f32 %v782, %v2679
        %v2681 = vand.u32 %v2680, 4294901760
        %v2682 = vsub.f32 %v2680, %v2681
        %v2683 = vand.u32 %v2682, 4294901760
        %2684 = vmatmul.f32.gmra.mxu0 %v2683
        %v2685 = vpop.f32.mrf.mxu0
        %v2686 = vadd.f32 %v2566, %v2685
        %v2687 = vand.u32 %v785, 4294901760
        %v2688 = vsub.f32 %v785, %v2687
        %v2689 = vand.u32 %v2688, 4294901760
        %v2690 = vsub.f32 %v2688, %v2689
        %v2691 = vand.u32 %v2690, 4294901760
        %2692 = vmatmul.f32.gmra.mxu0 %v2691
        %v2693 = vpop.f32.mrf.mxu0
        %v2694 = vadd.f32 %v2570, %v2693
        %v2695 = vand.u32 %v788, 4294901760
        %v2696 = vsub.f32 %v788, %v2695
        %v2697 = vand.u32 %v2696, 4294901760
        %v2698 = vsub.f32 %v2696, %v2697
        %v2699 = vand.u32 %v2698, 4294901760
        %2700 = vmatmul.f32.gmra.mxu0 %v2699
        %v2701 = vpop.f32.mrf.mxu0
        %v2702 = vadd.f32 %v2574, %v2701
        %v2703 = vand.u32 %v791, 4294901760
        %v2704 = vsub.f32 %v791, %v2703
        %v2705 = vand.u32 %v2704, 4294901760
        %v2706 = vsub.f32 %v2704, %v2705
        %v2707 = vand.u32 %v2706, 4294901760
        %2708 = vmatmul.f32.gmra.mxu0 %v2707
        %v2709 = vpop.f32.mrf.mxu0
        %v2710 = vadd.f32 %v2578, %v2709
        %v2711 = vand.u32 %v794, 4294901760
        %v2712 = vsub.f32 %v794, %v2711
        %v2713 = vand.u32 %v2712, 4294901760
        %v2714 = vsub.f32 %v2712, %v2713
        %v2715 = vand.u32 %v2714, 4294901760
        %2716 = vmatmul.f32.gmra.mxu0 %v2715
        %v2717 = vpop.f32.mrf.mxu0
        %v2718 = vadd.f32 %v2582, %v2717
        %v2719 = vand.u32 %v797, 4294901760
        %v2720 = vsub.f32 %v797, %v2719
        %v2721 = vand.u32 %v2720, 4294901760
        %v2722 = vsub.f32 %v2720, %v2721
        %v2723 = vand.u32 %v2722, 4294901760
        %2724 = vmatmul.f32.gmra.mxu0 %v2723
        %v2725 = vpop.f32.mrf.mxu0
        %v2726 = vadd.f32 %v2586, %v2725
        %v2727 = vand.u32 %v800, 4294901760
        %v2728 = vsub.f32 %v800, %v2727
        %v2729 = vand.u32 %v2728, 4294901760
        %v2730 = vsub.f32 %v2728, %v2729
        %v2731 = vand.u32 %v2730, 4294901760
        %2732 = vmatmul.f32.gmra.mxu0 %v2731
        %v2733 = vpop.f32.mrf.mxu0
        %v2734 = vadd.f32 %v2590, %v2733
        %v2735 = vand.u32 %v803, 4294901760
        %v2736 = vsub.f32 %v803, %v2735
        %v2737 = vand.u32 %v2736, 4294901760
        %v2738 = vsub.f32 %v2736, %v2737
        %v2739 = vand.u32 %v2738, 4294901760
        %2740 = vmatmul.f32.gmra.mxu0 %v2739
        %v2741 = vpop.f32.mrf.mxu0
        %v2742 = vadd.f32 %v2594, %v2741
        %v2743 = vand.u32 %v806, 4294901760
        %v2744 = vsub.f32 %v806, %v2743
        %v2745 = vand.u32 %v2744, 4294901760
        %v2746 = vsub.f32 %v2744, %v2745
        %v2747 = vand.u32 %v2746, 4294901760
        %2748 = vmatmul.f32.gmra.mxu0 %v2747
        %v2749 = vpop.f32.mrf.mxu0
        %v2750 = vadd.f32 %v2598, %v2749
        %v2751 = vand.u32 %v809, 4294901760
        %v2752 = vsub.f32 %v809, %v2751
        %v2753 = vand.u32 %v2752, 4294901760
        %v2754 = vsub.f32 %v2752, %v2753
        %v2755 = vand.u32 %v2754, 4294901760
        %2756 = vmatmul.f32.gmra.mxu0 %v2755
        %v2757 = vpop.f32.mrf.mxu0
        %v2758 = vadd.f32 %v2602, %v2757
        %v2759 = vand.u32 %v812, 4294901760
        %v2760 = vsub.f32 %v812, %v2759
        %v2761 = vand.u32 %v2760, 4294901760
        %v2762 = vsub.f32 %v2760, %v2761
        %v2763 = vand.u32 %v2762, 4294901760
        %2764 = vmatmul.f32.gmra.mxu0 %v2763
        %v2765 = vpop.f32.mrf.mxu0
        %v2766 = vadd.f32 %v2606, %v2765
        %v2767 = vand.u32 %v815, 4294901760
        %v2768 = vsub.f32 %v815, %v2767
        %v2769 = vand.u32 %v2768, 4294901760
        %v2770 = vsub.f32 %v2768, %v2769
        %v2771 = vand.u32 %v2770, 4294901760
        %2772 = vmatmul.f32.gmra.mxu0 %v2771
        %v2773 = vpop.f32.mrf.mxu0
        %v2774 = vadd.f32 %v2610, %v2773
        %v2775 = vand.u32 %v818, 4294901760
        %v2776 = vsub.f32 %v818, %v2775
        %v2777 = vand.u32 %v2776, 4294901760
        %v2778 = vsub.f32 %v2776, %v2777
        %v2779 = vand.u32 %v2778, 4294901760
        %2780 = vmatmul.f32.gmra.mxu0 %v2779
        %v2781 = vpop.f32.mrf.mxu0
        %v2782 = vadd.f32 %v2614, %v2781
        %v2783 = vand.u32 %v821, 4294901760
        %v2784 = vsub.f32 %v821, %v2783
        %v2785 = vand.u32 %v2784, 4294901760
        %v2786 = vsub.f32 %v2784, %v2785
        %v2787 = vand.u32 %v2786, 4294901760
        %2788 = vmatmul.f32.gmra.mxu0 %v2787
        %v2789 = vpop.f32.mrf.mxu0
        %v2790 = vadd.f32 %v2618, %v2789
        %v2791 = vand.u32 %v824, 4294901760
        %v2792 = vsub.f32 %v824, %v2791
        %v2793 = vand.u32 %v2792, 4294901760
        %v2794 = vsub.f32 %v2792, %v2793
        %v2795 = vand.u32 %v2794, 4294901760
        %2796 = vmatmul.f32.gmra.mxu0 %v2795
        %v2797 = vpop.f32.mrf.mxu0
        %v2798 = vadd.f32 %v2622, %v2797
        %2799 = vdwg.mxu0
        %2800 = vmatpush.msra.mxu0 0.0
        %2801 = vmatpush.msra.mxu0 0.0
        %2802 = vmatpush.msra.mxu0 0.0
        %2803 = vmatpush.msra.mxu0 0.0
        %2804 = vmatpush.msra.mxu0 0.0
        %2805 = vmatpush.msra.mxu0 0.0
        %2806 = vmatpush.msra.mxu0 0.0
        %2807 = vmatpush.msra.mxu0 0.0
        %2808 = vmatpush.msra.mxu0 0.0
        %v2809 = vand.u32 %v729, 4294901760
        %v2810 = vsub.f32 %v729, %v2809
        %v2811 = vand.u32 %v2810, 4294901760
        %v2812 = vsub.f32 %v2810, %v2811
        %v2813 = vand.u32 %v2812, 4294901760
        %2814 = vmatpush.msra.mxu0 %v2813
        %v2815 = vand.u32 %v767, 4294901760
        %v2816 = vsub.f32 %v767, %v2815
        %v2817 = vand.u32 %v2816, 4294901760
        %v2818 = vsub.f32 %v2816, %v2817
        %v2819 = vand.u32 %v2818, 4294901760
        %2820 = vmatpush.msra.mxu0 %v2819
        %v2821 = vand.u32 %v766, 4294901760
        %v2822 = vsub.f32 %v766, %v2821
        %v2823 = vand.u32 %v2822, 4294901760
        %v2824 = vsub.f32 %v2822, %v2823
        %v2825 = vand.u32 %v2824, 4294901760
        %2826 = vmatpush.msra.mxu0 %v2825
        %v2827 = vand.u32 %v765, 4294901760
        %v2828 = vsub.f32 %v765, %v2827
        %v2829 = vand.u32 %v2828, 4294901760
        %v2830 = vsub.f32 %v2828, %v2829
        %v2831 = vand.u32 %v2830, 4294901760
        %2832 = vmatpush.msra.mxu0 %v2831
        %v2833 = vand.u32 %v764, 4294901760
        %v2834 = vsub.f32 %v764, %v2833
        %v2835 = vand.u32 %v2834, 4294901760
        %v2836 = vsub.f32 %v2834, %v2835
        %v2837 = vand.u32 %v2836, 4294901760
        %2838 = vmatpush.msra.mxu0 %v2837
        %v2839 = vand.u32 %v763, 4294901760
        %v2840 = vsub.f32 %v763, %v2839
        %v2841 = vand.u32 %v2840, 4294901760
        %v2842 = vsub.f32 %v2840, %v2841
        %v2843 = vand.u32 %v2842, 4294901760
        %2844 = vmatpush.msra.mxu0 %v2843
        %v2845 = vand.u32 %v762, 4294901760
        %v2846 = vsub.f32 %v762, %v2845
        %v2847 = vand.u32 %v2846, 4294901760
        %v2848 = vsub.f32 %v2846, %v2847
        %v2849 = vand.u32 %v2848, 4294901760
        %2850 = vmatpush.msra.mxu0 %v2849
        %v2851 = vand.u32 %v770, 4294901760
        %2852 = vmatmul.f32.gmra.mxu0 %v2851
        %v2853 = vpop.f32.mrf.mxu0
        %v2854 = vadd.f32 %v2654, %v2853
        %v2855 = vand.u32 %v773, 4294901760
        %2856 = vmatmul.f32.gmra.mxu0 %v2855
        %v2857 = vpop.f32.mrf.mxu0
        %v2858 = vadd.f32 %v2662, %v2857
        %v2859 = vand.u32 %v776, 4294901760
        %2860 = vmatmul.f32.gmra.mxu0 %v2859
        %v2861 = vpop.f32.mrf.mxu0
        %v2862 = vadd.f32 %v2670, %v2861
        %v2863 = vand.u32 %v779, 4294901760
        %2864 = vmatmul.f32.gmra.mxu0 %v2863
        %v2865 = vpop.f32.mrf.mxu0
        %v2866 = vadd.f32 %v2678, %v2865
        %v2867 = vand.u32 %v782, 4294901760
        %2868 = vmatmul.f32.gmra.mxu0 %v2867
        %v2869 = vpop.f32.mrf.mxu0
        %v2870 = vadd.f32 %v2686, %v2869
        %v2871 = vand.u32 %v785, 4294901760
        %2872 = vmatmul.f32.gmra.mxu0 %v2871
        %v2873 = vpop.f32.mrf.mxu0
        %v2874 = vadd.f32 %v2694, %v2873
        %v2875 = vand.u32 %v788, 4294901760
        %2876 = vmatmul.f32.gmra.mxu0 %v2875
        %v2877 = vpop.f32.mrf.mxu0
        %v2878 = vadd.f32 %v2702, %v2877
        %v2879 = vand.u32 %v791, 4294901760
        %2880 = vmatmul.f32.gmra.mxu0 %v2879
        %v2881 = vpop.f32.mrf.mxu0
        %v2882 = vadd.f32 %v2710, %v2881
        %v2883 = vand.u32 %v794, 4294901760
        %2884 = vmatmul.f32.gmra.mxu0 %v2883
        %v2885 = vpop.f32.mrf.mxu0
        %v2886 = vadd.f32 %v2718, %v2885
        %v2887 = vand.u32 %v797, 4294901760
        %2888 = vmatmul.f32.gmra.mxu0 %v2887
        %v2889 = vpop.f32.mrf.mxu0
        %v2890 = vadd.f32 %v2726, %v2889
        %v2891 = vand.u32 %v800, 4294901760
        %2892 = vmatmul.f32.gmra.mxu0 %v2891
        %v2893 = vpop.f32.mrf.mxu0
        %v2894 = vadd.f32 %v2734, %v2893
        %v2895 = vand.u32 %v803, 4294901760
        %2896 = vmatmul.f32.gmra.mxu0 %v2895
        %v2897 = vpop.f32.mrf.mxu0
        %v2898 = vadd.f32 %v2742, %v2897
        %v2899 = vand.u32 %v806, 4294901760
        %2900 = vmatmul.f32.gmra.mxu0 %v2899
        %v2901 = vpop.f32.mrf.mxu0
        %v2902 = vadd.f32 %v2750, %v2901
        %v2903 = vand.u32 %v809, 4294901760
        %2904 = vmatmul.f32.gmra.mxu0 %v2903
        %v2905 = vpop.f32.mrf.mxu0
        %v2906 = vadd.f32 %v2758, %v2905
        %v2907 = vand.u32 %v812, 4294901760
        %2908 = vmatmul.f32.gmra.mxu0 %v2907
        %v2909 = vpop.f32.mrf.mxu0
        %v2910 = vadd.f32 %v2766, %v2909
        %v2911 = vand.u32 %v815, 4294901760
        %2912 = vmatmul.f32.gmra.mxu0 %v2911
        %v2913 = vpop.f32.mrf.mxu0
        %v2914 = vadd.f32 %v2774, %v2913
        %v2915 = vand.u32 %v818, 4294901760
        %2916 = vmatmul.f32.gmra.mxu0 %v2915
        %v2917 = vpop.f32.mrf.mxu0
        %v2918 = vadd.f32 %v2782, %v2917
        %v2919 = vand.u32 %v821, 4294901760
        %2920 = vmatmul.f32.gmra.mxu0 %v2919
        %v2921 = vpop.f32.mrf.mxu0
        %v2922 = vadd.f32 %v2790, %v2921
        %v2923 = vand.u32 %v824, 4294901760
        %2924 = vmatmul.f32.gmra.mxu0 %v2923
        %v2925 = vpop.f32.mrf.mxu0
        %v2926 = vadd.f32 %v2798, %v2925
        %2927 = vdwg.mxu0
        %2928 = vmatpush.msra.mxu0 0.0
        %2929 = vmatpush.msra.mxu0 0.0
        %2930 = vmatpush.msra.mxu0 0.0
        %2931 = vmatpush.msra.mxu0 0.0
        %2932 = vmatpush.msra.mxu0 0.0
        %2933 = vmatpush.msra.mxu0 0.0
        %2934 = vmatpush.msra.mxu0 0.0
        %2935 = vmatpush.msra.mxu0 0.0
        %2936 = vmatpush.msra.mxu0 0.0
        %v2937 = vand.u32 %v729, 4294901760
        %v2938 = vsub.f32 %v729, %v2937
        %2939 = vmatpush.msra.mxu0 %v2938
        %v2940 = vand.u32 %v767, 4294901760
        %v2941 = vsub.f32 %v767, %v2940
        %2942 = vmatpush.msra.mxu0 %v2941
        %v2943 = vand.u32 %v766, 4294901760
        %v2944 = vsub.f32 %v766, %v2943
        %2945 = vmatpush.msra.mxu0 %v2944
        %v2946 = vand.u32 %v765, 4294901760
        %v2947 = vsub.f32 %v765, %v2946
        %2948 = vmatpush.msra.mxu0 %v2947
        %v2949 = vand.u32 %v764, 4294901760
        %v2950 = vsub.f32 %v764, %v2949
        %2951 = vmatpush.msra.mxu0 %v2950
        %v2952 = vand.u32 %v763, 4294901760
        %v2953 = vsub.f32 %v763, %v2952
        %2954 = vmatpush.msra.mxu0 %v2953
        %v2955 = vand.u32 %v762, 4294901760
        %v2956 = vsub.f32 %v762, %v2955
        %2957 = vmatpush.msra.mxu0 %v2956
        %v2958 = vand.u32 %v770, 4294901760
        %v2959 = vsub.f32 %v770, %v2958
        %2960 = vmatmul.f32.gmra.mxu0 %v2959
        %v2961 = vpop.f32.mrf.mxu0
        %v2962 = vadd.f32 %v2854, %v2961
        %v2963 = vand.u32 %v773, 4294901760
        %v2964 = vsub.f32 %v773, %v2963
        %2965 = vmatmul.f32.gmra.mxu0 %v2964
        %v2966 = vpop.f32.mrf.mxu0
        %v2967 = vadd.f32 %v2858, %v2966
        %v2968 = vand.u32 %v776, 4294901760
        %v2969 = vsub.f32 %v776, %v2968
        %2970 = vmatmul.f32.gmra.mxu0 %v2969
        %v2971 = vpop.f32.mrf.mxu0
        %v2972 = vadd.f32 %v2862, %v2971
        %v2973 = vand.u32 %v779, 4294901760
        %v2974 = vsub.f32 %v779, %v2973
        %2975 = vmatmul.f32.gmra.mxu0 %v2974
        %v2976 = vpop.f32.mrf.mxu0
        %v2977 = vadd.f32 %v2866, %v2976
        %v2978 = vand.u32 %v782, 4294901760
        %v2979 = vsub.f32 %v782, %v2978
        %2980 = vmatmul.f32.gmra.mxu0 %v2979
        %v2981 = vpop.f32.mrf.mxu0
        %v2982 = vadd.f32 %v2870, %v2981
        %v2983 = vand.u32 %v785, 4294901760
        %v2984 = vsub.f32 %v785, %v2983
        %2985 = vmatmul.f32.gmra.mxu0 %v2984
        %v2986 = vpop.f32.mrf.mxu0
        %v2987 = vadd.f32 %v2874, %v2986
        %v2988 = vand.u32 %v788, 4294901760
        %v2989 = vsub.f32 %v788, %v2988
        %2990 = vmatmul.f32.gmra.mxu0 %v2989
        %v2991 = vpop.f32.mrf.mxu0
        %v2992 = vadd.f32 %v2878, %v2991
        %v2993 = vand.u32 %v791, 4294901760
        %v2994 = vsub.f32 %v791, %v2993
        %2995 = vmatmul.f32.gmra.mxu0 %v2994
        %v2996 = vpop.f32.mrf.mxu0
        %v2997 = vadd.f32 %v2882, %v2996
        %v2998 = vand.u32 %v794, 4294901760
        %v2999 = vsub.f32 %v794, %v2998
        %3000 = vmatmul.f32.gmra.mxu0 %v2999
        %v3001 = vpop.f32.mrf.mxu0
        %v3002 = vadd.f32 %v2886, %v3001
        %v3003 = vand.u32 %v797, 4294901760
        %v3004 = vsub.f32 %v797, %v3003
        %3005 = vmatmul.f32.gmra.mxu0 %v3004
        %v3006 = vpop.f32.mrf.mxu0
        %v3007 = vadd.f32 %v2890, %v3006
        %v3008 = vand.u32 %v800, 4294901760
        %v3009 = vsub.f32 %v800, %v3008
        %3010 = vmatmul.f32.gmra.mxu0 %v3009
        %v3011 = vpop.f32.mrf.mxu0
        %v3012 = vadd.f32 %v2894, %v3011
        %v3013 = vand.u32 %v803, 4294901760
        %v3014 = vsub.f32 %v803, %v3013
        %3015 = vmatmul.f32.gmra.mxu0 %v3014
        %v3016 = vpop.f32.mrf.mxu0
        %v3017 = vadd.f32 %v2898, %v3016
        %v3018 = vand.u32 %v806, 4294901760
        %v3019 = vsub.f32 %v806, %v3018
        %3020 = vmatmul.f32.gmra.mxu0 %v3019
        %v3021 = vpop.f32.mrf.mxu0
        %v3022 = vadd.f32 %v2902, %v3021
        %v3023 = vand.u32 %v809, 4294901760
        %v3024 = vsub.f32 %v809, %v3023
        %3025 = vmatmul.f32.gmra.mxu0 %v3024
        %v3026 = vpop.f32.mrf.mxu0
        %v3027 = vadd.f32 %v2906, %v3026
        %v3028 = vand.u32 %v812, 4294901760
        %v3029 = vsub.f32 %v812, %v3028
        %3030 = vmatmul.f32.gmra.mxu0 %v3029
        %v3031 = vpop.f32.mrf.mxu0
        %v3032 = vadd.f32 %v2910, %v3031
        %v3033 = vand.u32 %v815, 4294901760
        %v3034 = vsub.f32 %v815, %v3033
        %3035 = vmatmul.f32.gmra.mxu0 %v3034
        %v3036 = vpop.f32.mrf.mxu0
        %v3037 = vadd.f32 %v2914, %v3036
        %v3038 = vand.u32 %v818, 4294901760
        %v3039 = vsub.f32 %v818, %v3038
        %3040 = vmatmul.f32.gmra.mxu0 %v3039
        %v3041 = vpop.f32.mrf.mxu0
        %v3042 = vadd.f32 %v2918, %v3041
        %v3043 = vand.u32 %v821, 4294901760
        %v3044 = vsub.f32 %v821, %v3043
        %3045 = vmatmul.f32.gmra.mxu0 %v3044
        %v3046 = vpop.f32.mrf.mxu0
        %v3047 = vadd.f32 %v2922, %v3046
        %v3048 = vand.u32 %v824, 4294901760
        %v3049 = vsub.f32 %v824, %v3048
        %3050 = vmatmul.f32.gmra.mxu0 %v3049
        %v3051 = vpop.f32.mrf.mxu0
        %v3052 = vadd.f32 %v2926, %v3051
        %3053 = vdwg.mxu0
        %3054 = vmatpush.msra.mxu0 0.0
        %3055 = vmatpush.msra.mxu0 0.0
        %3056 = vmatpush.msra.mxu0 0.0
        %3057 = vmatpush.msra.mxu0 0.0
        %3058 = vmatpush.msra.mxu0 0.0
        %3059 = vmatpush.msra.mxu0 0.0
        %3060 = vmatpush.msra.mxu0 0.0
        %3061 = vmatpush.msra.mxu0 0.0
        %3062 = vmatpush.msra.mxu0 0.0
        %v3063 = vand.u32 %v729, 4294901760
        %3064 = vmatpush.msra.mxu0 %v3063
        %v3065 = vand.u32 %v767, 4294901760
        %3066 = vmatpush.msra.mxu0 %v3065
        %v3067 = vand.u32 %v766, 4294901760
        %3068 = vmatpush.msra.mxu0 %v3067
        %v3069 = vand.u32 %v765, 4294901760
        %3070 = vmatpush.msra.mxu0 %v3069
        %v3071 = vand.u32 %v764, 4294901760
        %3072 = vmatpush.msra.mxu0 %v3071
        %v3073 = vand.u32 %v763, 4294901760
        %3074 = vmatpush.msra.mxu0 %v3073
        %v3075 = vand.u32 %v762, 4294901760
        %3076 = vmatpush.msra.mxu0 %v3075
        %v3077 = vand.u32 %v770, 4294901760
        %v3078 = vsub.f32 %v770, %v3077
        %v3079 = vand.u32 %v3078, 4294901760
        %3080 = vmatmul.f32.gmra.mxu0 %v3079
        %v3081 = vpop.f32.mrf.mxu0
        %v3082 = vadd.f32 %v2962, %v3081
        %v3083 = vand.u32 %v773, 4294901760
        %v3084 = vsub.f32 %v773, %v3083
        %v3085 = vand.u32 %v3084, 4294901760
        %3086 = vmatmul.f32.gmra.mxu0 %v3085
        %v3087 = vpop.f32.mrf.mxu0
        %v3088 = vadd.f32 %v2967, %v3087
        %v3089 = vand.u32 %v776, 4294901760
        %v3090 = vsub.f32 %v776, %v3089
        %v3091 = vand.u32 %v3090, 4294901760
        %3092 = vmatmul.f32.gmra.mxu0 %v3091
        %v3093 = vpop.f32.mrf.mxu0
        %v3094 = vadd.f32 %v2972, %v3093
        %v3095 = vand.u32 %v779, 4294901760
        %v3096 = vsub.f32 %v779, %v3095
        %v3097 = vand.u32 %v3096, 4294901760
        %3098 = vmatmul.f32.gmra.mxu0 %v3097
        %v3099 = vpop.f32.mrf.mxu0
        %v3100 = vadd.f32 %v2977, %v3099
        %v3101 = vand.u32 %v782, 4294901760
        %v3102 = vsub.f32 %v782, %v3101
        %v3103 = vand.u32 %v3102, 4294901760
        %3104 = vmatmul.f32.gmra.mxu0 %v3103
        %v3105 = vpop.f32.mrf.mxu0
        %v3106 = vadd.f32 %v2982, %v3105
        %v3107 = vand.u32 %v785, 4294901760
        %v3108 = vsub.f32 %v785, %v3107
        %v3109 = vand.u32 %v3108, 4294901760
        %3110 = vmatmul.f32.gmra.mxu0 %v3109
        %v3111 = vpop.f32.mrf.mxu0
        %v3112 = vadd.f32 %v2987, %v3111
        %v3113 = vand.u32 %v788, 4294901760
        %v3114 = vsub.f32 %v788, %v3113
        %v3115 = vand.u32 %v3114, 4294901760
        %3116 = vmatmul.f32.gmra.mxu0 %v3115
        %v3117 = vpop.f32.mrf.mxu0
        %v3118 = vadd.f32 %v2992, %v3117
        %v3119 = vand.u32 %v791, 4294901760
        %v3120 = vsub.f32 %v791, %v3119
        %v3121 = vand.u32 %v3120, 4294901760
        %3122 = vmatmul.f32.gmra.mxu0 %v3121
        %v3123 = vpop.f32.mrf.mxu0
        %v3124 = vadd.f32 %v2997, %v3123
        %v3125 = vand.u32 %v794, 4294901760
        %v3126 = vsub.f32 %v794, %v3125
        %v3127 = vand.u32 %v3126, 4294901760
        %3128 = vmatmul.f32.gmra.mxu0 %v3127
        %v3129 = vpop.f32.mrf.mxu0
        %v3130 = vadd.f32 %v3002, %v3129
        %v3131 = vand.u32 %v797, 4294901760
        %v3132 = vsub.f32 %v797, %v3131
        %v3133 = vand.u32 %v3132, 4294901760
        %3134 = vmatmul.f32.gmra.mxu0 %v3133
        %v3135 = vpop.f32.mrf.mxu0
        %v3136 = vadd.f32 %v3007, %v3135
        %v3137 = vand.u32 %v800, 4294901760
        %v3138 = vsub.f32 %v800, %v3137
        %v3139 = vand.u32 %v3138, 4294901760
        %3140 = vmatmul.f32.gmra.mxu0 %v3139
        %v3141 = vpop.f32.mrf.mxu0
        %v3142 = vadd.f32 %v3012, %v3141
        %v3143 = vand.u32 %v803, 4294901760
        %v3144 = vsub.f32 %v803, %v3143
        %v3145 = vand.u32 %v3144, 4294901760
        %3146 = vmatmul.f32.gmra.mxu0 %v3145
        %v3147 = vpop.f32.mrf.mxu0
        %v3148 = vadd.f32 %v3017, %v3147
        %v3149 = vand.u32 %v806, 4294901760
        %v3150 = vsub.f32 %v806, %v3149
        %v3151 = vand.u32 %v3150, 4294901760
        %3152 = vmatmul.f32.gmra.mxu0 %v3151
        %v3153 = vpop.f32.mrf.mxu0
        %v3154 = vadd.f32 %v3022, %v3153
        %v3155 = vand.u32 %v809, 4294901760
        %v3156 = vsub.f32 %v809, %v3155
        %v3157 = vand.u32 %v3156, 4294901760
        %3158 = vmatmul.f32.gmra.mxu0 %v3157
        %v3159 = vpop.f32.mrf.mxu0
        %v3160 = vadd.f32 %v3027, %v3159
        %v3161 = vand.u32 %v812, 4294901760
        %v3162 = vsub.f32 %v812, %v3161
        %v3163 = vand.u32 %v3162, 4294901760
        %3164 = vmatmul.f32.gmra.mxu0 %v3163
        %v3165 = vpop.f32.mrf.mxu0
        %v3166 = vadd.f32 %v3032, %v3165
        %v3167 = vand.u32 %v815, 4294901760
        %v3168 = vsub.f32 %v815, %v3167
        %v3169 = vand.u32 %v3168, 4294901760
        %3170 = vmatmul.f32.gmra.mxu0 %v3169
        %v3171 = vpop.f32.mrf.mxu0
        %v3172 = vadd.f32 %v3037, %v3171
        %v3173 = vand.u32 %v818, 4294901760
        %v3174 = vsub.f32 %v818, %v3173
        %v3175 = vand.u32 %v3174, 4294901760
        %3176 = vmatmul.f32.gmra.mxu0 %v3175
        %v3177 = vpop.f32.mrf.mxu0
        %v3178 = vadd.f32 %v3042, %v3177
        %v3179 = vand.u32 %v821, 4294901760
        %v3180 = vsub.f32 %v821, %v3179
        %v3181 = vand.u32 %v3180, 4294901760
        %3182 = vmatmul.f32.gmra.mxu0 %v3181
        %v3183 = vpop.f32.mrf.mxu0
        %v3184 = vadd.f32 %v3047, %v3183
        %v3185 = vand.u32 %v824, 4294901760
        %v3186 = vsub.f32 %v824, %v3185
        %v3187 = vand.u32 %v3186, 4294901760
        %3188 = vmatmul.f32.gmra.mxu0 %v3187
        %v3189 = vpop.f32.mrf.mxu0
        %v3190 = vadd.f32 %v3052, %v3189
        %3191 = vdwg.mxu0
        %3192 = vmatpush.msra.mxu0 0.0
        %3193 = vmatpush.msra.mxu0 0.0
        %3194 = vmatpush.msra.mxu0 0.0
        %3195 = vmatpush.msra.mxu0 0.0
        %3196 = vmatpush.msra.mxu0 0.0
        %3197 = vmatpush.msra.mxu0 0.0
        %3198 = vmatpush.msra.mxu0 0.0
        %3199 = vmatpush.msra.mxu0 0.0
        %3200 = vmatpush.msra.mxu0 0.0
        %v3201 = vand.u32 %v729, 4294901760
        %v3202 = vsub.f32 %v729, %v3201
        %v3203 = vand.u32 %v3202, 4294901760
        %3204 = vmatpush.msra.mxu0 %v3203
        %v3205 = vand.u32 %v767, 4294901760
        %v3206 = vsub.f32 %v767, %v3205
        %v3207 = vand.u32 %v3206, 4294901760
        %3208 = vmatpush.msra.mxu0 %v3207
        %v3209 = vand.u32 %v766, 4294901760
        %v3210 = vsub.f32 %v766, %v3209
        %v3211 = vand.u32 %v3210, 4294901760
        %3212 = vmatpush.msra.mxu0 %v3211
        %v3213 = vand.u32 %v765, 4294901760
        %v3214 = vsub.f32 %v765, %v3213
        %v3215 = vand.u32 %v3214, 4294901760
        %3216 = vmatpush.msra.mxu0 %v3215
        %v3217 = vand.u32 %v764, 4294901760
        %v3218 = vsub.f32 %v764, %v3217
        %v3219 = vand.u32 %v3218, 4294901760
        %3220 = vmatpush.msra.mxu0 %v3219
        %v3221 = vand.u32 %v763, 4294901760
        %v3222 = vsub.f32 %v763, %v3221
        %v3223 = vand.u32 %v3222, 4294901760
        %3224 = vmatpush.msra.mxu0 %v3223
        %v3225 = vand.u32 %v762, 4294901760
        %v3226 = vsub.f32 %v762, %v3225
        %v3227 = vand.u32 %v3226, 4294901760
        %3228 = vmatpush.msra.mxu0 %v3227
        %v3229 = vand.u32 %v770, 4294901760
        %3230 = vmatmul.f32.gmra.mxu0 %v3229
        %v3231 = vpop.f32.mrf.mxu0
        %v3232 = vadd.f32 %v3082, %v3231
        %v3233 = vand.u32 %v773, 4294901760
        %3234 = vmatmul.f32.gmra.mxu0 %v3233
        %v3235 = vpop.f32.mrf.mxu0
        %v3236 = vadd.f32 %v3088, %v3235
        %v3237 = vand.u32 %v776, 4294901760
        %3238 = vmatmul.f32.gmra.mxu0 %v3237
        %v3239 = vpop.f32.mrf.mxu0
        %v3240 = vadd.f32 %v3094, %v3239
        %v3241 = vand.u32 %v779, 4294901760
        %3242 = vmatmul.f32.gmra.mxu0 %v3241
        %v3243 = vpop.f32.mrf.mxu0
        %v3244 = vadd.f32 %v3100, %v3243
        %v3245 = vand.u32 %v782, 4294901760
        %3246 = vmatmul.f32.gmra.mxu0 %v3245
        %v3247 = vpop.f32.mrf.mxu0
        %v3248 = vadd.f32 %v3106, %v3247
        %v3249 = vand.u32 %v785, 4294901760
        %3250 = vmatmul.f32.gmra.mxu0 %v3249
        %v3251 = vpop.f32.mrf.mxu0
        %v3252 = vadd.f32 %v3112, %v3251
        %v3253 = vand.u32 %v788, 4294901760
        %3254 = vmatmul.f32.gmra.mxu0 %v3253
        %v3255 = vpop.f32.mrf.mxu0
        %v3256 = vadd.f32 %v3118, %v3255
        %v3257 = vand.u32 %v791, 4294901760
        %3258 = vmatmul.f32.gmra.mxu0 %v3257
        %v3259 = vpop.f32.mrf.mxu0
        %v3260 = vadd.f32 %v3124, %v3259
        %v3261 = vand.u32 %v794, 4294901760
        %3262 = vmatmul.f32.gmra.mxu0 %v3261
        %v3263 = vpop.f32.mrf.mxu0
        %v3264 = vadd.f32 %v3130, %v3263
        %v3265 = vand.u32 %v797, 4294901760
        %3266 = vmatmul.f32.gmra.mxu0 %v3265
        %v3267 = vpop.f32.mrf.mxu0
        %v3268 = vadd.f32 %v3136, %v3267
        %v3269 = vand.u32 %v800, 4294901760
        %3270 = vmatmul.f32.gmra.mxu0 %v3269
        %v3271 = vpop.f32.mrf.mxu0
        %v3272 = vadd.f32 %v3142, %v3271
        %v3273 = vand.u32 %v803, 4294901760
        %3274 = vmatmul.f32.gmra.mxu0 %v3273
        %v3275 = vpop.f32.mrf.mxu0
        %v3276 = vadd.f32 %v3148, %v3275
        %v3277 = vand.u32 %v806, 4294901760
        %3278 = vmatmul.f32.gmra.mxu0 %v3277
        %v3279 = vpop.f32.mrf.mxu0
        %v3280 = vadd.f32 %v3154, %v3279
        %v3281 = vand.u32 %v809, 4294901760
        %3282 = vmatmul.f32.gmra.mxu0 %v3281
        %v3283 = vpop.f32.mrf.mxu0
        %v3284 = vadd.f32 %v3160, %v3283
        %v3285 = vand.u32 %v812, 4294901760
        %3286 = vmatmul.f32.gmra.mxu0 %v3285
        %v3287 = vpop.f32.mrf.mxu0
        %v3288 = vadd.f32 %v3166, %v3287
        %v3289 = vand.u32 %v815, 4294901760
        %3290 = vmatmul.f32.gmra.mxu0 %v3289
        %v3291 = vpop.f32.mrf.mxu0
        %v3292 = vadd.f32 %v3172, %v3291
        %v3293 = vand.u32 %v818, 4294901760
        %3294 = vmatmul.f32.gmra.mxu0 %v3293
        %v3295 = vpop.f32.mrf.mxu0
        %v3296 = vadd.f32 %v3178, %v3295
        %v3297 = vand.u32 %v821, 4294901760
        %3298 = vmatmul.f32.gmra.mxu0 %v3297
        %v3299 = vpop.f32.mrf.mxu0
        %v3300 = vadd.f32 %v3184, %v3299
        %v3301 = vand.u32 %v824, 4294901760
        %3302 = vmatmul.f32.gmra.mxu0 %v3301
        %v3303 = vpop.f32.mrf.mxu0
        %v3304 = vadd.f32 %v3190, %v3303
        %3305 = vdwg.mxu0
        %3306 = vmatpush.msra.mxu0 0.0
        %3307 = vmatpush.msra.mxu0 0.0
        %3308 = vmatpush.msra.mxu0 0.0
        %3309 = vmatpush.msra.mxu0 0.0
        %3310 = vmatpush.msra.mxu0 0.0
        %3311 = vmatpush.msra.mxu0 0.0
        %3312 = vmatpush.msra.mxu0 0.0
        %3313 = vmatpush.msra.mxu0 0.0
        %3314 = vmatpush.msra.mxu0 0.0
        %v3315 = vand.u32 %v729, 4294901760
        %3316 = vmatpush.msra.mxu0 %v3315
        %v3317 = vand.u32 %v767, 4294901760
        %3318 = vmatpush.msra.mxu0 %v3317
        %v3319 = vand.u32 %v766, 4294901760
        %3320 = vmatpush.msra.mxu0 %v3319
        %v3321 = vand.u32 %v765, 4294901760
        %3322 = vmatpush.msra.mxu0 %v3321
        %v3323 = vand.u32 %v764, 4294901760
        %3324 = vmatpush.msra.mxu0 %v3323
        %v3325 = vand.u32 %v763, 4294901760
        %3326 = vmatpush.msra.mxu0 %v3325
        %v3327 = vand.u32 %v762, 4294901760
        %3328 = vmatpush.msra.mxu0 %v3327
        %v3329 = vand.u32 %v770, 4294901760
        %3330 = vmatmul.f32.gmra.mxu0 %v3329
        %v3331 = vpop.f32.mrf.mxu0
        %v3332 = vadd.f32 %v3232, %v3331
        %v3333 = vand.u32 %v773, 4294901760
        %3334 = vmatmul.f32.gmra.mxu0 %v3333
        %v3335 = vpop.f32.mrf.mxu0
        %v3336 = vadd.f32 %v3236, %v3335
        %v3337 = vand.u32 %v776, 4294901760
        %3338 = vmatmul.f32.gmra.mxu0 %v3337
        %v3339 = vpop.f32.mrf.mxu0
        %v3340 = vadd.f32 %v3240, %v3339
        %v3341 = vand.u32 %v779, 4294901760
        %3342 = vmatmul.f32.gmra.mxu0 %v3341
        %v3343 = vpop.f32.mrf.mxu0
        %v3344 = vadd.f32 %v3244, %v3343
        %v3345 = vand.u32 %v782, 4294901760
        %3346 = vmatmul.f32.gmra.mxu0 %v3345
        %v3347 = vpop.f32.mrf.mxu0
        %v3348 = vadd.f32 %v3248, %v3347
        %v3349 = vand.u32 %v785, 4294901760
        %3350 = vmatmul.f32.gmra.mxu0 %v3349
        %v3351 = vpop.f32.mrf.mxu0
        %v3352 = vadd.f32 %v3252, %v3351
        %v3353 = vand.u32 %v788, 4294901760
        %3354 = vmatmul.f32.gmra.mxu0 %v3353
        %v3355 = vpop.f32.mrf.mxu0
        %v3356 = vadd.f32 %v3256, %v3355
        %v3357 = vand.u32 %v791, 4294901760
        %3358 = vmatmul.f32.gmra.mxu0 %v3357
        %v3359 = vpop.f32.mrf.mxu0
        %v3360 = vadd.f32 %v3260, %v3359
        %v3361 = vand.u32 %v794, 4294901760
        %3362 = vmatmul.f32.gmra.mxu0 %v3361
        %v3363 = vpop.f32.mrf.mxu0
        %v3364 = vadd.f32 %v3264, %v3363
        %v3365 = vand.u32 %v797, 4294901760
        %3366 = vmatmul.f32.gmra.mxu0 %v3365
        %v3367 = vpop.f32.mrf.mxu0
        %v3368 = vadd.f32 %v3268, %v3367
        %v3369 = vand.u32 %v800, 4294901760
        %3370 = vmatmul.f32.gmra.mxu0 %v3369
        %v3371 = vpop.f32.mrf.mxu0
        %v3372 = vadd.f32 %v3272, %v3371
        %v3373 = vand.u32 %v803, 4294901760
        %3374 = vmatmul.f32.gmra.mxu0 %v3373
        %v3375 = vpop.f32.mrf.mxu0
        %v3376 = vadd.f32 %v3276, %v3375
        %v3377 = vand.u32 %v806, 4294901760
        %3378 = vmatmul.f32.gmra.mxu0 %v3377
        %v3379 = vpop.f32.mrf.mxu0
        %v3380 = vadd.f32 %v3280, %v3379
        %v3381 = vand.u32 %v809, 4294901760
        %3382 = vmatmul.f32.gmra.mxu0 %v3381
        %v3383 = vpop.f32.mrf.mxu0
        %v3384 = vadd.f32 %v3284, %v3383
        %v3385 = vand.u32 %v812, 4294901760
        %3386 = vmatmul.f32.gmra.mxu0 %v3385
        %v3387 = vpop.f32.mrf.mxu0
        %v3388 = vadd.f32 %v3288, %v3387
        %v3389 = vand.u32 %v815, 4294901760
        %3390 = vmatmul.f32.gmra.mxu0 %v3389
        %v3391 = vpop.f32.mrf.mxu0
        %v3392 = vadd.f32 %v3292, %v3391
        %v3393 = vand.u32 %v818, 4294901760
        %3394 = vmatmul.f32.gmra.mxu0 %v3393
        %v3395 = vpop.f32.mrf.mxu0
        %v3396 = vadd.f32 %v3296, %v3395
        %v3397 = vand.u32 %v821, 4294901760
        %3398 = vmatmul.f32.gmra.mxu0 %v3397
        %v3399 = vpop.f32.mrf.mxu0
        %v3400 = vadd.f32 %v3300, %v3399
        %v3401 = vand.u32 %v824, 4294901760
        %3402 = vmatmul.f32.gmra.mxu0 %v3401
        %v3403 = vpop.f32.mrf.mxu0
        %v3404 = vadd.f32 %v3304, %v3403
        %3405 = vdwg.mxu0
        %v3406 = vld [vmem:[%s4] sm:$0xf]
        %v3407 = vld [vmem:[%s4 + $0x4] sm:$0xf]
        %v3408 = vld [vmem:[%s4 + $0x8] sm:$0xf]
        %v3409 = vld [vmem:[%s4 + $0xc] sm:$0xf]
        %v3410 = vld [vmem:[%s4 + $0x10] sm:$0xf]
        %v3411 = vld [vmem:[%s4 + $0x14] sm:$0xf]
        %v3412 = vld [vmem:[%s4 + $0x18] sm:$0xf]
        %v3413 = vld [vmem:[%s4 + $0x1c] sm:$0xf]
        %v3414 = vld [vmem:[%s4 + $0x20] sm:$0xf]
        %v3415 = vld [vmem:[%s4 + $0x24] sm:$0xf]
        %v3416 = vld [vmem:[%s4 + $0x28] sm:$0xf]
        %v3417 = vld [vmem:[%s4 + $0x2c] sm:$0xf]
        %3437 = vrot.lane.b32.xlu0 %v3332, 32
        %v3438 = vpop.permute.xlu0 %3437
        %3439 = vrot.lane.b32.xlu0 %v3336, 32
        %v3440 = vpop.permute.xlu0 %3439
        %3441 = vrot.lane.b32.xlu0 %v3340, 32
        %v3442 = vpop.permute.xlu0 %3441
        %3443 = vrot.lane.b32.xlu0 %v3344, 32
        %v3444 = vpop.permute.xlu0 %3443
        %3445 = vrot.lane.b32.xlu0 %v3348, 32
        %v3446 = vpop.permute.xlu0 %3445
        %3447 = vrot.lane.b32.xlu0 %v3352, 32
        %v3448 = vpop.permute.xlu0 %3447
        %3449 = vrot.lane.b32.xlu0 %v3356, 32
        %v3450 = vpop.permute.xlu0 %3449
        %3451 = vrot.lane.b32.xlu0 %v3360, 32
        %v3452 = vpop.permute.xlu0 %3451
        %3453 = vrot.lane.b32.xlu0 %v3364, 32
        %v3454 = vpop.permute.xlu0 %3453
        %3455 = vrot.lane.b32.xlu0 %v3368, 32
        %v3456 = vpop.permute.xlu0 %3455
        %3457 = vrot.lane.b32.xlu0 %v3372, 32
        %v3458 = vpop.permute.xlu0 %3457
        %3459 = vrot.lane.b32.xlu0 %v3376, 32
        %v3460 = vpop.permute.xlu0 %3459
        %3461 = vrot.lane.b32.xlu0 %v3380, 32
        %v3462 = vpop.permute.xlu0 %3461
        %3463 = vrot.lane.b32.xlu0 %v3384, 32
        %v3464 = vpop.permute.xlu0 %3463
        %3465 = vrot.lane.b32.xlu0 %v3388, 32
        %v3466 = vpop.permute.xlu0 %3465
        %3467 = vrot.lane.b32.xlu0 %v3392, 32
        %v3468 = vpop.permute.xlu0 %3467
        %3469 = vrot.lane.b32.xlu0 %v3396, 32
        %v3470 = vpop.permute.xlu0 %3469
        %3471 = vrot.lane.b32.xlu0 %v3400, 32
        %v3472 = vpop.permute.xlu0 %3471
        %3473 = vrot.lane.b32.xlu0 %v3404, 32
        %v3474 = vpop.permute.xlu0 %3473
        %3495 = vrot.lane.b32.xlu0 %v3336, 64
        %v3496 = vpop.permute.xlu0 %3495
        %3497 = vrot.lane.b32.xlu0 %v3340, 64
        %v3498 = vpop.permute.xlu0 %3497
        %3499 = vrot.lane.b32.xlu0 %v3344, 64
        %v3500 = vpop.permute.xlu0 %3499
        %3501 = vrot.lane.b32.xlu0 %v3348, 64
        %v3502 = vpop.permute.xlu0 %3501
        %3503 = vrot.lane.b32.xlu0 %v3352, 64
        %v3504 = vpop.permute.xlu0 %3503
        %3505 = vrot.lane.b32.xlu0 %v3356, 64
        %v3506 = vpop.permute.xlu0 %3505
        %3507 = vrot.lane.b32.xlu0 %v3360, 64
        %v3508 = vpop.permute.xlu0 %3507
        %3509 = vrot.lane.b32.xlu0 %v3364, 64
        %v3510 = vpop.permute.xlu0 %3509
        %3511 = vrot.lane.b32.xlu0 %v3368, 64
        %v3512 = vpop.permute.xlu0 %3511
        %3513 = vrot.lane.b32.xlu0 %v3372, 64
        %v3514 = vpop.permute.xlu0 %3513
        %3515 = vrot.lane.b32.xlu0 %v3376, 64
        %v3516 = vpop.permute.xlu0 %3515
        %3517 = vrot.lane.b32.xlu0 %v3380, 64
        %v3518 = vpop.permute.xlu0 %3517
        %3519 = vrot.lane.b32.xlu0 %v3384, 64
        %v3520 = vpop.permute.xlu0 %3519
        %3521 = vrot.lane.b32.xlu0 %v3388, 64
        %v3522 = vpop.permute.xlu0 %3521
        %3523 = vrot.lane.b32.xlu0 %v3392, 64
        %v3524 = vpop.permute.xlu0 %3523
        %3525 = vrot.lane.b32.xlu0 %v3396, 64
        %v3526 = vpop.permute.xlu0 %3525
        %3527 = vrot.lane.b32.xlu0 %v3400, 64
        %v3528 = vpop.permute.xlu0 %3527
        %3529 = vrot.lane.b32.xlu0 %v3404, 64
        %v3530 = vpop.permute.xlu0 %3529
        %3531 = vrot.lane.b32.xlu0 0.0, 64
        %v3532 = vpop.permute.xlu0 %3531
        %vm3552 = vcmask 261120
        %v3553 = vsel %vm3552, 0.0, %v3438
        %v3554 = vsel %vm3552, %v3332, %v3440
        %v3555 = vsel %vm3552, %v3336, %v3442
        %v3556 = vsel %vm3552, %v3340, %v3444
        %v3557 = vsel %vm3552, %v3344, %v3446
        %v3558 = vsel %vm3552, %v3348, %v3448
        %v3559 = vsel %vm3552, %v3352, %v3450
        %v3560 = vsel %vm3552, %v3356, %v3452
        %v3561 = vsel %vm3552, %v3360, %v3454
        %v3562 = vsel %vm3552, %v3364, %v3456
        %v3563 = vsel %vm3552, %v3368, %v3458
        %v3564 = vsel %vm3552, %v3372, %v3460
        %v3565 = vsel %vm3552, %v3376, %v3462
        %v3566 = vsel %vm3552, %v3380, %v3464
        %v3567 = vsel %vm3552, %v3384, %v3466
        %v3568 = vsel %vm3552, %v3388, %v3468
        %v3569 = vsel %vm3552, %v3392, %v3470
        %v3570 = vsel %vm3552, %v3396, %v3472
        %v3571 = vsel %vm3552, %v3400, %v3474
        %vm3572 = vcmask 523264
        %v3573 = vsel %vm3572, %v3553, %v3496
        %v3574 = vsel %vm3572, %v3554, %v3498
        %v3575 = vsel %vm3572, %v3555, %v3500
        %v3576 = vsel %vm3572, %v3556, %v3502
        %v3577 = vsel %vm3572, %v3557, %v3504
        %v3578 = vsel %vm3572, %v3558, %v3506
        %v3579 = vsel %vm3572, %v3559, %v3508
        %v3580 = vsel %vm3572, %v3560, %v3510
        %v3581 = vsel %vm3572, %v3561, %v3512
        %v3582 = vsel %vm3572, %v3562, %v3514
        %v3583 = vsel %vm3572, %v3563, %v3516
        %v3584 = vsel %vm3572, %v3564, %v3518
        %v3585 = vsel %vm3572, %v3565, %v3520
        %v3586 = vsel %vm3572, %v3566, %v3522
        %v3587 = vsel %vm3572, %v3567, %v3524
        %v3588 = vsel %vm3572, %v3568, %v3526
        %v3589 = vsel %vm3572, %v3569, %v3528
        %v3590 = vsel %vm3572, %v3570, %v3530
        %v3591 = vsel %vm3572, %v3571, %v3532
        %v3592 = vpack.c.bf16 %v3574, %v3573
        %v3593 = vpack.c.bf16 %v3576, %v3575
        %v3594 = vpack.c.bf16 %v3578, %v3577
        %v3595 = vpack.c.bf16 %v3580, %v3579
        %v3596 = vpack.c.bf16 %v3582, %v3581
        %v3597 = vpack.c.bf16 %v3584, %v3583
        %v3598 = vpack.c.bf16 %v3586, %v3585
        %v3599 = vpack.c.bf16 %v3588, %v3587
        %v3600 = vpack.c.bf16 %v3590, %v3589
        %v3601 = vpack.c.bf16 %v3591, %v3591
        %v3602 = vld [vmem:[%s8 + $0x1] sm:$0x1]
        %v3603 = vperm.slane %v3602, 0
        %v3616 = vunpack.c.l.b16 %v3406
        %v3617 = vunpack.c.l.b16 %v3407
        %v3618 = vunpack.c.l.b16 %v3408
        %v3619 = vunpack.c.l.b16 %v3409
        %v3620 = vunpack.c.l.b16 %v3410
        %v3621 = vunpack.c.l.b16 %v3411
        %v3622 = vunpack.c.l.b16 %v3412
        %v3623 = vunpack.c.l.b16 %v3413
        %v3624 = vunpack.c.l.b16 %v3414
        %v3625 = vunpack.c.l.b16 %v3415
        %v3626 = vunpack.c.l.b16 %v3416
        %v3627 = vunpack.c.l.b16 %v3417
        %v3628 = vpack.c.b16 %v3617, %v3616
        %v3629 = vpack.c.b16 %v3619, %v3618
        %v3630 = vpack.c.b16 %v3621, %v3620
        %v3631 = vpack.c.b16 %v3623, %v3622
        %v3632 = vpack.c.b16 %v3625, %v3624
        %v3633 = vpack.c.b16 %v3627, %v3626
        %vm3640 = vcmask 785408
        %v3642 = vsel %vm3640, %v3592, 0
        %v3645 = vsel %vm3640, %v3593, 0
        %v3648 = vsel %vm3640, %v3594, 0
        %v3651 = vsel %vm3640, %v3595, 0
        %v3654 = vsel %vm3640, %v3596, 0
        %v3657 = vsel %vm3640, %v3597, 0
        %v3660 = vsel %vm3640, %v3598, 0
        %v3663 = vsel %vm3640, %v3599, 0
        %v3666 = vsel %vm3640, %v3600, 0
        %v3669 = vsel %vm3640, %v3601, 0
        %3671 = vmatpush.bf16.msra.mxu0 0
        %3672 = vmatpush.bf16.msra.mxu0 0
        %3673 = vmatpush.bf16.msra.mxu0 %v3633
        %3674 = vmatpush.bf16.msra.mxu0 %v3632
        %3675 = vmatpush.bf16.msra.mxu0 %v3631
        %3676 = vmatpush.bf16.msra.mxu0 %v3630
        %3677 = vmatpush.bf16.msra.mxu0 %v3629
        %3678 = vmatpush.bf16.msra.mxu0 %v3628
        %3679 = vmatmul.bf16.gmra.mxu0 %v3642
        %v3680 = vpop.f32.mrf.mxu0
        %v3681 = vadd.f32 %v3603, %v3680
        %v3682 = vpop.f32.mrf.mxu0
        %v3683 = vadd.f32 %v3603, %v3682
        %3684 = vmatmul.bf16.gmra.mxu0 %v3645
        %v3685 = vpop.f32.mrf.mxu0
        %v3686 = vadd.f32 %v3603, %v3685
        %v3687 = vpop.f32.mrf.mxu0
        %v3688 = vadd.f32 %v3603, %v3687
        %3689 = vmatmul.bf16.gmra.mxu0 %v3648
        %v3690 = vpop.f32.mrf.mxu0
        %v3691 = vadd.f32 %v3603, %v3690
        %v3692 = vpop.f32.mrf.mxu0
        %v3693 = vadd.f32 %v3603, %v3692
        %3694 = vmatmul.bf16.gmra.mxu0 %v3651
        %v3695 = vpop.f32.mrf.mxu0
        %v3696 = vadd.f32 %v3603, %v3695
        %v3697 = vpop.f32.mrf.mxu0
        %v3698 = vadd.f32 %v3603, %v3697
        %3699 = vmatmul.bf16.gmra.mxu0 %v3654
        %v3700 = vpop.f32.mrf.mxu0
        %v3701 = vadd.f32 %v3603, %v3700
        %v3702 = vpop.f32.mrf.mxu0
        %v3703 = vadd.f32 %v3603, %v3702
        %3704 = vmatmul.bf16.gmra.mxu0 %v3657
        %v3705 = vpop.f32.mrf.mxu0
        %v3706 = vadd.f32 %v3603, %v3705
        %v3707 = vpop.f32.mrf.mxu0
        %v3708 = vadd.f32 %v3603, %v3707
        %3709 = vmatmul.bf16.gmra.mxu0 %v3660
        %v3710 = vpop.f32.mrf.mxu0
        %v3711 = vadd.f32 %v3603, %v3710
        %v3712 = vpop.f32.mrf.mxu0
        %v3713 = vadd.f32 %v3603, %v3712
        %3714 = vmatmul.bf16.gmra.mxu0 %v3663
        %v3715 = vpop.f32.mrf.mxu0
        %v3716 = vadd.f32 %v3603, %v3715
        %v3717 = vpop.f32.mrf.mxu0
        %v3718 = vadd.f32 %v3603, %v3717
        %3719 = vmatmul.bf16.gmra.mxu0 %v3666
        %v3720 = vpop.f32.mrf.mxu0
        %v3721 = vadd.f32 %v3603, %v3720
        %v3722 = vpop.f32.mrf.mxu0
        %v3723 = vadd.f32 %v3603, %v3722
        %3724 = vmatmul.bf16.gmra.mxu0 %v3669
        %v3725 = vpop.f32.mrf.mxu0
        %v3726 = vadd.f32 %v3603, %v3725
        %v3727 = vpop.f32.mrf.mxu0
        %3728 = vdwg.mxu0
        %v3729 = vmax.f32 %v3681, 0.0
        %v3730 = vmax.f32 %v3683, 0.0
        %v3731 = vmax.f32 %v3686, 0.0
        %v3732 = vmax.f32 %v3688, 0.0
        %v3733 = vmax.f32 %v3691, 0.0
        %v3734 = vmax.f32 %v3693, 0.0
        %v3735 = vmax.f32 %v3696, 0.0
        %v3736 = vmax.f32 %v3698, 0.0
        %v3737 = vmax.f32 %v3701, 0.0
        %v3738 = vmax.f32 %v3703, 0.0
        %v3739 = vmax.f32 %v3706, 0.0
        %v3740 = vmax.f32 %v3708, 0.0
        %v3741 = vmax.f32 %v3711, 0.0
        %v3742 = vmax.f32 %v3713, 0.0
        %v3743 = vmax.f32 %v3716, 0.0
        %v3744 = vmax.f32 %v3718, 0.0
        %v3745 = vmax.f32 %v3721, 0.0
        %v3746 = vmax.f32 %v3723, 0.0
        %v3747 = vmax.f32 %v3726, 0.0
        %v3748 = vld [vmem:[%s4 + $0x30] sm:$0xf]
        %v3749 = vld [vmem:[%s4 + $0x34] sm:$0xf]
        %v3750 = vld [vmem:[%s4 + $0x38] sm:$0xf]
        %v3751 = vld [vmem:[%s4 + $0x3c] sm:$0xf]
        %v3752 = vld [vmem:[%s4 + $0x40] sm:$0xf]
        %v3753 = vld [vmem:[%s4 + $0x44] sm:$0xf]
        %v3754 = vld [vmem:[%s4 + $0x48] sm:$0xf]
        %v3755 = vld [vmem:[%s4 + $0x4c] sm:$0xf]
        %v3756 = vld [vmem:[%s4 + $0x50] sm:$0xf]
        %v3757 = vld [vmem:[%s4 + $0x54] sm:$0xf]
        %v3758 = vld [vmem:[%s4 + $0x58] sm:$0xf]
        %v3759 = vld [vmem:[%s4 + $0x5c] sm:$0xf]
        %v3760 = vld [vmem:[%s4 + $0x60] sm:$0xf]
        %v3761 = vld [vmem:[%s4 + $0x64] sm:$0xf]
        %v3762 = vld [vmem:[%s4 + $0x68] sm:$0xf]
        %v3763 = vld [vmem:[%s4 + $0x6c] sm:$0xf]
        %v3764 = vld [vmem:[%s4 + $0x70] sm:$0xf]
        %v3765 = vld [vmem:[%s4 + $0x74] sm:$0xf]
        %v3766 = vld [vmem:[%s4 + $0x78] sm:$0xf]
        %v3767 = vld [vmem:[%s4 + $0x7c] sm:$0xf]
        %v3768 = vld [vmem:[%s4 + $0x80] sm:$0xf]
        %v3769 = vld [vmem:[%s4 + $0x84] sm:$0xf]
        %v3770 = vld [vmem:[%s4 + $0x88] sm:$0xf]
        %v3771 = vld [vmem:[%s4 + $0x8c] sm:$0xf]
        %3791 = vrot.lane.b32.xlu0 %v3729, 64
        %v3792 = vpop.permute.xlu0 %3791
        %3793 = vrot.lane.b32.xlu0 %v3730, 64
        %v3794 = vpop.permute.xlu0 %3793
        %3795 = vrot.lane.b32.xlu0 %v3731, 64
        %v3796 = vpop.permute.xlu0 %3795
        %3797 = vrot.lane.b32.xlu0 %v3732, 64
        %v3798 = vpop.permute.xlu0 %3797
        %3799 = vrot.lane.b32.xlu0 %v3733, 64
        %v3800 = vpop.permute.xlu0 %3799
        %3801 = vrot.lane.b32.xlu0 %v3734, 64
        %v3802 = vpop.permute.xlu0 %3801
        %3803 = vrot.lane.b32.xlu0 %v3735, 64
        %v3804 = vpop.permute.xlu0 %3803
        %3805 = vrot.lane.b32.xlu0 %v3736, 64
        %v3806 = vpop.permute.xlu0 %3805
        %3807 = vrot.lane.b32.xlu0 %v3737, 64
        %v3808 = vpop.permute.xlu0 %3807
        %3809 = vrot.lane.b32.xlu0 %v3738, 64
        %v3810 = vpop.permute.xlu0 %3809
        %3811 = vrot.lane.b32.xlu0 %v3739, 64
        %v3812 = vpop.permute.xlu0 %3811
        %3813 = vrot.lane.b32.xlu0 %v3740, 64
        %v3814 = vpop.permute.xlu0 %3813
        %3815 = vrot.lane.b32.xlu0 %v3741, 64
        %v3816 = vpop.permute.xlu0 %3815
        %3817 = vrot.lane.b32.xlu0 %v3742, 64
        %v3818 = vpop.permute.xlu0 %3817
        %3819 = vrot.lane.b32.xlu0 %v3743, 64
        %v3820 = vpop.permute.xlu0 %3819
        %3821 = vrot.lane.b32.xlu0 %v3744, 64
        %v3822 = vpop.permute.xlu0 %3821
        %3823 = vrot.lane.b32.xlu0 %v3745, 64
        %v3824 = vpop.permute.xlu0 %3823
        %3825 = vrot.lane.b32.xlu0 %v3746, 64
        %v3826 = vpop.permute.xlu0 %3825
        %3827 = vrot.lane.b32.xlu0 %v3747, 64
        %v3828 = vpop.permute.xlu0 %3827
        %v3848 = vsel %vm3572, 0.0, %v3792
        %v3849 = vsel %vm3572, %v3729, %v3794
        %v3850 = vsel %vm3572, %v3730, %v3796
        %v3851 = vsel %vm3572, %v3731, %v3798
        %v3852 = vsel %vm3572, %v3732, %v3800
        %v3853 = vsel %vm3572, %v3733, %v3802
        %v3854 = vsel %vm3572, %v3734, %v3804
        %v3855 = vsel %vm3572, %v3735, %v3806
        %v3856 = vsel %vm3572, %v3736, %v3808
        %v3857 = vsel %vm3572, %v3737, %v3810
        %v3858 = vsel %vm3572, %v3738, %v3812
        %v3859 = vsel %vm3572, %v3739, %v3814
        %v3860 = vsel %vm3572, %v3740, %v3816
        %v3861 = vsel %vm3572, %v3741, %v3818
        %v3862 = vsel %vm3572, %v3742, %v3820
        %v3863 = vsel %vm3572, %v3743, %v3822
        %v3864 = vsel %vm3572, %v3744, %v3824
        %v3865 = vsel %vm3572, %v3745, %v3826
        %v3866 = vsel %vm3572, %v3746, %v3828
        %v3867 = vpack.c.bf16 %v3849, %v3848
        %v3868 = vpack.c.bf16 %v3731, %v3730
        %v3869 = vpack.c.bf16 %v3851, %v3850
        %v3870 = vpack.c.bf16 %v3733, %v3732
        %v3871 = vpack.c.bf16 %v3853, %v3852
        %v3872 = vpack.c.bf16 %v3735, %v3734
        %v3873 = vpack.c.bf16 %v3855, %v3854
        %v3874 = vpack.c.bf16 %v3737, %v3736
        %v3875 = vpack.c.bf16 %v3857, %v3856
        %v3876 = vpack.c.bf16 %v3739, %v3738
        %v3877 = vpack.c.bf16 %v3859, %v3858
        %v3878 = vpack.c.bf16 %v3741, %v3740
        %v3879 = vpack.c.bf16 %v3861, %v3860
        %v3880 = vpack.c.bf16 %v3743, %v3742
        %v3881 = vpack.c.bf16 %v3863, %v3862
        %v3882 = vpack.c.bf16 %v3745, %v3744
        %v3883 = vpack.c.bf16 %v3865, %v3864
        %v3884 = vpack.c.bf16 %v3747, %v3746
        %v3885 = vpack.c.bf16 %v3866, %v3866
        %v3886 = vpack.c.bf16 0.0, 0.0
        %v3887 = vld [vmem:[%s8 + $0x2] sm:$0x1]
        %v3888 = vperm.slane %v3887, 0
        %v3913 = vunpack.c.l.b16 %v3748
        %v3914 = vunpack.c.l.b16 %v3749
        %v3915 = vunpack.c.l.b16 %v3750
        %v3916 = vunpack.c.l.b16 %v3751
        %v3917 = vunpack.c.l.b16 %v3752
        %v3918 = vunpack.c.l.b16 %v3753
        %v3919 = vunpack.c.l.b16 %v3754
        %v3920 = vunpack.c.l.b16 %v3755
        %v3921 = vunpack.c.l.b16 %v3756
        %v3922 = vunpack.c.l.b16 %v3757
        %v3923 = vunpack.c.l.b16 %v3758
        %v3924 = vunpack.c.l.b16 %v3759
        %v3925 = vunpack.c.l.b16 %v3760
        %v3926 = vunpack.c.l.b16 %v3761
        %v3927 = vunpack.c.l.b16 %v3762
        %v3928 = vunpack.c.l.b16 %v3763
        %v3929 = vunpack.c.l.b16 %v3764
        %v3930 = vunpack.c.l.b16 %v3765
        %v3931 = vunpack.c.l.b16 %v3766
        %v3932 = vunpack.c.l.b16 %v3767
        %v3933 = vunpack.c.l.b16 %v3768
        %v3934 = vunpack.c.l.b16 %v3769
        %v3935 = vunpack.c.l.b16 %v3770
        %v3936 = vunpack.c.l.b16 %v3771
        %v3937 = vpack.c.b16 %v3914, %v3913
        %v3938 = vpack.c.b16 %v3916, %v3915
        %v3939 = vpack.c.b16 %v3918, %v3917
        %v3940 = vpack.c.b16 %v3920, %v3919
        %v3941 = vpack.c.b16 %v3922, %v3921
        %v3942 = vpack.c.b16 %v3924, %v3923
        %v3943 = vpack.c.b16 %v3926, %v3925
        %v3944 = vpack.c.b16 %v3928, %v3927
        %v3945 = vpack.c.b16 %v3930, %v3929
        %v3946 = vpack.c.b16 %v3932, %v3931
        %v3947 = vpack.c.b16 %v3934, %v3933
        %v3948 = vpack.c.b16 %v3936, %v3935
        %v3962 = vsel %vm3572, %v3868, 0
        %v3965 = vsel %vm3572, %v3870, 0
        %v3968 = vsel %vm3572, %v3872, 0
        %v3971 = vsel %vm3572, %v3874, 0
        %v3974 = vsel %vm3572, %v3876, 0
        %v3977 = vsel %vm3572, %v3878, 0
        %v3980 = vsel %vm3572, %v3880, 0
        %v3983 = vsel %vm3572, %v3882, 0
        %v3986 = vsel %vm3572, %v3884, 0
        %v3989 = vsel %vm3572, %v3886, 0
        %3991 = vmatpush.bf16.msra.mxu0 %v3944
        %3992 = vmatpush.bf16.msra.mxu0 %v3943
        %3993 = vmatpush.bf16.msra.mxu0 %v3942
        %3994 = vmatpush.bf16.msra.mxu0 %v3941
        %3995 = vmatpush.bf16.msra.mxu0 %v3940
        %3996 = vmatpush.bf16.msra.mxu0 %v3939
        %3997 = vmatpush.bf16.msra.mxu0 %v3938
        %3998 = vmatpush.bf16.msra.mxu0 %v3937
        %3999 = vmatmul.bf16.gmra.mxu0 %v3867
        %v4000 = vpop.f32.mrf.mxu0
        %v4001 = vadd.f32 %v3888, %v4000
        %v4002 = vpop.f32.mrf.mxu0
        %v4003 = vadd.f32 %v3888, %v4002
        %4004 = vmatmul.bf16.gmra.mxu0 %v3869
        %v4005 = vpop.f32.mrf.mxu0
        %v4006 = vadd.f32 %v3888, %v4005
        %v4007 = vpop.f32.mrf.mxu0
        %v4008 = vadd.f32 %v3888, %v4007
        %4009 = vmatmul.bf16.gmra.mxu0 %v3871
        %v4010 = vpop.f32.mrf.mxu0
        %v4011 = vadd.f32 %v3888, %v4010
        %v4012 = vpop.f32.mrf.mxu0
        %v4013 = vadd.f32 %v3888, %v4012
        %4014 = vmatmul.bf16.gmra.mxu0 %v3873
        %v4015 = vpop.f32.mrf.mxu0
        %v4016 = vadd.f32 %v3888, %v4015
        %v4017 = vpop.f32.mrf.mxu0
        %v4018 = vadd.f32 %v3888, %v4017
        %4019 = vmatmul.bf16.gmra.mxu0 %v3875
        %v4020 = vpop.f32.mrf.mxu0
        %v4021 = vadd.f32 %v3888, %v4020
        %v4022 = vpop.f32.mrf.mxu0
        %v4023 = vadd.f32 %v3888, %v4022
        %4024 = vmatmul.bf16.gmra.mxu0 %v3877
        %v4025 = vpop.f32.mrf.mxu0
        %v4026 = vadd.f32 %v3888, %v4025
        %v4027 = vpop.f32.mrf.mxu0
        %v4028 = vadd.f32 %v3888, %v4027
        %4029 = vmatmul.bf16.gmra.mxu0 %v3879
        %v4030 = vpop.f32.mrf.mxu0
        %v4031 = vadd.f32 %v3888, %v4030
        %v4032 = vpop.f32.mrf.mxu0
        %v4033 = vadd.f32 %v3888, %v4032
        %4034 = vmatmul.bf16.gmra.mxu0 %v3881
        %v4035 = vpop.f32.mrf.mxu0
        %v4036 = vadd.f32 %v3888, %v4035
        %v4037 = vpop.f32.mrf.mxu0
        %v4038 = vadd.f32 %v3888, %v4037
        %4039 = vmatmul.bf16.gmra.mxu0 %v3883
        %v4040 = vpop.f32.mrf.mxu0
        %v4041 = vadd.f32 %v3888, %v4040
        %v4042 = vpop.f32.mrf.mxu0
        %v4043 = vadd.f32 %v3888, %v4042
        %4044 = vmatmul.bf16.gmra.mxu0 %v3885
        %v4045 = vpop.f32.mrf.mxu0
        %v4046 = vadd.f32 %v3888, %v4045
        %v4047 = vpop.f32.mrf.mxu0
        %4048 = vdwg.mxu0
        %4049 = vmatpush.bf16.msra.mxu0 0
        %4050 = vmatpush.bf16.msra.mxu0 0
        %4051 = vmatpush.bf16.msra.mxu0 0
        %4052 = vmatpush.bf16.msra.mxu0 0
        %4053 = vmatpush.bf16.msra.mxu0 %v3948
        %4054 = vmatpush.bf16.msra.mxu0 %v3947
        %4055 = vmatpush.bf16.msra.mxu0 %v3946
        %4056 = vmatpush.bf16.msra.mxu0 %v3945
        %4057 = vmatmul.bf16.gmra.mxu0 %v3962
        %v4058 = vpop.f32.mrf.mxu0
        %v4059 = vadd.f32 %v4001, %v4058
        %v4060 = vpop.f32.mrf.mxu0
        %v4061 = vadd.f32 %v4003, %v4060
        %4062 = vmatmul.bf16.gmra.mxu0 %v3965
        %v4063 = vpop.f32.mrf.mxu0
        %v4064 = vadd.f32 %v4006, %v4063
        %v4065 = vpop.f32.mrf.mxu0
        %v4066 = vadd.f32 %v4008, %v4065
        %4067 = vmatmul.bf16.gmra.mxu0 %v3968
        %v4068 = vpop.f32.mrf.mxu0
        %v4069 = vadd.f32 %v4011, %v4068
        %v4070 = vpop.f32.mrf.mxu0
        %v4071 = vadd.f32 %v4013, %v4070
        %4072 = vmatmul.bf16.gmra.mxu0 %v3971
        %v4073 = vpop.f32.mrf.mxu0
        %v4074 = vadd.f32 %v4016, %v4073
        %v4075 = vpop.f32.mrf.mxu0
        %v4076 = vadd.f32 %v4018, %v4075
        %4077 = vmatmul.bf16.gmra.mxu0 %v3974
        %v4078 = vpop.f32.mrf.mxu0
        %v4079 = vadd.f32 %v4021, %v4078
        %v4080 = vpop.f32.mrf.mxu0
        %v4081 = vadd.f32 %v4023, %v4080
        %4082 = vmatmul.bf16.gmra.mxu0 %v3977
        %v4083 = vpop.f32.mrf.mxu0
        %v4084 = vadd.f32 %v4026, %v4083
        %v4085 = vpop.f32.mrf.mxu0
        %v4086 = vadd.f32 %v4028, %v4085
        %4087 = vmatmul.bf16.gmra.mxu0 %v3980
        %v4088 = vpop.f32.mrf.mxu0
        %v4089 = vadd.f32 %v4031, %v4088
        %v4090 = vpop.f32.mrf.mxu0
        %v4091 = vadd.f32 %v4033, %v4090
        %4092 = vmatmul.bf16.gmra.mxu0 %v3983
        %v4093 = vpop.f32.mrf.mxu0
        %v4094 = vadd.f32 %v4036, %v4093
        %v4095 = vpop.f32.mrf.mxu0
        %v4096 = vadd.f32 %v4038, %v4095
        %4097 = vmatmul.bf16.gmra.mxu0 %v3986
        %v4098 = vpop.f32.mrf.mxu0
        %v4099 = vadd.f32 %v4041, %v4098
        %v4100 = vpop.f32.mrf.mxu0
        %v4101 = vadd.f32 %v4043, %v4100
        %4102 = vmatmul.bf16.gmra.mxu0 %v3989
        %v4103 = vpop.f32.mrf.mxu0
        %v4104 = vadd.f32 %v4046, %v4103
        %v4105 = vpop.f32.mrf.mxu0
        %4106 = vdwg.mxu0
        %v4107 = vld [vmem:[%s4 + $0x90] sm:$0xf]
        %v4108 = vld [vmem:[%s4 + $0x94] sm:$0xf]
        %v4109 = vld [vmem:[%s4 + $0x98] sm:$0xf]
        %v4110 = vld [vmem:[%s4 + $0x9c] sm:$0xf]
        %v4111 = vpack.c.bf16 %v3336, %v3332
        %v4112 = vpack.c.bf16 %v3344, %v3340
        %v4113 = vpack.c.bf16 %v3352, %v3348
        %v4114 = vpack.c.bf16 %v3360, %v3356
        %v4115 = vpack.c.bf16 %v3368, %v3364
        %v4116 = vpack.c.bf16 %v3376, %v3372
        %v4117 = vpack.c.bf16 %v3384, %v3380
        %v4118 = vpack.c.bf16 %v3392, %v3388
        %v4119 = vpack.c.bf16 %v3400, %v3396
        %v4120 = vpack.c.bf16 %v3404, %v3404
        %v4121 = vld [vmem:[%s8 + $0x3] sm:$0x1]
        %v4122 = vperm.slane %v4121, 0
        %v4127 = vunpack.c.l.b16 %v4107
        %v4128 = vunpack.c.l.b16 %v4108
        %v4129 = vunpack.c.l.b16 %v4109
        %v4130 = vunpack.c.l.b16 %v4110
        %v4131 = vpack.c.b16 %v4128, %v4127
        %v4132 = vpack.c.b16 %v4130, %v4129
        %v4136 = vsel %vm3552, %v4111, 0
        %v4139 = vsel %vm3552, %v4112, 0
        %v4142 = vsel %vm3552, %v4113, 0
        %v4145 = vsel %vm3552, %v4114, 0
        %v4148 = vsel %vm3552, %v4115, 0
        %v4151 = vsel %vm3552, %v4116, 0
        %v4154 = vsel %vm3552, %v4117, 0
        %v4157 = vsel %vm3552, %v4118, 0
        %v4160 = vsel %vm3552, %v4119, 0
        %v4163 = vsel %vm3552, %v4120, 0
        %4165 = vmatpush.bf16.msra.mxu0 0
        %4166 = vmatpush.bf16.msra.mxu0 0
        %4167 = vmatpush.bf16.msra.mxu0 0
        %4168 = vmatpush.bf16.msra.mxu0 0
        %4169 = vmatpush.bf16.msra.mxu0 0
        %4170 = vmatpush.bf16.msra.mxu0 0
        %4171 = vmatpush.bf16.msra.mxu0 %v4132
        %4172 = vmatpush.bf16.msra.mxu0 %v4131
        %4173 = vmatmul.bf16.gmra.mxu0 %v4136
        %v4174 = vpop.f32.mrf.mxu0
        %v4175 = vadd.f32 %v4122, %v4174
        %v4176 = vpop.f32.mrf.mxu0
        %v4177 = vadd.f32 %v4122, %v4176
        %4178 = vmatmul.bf16.gmra.mxu0 %v4139
        %v4179 = vpop.f32.mrf.mxu0
        %v4180 = vadd.f32 %v4122, %v4179
        %v4181 = vpop.f32.mrf.mxu0
        %v4182 = vadd.f32 %v4122, %v4181
        %4183 = vmatmul.bf16.gmra.mxu0 %v4142
        %v4184 = vpop.f32.mrf.mxu0
        %v4185 = vadd.f32 %v4122, %v4184
        %v4186 = vpop.f32.mrf.mxu0
        %v4187 = vadd.f32 %v4122, %v4186
        %4188 = vmatmul.bf16.gmra.mxu0 %v4145
        %v4189 = vpop.f32.mrf.mxu0
        %v4190 = vadd.f32 %v4122, %v4189
        %v4191 = vpop.f32.mrf.mxu0
        %v4192 = vadd.f32 %v4122, %v4191
        %4193 = vmatmul.bf16.gmra.mxu0 %v4148
        %v4194 = vpop.f32.mrf.mxu0
        %v4195 = vadd.f32 %v4122, %v4194
        %v4196 = vpop.f32.mrf.mxu0
        %v4197 = vadd.f32 %v4122, %v4196
        %4198 = vmatmul.bf16.gmra.mxu0 %v4151
        %v4199 = vpop.f32.mrf.mxu0
        %v4200 = vadd.f32 %v4122, %v4199
        %v4201 = vpop.f32.mrf.mxu0
        %v4202 = vadd.f32 %v4122, %v4201
        %4203 = vmatmul.bf16.gmra.mxu0 %v4154
        %v4204 = vpop.f32.mrf.mxu0
        %v4205 = vadd.f32 %v4122, %v4204
        %v4206 = vpop.f32.mrf.mxu0
        %v4207 = vadd.f32 %v4122, %v4206
        %4208 = vmatmul.bf16.gmra.mxu0 %v4157
        %v4209 = vpop.f32.mrf.mxu0
        %v4210 = vadd.f32 %v4122, %v4209
        %v4211 = vpop.f32.mrf.mxu0
        %v4212 = vadd.f32 %v4122, %v4211
        %4213 = vmatmul.bf16.gmra.mxu0 %v4160
        %v4214 = vpop.f32.mrf.mxu0
        %v4215 = vadd.f32 %v4122, %v4214
        %v4216 = vpop.f32.mrf.mxu0
        %v4217 = vadd.f32 %v4122, %v4216
        %4218 = vmatmul.bf16.gmra.mxu0 %v4163
        %v4219 = vpop.f32.mrf.mxu0
        %v4220 = vadd.f32 %v4122, %v4219
        %v4221 = vpop.f32.mrf.mxu0
        %4222 = vdwg.mxu0
        %v4223 = vadd.f32 %v4059, %v4175
        %v4224 = vadd.f32 %v4061, %v4177
        %v4225 = vadd.f32 %v4064, %v4180
        %v4226 = vadd.f32 %v4066, %v4182
        %v4227 = vadd.f32 %v4069, %v4185
        %v4228 = vadd.f32 %v4071, %v4187
        %v4229 = vadd.f32 %v4074, %v4190
        %v4230 = vadd.f32 %v4076, %v4192
        %v4231 = vadd.f32 %v4079, %v4195
        %v4232 = vadd.f32 %v4081, %v4197
        %v4233 = vadd.f32 %v4084, %v4200
        %v4234 = vadd.f32 %v4086, %v4202
        %v4235 = vadd.f32 %v4089, %v4205
        %v4236 = vadd.f32 %v4091, %v4207
        %v4237 = vadd.f32 %v4094, %v4210
        %v4238 = vadd.f32 %v4096, %v4212
        %v4239 = vadd.f32 %v4099, %v4215
        %v4240 = vadd.f32 %v4101, %v4217
        %v4241 = vadd.f32 %v4104, %v4220
        %v4242 = vmax.f32 %v4223, 0.0
        %v4243 = vmax.f32 %v4224, 0.0
        %v4244 = vmax.f32 %v4225, 0.0
        %v4245 = vmax.f32 %v4226, 0.0
        %v4246 = vmax.f32 %v4227, 0.0
        %v4247 = vmax.f32 %v4228, 0.0
        %v4248 = vmax.f32 %v4229, 0.0
        %v4249 = vmax.f32 %v4230, 0.0
        %v4250 = vmax.f32 %v4231, 0.0
        %v4251 = vmax.f32 %v4232, 0.0
        %v4252 = vmax.f32 %v4233, 0.0
        %v4253 = vmax.f32 %v4234, 0.0
        %v4254 = vmax.f32 %v4235, 0.0
        %v4255 = vmax.f32 %v4236, 0.0
        %v4256 = vmax.f32 %v4237, 0.0
        %v4257 = vmax.f32 %v4238, 0.0
        %v4258 = vmax.f32 %v4239, 0.0
        %v4259 = vmax.f32 %v4240, 0.0
        %v4260 = vmax.f32 %v4241, 0.0
        %v4261 = vld [vmem:[%s5] sm:$0xf]
        %v4262 = vld [vmem:[%s5 + $0x4] sm:$0xf]
        %v4263 = vld [vmem:[%s5 + $0x8] sm:$0xf]
        %v4264 = vld [vmem:[%s5 + $0xc] sm:$0xf]
        %v4265 = vld [vmem:[%s5 + $0x10] sm:$0xf]
        %v4266 = vld [vmem:[%s5 + $0x14] sm:$0xf]
        %v4267 = vld [vmem:[%s5 + $0x18] sm:$0xf]
        %v4268 = vld [vmem:[%s5 + $0x1c] sm:$0xf]
        %v4269 = vld [vmem:[%s5 + $0x20] sm:$0xf]
        %v4270 = vld [vmem:[%s5 + $0x24] sm:$0xf]
        %v4271 = vld [vmem:[%s5 + $0x28] sm:$0xf]
        %v4272 = vld [vmem:[%s5 + $0x2c] sm:$0xf]
        %v4273 = vld [vmem:[%s5 + $0x30] sm:$0xf]
        %v4274 = vld [vmem:[%s5 + $0x34] sm:$0xf]
        %v4275 = vld [vmem:[%s5 + $0x38] sm:$0xf]
        %v4276 = vld [vmem:[%s5 + $0x3c] sm:$0xf]
        %v4277 = vld [vmem:[%s5 + $0x40] sm:$0xf]
        %v4278 = vld [vmem:[%s5 + $0x44] sm:$0xf]
        %v4279 = vld [vmem:[%s5 + $0x48] sm:$0xf]
        %v4280 = vld [vmem:[%s5 + $0x4c] sm:$0xf]
        %v4281 = vld [vmem:[%s5 + $0x50] sm:$0xf]
        %v4282 = vld [vmem:[%s5 + $0x54] sm:$0xf]
        %v4283 = vld [vmem:[%s5 + $0x58] sm:$0xf]
        %v4284 = vld [vmem:[%s5 + $0x5c] sm:$0xf]
        %4304 = vrot.lane.b32.xlu0 %v4242, 64
        %v4305 = vpop.permute.xlu0 %4304
        %4306 = vrot.lane.b32.xlu0 %v4243, 64
        %v4307 = vpop.permute.xlu0 %4306
        %4308 = vrot.lane.b32.xlu0 %v4244, 64
        %v4309 = vpop.permute.xlu0 %4308
        %4310 = vrot.lane.b32.xlu0 %v4245, 64
        %v4311 = vpop.permute.xlu0 %4310
        %4312 = vrot.lane.b32.xlu0 %v4246, 64
        %v4313 = vpop.permute.xlu0 %4312
        %4314 = vrot.lane.b32.xlu0 %v4247, 64
        %v4315 = vpop.permute.xlu0 %4314
        %4316 = vrot.lane.b32.xlu0 %v4248, 64
        %v4317 = vpop.permute.xlu0 %4316
        %4318 = vrot.lane.b32.xlu0 %v4249, 64
        %v4319 = vpop.permute.xlu0 %4318
        %4320 = vrot.lane.b32.xlu0 %v4250, 64
        %v4321 = vpop.permute.xlu0 %4320
        %4322 = vrot.lane.b32.xlu0 %v4251, 64
        %v4323 = vpop.permute.xlu0 %4322
        %4324 = vrot.lane.b32.xlu0 %v4252, 64
        %v4325 = vpop.permute.xlu0 %4324
        %4326 = vrot.lane.b32.xlu0 %v4253, 64
        %v4327 = vpop.permute.xlu0 %4326
        %4328 = vrot.lane.b32.xlu0 %v4254, 64
        %v4329 = vpop.permute.xlu0 %4328
        %4330 = vrot.lane.b32.xlu0 %v4255, 64
        %v4331 = vpop.permute.xlu0 %4330
        %4332 = vrot.lane.b32.xlu0 %v4256, 64
        %v4333 = vpop.permute.xlu0 %4332
        %4334 = vrot.lane.b32.xlu0 %v4257, 64
        %v4335 = vpop.permute.xlu0 %4334
        %4336 = vrot.lane.b32.xlu0 %v4258, 64
        %v4337 = vpop.permute.xlu0 %4336
        %4338 = vrot.lane.b32.xlu0 %v4259, 64
        %v4339 = vpop.permute.xlu0 %4338
        %4340 = vrot.lane.b32.xlu0 %v4260, 64
        %v4341 = vpop.permute.xlu0 %4340
        %v4361 = vsel %vm3572, 0.0, %v4305
        %v4362 = vsel %vm3572, %v4242, %v4307
        %v4363 = vsel %vm3572, %v4243, %v4309
        %v4364 = vsel %vm3572, %v4244, %v4311
        %v4365 = vsel %vm3572, %v4245, %v4313
        %v4366 = vsel %vm3572, %v4246, %v4315
        %v4367 = vsel %vm3572, %v4247, %v4317
        %v4368 = vsel %vm3572, %v4248, %v4319
        %v4369 = vsel %vm3572, %v4249, %v4321
        %v4370 = vsel %vm3572, %v4250, %v4323
        %v4371 = vsel %vm3572, %v4251, %v4325
        %v4372 = vsel %vm3572, %v4252, %v4327
        %v4373 = vsel %vm3572, %v4253, %v4329
        %v4374 = vsel %vm3572, %v4254, %v4331
        %v4375 = vsel %vm3572, %v4255, %v4333
        %v4376 = vsel %vm3572, %v4256, %v4335
        %v4377 = vsel %vm3572, %v4257, %v4337
        %v4378 = vsel %vm3572, %v4258, %v4339
        %v4379 = vsel %vm3572, %v4259, %v4341
        %v4380 = vpack.c.bf16 %v4362, %v4361
        %v4381 = vpack.c.bf16 %v4244, %v4243
        %v4382 = vpack.c.bf16 %v4364, %v4363
        %v4383 = vpack.c.bf16 %v4246, %v4245
        %v4384 = vpack.c.bf16 %v4366, %v4365
        %v4385 = vpack.c.bf16 %v4248, %v4247
        %v4386 = vpack.c.bf16 %v4368, %v4367
        %v4387 = vpack.c.bf16 %v4250, %v4249
        %v4388 = vpack.c.bf16 %v4370, %v4369
        %v4389 = vpack.c.bf16 %v4252, %v4251
        %v4390 = vpack.c.bf16 %v4372, %v4371
        %v4391 = vpack.c.bf16 %v4254, %v4253
        %v4392 = vpack.c.bf16 %v4374, %v4373
        %v4393 = vpack.c.bf16 %v4256, %v4255
        %v4394 = vpack.c.bf16 %v4376, %v4375
        %v4395 = vpack.c.bf16 %v4258, %v4257
        %v4396 = vpack.c.bf16 %v4378, %v4377
        %v4397 = vpack.c.bf16 %v4260, %v4259
        %v4398 = vpack.c.bf16 %v4379, %v4379
        %v4423 = vunpack.c.l.b16 %v4261
        %v4424 = vunpack.c.l.b16 %v4262
        %v4425 = vunpack.c.l.b16 %v4263
        %v4426 = vunpack.c.l.b16 %v4264
        %v4427 = vunpack.c.l.b16 %v4265
        %v4428 = vunpack.c.l.b16 %v4266
        %v4429 = vunpack.c.l.b16 %v4267
        %v4430 = vunpack.c.l.b16 %v4268
        %v4431 = vunpack.c.l.b16 %v4269
        %v4432 = vunpack.c.l.b16 %v4270
        %v4433 = vunpack.c.l.b16 %v4271
        %v4434 = vunpack.c.l.b16 %v4272
        %v4435 = vunpack.c.l.b16 %v4273
        %v4436 = vunpack.c.l.b16 %v4274
        %v4437 = vunpack.c.l.b16 %v4275
        %v4438 = vunpack.c.l.b16 %v4276
        %v4439 = vunpack.c.l.b16 %v4277
        %v4440 = vunpack.c.l.b16 %v4278
        %v4441 = vunpack.c.l.b16 %v4279
        %v4442 = vunpack.c.l.b16 %v4280
        %v4443 = vunpack.c.l.b16 %v4281
        %v4444 = vunpack.c.l.b16 %v4282
        %v4445 = vunpack.c.l.b16 %v4283
        %v4446 = vunpack.c.l.b16 %v4284
        %v4447 = vpack.c.b16 %v4424, %v4423
        %v4448 = vpack.c.b16 %v4426, %v4425
        %v4449 = vpack.c.b16 %v4428, %v4427
        %v4450 = vpack.c.b16 %v4430, %v4429
        %v4451 = vpack.c.b16 %v4432, %v4431
        %v4452 = vpack.c.b16 %v4434, %v4433
        %v4453 = vpack.c.b16 %v4436, %v4435
        %v4454 = vpack.c.b16 %v4438, %v4437
        %v4455 = vpack.c.b16 %v4440, %v4439
        %v4456 = vpack.c.b16 %v4442, %v4441
        %v4457 = vpack.c.b16 %v4444, %v4443
        %v4458 = vpack.c.b16 %v4446, %v4445
        %v4472 = vsel %vm3572, %v4381, 0
        %v4475 = vsel %vm3572, %v4383, 0
        %v4478 = vsel %vm3572, %v4385, 0
        %v4481 = vsel %vm3572, %v4387, 0
        %v4484 = vsel %vm3572, %v4389, 0
        %v4487 = vsel %vm3572, %v4391, 0
        %v4490 = vsel %vm3572, %v4393, 0
        %v4493 = vsel %vm3572, %v4395, 0
        %v4496 = vsel %vm3572, %v4397, 0
        %4498 = vmatpush.bf16.msra.mxu0 %v4454
        %4499 = vmatpush.bf16.msra.mxu0 %v4453
        %4500 = vmatpush.bf16.msra.mxu0 %v4452
        %4501 = vmatpush.bf16.msra.mxu0 %v4451
        %4502 = vmatpush.bf16.msra.mxu0 %v4450
        %4503 = vmatpush.bf16.msra.mxu0 %v4449
        %4504 = vmatpush.bf16.msra.mxu0 %v4448
        %4505 = vmatpush.bf16.msra.mxu0 %v4447
        %4506 = vmatmul.bf16.gmra.mxu0 %v4380
        %v4507 = vpop.f32.mrf.mxu0
        %v4508 = vadd.f32 0.0, %v4507
        %v4509 = vpop.f32.mrf.mxu0
        %v4510 = vadd.f32 0.0, %v4509
        %4511 = vmatmul.bf16.gmra.mxu0 %v4382
        %v4512 = vpop.f32.mrf.mxu0
        %v4513 = vadd.f32 0.0, %v4512
        %v4514 = vpop.f32.mrf.mxu0
        %v4515 = vadd.f32 0.0, %v4514
        %4516 = vmatmul.bf16.gmra.mxu0 %v4384
        %v4517 = vpop.f32.mrf.mxu0
        %v4518 = vadd.f32 0.0, %v4517
        %v4519 = vpop.f32.mrf.mxu0
        %v4520 = vadd.f32 0.0, %v4519
        %4521 = vmatmul.bf16.gmra.mxu0 %v4386
        %v4522 = vpop.f32.mrf.mxu0
        %v4523 = vadd.f32 0.0, %v4522
        %v4524 = vpop.f32.mrf.mxu0
        %v4525 = vadd.f32 0.0, %v4524
        %4526 = vmatmul.bf16.gmra.mxu0 %v4388
        %v4527 = vpop.f32.mrf.mxu0
        %v4528 = vadd.f32 0.0, %v4527
        %v4529 = vpop.f32.mrf.mxu0
        %v4530 = vadd.f32 0.0, %v4529
        %4531 = vmatmul.bf16.gmra.mxu0 %v4390
        %v4532 = vpop.f32.mrf.mxu0
        %v4533 = vadd.f32 0.0, %v4532
        %v4534 = vpop.f32.mrf.mxu0
        %v4535 = vadd.f32 0.0, %v4534
        %4536 = vmatmul.bf16.gmra.mxu0 %v4392
        %v4537 = vpop.f32.mrf.mxu0
        %v4538 = vadd.f32 0.0, %v4537
        %v4539 = vpop.f32.mrf.mxu0
        %v4540 = vadd.f32 0.0, %v4539
        %4541 = vmatmul.bf16.gmra.mxu0 %v4394
        %v4542 = vpop.f32.mrf.mxu0
        %v4543 = vadd.f32 0.0, %v4542
        %v4544 = vpop.f32.mrf.mxu0
        %v4545 = vadd.f32 0.0, %v4544
        %4546 = vmatmul.bf16.gmra.mxu0 %v4396
        %v4547 = vpop.f32.mrf.mxu0
        %v4548 = vadd.f32 0.0, %v4547
        %v4549 = vpop.f32.mrf.mxu0
        %v4550 = vadd.f32 0.0, %v4549
        %4551 = vmatmul.bf16.gmra.mxu0 %v4398
        %v4552 = vpop.f32.mrf.mxu0
        %v4553 = vadd.f32 0.0, %v4552
        %v4554 = vpop.f32.mrf.mxu0
        %4555 = vdwg.mxu0
        %4556 = vmatpush.bf16.msra.mxu0 0
        %4557 = vmatpush.bf16.msra.mxu0 0
        %4558 = vmatpush.bf16.msra.mxu0 0
        %4559 = vmatpush.bf16.msra.mxu0 0
        %4560 = vmatpush.bf16.msra.mxu0 %v4458
        %4561 = vmatpush.bf16.msra.mxu0 %v4457
        %4562 = vmatpush.bf16.msra.mxu0 %v4456
        %4563 = vmatpush.bf16.msra.mxu0 %v4455
        %4564 = vmatmul.bf16.gmra.mxu0 %v4472
        %v4565 = vpop.f32.mrf.mxu0
        %v4566 = vadd.f32 %v4508, %v4565
        %v4567 = vpop.f32.mrf.mxu0
        %v4568 = vadd.f32 %v4510, %v4567
        %4569 = vmatmul.bf16.gmra.mxu0 %v4475
        %v4570 = vpop.f32.mrf.mxu0
        %v4571 = vadd.f32 %v4513, %v4570
        %v4572 = vpop.f32.mrf.mxu0
        %v4573 = vadd.f32 %v4515, %v4572
        %4574 = vmatmul.bf16.gmra.mxu0 %v4478
        %v4575 = vpop.f32.mrf.mxu0
        %v4576 = vadd.f32 %v4518, %v4575
        %v4577 = vpop.f32.mrf.mxu0
        %v4578 = vadd.f32 %v4520, %v4577
        %4579 = vmatmul.bf16.gmra.mxu0 %v4481
        %v4580 = vpop.f32.mrf.mxu0
        %v4581 = vadd.f32 %v4523, %v4580
        %v4582 = vpop.f32.mrf.mxu0
        %v4583 = vadd.f32 %v4525, %v4582
        %4584 = vmatmul.bf16.gmra.mxu0 %v4484
        %v4585 = vpop.f32.mrf.mxu0
        %v4586 = vadd.f32 %v4528, %v4585
        %v4587 = vpop.f32.mrf.mxu0
        %v4588 = vadd.f32 %v4530, %v4587
        %4589 = vmatmul.bf16.gmra.mxu0 %v4487
        %v4590 = vpop.f32.mrf.mxu0
        %v4591 = vadd.f32 %v4533, %v4590
        %v4592 = vpop.f32.mrf.mxu0
        %v4593 = vadd.f32 %v4535, %v4592
        %4594 = vmatmul.bf16.gmra.mxu0 %v4490
        %v4595 = vpop.f32.mrf.mxu0
        %v4596 = vadd.f32 %v4538, %v4595
        %v4597 = vpop.f32.mrf.mxu0
        %v4598 = vadd.f32 %v4540, %v4597
        %4599 = vmatmul.bf16.gmra.mxu0 %v4493
        %v4600 = vpop.f32.mrf.mxu0
        %v4601 = vadd.f32 %v4543, %v4600
        %v4602 = vpop.f32.mrf.mxu0
        %v4603 = vadd.f32 %v4545, %v4602
        %4604 = vmatmul.bf16.gmra.mxu0 %v4496
        %v4605 = vpop.f32.mrf.mxu0
        %v4606 = vadd.f32 %v4548, %v4605
        %v4607 = vpop.f32.mrf.mxu0
        %v4608 = vadd.f32 %v4550, %v4607
        %4609 = vmatmul.bf16.gmra.mxu0 %v3989
        %v4610 = vpop.f32.mrf.mxu0
        %v4611 = vadd.f32 %v4553, %v4610
        %v4612 = vpop.f32.mrf.mxu0
        %4613 = vdwg.mxu0
        %v4614 = vld [vmem:[%s8 + $0x4] sm:$0x1]
        %v4615 = vperm.slane %v4614, 0
        %vm4616 = vcmask 195584
        %v4618 = vsel %vm4616, %v390, 0
        %v4621 = vsel %vm4616, %v392, 0
        %v4624 = vsel %vm4616, %v394, 0
        %v4627 = vsel %vm4616, %v396, 0
        %v4630 = vsel %vm4616, %v398, 0
        %v4633 = vsel %vm4616, %v400, 0
        %v4636 = vsel %vm4616, %v402, 0
        %v4639 = vsel %vm4616, %v404, 0
        %v4642 = vsel %vm4616, %v406, 0
        %v4645 = vsel %vm4616, %v408, 0
        %v4647 = vand.u32 %v4603, 4294901760
        %4648 = vmatpush.msra.mxu0 %v4647
        %v4649 = vand.u32 %v4601, 4294901760
        %4650 = vmatpush.msra.mxu0 %v4649
        %v4651 = vand.u32 %v4598, 4294901760
        %4652 = vmatpush.msra.mxu0 %v4651
        %v4653 = vand.u32 %v4596, 4294901760
        %4654 = vmatpush.msra.mxu0 %v4653
        %v4655 = vand.u32 %v4593, 4294901760
        %4656 = vmatpush.msra.mxu0 %v4655
        %v4657 = vand.u32 %v4591, 4294901760
        %4658 = vmatpush.msra.mxu0 %v4657
        %v4659 = vand.u32 %v4588, 4294901760
        %4660 = vmatpush.msra.mxu0 %v4659
        %v4661 = vand.u32 %v4586, 4294901760
        %4662 = vmatpush.msra.mxu0 %v4661
        %v4663 = vand.u32 %v4583, 4294901760
        %4664 = vmatpush.msra.mxu0 %v4663
        %v4665 = vand.u32 %v4581, 4294901760
        %4666 = vmatpush.msra.mxu0 %v4665
        %v4667 = vand.u32 %v4578, 4294901760
        %4668 = vmatpush.msra.mxu0 %v4667
        %v4669 = vand.u32 %v4576, 4294901760
        %4670 = vmatpush.msra.mxu0 %v4669
        %v4671 = vand.u32 %v4573, 4294901760
        %4672 = vmatpush.msra.mxu0 %v4671
        %v4673 = vand.u32 %v4571, 4294901760
        %4674 = vmatpush.msra.mxu0 %v4673
        %v4675 = vand.u32 %v4568, 4294901760
        %4676 = vmatpush.msra.mxu0 %v4675
        %v4677 = vand.u32 %v4566, 4294901760
        %4678 = vmatpush.msra.mxu0 %v4677
        %v4679 = vand.u32 %v389, 4294901760
        %v4680 = vsub.f32 %v389, %v4679
        %v4681 = vand.u32 %v4680, 4294901760
        %v4682 = vsub.f32 %v4680, %v4681
        %v4683 = vand.u32 %v4682, 4294901760
        %4684 = vmatmul.f32.gmra.mxu0 %v4683
        %v4685 = vpop.f32.mrf.mxu0
        %v4686 = vadd.f32 %v4615, %v4685
        %v4687 = vand.u32 %v391, 4294901760
        %v4688 = vsub.f32 %v391, %v4687
        %v4689 = vand.u32 %v4688, 4294901760
        %v4690 = vsub.f32 %v4688, %v4689
        %v4691 = vand.u32 %v4690, 4294901760
        %4692 = vmatmul.f32.gmra.mxu0 %v4691
        %v4693 = vpop.f32.mrf.mxu0
        %v4694 = vadd.f32 %v4615, %v4693
        %v4695 = vand.u32 %v393, 4294901760
        %v4696 = vsub.f32 %v393, %v4695
        %v4697 = vand.u32 %v4696, 4294901760
        %v4698 = vsub.f32 %v4696, %v4697
        %v4699 = vand.u32 %v4698, 4294901760
        %4700 = vmatmul.f32.gmra.mxu0 %v4699
        %v4701 = vpop.f32.mrf.mxu0
        %v4702 = vadd.f32 %v4615, %v4701
        %v4703 = vand.u32 %v395, 4294901760
        %v4704 = vsub.f32 %v395, %v4703
        %v4705 = vand.u32 %v4704, 4294901760
        %v4706 = vsub.f32 %v4704, %v4705
        %v4707 = vand.u32 %v4706, 4294901760
        %4708 = vmatmul.f32.gmra.mxu0 %v4707
        %v4709 = vpop.f32.mrf.mxu0
        %v4710 = vadd.f32 %v4615, %v4709
        %v4711 = vand.u32 %v397, 4294901760
        %v4712 = vsub.f32 %v397, %v4711
        %v4713 = vand.u32 %v4712, 4294901760
        %v4714 = vsub.f32 %v4712, %v4713
        %v4715 = vand.u32 %v4714, 4294901760
        %4716 = vmatmul.f32.gmra.mxu0 %v4715
        %v4717 = vpop.f32.mrf.mxu0
        %v4718 = vadd.f32 %v4615, %v4717
        %v4719 = vand.u32 %v399, 4294901760
        %v4720 = vsub.f32 %v399, %v4719
        %v4721 = vand.u32 %v4720, 4294901760
        %v4722 = vsub.f32 %v4720, %v4721
        %v4723 = vand.u32 %v4722, 4294901760
        %4724 = vmatmul.f32.gmra.mxu0 %v4723
        %v4725 = vpop.f32.mrf.mxu0
        %v4726 = vadd.f32 %v4615, %v4725
        %v4727 = vand.u32 %v401, 4294901760
        %v4728 = vsub.f32 %v401, %v4727
        %v4729 = vand.u32 %v4728, 4294901760
        %v4730 = vsub.f32 %v4728, %v4729
        %v4731 = vand.u32 %v4730, 4294901760
        %4732 = vmatmul.f32.gmra.mxu0 %v4731
        %v4733 = vpop.f32.mrf.mxu0
        %v4734 = vadd.f32 %v4615, %v4733
        %v4735 = vand.u32 %v403, 4294901760
        %v4736 = vsub.f32 %v403, %v4735
        %v4737 = vand.u32 %v4736, 4294901760
        %v4738 = vsub.f32 %v4736, %v4737
        %v4739 = vand.u32 %v4738, 4294901760
        %4740 = vmatmul.f32.gmra.mxu0 %v4739
        %v4741 = vpop.f32.mrf.mxu0
        %v4742 = vadd.f32 %v4615, %v4741
        %v4743 = vand.u32 %v405, 4294901760
        %v4744 = vsub.f32 %v405, %v4743
        %v4745 = vand.u32 %v4744, 4294901760
        %v4746 = vsub.f32 %v4744, %v4745
        %v4747 = vand.u32 %v4746, 4294901760
        %4748 = vmatmul.f32.gmra.mxu0 %v4747
        %v4749 = vpop.f32.mrf.mxu0
        %v4750 = vadd.f32 %v4615, %v4749
        %v4751 = vand.u32 %v407, 4294901760
        %v4752 = vsub.f32 %v407, %v4751
        %v4753 = vand.u32 %v4752, 4294901760
        %v4754 = vsub.f32 %v4752, %v4753
        %v4755 = vand.u32 %v4754, 4294901760
        %4756 = vmatmul.f32.gmra.mxu0 %v4755
        %v4757 = vpop.f32.mrf.mxu0
        %v4758 = vadd.f32 %v4615, %v4757
        %4759 = vdwg.mxu0
        %v4760 = vand.u32 %v4603, 4294901760
        %v4761 = vsub.f32 %v4603, %v4760
        %v4762 = vand.u32 %v4761, 4294901760
        %v4763 = vsub.f32 %v4761, %v4762
        %v4764 = vand.u32 %v4763, 4294901760
        %4765 = vmatpush.msra.mxu0 %v4764
        %v4766 = vand.u32 %v4601, 4294901760
        %v4767 = vsub.f32 %v4601, %v4766
        %v4768 = vand.u32 %v4767, 4294901760
        %v4769 = vsub.f32 %v4767, %v4768
        %v4770 = vand.u32 %v4769, 4294901760
        %4771 = vmatpush.msra.mxu0 %v4770
        %v4772 = vand.u32 %v4598, 4294901760
        %v4773 = vsub.f32 %v4598, %v4772
        %v4774 = vand.u32 %v4773, 4294901760
        %v4775 = vsub.f32 %v4773, %v4774
        %v4776 = vand.u32 %v4775, 4294901760
        %4777 = vmatpush.msra.mxu0 %v4776
        %v4778 = vand.u32 %v4596, 4294901760
        %v4779 = vsub.f32 %v4596, %v4778
        %v4780 = vand.u32 %v4779, 4294901760
        %v4781 = vsub.f32 %v4779, %v4780
        %v4782 = vand.u32 %v4781, 4294901760
        %4783 = vmatpush.msra.mxu0 %v4782
        %v4784 = vand.u32 %v4593, 4294901760
        %v4785 = vsub.f32 %v4593, %v4784
        %v4786 = vand.u32 %v4785, 4294901760
        %v4787 = vsub.f32 %v4785, %v4786
        %v4788 = vand.u32 %v4787, 4294901760
        %4789 = vmatpush.msra.mxu0 %v4788
        %v4790 = vand.u32 %v4591, 4294901760
        %v4791 = vsub.f32 %v4591, %v4790
        %v4792 = vand.u32 %v4791, 4294901760
        %v4793 = vsub.f32 %v4791, %v4792
        %v4794 = vand.u32 %v4793, 4294901760
        %4795 = vmatpush.msra.mxu0 %v4794
        %v4796 = vand.u32 %v4588, 4294901760
        %v4797 = vsub.f32 %v4588, %v4796
        %v4798 = vand.u32 %v4797, 4294901760
        %v4799 = vsub.f32 %v4797, %v4798
        %v4800 = vand.u32 %v4799, 4294901760
        %4801 = vmatpush.msra.mxu0 %v4800
        %v4802 = vand.u32 %v4586, 4294901760
        %v4803 = vsub.f32 %v4586, %v4802
        %v4804 = vand.u32 %v4803, 4294901760
        %v4805 = vsub.f32 %v4803, %v4804
        %v4806 = vand.u32 %v4805, 4294901760
        %4807 = vmatpush.msra.mxu0 %v4806
        %v4808 = vand.u32 %v4583, 4294901760
        %v4809 = vsub.f32 %v4583, %v4808
        %v4810 = vand.u32 %v4809, 4294901760
        %v4811 = vsub.f32 %v4809, %v4810
        %v4812 = vand.u32 %v4811, 4294901760
        %4813 = vmatpush.msra.mxu0 %v4812
        %v4814 = vand.u32 %v4581, 4294901760
        %v4815 = vsub.f32 %v4581, %v4814
        %v4816 = vand.u32 %v4815, 4294901760
        %v4817 = vsub.f32 %v4815, %v4816
        %v4818 = vand.u32 %v4817, 4294901760
        %4819 = vmatpush.msra.mxu0 %v4818
        %v4820 = vand.u32 %v4578, 4294901760
        %v4821 = vsub.f32 %v4578, %v4820
        %v4822 = vand.u32 %v4821, 4294901760
        %v4823 = vsub.f32 %v4821, %v4822
        %v4824 = vand.u32 %v4823, 4294901760
        %4825 = vmatpush.msra.mxu0 %v4824
        %v4826 = vand.u32 %v4576, 4294901760
        %v4827 = vsub.f32 %v4576, %v4826
        %v4828 = vand.u32 %v4827, 4294901760
        %v4829 = vsub.f32 %v4827, %v4828
        %v4830 = vand.u32 %v4829, 4294901760
        %4831 = vmatpush.msra.mxu0 %v4830
        %v4832 = vand.u32 %v4573, 4294901760
        %v4833 = vsub.f32 %v4573, %v4832
        %v4834 = vand.u32 %v4833, 4294901760
        %v4835 = vsub.f32 %v4833, %v4834
        %v4836 = vand.u32 %v4835, 4294901760
        %4837 = vmatpush.msra.mxu0 %v4836
        %v4838 = vand.u32 %v4571, 4294901760
        %v4839 = vsub.f32 %v4571, %v4838
        %v4840 = vand.u32 %v4839, 4294901760
        %v4841 = vsub.f32 %v4839, %v4840
        %v4842 = vand.u32 %v4841, 4294901760
        %4843 = vmatpush.msra.mxu0 %v4842
        %v4844 = vand.u32 %v4568, 4294901760
        %v4845 = vsub.f32 %v4568, %v4844
        %v4846 = vand.u32 %v4845, 4294901760
        %v4847 = vsub.f32 %v4845, %v4846
        %v4848 = vand.u32 %v4847, 4294901760
        %4849 = vmatpush.msra.mxu0 %v4848
        %v4850 = vand.u32 %v4566, 4294901760
        %v4851 = vsub.f32 %v4566, %v4850
        %v4852 = vand.u32 %v4851, 4294901760
        %v4853 = vsub.f32 %v4851, %v4852
        %v4854 = vand.u32 %v4853, 4294901760
        %4855 = vmatpush.msra.mxu0 %v4854
        %v4856 = vand.u32 %v389, 4294901760
        %4857 = vmatmul.f32.gmra.mxu0 %v4856
        %v4858 = vpop.f32.mrf.mxu0
        %v4859 = vadd.f32 %v4686, %v4858
        %v4860 = vand.u32 %v391, 4294901760
        %4861 = vmatmul.f32.gmra.mxu0 %v4860
        %v4862 = vpop.f32.mrf.mxu0
        %v4863 = vadd.f32 %v4694, %v4862
        %v4864 = vand.u32 %v393, 4294901760
        %4865 = vmatmul.f32.gmra.mxu0 %v4864
        %v4866 = vpop.f32.mrf.mxu0
        %v4867 = vadd.f32 %v4702, %v4866
        %v4868 = vand.u32 %v395, 4294901760
        %4869 = vmatmul.f32.gmra.mxu0 %v4868
        %v4870 = vpop.f32.mrf.mxu0
        %v4871 = vadd.f32 %v4710, %v4870
        %v4872 = vand.u32 %v397, 4294901760
        %4873 = vmatmul.f32.gmra.mxu0 %v4872
        %v4874 = vpop.f32.mrf.mxu0
        %v4875 = vadd.f32 %v4718, %v4874
        %v4876 = vand.u32 %v399, 4294901760
        %4877 = vmatmul.f32.gmra.mxu0 %v4876
        %v4878 = vpop.f32.mrf.mxu0
        %v4879 = vadd.f32 %v4726, %v4878
        %v4880 = vand.u32 %v401, 4294901760
        %4881 = vmatmul.f32.gmra.mxu0 %v4880
        %v4882 = vpop.f32.mrf.mxu0
        %v4883 = vadd.f32 %v4734, %v4882
        %v4884 = vand.u32 %v403, 4294901760
        %4885 = vmatmul.f32.gmra.mxu0 %v4884
        %v4886 = vpop.f32.mrf.mxu0
        %v4887 = vadd.f32 %v4742, %v4886
        %v4888 = vand.u32 %v405, 4294901760
        %4889 = vmatmul.f32.gmra.mxu0 %v4888
        %v4890 = vpop.f32.mrf.mxu0
        %v4891 = vadd.f32 %v4750, %v4890
        %v4892 = vand.u32 %v407, 4294901760
        %4893 = vmatmul.f32.gmra.mxu0 %v4892
        %v4894 = vpop.f32.mrf.mxu0
        %v4895 = vadd.f32 %v4758, %v4894
        %4896 = vdwg.mxu0
        %v4897 = vand.u32 %v4603, 4294901760
        %v4898 = vsub.f32 %v4603, %v4897
        %4899 = vmatpush.msra.mxu0 %v4898
        %v4900 = vand.u32 %v4601, 4294901760
        %v4901 = vsub.f32 %v4601, %v4900
        %4902 = vmatpush.msra.mxu0 %v4901
        %v4903 = vand.u32 %v4598, 4294901760
        %v4904 = vsub.f32 %v4598, %v4903
        %4905 = vmatpush.msra.mxu0 %v4904
        %v4906 = vand.u32 %v4596, 4294901760
        %v4907 = vsub.f32 %v4596, %v4906
        %4908 = vmatpush.msra.mxu0 %v4907
        %v4909 = vand.u32 %v4593, 4294901760
        %v4910 = vsub.f32 %v4593, %v4909
        %4911 = vmatpush.msra.mxu0 %v4910
        %v4912 = vand.u32 %v4591, 4294901760
        %v4913 = vsub.f32 %v4591, %v4912
        %4914 = vmatpush.msra.mxu0 %v4913
        %v4915 = vand.u32 %v4588, 4294901760
        %v4916 = vsub.f32 %v4588, %v4915
        %4917 = vmatpush.msra.mxu0 %v4916
        %v4918 = vand.u32 %v4586, 4294901760
        %v4919 = vsub.f32 %v4586, %v4918
        %4920 = vmatpush.msra.mxu0 %v4919
        %v4921 = vand.u32 %v4583, 4294901760
        %v4922 = vsub.f32 %v4583, %v4921
        %4923 = vmatpush.msra.mxu0 %v4922
        %v4924 = vand.u32 %v4581, 4294901760
        %v4925 = vsub.f32 %v4581, %v4924
        %4926 = vmatpush.msra.mxu0 %v4925
        %v4927 = vand.u32 %v4578, 4294901760
        %v4928 = vsub.f32 %v4578, %v4927
        %4929 = vmatpush.msra.mxu0 %v4928
        %v4930 = vand.u32 %v4576, 4294901760
        %v4931 = vsub.f32 %v4576, %v4930
        %4932 = vmatpush.msra.mxu0 %v4931
        %v4933 = vand.u32 %v4573, 4294901760
        %v4934 = vsub.f32 %v4573, %v4933
        %4935 = vmatpush.msra.mxu0 %v4934
        %v4936 = vand.u32 %v4571, 4294901760
        %v4937 = vsub.f32 %v4571, %v4936
        %4938 = vmatpush.msra.mxu0 %v4937
        %v4939 = vand.u32 %v4568, 4294901760
        %v4940 = vsub.f32 %v4568, %v4939
        %4941 = vmatpush.msra.mxu0 %v4940
        %v4942 = vand.u32 %v4566, 4294901760
        %v4943 = vsub.f32 %v4566, %v4942
        %4944 = vmatpush.msra.mxu0 %v4943
        %v4945 = vand.u32 %v389, 4294901760
        %v4946 = vsub.f32 %v389, %v4945
        %4947 = vmatmul.f32.gmra.mxu0 %v4946
        %v4948 = vpop.f32.mrf.mxu0
        %v4949 = vadd.f32 %v4859, %v4948
        %v4950 = vand.u32 %v391, 4294901760
        %v4951 = vsub.f32 %v391, %v4950
        %4952 = vmatmul.f32.gmra.mxu0 %v4951
        %v4953 = vpop.f32.mrf.mxu0
        %v4954 = vadd.f32 %v4863, %v4953
        %v4955 = vand.u32 %v393, 4294901760
        %v4956 = vsub.f32 %v393, %v4955
        %4957 = vmatmul.f32.gmra.mxu0 %v4956
        %v4958 = vpop.f32.mrf.mxu0
        %v4959 = vadd.f32 %v4867, %v4958
        %v4960 = vand.u32 %v395, 4294901760
        %v4961 = vsub.f32 %v395, %v4960
        %4962 = vmatmul.f32.gmra.mxu0 %v4961
        %v4963 = vpop.f32.mrf.mxu0
        %v4964 = vadd.f32 %v4871, %v4963
        %v4965 = vand.u32 %v397, 4294901760
        %v4966 = vsub.f32 %v397, %v4965
        %4967 = vmatmul.f32.gmra.mxu0 %v4966
        %v4968 = vpop.f32.mrf.mxu0
        %v4969 = vadd.f32 %v4875, %v4968
        %v4970 = vand.u32 %v399, 4294901760
        %v4971 = vsub.f32 %v399, %v4970
        %4972 = vmatmul.f32.gmra.mxu0 %v4971
        %v4973 = vpop.f32.mrf.mxu0
        %v4974 = vadd.f32 %v4879, %v4973
        %v4975 = vand.u32 %v401, 4294901760
        %v4976 = vsub.f32 %v401, %v4975
        %4977 = vmatmul.f32.gmra.mxu0 %v4976
        %v4978 = vpop.f32.mrf.mxu0
        %v4979 = vadd.f32 %v4883, %v4978
        %v4980 = vand.u32 %v403, 4294901760
        %v4981 = vsub.f32 %v403, %v4980
        %4982 = vmatmul.f32.gmra.mxu0 %v4981
        %v4983 = vpop.f32.mrf.mxu0
        %v4984 = vadd.f32 %v4887, %v4983
        %v4985 = vand.u32 %v405, 4294901760
        %v4986 = vsub.f32 %v405, %v4985
        %4987 = vmatmul.f32.gmra.mxu0 %v4986
        %v4988 = vpop.f32.mrf.mxu0
        %v4989 = vadd.f32 %v4891, %v4988
        %v4990 = vand.u32 %v407, 4294901760
        %v4991 = vsub.f32 %v407, %v4990
        %4992 = vmatmul.f32.gmra.mxu0 %v4991
        %v4993 = vpop.f32.mrf.mxu0
        %v4994 = vadd.f32 %v4895, %v4993
        %4995 = vdwg.mxu0
        %v4996 = vand.u32 %v4603, 4294901760
        %4997 = vmatpush.msra.mxu0 %v4996
        %v4998 = vand.u32 %v4601, 4294901760
        %4999 = vmatpush.msra.mxu0 %v4998
        %v5000 = vand.u32 %v4598, 4294901760
        %5001 = vmatpush.msra.mxu0 %v5000
        %v5002 = vand.u32 %v4596, 4294901760
        %5003 = vmatpush.msra.mxu0 %v5002
        %v5004 = vand.u32 %v4593, 4294901760
        %5005 = vmatpush.msra.mxu0 %v5004
        %v5006 = vand.u32 %v4591, 4294901760
        %5007 = vmatpush.msra.mxu0 %v5006
        %v5008 = vand.u32 %v4588, 4294901760
        %5009 = vmatpush.msra.mxu0 %v5008
        %v5010 = vand.u32 %v4586, 4294901760
        %5011 = vmatpush.msra.mxu0 %v5010
        %v5012 = vand.u32 %v4583, 4294901760
        %5013 = vmatpush.msra.mxu0 %v5012
        %v5014 = vand.u32 %v4581, 4294901760
        %5015 = vmatpush.msra.mxu0 %v5014
        %v5016 = vand.u32 %v4578, 4294901760
        %5017 = vmatpush.msra.mxu0 %v5016
        %v5018 = vand.u32 %v4576, 4294901760
        %5019 = vmatpush.msra.mxu0 %v5018
        %v5020 = vand.u32 %v4573, 4294901760
        %5021 = vmatpush.msra.mxu0 %v5020
        %v5022 = vand.u32 %v4571, 4294901760
        %5023 = vmatpush.msra.mxu0 %v5022
        %v5024 = vand.u32 %v4568, 4294901760
        %5025 = vmatpush.msra.mxu0 %v5024
        %v5026 = vand.u32 %v4566, 4294901760
        %5027 = vmatpush.msra.mxu0 %v5026
        %v5028 = vand.u32 %v389, 4294901760
        %v5029 = vsub.f32 %v389, %v5028
        %v5030 = vand.u32 %v5029, 4294901760
        %5031 = vmatmul.f32.gmra.mxu0 %v5030
        %v5032 = vpop.f32.mrf.mxu0
        %v5033 = vadd.f32 %v4949, %v5032
        %v5034 = vand.u32 %v391, 4294901760
        %v5035 = vsub.f32 %v391, %v5034
        %v5036 = vand.u32 %v5035, 4294901760
        %5037 = vmatmul.f32.gmra.mxu0 %v5036
        %v5038 = vpop.f32.mrf.mxu0
        %v5039 = vadd.f32 %v4954, %v5038
        %v5040 = vand.u32 %v393, 4294901760
        %v5041 = vsub.f32 %v393, %v5040
        %v5042 = vand.u32 %v5041, 4294901760
        %5043 = vmatmul.f32.gmra.mxu0 %v5042
        %v5044 = vpop.f32.mrf.mxu0
        %v5045 = vadd.f32 %v4959, %v5044
        %v5046 = vand.u32 %v395, 4294901760
        %v5047 = vsub.f32 %v395, %v5046
        %v5048 = vand.u32 %v5047, 4294901760
        %5049 = vmatmul.f32.gmra.mxu0 %v5048
        %v5050 = vpop.f32.mrf.mxu0
        %v5051 = vadd.f32 %v4964, %v5050
        %v5052 = vand.u32 %v397, 4294901760
        %v5053 = vsub.f32 %v397, %v5052
        %v5054 = vand.u32 %v5053, 4294901760
        %5055 = vmatmul.f32.gmra.mxu0 %v5054
        %v5056 = vpop.f32.mrf.mxu0
        %v5057 = vadd.f32 %v4969, %v5056
        %v5058 = vand.u32 %v399, 4294901760
        %v5059 = vsub.f32 %v399, %v5058
        %v5060 = vand.u32 %v5059, 4294901760
        %5061 = vmatmul.f32.gmra.mxu0 %v5060
        %v5062 = vpop.f32.mrf.mxu0
        %v5063 = vadd.f32 %v4974, %v5062
        %v5064 = vand.u32 %v401, 4294901760
        %v5065 = vsub.f32 %v401, %v5064
        %v5066 = vand.u32 %v5065, 4294901760
        %5067 = vmatmul.f32.gmra.mxu0 %v5066
        %v5068 = vpop.f32.mrf.mxu0
        %v5069 = vadd.f32 %v4979, %v5068
        %v5070 = vand.u32 %v403, 4294901760
        %v5071 = vsub.f32 %v403, %v5070
        %v5072 = vand.u32 %v5071, 4294901760
        %5073 = vmatmul.f32.gmra.mxu0 %v5072
        %v5074 = vpop.f32.mrf.mxu0
        %v5075 = vadd.f32 %v4984, %v5074
        %v5076 = vand.u32 %v405, 4294901760
        %v5077 = vsub.f32 %v405, %v5076
        %v5078 = vand.u32 %v5077, 4294901760
        %5079 = vmatmul.f32.gmra.mxu0 %v5078
        %v5080 = vpop.f32.mrf.mxu0
        %v5081 = vadd.f32 %v4989, %v5080
        %v5082 = vand.u32 %v407, 4294901760
        %v5083 = vsub.f32 %v407, %v5082
        %v5084 = vand.u32 %v5083, 4294901760
        %5085 = vmatmul.f32.gmra.mxu0 %v5084
        %v5086 = vpop.f32.mrf.mxu0
        %v5087 = vadd.f32 %v4994, %v5086
        %5088 = vdwg.mxu0
        %v5089 = vand.u32 %v4603, 4294901760
        %v5090 = vsub.f32 %v4603, %v5089
        %v5091 = vand.u32 %v5090, 4294901760
        %5092 = vmatpush.msra.mxu0 %v5091
        %v5093 = vand.u32 %v4601, 4294901760
        %v5094 = vsub.f32 %v4601, %v5093
        %v5095 = vand.u32 %v5094, 4294901760
        %5096 = vmatpush.msra.mxu0 %v5095
        %v5097 = vand.u32 %v4598, 4294901760
        %v5098 = vsub.f32 %v4598, %v5097
        %v5099 = vand.u32 %v5098, 4294901760
        %5100 = vmatpush.msra.mxu0 %v5099
        %v5101 = vand.u32 %v4596, 4294901760
        %v5102 = vsub.f32 %v4596, %v5101
        %v5103 = vand.u32 %v5102, 4294901760
        %5104 = vmatpush.msra.mxu0 %v5103
        %v5105 = vand.u32 %v4593, 4294901760
        %v5106 = vsub.f32 %v4593, %v5105
        %v5107 = vand.u32 %v5106, 4294901760
        %5108 = vmatpush.msra.mxu0 %v5107
        %v5109 = vand.u32 %v4591, 4294901760
        %v5110 = vsub.f32 %v4591, %v5109
        %v5111 = vand.u32 %v5110, 4294901760
        %5112 = vmatpush.msra.mxu0 %v5111
        %v5113 = vand.u32 %v4588, 4294901760
        %v5114 = vsub.f32 %v4588, %v5113
        %v5115 = vand.u32 %v5114, 4294901760
        %5116 = vmatpush.msra.mxu0 %v5115
        %v5117 = vand.u32 %v4586, 4294901760
        %v5118 = vsub.f32 %v4586, %v5117
        %v5119 = vand.u32 %v5118, 4294901760
        %5120 = vmatpush.msra.mxu0 %v5119
        %v5121 = vand.u32 %v4583, 4294901760
        %v5122 = vsub.f32 %v4583, %v5121
        %v5123 = vand.u32 %v5122, 4294901760
        %5124 = vmatpush.msra.mxu0 %v5123
        %v5125 = vand.u32 %v4581, 4294901760
        %v5126 = vsub.f32 %v4581, %v5125
        %v5127 = vand.u32 %v5126, 4294901760
        %5128 = vmatpush.msra.mxu0 %v5127
        %v5129 = vand.u32 %v4578, 4294901760
        %v5130 = vsub.f32 %v4578, %v5129
        %v5131 = vand.u32 %v5130, 4294901760
        %5132 = vmatpush.msra.mxu0 %v5131
        %v5133 = vand.u32 %v4576, 4294901760
        %v5134 = vsub.f32 %v4576, %v5133
        %v5135 = vand.u32 %v5134, 4294901760
        %5136 = vmatpush.msra.mxu0 %v5135
        %v5137 = vand.u32 %v4573, 4294901760
        %v5138 = vsub.f32 %v4573, %v5137
        %v5139 = vand.u32 %v5138, 4294901760
        %5140 = vmatpush.msra.mxu0 %v5139
        %v5141 = vand.u32 %v4571, 4294901760
        %v5142 = vsub.f32 %v4571, %v5141
        %v5143 = vand.u32 %v5142, 4294901760
        %5144 = vmatpush.msra.mxu0 %v5143
        %v5145 = vand.u32 %v4568, 4294901760
        %v5146 = vsub.f32 %v4568, %v5145
        %v5147 = vand.u32 %v5146, 4294901760
        %5148 = vmatpush.msra.mxu0 %v5147
        %v5149 = vand.u32 %v4566, 4294901760
        %v5150 = vsub.f32 %v4566, %v5149
        %v5151 = vand.u32 %v5150, 4294901760
        %5152 = vmatpush.msra.mxu0 %v5151
        %v5153 = vand.u32 %v389, 4294901760
        %5154 = vmatmul.f32.gmra.mxu0 %v5153
        %v5155 = vpop.f32.mrf.mxu0
        %v5156 = vadd.f32 %v5033, %v5155
        %v5157 = vand.u32 %v391, 4294901760
        %5158 = vmatmul.f32.gmra.mxu0 %v5157
        %v5159 = vpop.f32.mrf.mxu0
        %v5160 = vadd.f32 %v5039, %v5159
        %v5161 = vand.u32 %v393, 4294901760
        %5162 = vmatmul.f32.gmra.mxu0 %v5161
        %v5163 = vpop.f32.mrf.mxu0
        %v5164 = vadd.f32 %v5045, %v5163
        %v5165 = vand.u32 %v395, 4294901760
        %5166 = vmatmul.f32.gmra.mxu0 %v5165
        %v5167 = vpop.f32.mrf.mxu0
        %v5168 = vadd.f32 %v5051, %v5167
        %v5169 = vand.u32 %v397, 4294901760
        %5170 = vmatmul.f32.gmra.mxu0 %v5169
        %v5171 = vpop.f32.mrf.mxu0
        %v5172 = vadd.f32 %v5057, %v5171
        %v5173 = vand.u32 %v399, 4294901760
        %5174 = vmatmul.f32.gmra.mxu0 %v5173
        %v5175 = vpop.f32.mrf.mxu0
        %v5176 = vadd.f32 %v5063, %v5175
        %v5177 = vand.u32 %v401, 4294901760
        %5178 = vmatmul.f32.gmra.mxu0 %v5177
        %v5179 = vpop.f32.mrf.mxu0
        %v5180 = vadd.f32 %v5069, %v5179
        %v5181 = vand.u32 %v403, 4294901760
        %5182 = vmatmul.f32.gmra.mxu0 %v5181
        %v5183 = vpop.f32.mrf.mxu0
        %v5184 = vadd.f32 %v5075, %v5183
        %v5185 = vand.u32 %v405, 4294901760
        %5186 = vmatmul.f32.gmra.mxu0 %v5185
        %v5187 = vpop.f32.mrf.mxu0
        %v5188 = vadd.f32 %v5081, %v5187
        %v5189 = vand.u32 %v407, 4294901760
        %5190 = vmatmul.f32.gmra.mxu0 %v5189
        %v5191 = vpop.f32.mrf.mxu0
        %v5192 = vadd.f32 %v5087, %v5191
        %5193 = vdwg.mxu0
        %v5194 = vand.u32 %v4603, 4294901760
        %5195 = vmatpush.msra.mxu0 %v5194
        %v5196 = vand.u32 %v4601, 4294901760
        %5197 = vmatpush.msra.mxu0 %v5196
        %v5198 = vand.u32 %v4598, 4294901760
        %5199 = vmatpush.msra.mxu0 %v5198
        %v5200 = vand.u32 %v4596, 4294901760
        %5201 = vmatpush.msra.mxu0 %v5200
        %v5202 = vand.u32 %v4593, 4294901760
        %5203 = vmatpush.msra.mxu0 %v5202
        %v5204 = vand.u32 %v4591, 4294901760
        %5205 = vmatpush.msra.mxu0 %v5204
        %v5206 = vand.u32 %v4588, 4294901760
        %5207 = vmatpush.msra.mxu0 %v5206
        %v5208 = vand.u32 %v4586, 4294901760
        %5209 = vmatpush.msra.mxu0 %v5208
        %v5210 = vand.u32 %v4583, 4294901760
        %5211 = vmatpush.msra.mxu0 %v5210
        %v5212 = vand.u32 %v4581, 4294901760
        %5213 = vmatpush.msra.mxu0 %v5212
        %v5214 = vand.u32 %v4578, 4294901760
        %5215 = vmatpush.msra.mxu0 %v5214
        %v5216 = vand.u32 %v4576, 4294901760
        %5217 = vmatpush.msra.mxu0 %v5216
        %v5218 = vand.u32 %v4573, 4294901760
        %5219 = vmatpush.msra.mxu0 %v5218
        %v5220 = vand.u32 %v4571, 4294901760
        %5221 = vmatpush.msra.mxu0 %v5220
        %v5222 = vand.u32 %v4568, 4294901760
        %5223 = vmatpush.msra.mxu0 %v5222
        %v5224 = vand.u32 %v4566, 4294901760
        %5225 = vmatpush.msra.mxu0 %v5224
        %v5226 = vand.u32 %v389, 4294901760
        %5227 = vmatmul.f32.gmra.mxu0 %v5226
        %v5228 = vpop.f32.mrf.mxu0
        %v5229 = vadd.f32 %v5156, %v5228
        %v5230 = vand.u32 %v391, 4294901760
        %5231 = vmatmul.f32.gmra.mxu0 %v5230
        %v5232 = vpop.f32.mrf.mxu0
        %v5233 = vadd.f32 %v5160, %v5232
        %v5234 = vand.u32 %v393, 4294901760
        %5235 = vmatmul.f32.gmra.mxu0 %v5234
        %v5236 = vpop.f32.mrf.mxu0
        %v5237 = vadd.f32 %v5164, %v5236
        %v5238 = vand.u32 %v395, 4294901760
        %5239 = vmatmul.f32.gmra.mxu0 %v5238
        %v5240 = vpop.f32.mrf.mxu0
        %v5241 = vadd.f32 %v5168, %v5240
        %v5242 = vand.u32 %v397, 4294901760
        %5243 = vmatmul.f32.gmra.mxu0 %v5242
        %v5244 = vpop.f32.mrf.mxu0
        %v5245 = vadd.f32 %v5172, %v5244
        %v5246 = vand.u32 %v399, 4294901760
        %5247 = vmatmul.f32.gmra.mxu0 %v5246
        %v5248 = vpop.f32.mrf.mxu0
        %v5249 = vadd.f32 %v5176, %v5248
        %v5250 = vand.u32 %v401, 4294901760
        %5251 = vmatmul.f32.gmra.mxu0 %v5250
        %v5252 = vpop.f32.mrf.mxu0
        %v5253 = vadd.f32 %v5180, %v5252
        %v5254 = vand.u32 %v403, 4294901760
        %5255 = vmatmul.f32.gmra.mxu0 %v5254
        %v5256 = vpop.f32.mrf.mxu0
        %v5257 = vadd.f32 %v5184, %v5256
        %v5258 = vand.u32 %v405, 4294901760
        %5259 = vmatmul.f32.gmra.mxu0 %v5258
        %v5260 = vpop.f32.mrf.mxu0
        %v5261 = vadd.f32 %v5188, %v5260
        %v5262 = vand.u32 %v407, 4294901760
        %5263 = vmatmul.f32.gmra.mxu0 %v5262
        %v5264 = vpop.f32.mrf.mxu0
        %v5265 = vadd.f32 %v5192, %v5264
        %5266 = vdwg.mxu0
        %5267 = vmatpush.msra.mxu0 0.0
        %5268 = vmatpush.msra.mxu0 0.0
        %5269 = vmatpush.msra.mxu0 0.0
        %5270 = vmatpush.msra.mxu0 0.0
        %5271 = vmatpush.msra.mxu0 0.0
        %5272 = vmatpush.msra.mxu0 0.0
        %5273 = vmatpush.msra.mxu0 0.0
        %5274 = vmatpush.msra.mxu0 0.0
        %5275 = vmatpush.msra.mxu0 0.0
        %5276 = vmatpush.msra.mxu0 0.0
        %5277 = vmatpush.msra.mxu0 0.0
        %5278 = vmatpush.msra.mxu0 0.0
        %5279 = vmatpush.msra.mxu0 0.0
        %v5280 = vand.u32 %v4611, 4294901760
        %5281 = vmatpush.msra.mxu0 %v5280
        %v5282 = vand.u32 %v4608, 4294901760
        %5283 = vmatpush.msra.mxu0 %v5282
        %v5284 = vand.u32 %v4606, 4294901760
        %5285 = vmatpush.msra.mxu0 %v5284
        %v5286 = vand.u32 %v4618, 4294901760
        %v5287 = vsub.f32 %v4618, %v5286
        %v5288 = vand.u32 %v5287, 4294901760
        %v5289 = vsub.f32 %v5287, %v5288
        %v5290 = vand.u32 %v5289, 4294901760
        %5291 = vmatmul.f32.gmra.mxu0 %v5290
        %v5292 = vpop.f32.mrf.mxu0
        %v5293 = vadd.f32 %v5229, %v5292
        %v5294 = vand.u32 %v4621, 4294901760
        %v5295 = vsub.f32 %v4621, %v5294
        %v5296 = vand.u32 %v5295, 4294901760
        %v5297 = vsub.f32 %v5295, %v5296
        %v5298 = vand.u32 %v5297, 4294901760
        %5299 = vmatmul.f32.gmra.mxu0 %v5298
        %v5300 = vpop.f32.mrf.mxu0
        %v5301 = vadd.f32 %v5233, %v5300
        %v5302 = vand.u32 %v4624, 4294901760
        %v5303 = vsub.f32 %v4624, %v5302
        %v5304 = vand.u32 %v5303, 4294901760
        %v5305 = vsub.f32 %v5303, %v5304
        %v5306 = vand.u32 %v5305, 4294901760
        %5307 = vmatmul.f32.gmra.mxu0 %v5306
        %v5308 = vpop.f32.mrf.mxu0
        %v5309 = vadd.f32 %v5237, %v5308
        %v5310 = vand.u32 %v4627, 4294901760
        %v5311 = vsub.f32 %v4627, %v5310
        %v5312 = vand.u32 %v5311, 4294901760
        %v5313 = vsub.f32 %v5311, %v5312
        %v5314 = vand.u32 %v5313, 4294901760
        %5315 = vmatmul.f32.gmra.mxu0 %v5314
        %v5316 = vpop.f32.mrf.mxu0
        %v5317 = vadd.f32 %v5241, %v5316
        %v5318 = vand.u32 %v4630, 4294901760
        %v5319 = vsub.f32 %v4630, %v5318
        %v5320 = vand.u32 %v5319, 4294901760
        %v5321 = vsub.f32 %v5319, %v5320
        %v5322 = vand.u32 %v5321, 4294901760
        %5323 = vmatmul.f32.gmra.mxu0 %v5322
        %v5324 = vpop.f32.mrf.mxu0
        %v5325 = vadd.f32 %v5245, %v5324
        %v5326 = vand.u32 %v4633, 4294901760
        %v5327 = vsub.f32 %v4633, %v5326
        %v5328 = vand.u32 %v5327, 4294901760
        %v5329 = vsub.f32 %v5327, %v5328
        %v5330 = vand.u32 %v5329, 4294901760
        %5331 = vmatmul.f32.gmra.mxu0 %v5330
        %v5332 = vpop.f32.mrf.mxu0
        %v5333 = vadd.f32 %v5249, %v5332
        %v5334 = vand.u32 %v4636, 4294901760
        %v5335 = vsub.f32 %v4636, %v5334
        %v5336 = vand.u32 %v5335, 4294901760
        %v5337 = vsub.f32 %v5335, %v5336
        %v5338 = vand.u32 %v5337, 4294901760
        %5339 = vmatmul.f32.gmra.mxu0 %v5338
        %v5340 = vpop.f32.mrf.mxu0
        %v5341 = vadd.f32 %v5253, %v5340
        %v5342 = vand.u32 %v4639, 4294901760
        %v5343 = vsub.f32 %v4639, %v5342
        %v5344 = vand.u32 %v5343, 4294901760
        %v5345 = vsub.f32 %v5343, %v5344
        %v5346 = vand.u32 %v5345, 4294901760
        %5347 = vmatmul.f32.gmra.mxu0 %v5346
        %v5348 = vpop.f32.mrf.mxu0
        %v5349 = vadd.f32 %v5257, %v5348
        %v5350 = vand.u32 %v4642, 4294901760
        %v5351 = vsub.f32 %v4642, %v5350
        %v5352 = vand.u32 %v5351, 4294901760
        %v5353 = vsub.f32 %v5351, %v5352
        %v5354 = vand.u32 %v5353, 4294901760
        %5355 = vmatmul.f32.gmra.mxu0 %v5354
        %v5356 = vpop.f32.mrf.mxu0
        %v5357 = vadd.f32 %v5261, %v5356
        %v5358 = vand.u32 %v4645, 4294901760
        %v5359 = vsub.f32 %v4645, %v5358
        %v5360 = vand.u32 %v5359, 4294901760
        %v5361 = vsub.f32 %v5359, %v5360
        %v5362 = vand.u32 %v5361, 4294901760
        %5363 = vmatmul.f32.gmra.mxu0 %v5362
        %v5364 = vpop.f32.mrf.mxu0
        %v5365 = vadd.f32 %v5265, %v5364
        %5366 = vdwg.mxu0
        %5367 = vmatpush.msra.mxu0 0.0
        %5368 = vmatpush.msra.mxu0 0.0
        %5369 = vmatpush.msra.mxu0 0.0
        %5370 = vmatpush.msra.mxu0 0.0
        %5371 = vmatpush.msra.mxu0 0.0
        %5372 = vmatpush.msra.mxu0 0.0
        %5373 = vmatpush.msra.mxu0 0.0
        %5374 = vmatpush.msra.mxu0 0.0
        %5375 = vmatpush.msra.mxu0 0.0
        %5376 = vmatpush.msra.mxu0 0.0
        %5377 = vmatpush.msra.mxu0 0.0
        %5378 = vmatpush.msra.mxu0 0.0
        %5379 = vmatpush.msra.mxu0 0.0
        %v5380 = vand.u32 %v4611, 4294901760
        %v5381 = vsub.f32 %v4611, %v5380
        %v5382 = vand.u32 %v5381, 4294901760
        %v5383 = vsub.f32 %v5381, %v5382
        %v5384 = vand.u32 %v5383, 4294901760
        %5385 = vmatpush.msra.mxu0 %v5384
        %v5386 = vand.u32 %v4608, 4294901760
        %v5387 = vsub.f32 %v4608, %v5386
        %v5388 = vand.u32 %v5387, 4294901760
        %v5389 = vsub.f32 %v5387, %v5388
        %v5390 = vand.u32 %v5389, 4294901760
        %5391 = vmatpush.msra.mxu0 %v5390
        %v5392 = vand.u32 %v4606, 4294901760
        %v5393 = vsub.f32 %v4606, %v5392
        %v5394 = vand.u32 %v5393, 4294901760
        %v5395 = vsub.f32 %v5393, %v5394
        %v5396 = vand.u32 %v5395, 4294901760
        %5397 = vmatpush.msra.mxu0 %v5396
        %v5398 = vand.u32 %v4618, 4294901760
        %5399 = vmatmul.f32.gmra.mxu0 %v5398
        %v5400 = vpop.f32.mrf.mxu0
        %v5401 = vadd.f32 %v5293, %v5400
        %v5402 = vand.u32 %v4621, 4294901760
        %5403 = vmatmul.f32.gmra.mxu0 %v5402
        %v5404 = vpop.f32.mrf.mxu0
        %v5405 = vadd.f32 %v5301, %v5404
        %v5406 = vand.u32 %v4624, 4294901760
        %5407 = vmatmul.f32.gmra.mxu0 %v5406
        %v5408 = vpop.f32.mrf.mxu0
        %v5409 = vadd.f32 %v5309, %v5408
        %v5410 = vand.u32 %v4627, 4294901760
        %5411 = vmatmul.f32.gmra.mxu0 %v5410
        %v5412 = vpop.f32.mrf.mxu0
        %v5413 = vadd.f32 %v5317, %v5412
        %v5414 = vand.u32 %v4630, 4294901760
        %5415 = vmatmul.f32.gmra.mxu0 %v5414
        %v5416 = vpop.f32.mrf.mxu0
        %v5417 = vadd.f32 %v5325, %v5416
        %v5418 = vand.u32 %v4633, 4294901760
        %5419 = vmatmul.f32.gmra.mxu0 %v5418
        %v5420 = vpop.f32.mrf.mxu0
        %v5421 = vadd.f32 %v5333, %v5420
        %v5422 = vand.u32 %v4636, 4294901760
        %5423 = vmatmul.f32.gmra.mxu0 %v5422
        %v5424 = vpop.f32.mrf.mxu0
        %v5425 = vadd.f32 %v5341, %v5424
        %v5426 = vand.u32 %v4639, 4294901760
        %5427 = vmatmul.f32.gmra.mxu0 %v5426
        %v5428 = vpop.f32.mrf.mxu0
        %v5429 = vadd.f32 %v5349, %v5428
        %v5430 = vand.u32 %v4642, 4294901760
        %5431 = vmatmul.f32.gmra.mxu0 %v5430
        %v5432 = vpop.f32.mrf.mxu0
        %v5433 = vadd.f32 %v5357, %v5432
        %v5434 = vand.u32 %v4645, 4294901760
        %5435 = vmatmul.f32.gmra.mxu0 %v5434
        %v5436 = vpop.f32.mrf.mxu0
        %v5437 = vadd.f32 %v5365, %v5436
        %5438 = vdwg.mxu0
        %5439 = vmatpush.msra.mxu0 0.0
        %5440 = vmatpush.msra.mxu0 0.0
        %5441 = vmatpush.msra.mxu0 0.0
        %5442 = vmatpush.msra.mxu0 0.0
        %5443 = vmatpush.msra.mxu0 0.0
        %5444 = vmatpush.msra.mxu0 0.0
        %5445 = vmatpush.msra.mxu0 0.0
        %5446 = vmatpush.msra.mxu0 0.0
        %5447 = vmatpush.msra.mxu0 0.0
        %5448 = vmatpush.msra.mxu0 0.0
        %5449 = vmatpush.msra.mxu0 0.0
        %5450 = vmatpush.msra.mxu0 0.0
        %5451 = vmatpush.msra.mxu0 0.0
        %v5452 = vand.u32 %v4611, 4294901760
        %v5453 = vsub.f32 %v4611, %v5452
        %5454 = vmatpush.msra.mxu0 %v5453
        %v5455 = vand.u32 %v4608, 4294901760
        %v5456 = vsub.f32 %v4608, %v5455
        %5457 = vmatpush.msra.mxu0 %v5456
        %v5458 = vand.u32 %v4606, 4294901760
        %v5459 = vsub.f32 %v4606, %v5458
        %5460 = vmatpush.msra.mxu0 %v5459
        %v5461 = vand.u32 %v4618, 4294901760
        %v5462 = vsub.f32 %v4618, %v5461
        %5463 = vmatmul.f32.gmra.mxu0 %v5462
        %v5464 = vpop.f32.mrf.mxu0
        %v5465 = vadd.f32 %v5401, %v5464
        %v5466 = vand.u32 %v4621, 4294901760
        %v5467 = vsub.f32 %v4621, %v5466
        %5468 = vmatmul.f32.gmra.mxu0 %v5467
        %v5469 = vpop.f32.mrf.mxu0
        %v5470 = vadd.f32 %v5405, %v5469
        %v5471 = vand.u32 %v4624, 4294901760
        %v5472 = vsub.f32 %v4624, %v5471
        %5473 = vmatmul.f32.gmra.mxu0 %v5472
        %v5474 = vpop.f32.mrf.mxu0
        %v5475 = vadd.f32 %v5409, %v5474
        %v5476 = vand.u32 %v4627, 4294901760
        %v5477 = vsub.f32 %v4627, %v5476
        %5478 = vmatmul.f32.gmra.mxu0 %v5477
        %v5479 = vpop.f32.mrf.mxu0
        %v5480 = vadd.f32 %v5413, %v5479
        %v5481 = vand.u32 %v4630, 4294901760
        %v5482 = vsub.f32 %v4630, %v5481
        %5483 = vmatmul.f32.gmra.mxu0 %v5482
        %v5484 = vpop.f32.mrf.mxu0
        %v5485 = vadd.f32 %v5417, %v5484
        %v5486 = vand.u32 %v4633, 4294901760
        %v5487 = vsub.f32 %v4633, %v5486
        %5488 = vmatmul.f32.gmra.mxu0 %v5487
        %v5489 = vpop.f32.mrf.mxu0
        %v5490 = vadd.f32 %v5421, %v5489
        %v5491 = vand.u32 %v4636, 4294901760
        %v5492 = vsub.f32 %v4636, %v5491
        %5493 = vmatmul.f32.gmra.mxu0 %v5492
        %v5494 = vpop.f32.mrf.mxu0
        %v5495 = vadd.f32 %v5425, %v5494
        %v5496 = vand.u32 %v4639, 4294901760
        %v5497 = vsub.f32 %v4639, %v5496
        %5498 = vmatmul.f32.gmra.mxu0 %v5497
        %v5499 = vpop.f32.mrf.mxu0
        %v5500 = vadd.f32 %v5429, %v5499
        %v5501 = vand.u32 %v4642, 4294901760
        %v5502 = vsub.f32 %v4642, %v5501
        %5503 = vmatmul.f32.gmra.mxu0 %v5502
        %v5504 = vpop.f32.mrf.mxu0
        %v5505 = vadd.f32 %v5433, %v5504
        %v5506 = vand.u32 %v4645, 4294901760
        %v5507 = vsub.f32 %v4645, %v5506
        %5508 = vmatmul.f32.gmra.mxu0 %v5507
        %v5509 = vpop.f32.mrf.mxu0
        %v5510 = vadd.f32 %v5437, %v5509
        %5511 = vdwg.mxu0
        %5512 = vmatpush.msra.mxu0 0.0
        %5513 = vmatpush.msra.mxu0 0.0
        %5514 = vmatpush.msra.mxu0 0.0
        %5515 = vmatpush.msra.mxu0 0.0
        %5516 = vmatpush.msra.mxu0 0.0
        %5517 = vmatpush.msra.mxu0 0.0
        %5518 = vmatpush.msra.mxu0 0.0
        %5519 = vmatpush.msra.mxu0 0.0
        %5520 = vmatpush.msra.mxu0 0.0
        %5521 = vmatpush.msra.mxu0 0.0
        %5522 = vmatpush.msra.mxu0 0.0
        %5523 = vmatpush.msra.mxu0 0.0
        %5524 = vmatpush.msra.mxu0 0.0
        %v5525 = vand.u32 %v4611, 4294901760
        %5526 = vmatpush.msra.mxu0 %v5525
        %v5527 = vand.u32 %v4608, 4294901760
        %5528 = vmatpush.msra.mxu0 %v5527
        %v5529 = vand.u32 %v4606, 4294901760
        %5530 = vmatpush.msra.mxu0 %v5529
        %v5531 = vand.u32 %v4618, 4294901760
        %v5532 = vsub.f32 %v4618, %v5531
        %v5533 = vand.u32 %v5532, 4294901760
        %5534 = vmatmul.f32.gmra.mxu0 %v5533
        %v5535 = vpop.f32.mrf.mxu0
        %v5536 = vadd.f32 %v5465, %v5535
        %v5537 = vand.u32 %v4621, 4294901760
        %v5538 = vsub.f32 %v4621, %v5537
        %v5539 = vand.u32 %v5538, 4294901760
        %5540 = vmatmul.f32.gmra.mxu0 %v5539
        %v5541 = vpop.f32.mrf.mxu0
        %v5542 = vadd.f32 %v5470, %v5541
        %v5543 = vand.u32 %v4624, 4294901760
        %v5544 = vsub.f32 %v4624, %v5543
        %v5545 = vand.u32 %v5544, 4294901760
        %5546 = vmatmul.f32.gmra.mxu0 %v5545
        %v5547 = vpop.f32.mrf.mxu0
        %v5548 = vadd.f32 %v5475, %v5547
        %v5549 = vand.u32 %v4627, 4294901760
        %v5550 = vsub.f32 %v4627, %v5549
        %v5551 = vand.u32 %v5550, 4294901760
        %5552 = vmatmul.f32.gmra.mxu0 %v5551
        %v5553 = vpop.f32.mrf.mxu0
        %v5554 = vadd.f32 %v5480, %v5553
        %v5555 = vand.u32 %v4630, 4294901760
        %v5556 = vsub.f32 %v4630, %v5555
        %v5557 = vand.u32 %v5556, 4294901760
        %5558 = vmatmul.f32.gmra.mxu0 %v5557
        %v5559 = vpop.f32.mrf.mxu0
        %v5560 = vadd.f32 %v5485, %v5559
        %v5561 = vand.u32 %v4633, 4294901760
        %v5562 = vsub.f32 %v4633, %v5561
        %v5563 = vand.u32 %v5562, 4294901760
        %5564 = vmatmul.f32.gmra.mxu0 %v5563
        %v5565 = vpop.f32.mrf.mxu0
        %v5566 = vadd.f32 %v5490, %v5565
        %v5567 = vand.u32 %v4636, 4294901760
        %v5568 = vsub.f32 %v4636, %v5567
        %v5569 = vand.u32 %v5568, 4294901760
        %5570 = vmatmul.f32.gmra.mxu0 %v5569
        %v5571 = vpop.f32.mrf.mxu0
        %v5572 = vadd.f32 %v5495, %v5571
        %v5573 = vand.u32 %v4639, 4294901760
        %v5574 = vsub.f32 %v4639, %v5573
        %v5575 = vand.u32 %v5574, 4294901760
        %5576 = vmatmul.f32.gmra.mxu0 %v5575
        %v5577 = vpop.f32.mrf.mxu0
        %v5578 = vadd.f32 %v5500, %v5577
        %v5579 = vand.u32 %v4642, 4294901760
        %v5580 = vsub.f32 %v4642, %v5579
        %v5581 = vand.u32 %v5580, 4294901760
        %5582 = vmatmul.f32.gmra.mxu0 %v5581
        %v5583 = vpop.f32.mrf.mxu0
        %v5584 = vadd.f32 %v5505, %v5583
        %v5585 = vand.u32 %v4645, 4294901760
        %v5586 = vsub.f32 %v4645, %v5585
        %v5587 = vand.u32 %v5586, 4294901760
        %5588 = vmatmul.f32.gmra.mxu0 %v5587
        %v5589 = vpop.f32.mrf.mxu0
        %v5590 = vadd.f32 %v5510, %v5589
        %5591 = vdwg.mxu0
        %5592 = vmatpush.msra.mxu0 0.0
        %5593 = vmatpush.msra.mxu0 0.0
        %5594 = vmatpush.msra.mxu0 0.0
        %5595 = vmatpush.msra.mxu0 0.0
        %5596 = vmatpush.msra.mxu0 0.0
        %5597 = vmatpush.msra.mxu0 0.0
        %5598 = vmatpush.msra.mxu0 0.0
        %5599 = vmatpush.msra.mxu0 0.0
        %5600 = vmatpush.msra.mxu0 0.0
        %5601 = vmatpush.msra.mxu0 0.0
        %5602 = vmatpush.msra.mxu0 0.0
        %5603 = vmatpush.msra.mxu0 0.0
        %5604 = vmatpush.msra.mxu0 0.0
        %v5605 = vand.u32 %v4611, 4294901760
        %v5606 = vsub.f32 %v4611, %v5605
        %v5607 = vand.u32 %v5606, 4294901760
        %5608 = vmatpush.msra.mxu0 %v5607
        %v5609 = vand.u32 %v4608, 4294901760
        %v5610 = vsub.f32 %v4608, %v5609
        %v5611 = vand.u32 %v5610, 4294901760
        %5612 = vmatpush.msra.mxu0 %v5611
        %v5613 = vand.u32 %v4606, 4294901760
        %v5614 = vsub.f32 %v4606, %v5613
        %v5615 = vand.u32 %v5614, 4294901760
        %5616 = vmatpush.msra.mxu0 %v5615
        %v5617 = vand.u32 %v4618, 4294901760
        %5618 = vmatmul.f32.gmra.mxu0 %v5617
        %v5619 = vpop.f32.mrf.mxu0
        %v5620 = vadd.f32 %v5536, %v5619
        %v5621 = vand.u32 %v4621, 4294901760
        %5622 = vmatmul.f32.gmra.mxu0 %v5621
        %v5623 = vpop.f32.mrf.mxu0
        %v5624 = vadd.f32 %v5542, %v5623
        %v5625 = vand.u32 %v4624, 4294901760
        %5626 = vmatmul.f32.gmra.mxu0 %v5625
        %v5627 = vpop.f32.mrf.mxu0
        %v5628 = vadd.f32 %v5548, %v5627
        %v5629 = vand.u32 %v4627, 4294901760
        %5630 = vmatmul.f32.gmra.mxu0 %v5629
        %v5631 = vpop.f32.mrf.mxu0
        %v5632 = vadd.f32 %v5554, %v5631
        %v5633 = vand.u32 %v4630, 4294901760
        %5634 = vmatmul.f32.gmra.mxu0 %v5633
        %v5635 = vpop.f32.mrf.mxu0
        %v5636 = vadd.f32 %v5560, %v5635
        %v5637 = vand.u32 %v4633, 4294901760
        %5638 = vmatmul.f32.gmra.mxu0 %v5637
        %v5639 = vpop.f32.mrf.mxu0
        %v5640 = vadd.f32 %v5566, %v5639
        %v5641 = vand.u32 %v4636, 4294901760
        %5642 = vmatmul.f32.gmra.mxu0 %v5641
        %v5643 = vpop.f32.mrf.mxu0
        %v5644 = vadd.f32 %v5572, %v5643
        %v5645 = vand.u32 %v4639, 4294901760
        %5646 = vmatmul.f32.gmra.mxu0 %v5645
        %v5647 = vpop.f32.mrf.mxu0
        %v5648 = vadd.f32 %v5578, %v5647
        %v5649 = vand.u32 %v4642, 4294901760
        %5650 = vmatmul.f32.gmra.mxu0 %v5649
        %v5651 = vpop.f32.mrf.mxu0
        %v5652 = vadd.f32 %v5584, %v5651
        %v5653 = vand.u32 %v4645, 4294901760
        %5654 = vmatmul.f32.gmra.mxu0 %v5653
        %v5655 = vpop.f32.mrf.mxu0
        %v5656 = vadd.f32 %v5590, %v5655
        %5657 = vdwg.mxu0
        %5658 = vmatpush.msra.mxu0 0.0
        %5659 = vmatpush.msra.mxu0 0.0
        %5660 = vmatpush.msra.mxu0 0.0
        %5661 = vmatpush.msra.mxu0 0.0
        %5662 = vmatpush.msra.mxu0 0.0
        %5663 = vmatpush.msra.mxu0 0.0
        %5664 = vmatpush.msra.mxu0 0.0
        %5665 = vmatpush.msra.mxu0 0.0
        %5666 = vmatpush.msra.mxu0 0.0
        %5667 = vmatpush.msra.mxu0 0.0
        %5668 = vmatpush.msra.mxu0 0.0
        %5669 = vmatpush.msra.mxu0 0.0
        %5670 = vmatpush.msra.mxu0 0.0
        %v5671 = vand.u32 %v4611, 4294901760
        %5672 = vmatpush.msra.mxu0 %v5671
        %v5673 = vand.u32 %v4608, 4294901760
        %5674 = vmatpush.msra.mxu0 %v5673
        %v5675 = vand.u32 %v4606, 4294901760
        %5676 = vmatpush.msra.mxu0 %v5675
        %v5677 = vand.u32 %v4618, 4294901760
        %5678 = vmatmul.f32.gmra.mxu0 %v5677
        %v5679 = vpop.f32.mrf.mxu0
        %v5680 = vadd.f32 %v5620, %v5679
        %v5681 = vand.u32 %v4621, 4294901760
        %5682 = vmatmul.f32.gmra.mxu0 %v5681
        %v5683 = vpop.f32.mrf.mxu0
        %v5684 = vadd.f32 %v5624, %v5683
        %v5685 = vand.u32 %v4624, 4294901760
        %5686 = vmatmul.f32.gmra.mxu0 %v5685
        %v5687 = vpop.f32.mrf.mxu0
        %v5688 = vadd.f32 %v5628, %v5687
        %v5689 = vand.u32 %v4627, 4294901760
        %5690 = vmatmul.f32.gmra.mxu0 %v5689
        %v5691 = vpop.f32.mrf.mxu0
        %v5692 = vadd.f32 %v5632, %v5691
        %v5693 = vand.u32 %v4630, 4294901760
        %5694 = vmatmul.f32.gmra.mxu0 %v5693
        %v5695 = vpop.f32.mrf.mxu0
        %v5696 = vadd.f32 %v5636, %v5695
        %v5697 = vand.u32 %v4633, 4294901760
        %5698 = vmatmul.f32.gmra.mxu0 %v5697
        %v5699 = vpop.f32.mrf.mxu0
        %v5700 = vadd.f32 %v5640, %v5699
        %v5701 = vand.u32 %v4636, 4294901760
        %5702 = vmatmul.f32.gmra.mxu0 %v5701
        %v5703 = vpop.f32.mrf.mxu0
        %v5704 = vadd.f32 %v5644, %v5703
        %v5705 = vand.u32 %v4639, 4294901760
        %5706 = vmatmul.f32.gmra.mxu0 %v5705
        %v5707 = vpop.f32.mrf.mxu0
        %v5708 = vadd.f32 %v5648, %v5707
        %v5709 = vand.u32 %v4642, 4294901760
        %5710 = vmatmul.f32.gmra.mxu0 %v5709
        %v5711 = vpop.f32.mrf.mxu0
        %v5712 = vadd.f32 %v5652, %v5711
        %v5713 = vand.u32 %v4645, 4294901760
        %5714 = vmatmul.f32.gmra.mxu0 %v5713
        %v5715 = vpop.f32.mrf.mxu0
        %v5716 = vadd.f32 %v5656, %v5715
        %5717 = vdwg.mxu0
        %v5718 = vmax.f32 %v5680, 0.0
        %v5719 = vmax.f32 %v5684, 0.0
        %v5720 = vmax.f32 %v5688, 0.0
        %v5721 = vmax.f32 %v5692, 0.0
        %v5722 = vmax.f32 %v5696, 0.0
        %v5723 = vmax.f32 %v5700, 0.0
        %v5724 = vmax.f32 %v5704, 0.0
        %v5725 = vmax.f32 %v5708, 0.0
        %v5726 = vmax.f32 %v5712, 0.0
        %v5727 = vmax.f32 %v5716, 0.0
        %v5728 = vld [vmem:[%s5 + $0x60] sm:$0xf]
        %v5729 = vld [vmem:[%s5 + $0x64] sm:$0xf]
        %v5730 = vld [vmem:[%s5 + $0x68] sm:$0xf]
        %v5731 = vld [vmem:[%s5 + $0x6c] sm:$0xf]
        %v5732 = vld [vmem:[%s5 + $0x70] sm:$0xf]
        %v5733 = vld [vmem:[%s5 + $0x74] sm:$0xf]
        %v5734 = vld [vmem:[%s5 + $0x78] sm:$0xf]
        %v5735 = vld [vmem:[%s5 + $0x7c] sm:$0xf]
        %v5736 = vld [vmem:[%s5 + $0x80] sm:$0xf]
        %v5737 = vld [vmem:[%s5 + $0x84] sm:$0xf]
        %v5738 = vld [vmem:[%s5 + $0x88] sm:$0xf]
        %v5739 = vld [vmem:[%s5 + $0x8c] sm:$0xf]
        %v5740 = vld [vmem:[%s5 + $0x90] sm:$0xf]
        %v5741 = vld [vmem:[%s5 + $0x94] sm:$0xf]
        %v5742 = vld [vmem:[%s5 + $0x98] sm:$0xf]
        %v5743 = vld [vmem:[%s5 + $0x9c] sm:$0xf]
        %v5744 = vld [vmem:[%s5 + $0xa0] sm:$0xf]
        %v5745 = vld [vmem:[%s5 + $0xa4] sm:$0xf]
        %v5746 = vld [vmem:[%s5 + $0xa8] sm:$0xf]
        %v5747 = vld [vmem:[%s5 + $0xac] sm:$0xf]
        %v5748 = vld [vmem:[%s5 + $0xb0] sm:$0xf]
        %v5749 = vld [vmem:[%s5 + $0xb4] sm:$0xf]
        %v5750 = vld [vmem:[%s5 + $0xb8] sm:$0xf]
        %v5751 = vld [vmem:[%s5 + $0xbc] sm:$0xf]
        %v5752 = vld [vmem:[%s5 + $0xc0] sm:$0xf]
        %v5753 = vld [vmem:[%s5 + $0xc4] sm:$0xf]
        %v5754 = vld [vmem:[%s5 + $0xc8] sm:$0xf]
        %v5755 = vld [vmem:[%s5 + $0xcc] sm:$0xf]
        %v5756 = vld [vmem:[%s5 + $0xd0] sm:$0xf]
        %v5757 = vld [vmem:[%s5 + $0xd4] sm:$0xf]
        %v5758 = vld [vmem:[%s5 + $0xd8] sm:$0xf]
        %v5759 = vld [vmem:[%s5 + $0xdc] sm:$0xf]
        %v5760 = vld [vmem:[%s5 + $0xe0] sm:$0xf]
        %v5761 = vld [vmem:[%s5 + $0xe4] sm:$0xf]
        %v5762 = vld [vmem:[%s5 + $0xe8] sm:$0xf]
        %v5763 = vld [vmem:[%s5 + $0xec] sm:$0xf]
        %v5764 = vld [vmem:[%s5 + $0xf0] sm:$0xf]
        %v5765 = vld [vmem:[%s5 + $0xf4] sm:$0xf]
        %v5766 = vld [vmem:[%s5 + $0xf8] sm:$0xf]
        %v5767 = vld [vmem:[%s5 + $0xfc] sm:$0xf]
        %v5768 = vld [vmem:[%s5 + $0x100] sm:$0xf]
        %v5769 = vld [vmem:[%s5 + $0x104] sm:$0xf]
        %v5770 = vld [vmem:[%s5 + $0x108] sm:$0xf]
        %v5771 = vld [vmem:[%s5 + $0x10c] sm:$0xf]
        %v5772 = vld [vmem:[%s5 + $0x110] sm:$0xf]
        %v5773 = vld [vmem:[%s5 + $0x114] sm:$0xf]
        %v5774 = vld [vmem:[%s5 + $0x118] sm:$0xf]
        %v5775 = vld [vmem:[%s5 + $0x11c] sm:$0xf]
        %v5776 = vpack.c.bf16 %v5718, 0.0
        %v5777 = vpack.c.bf16 %v5719, %v5718
        %v5778 = vpack.c.bf16 %v5720, %v5719
        %v5779 = vpack.c.bf16 %v5721, %v5720
        %v5780 = vpack.c.bf16 %v5722, %v5721
        %v5781 = vpack.c.bf16 %v5723, %v5722
        %v5782 = vpack.c.bf16 %v5724, %v5723
        %v5783 = vpack.c.bf16 %v5725, %v5724
        %v5784 = vpack.c.bf16 %v5726, %v5725
        %v5785 = vpack.c.bf16 %v5727, %v5726
        %v5786 = vpack.c.bf16 0.0, %v5727
        %v5787 = vld [vmem:[%s8 + $0x5] sm:$0x1]
        %v5788 = vperm.slane %v5787, 0
        %v5837 = vunpack.c.l.b16 %v5728
        %v5838 = vunpack.c.l.b16 %v5729
        %v5839 = vunpack.c.l.b16 %v5730
        %v5840 = vunpack.c.l.b16 %v5731
        %v5841 = vunpack.c.l.b16 %v5732
        %v5842 = vunpack.c.l.b16 %v5733
        %v5843 = vunpack.c.l.b16 %v5734
        %v5844 = vunpack.c.l.b16 %v5735
        %v5845 = vunpack.c.l.b16 %v5736
        %v5846 = vunpack.c.l.b16 %v5737
        %v5847 = vunpack.c.l.b16 %v5738
        %v5848 = vunpack.c.l.b16 %v5739
        %v5849 = vunpack.c.l.b16 %v5740
        %v5850 = vunpack.c.l.b16 %v5741
        %v5851 = vunpack.c.l.b16 %v5742
        %v5852 = vunpack.c.l.b16 %v5743
        %v5853 = vunpack.c.l.b16 %v5744
        %v5854 = vunpack.c.l.b16 %v5745
        %v5855 = vunpack.c.l.b16 %v5746
        %v5856 = vunpack.c.l.b16 %v5747
        %v5857 = vunpack.c.l.b16 %v5748
        %v5858 = vunpack.c.l.b16 %v5749
        %v5859 = vunpack.c.l.b16 %v5750
        %v5860 = vunpack.c.l.b16 %v5751
        %v5861 = vunpack.c.l.b16 %v5752
        %v5862 = vunpack.c.l.b16 %v5753
        %v5863 = vunpack.c.l.b16 %v5754
        %v5864 = vunpack.c.l.b16 %v5755
        %v5865 = vunpack.c.l.b16 %v5756
        %v5866 = vunpack.c.l.b16 %v5757
        %v5867 = vunpack.c.l.b16 %v5758
        %v5868 = vunpack.c.l.b16 %v5759
        %v5869 = vunpack.c.l.b16 %v5760
        %v5870 = vunpack.c.l.b16 %v5761
        %v5871 = vunpack.c.l.b16 %v5762
        %v5872 = vunpack.c.l.b16 %v5763
        %v5873 = vunpack.c.l.b16 %v5764
        %v5874 = vunpack.c.l.b16 %v5765
        %v5875 = vunpack.c.l.b16 %v5766
        %v5876 = vunpack.c.l.b16 %v5767
        %v5877 = vunpack.c.l.b16 %v5768
        %v5878 = vunpack.c.l.b16 %v5769
        %v5879 = vunpack.c.l.b16 %v5770
        %v5880 = vunpack.c.l.b16 %v5771
        %v5881 = vunpack.c.l.b16 %v5772
        %v5882 = vunpack.c.l.b16 %v5773
        %v5883 = vunpack.c.l.b16 %v5774
        %v5884 = vunpack.c.l.b16 %v5775
        %v5885 = vpack.c.b16 %v5838, %v5837
        %v5886 = vpack.c.b16 %v5840, %v5839
        %v5887 = vpack.c.b16 %v5842, %v5841
        %v5888 = vpack.c.b16 %v5844, %v5843
        %v5889 = vpack.c.b16 %v5846, %v5845
        %v5890 = vpack.c.b16 %v5848, %v5847
        %v5891 = vpack.c.b16 %v5850, %v5849
        %v5892 = vpack.c.b16 %v5852, %v5851
        %v5893 = vpack.c.b16 %v5854, %v5853
        %v5894 = vpack.c.b16 %v5856, %v5855
        %v5895 = vpack.c.b16 %v5858, %v5857
        %v5896 = vpack.c.b16 %v5860, %v5859
        %v5897 = vpack.c.b16 %v5862, %v5861
        %v5898 = vpack.c.b16 %v5864, %v5863
        %v5899 = vpack.c.b16 %v5866, %v5865
        %v5900 = vpack.c.b16 %v5868, %v5867
        %v5901 = vpack.c.b16 %v5870, %v5869
        %v5902 = vpack.c.b16 %v5872, %v5871
        %v5903 = vpack.c.b16 %v5874, %v5873
        %v5904 = vpack.c.b16 %v5876, %v5875
        %v5905 = vpack.c.b16 %v5878, %v5877
        %v5906 = vpack.c.b16 %v5880, %v5879
        %v5907 = vpack.c.b16 %v5882, %v5881
        %v5908 = vpack.c.b16 %v5884, %v5883
        %5933 = vmatpush.bf16.msra.mxu0 %v5892
        %5934 = vmatpush.bf16.msra.mxu0 %v5891
        %5935 = vmatpush.bf16.msra.mxu0 %v5890
        %5936 = vmatpush.bf16.msra.mxu0 %v5889
        %5937 = vmatpush.bf16.msra.mxu0 %v5888
        %5938 = vmatpush.bf16.msra.mxu0 %v5887
        %5939 = vmatpush.bf16.msra.mxu0 %v5886
        %5940 = vmatpush.bf16.msra.mxu0 %v5885
        %5941 = vmatmul.bf16.gmra.mxu0 %v5776
        %v5942 = vpop.f32.mrf.mxu0
        %v5943 = vadd.f32 %v5788, %v5942
        %v5944 = vpop.f32.mrf.mxu0
        %v5945 = vadd.f32 %v5788, %v5944
        %5946 = vmatmul.bf16.gmra.mxu0 %v5778
        %v5947 = vpop.f32.mrf.mxu0
        %v5948 = vadd.f32 %v5788, %v5947
        %v5949 = vpop.f32.mrf.mxu0
        %v5950 = vadd.f32 %v5788, %v5949
        %5951 = vmatmul.bf16.gmra.mxu0 %v5780
        %v5952 = vpop.f32.mrf.mxu0
        %v5953 = vadd.f32 %v5788, %v5952
        %v5954 = vpop.f32.mrf.mxu0
        %v5955 = vadd.f32 %v5788, %v5954
        %5956 = vmatmul.bf16.gmra.mxu0 %v5782
        %v5957 = vpop.f32.mrf.mxu0
        %v5958 = vadd.f32 %v5788, %v5957
        %v5959 = vpop.f32.mrf.mxu0
        %v5960 = vadd.f32 %v5788, %v5959
        %5961 = vmatmul.bf16.gmra.mxu0 %v5784
        %v5962 = vpop.f32.mrf.mxu0
        %v5963 = vadd.f32 %v5788, %v5962
        %v5964 = vpop.f32.mrf.mxu0
        %v5965 = vadd.f32 %v5788, %v5964
        %5966 = vdwg.mxu0
        %5967 = vmatpush.bf16.msra.mxu0 %v5900
        %5968 = vmatpush.bf16.msra.mxu0 %v5899
        %5969 = vmatpush.bf16.msra.mxu0 %v5898
        %5970 = vmatpush.bf16.msra.mxu0 %v5897
        %5971 = vmatpush.bf16.msra.mxu0 %v5896
        %5972 = vmatpush.bf16.msra.mxu0 %v5895
        %5973 = vmatpush.bf16.msra.mxu0 %v5894
        %5974 = vmatpush.bf16.msra.mxu0 %v5893
        %5975 = vmatmul.bf16.gmra.mxu0 %v5777
        %v5976 = vpop.f32.mrf.mxu0
        %v5977 = vadd.f32 %v5943, %v5976
        %v5978 = vpop.f32.mrf.mxu0
        %v5979 = vadd.f32 %v5945, %v5978
        %5980 = vmatmul.bf16.gmra.mxu0 %v5779
        %v5981 = vpop.f32.mrf.mxu0
        %v5982 = vadd.f32 %v5948, %v5981
        %v5983 = vpop.f32.mrf.mxu0
        %v5984 = vadd.f32 %v5950, %v5983
        %5985 = vmatmul.bf16.gmra.mxu0 %v5781
        %v5986 = vpop.f32.mrf.mxu0
        %v5987 = vadd.f32 %v5953, %v5986
        %v5988 = vpop.f32.mrf.mxu0
        %v5989 = vadd.f32 %v5955, %v5988
        %5990 = vmatmul.bf16.gmra.mxu0 %v5783
        %v5991 = vpop.f32.mrf.mxu0
        %v5992 = vadd.f32 %v5958, %v5991
        %v5993 = vpop.f32.mrf.mxu0
        %v5994 = vadd.f32 %v5960, %v5993
        %5995 = vmatmul.bf16.gmra.mxu0 %v5785
        %v5996 = vpop.f32.mrf.mxu0
        %v5997 = vadd.f32 %v5963, %v5996
        %v5998 = vpop.f32.mrf.mxu0
        %v5999 = vadd.f32 %v5965, %v5998
        %6000 = vdwg.mxu0
        %6001 = vmatpush.bf16.msra.mxu0 %v5908
        %6002 = vmatpush.bf16.msra.mxu0 %v5907
        %6003 = vmatpush.bf16.msra.mxu0 %v5906
        %6004 = vmatpush.bf16.msra.mxu0 %v5905
        %6005 = vmatpush.bf16.msra.mxu0 %v5904
        %6006 = vmatpush.bf16.msra.mxu0 %v5903
        %6007 = vmatpush.bf16.msra.mxu0 %v5902
        %6008 = vmatpush.bf16.msra.mxu0 %v5901
        %6009 = vmatmul.bf16.gmra.mxu0 %v5778
        %v6010 = vpop.f32.mrf.mxu0
        %v6011 = vadd.f32 %v5977, %v6010
        %v6012 = vpop.f32.mrf.mxu0
        %v6013 = vadd.f32 %v5979, %v6012
        %6014 = vmatmul.bf16.gmra.mxu0 %v5780
        %v6015 = vpop.f32.mrf.mxu0
        %v6016 = vadd.f32 %v5982, %v6015
        %v6017 = vpop.f32.mrf.mxu0
        %v6018 = vadd.f32 %v5984, %v6017
        %6019 = vmatmul.bf16.gmra.mxu0 %v5782
        %v6020 = vpop.f32.mrf.mxu0
        %v6021 = vadd.f32 %v5987, %v6020
        %v6022 = vpop.f32.mrf.mxu0
        %v6023 = vadd.f32 %v5989, %v6022
        %6024 = vmatmul.bf16.gmra.mxu0 %v5784
        %v6025 = vpop.f32.mrf.mxu0
        %v6026 = vadd.f32 %v5992, %v6025
        %v6027 = vpop.f32.mrf.mxu0
        %v6028 = vadd.f32 %v5994, %v6027
        %6029 = vmatmul.bf16.gmra.mxu0 %v5786
        %v6030 = vpop.f32.mrf.mxu0
        %v6031 = vadd.f32 %v5997, %v6030
        %v6032 = vpop.f32.mrf.mxu0
        %v6033 = vadd.f32 %v5999, %v6032
        %6034 = vdwg.mxu0
        %v6035 = vand.u32 %v4257, 4294901760
        %6036 = vmatpush.msra.mxu0 %v6035
        %v6037 = vand.u32 %v4256, 4294901760
        %6038 = vmatpush.msra.mxu0 %v6037
        %v6039 = vand.u32 %v4255, 4294901760
        %6040 = vmatpush.msra.mxu0 %v6039
        %v6041 = vand.u32 %v4254, 4294901760
        %6042 = vmatpush.msra.mxu0 %v6041
        %v6043 = vand.u32 %v4253, 4294901760
        %6044 = vmatpush.msra.mxu0 %v6043
        %v6045 = vand.u32 %v4252, 4294901760
        %6046 = vmatpush.msra.mxu0 %v6045
        %v6047 = vand.u32 %v4251, 4294901760
        %6048 = vmatpush.msra.mxu0 %v6047
        %v6049 = vand.u32 %v4250, 4294901760
        %6050 = vmatpush.msra.mxu0 %v6049
        %v6051 = vand.u32 %v4249, 4294901760
        %6052 = vmatpush.msra.mxu0 %v6051
        %v6053 = vand.u32 %v4248, 4294901760
        %6054 = vmatpush.msra.mxu0 %v6053
        %v6055 = vand.u32 %v4247, 4294901760
        %6056 = vmatpush.msra.mxu0 %v6055
        %v6057 = vand.u32 %v4246, 4294901760
        %6058 = vmatpush.msra.mxu0 %v6057
        %v6059 = vand.u32 %v4245, 4294901760
        %6060 = vmatpush.msra.mxu0 %v6059
        %v6061 = vand.u32 %v4244, 4294901760
        %6062 = vmatpush.msra.mxu0 %v6061
        %v6063 = vand.u32 %v4243, 4294901760
        %6064 = vmatpush.msra.mxu0 %v6063
        %v6065 = vand.u32 %v4242, 4294901760
        %6066 = vmatpush.msra.mxu0 %v6065
        %v6067 = vand.u32 %v389, 4294901760
        %v6068 = vsub.f32 %v389, %v6067
        %v6069 = vand.u32 %v6068, 4294901760
        %v6070 = vsub.f32 %v6068, %v6069
        %v6071 = vand.u32 %v6070, 4294901760
        %6072 = vmatmul.f32.gmra.mxu0 %v6071
        %v6073 = vpop.f32.mrf.mxu0
        %v6074 = vadd.f32 0.0, %v6073
        %v6075 = vand.u32 %v391, 4294901760
        %v6076 = vsub.f32 %v391, %v6075
        %v6077 = vand.u32 %v6076, 4294901760
        %v6078 = vsub.f32 %v6076, %v6077
        %v6079 = vand.u32 %v6078, 4294901760
        %6080 = vmatmul.f32.gmra.mxu0 %v6079
        %v6081 = vpop.f32.mrf.mxu0
        %v6082 = vadd.f32 0.0, %v6081
        %v6083 = vand.u32 %v393, 4294901760
        %v6084 = vsub.f32 %v393, %v6083
        %v6085 = vand.u32 %v6084, 4294901760
        %v6086 = vsub.f32 %v6084, %v6085
        %v6087 = vand.u32 %v6086, 4294901760
        %6088 = vmatmul.f32.gmra.mxu0 %v6087
        %v6089 = vpop.f32.mrf.mxu0
        %v6090 = vadd.f32 0.0, %v6089
        %v6091 = vand.u32 %v395, 4294901760
        %v6092 = vsub.f32 %v395, %v6091
        %v6093 = vand.u32 %v6092, 4294901760
        %v6094 = vsub.f32 %v6092, %v6093
        %v6095 = vand.u32 %v6094, 4294901760
        %6096 = vmatmul.f32.gmra.mxu0 %v6095
        %v6097 = vpop.f32.mrf.mxu0
        %v6098 = vadd.f32 0.0, %v6097
        %v6099 = vand.u32 %v397, 4294901760
        %v6100 = vsub.f32 %v397, %v6099
        %v6101 = vand.u32 %v6100, 4294901760
        %v6102 = vsub.f32 %v6100, %v6101
        %v6103 = vand.u32 %v6102, 4294901760
        %6104 = vmatmul.f32.gmra.mxu0 %v6103
        %v6105 = vpop.f32.mrf.mxu0
        %v6106 = vadd.f32 0.0, %v6105
        %v6107 = vand.u32 %v399, 4294901760
        %v6108 = vsub.f32 %v399, %v6107
        %v6109 = vand.u32 %v6108, 4294901760
        %v6110 = vsub.f32 %v6108, %v6109
        %v6111 = vand.u32 %v6110, 4294901760
        %6112 = vmatmul.f32.gmra.mxu0 %v6111
        %v6113 = vpop.f32.mrf.mxu0
        %v6114 = vadd.f32 0.0, %v6113
        %v6115 = vand.u32 %v401, 4294901760
        %v6116 = vsub.f32 %v401, %v6115
        %v6117 = vand.u32 %v6116, 4294901760
        %v6118 = vsub.f32 %v6116, %v6117
        %v6119 = vand.u32 %v6118, 4294901760
        %6120 = vmatmul.f32.gmra.mxu0 %v6119
        %v6121 = vpop.f32.mrf.mxu0
        %v6122 = vadd.f32 0.0, %v6121
        %v6123 = vand.u32 %v403, 4294901760
        %v6124 = vsub.f32 %v403, %v6123
        %v6125 = vand.u32 %v6124, 4294901760
        %v6126 = vsub.f32 %v6124, %v6125
        %v6127 = vand.u32 %v6126, 4294901760
        %6128 = vmatmul.f32.gmra.mxu0 %v6127
        %v6129 = vpop.f32.mrf.mxu0
        %v6130 = vadd.f32 0.0, %v6129
        %v6131 = vand.u32 %v405, 4294901760
        %v6132 = vsub.f32 %v405, %v6131
        %v6133 = vand.u32 %v6132, 4294901760
        %v6134 = vsub.f32 %v6132, %v6133
        %v6135 = vand.u32 %v6134, 4294901760
        %6136 = vmatmul.f32.gmra.mxu0 %v6135
        %v6137 = vpop.f32.mrf.mxu0
        %v6138 = vadd.f32 0.0, %v6137
        %v6139 = vand.u32 %v407, 4294901760
        %v6140 = vsub.f32 %v407, %v6139
        %v6141 = vand.u32 %v6140, 4294901760
        %v6142 = vsub.f32 %v6140, %v6141
        %v6143 = vand.u32 %v6142, 4294901760
        %6144 = vmatmul.f32.gmra.mxu0 %v6143
        %v6145 = vpop.f32.mrf.mxu0
        %v6146 = vadd.f32 0.0, %v6145
        %6147 = vdwg.mxu0
        %v6148 = vand.u32 %v4257, 4294901760
        %v6149 = vsub.f32 %v4257, %v6148
        %v6150 = vand.u32 %v6149, 4294901760
        %v6151 = vsub.f32 %v6149, %v6150
        %v6152 = vand.u32 %v6151, 4294901760
        %6153 = vmatpush.msra.mxu0 %v6152
        %v6154 = vand.u32 %v4256, 4294901760
        %v6155 = vsub.f32 %v4256, %v6154
        %v6156 = vand.u32 %v6155, 4294901760
        %v6157 = vsub.f32 %v6155, %v6156
        %v6158 = vand.u32 %v6157, 4294901760
        %6159 = vmatpush.msra.mxu0 %v6158
        %v6160 = vand.u32 %v4255, 4294901760
        %v6161 = vsub.f32 %v4255, %v6160
        %v6162 = vand.u32 %v6161, 4294901760
        %v6163 = vsub.f32 %v6161, %v6162
        %v6164 = vand.u32 %v6163, 4294901760
        %6165 = vmatpush.msra.mxu0 %v6164
        %v6166 = vand.u32 %v4254, 4294901760
        %v6167 = vsub.f32 %v4254, %v6166
        %v6168 = vand.u32 %v6167, 4294901760
        %v6169 = vsub.f32 %v6167, %v6168
        %v6170 = vand.u32 %v6169, 4294901760
        %6171 = vmatpush.msra.mxu0 %v6170
        %v6172 = vand.u32 %v4253, 4294901760
        %v6173 = vsub.f32 %v4253, %v6172
        %v6174 = vand.u32 %v6173, 4294901760
        %v6175 = vsub.f32 %v6173, %v6174
        %v6176 = vand.u32 %v6175, 4294901760
        %6177 = vmatpush.msra.mxu0 %v6176
        %v6178 = vand.u32 %v4252, 4294901760
        %v6179 = vsub.f32 %v4252, %v6178
        %v6180 = vand.u32 %v6179, 4294901760
        %v6181 = vsub.f32 %v6179, %v6180
        %v6182 = vand.u32 %v6181, 4294901760
        %6183 = vmatpush.msra.mxu0 %v6182
        %v6184 = vand.u32 %v4251, 4294901760
        %v6185 = vsub.f32 %v4251, %v6184
        %v6186 = vand.u32 %v6185, 4294901760
        %v6187 = vsub.f32 %v6185, %v6186
        %v6188 = vand.u32 %v6187, 4294901760
        %6189 = vmatpush.msra.mxu0 %v6188
        %v6190 = vand.u32 %v4250, 4294901760
        %v6191 = vsub.f32 %v4250, %v6190
        %v6192 = vand.u32 %v6191, 4294901760
        %v6193 = vsub.f32 %v6191, %v6192
        %v6194 = vand.u32 %v6193, 4294901760
        %6195 = vmatpush.msra.mxu0 %v6194
        %v6196 = vand.u32 %v4249, 4294901760
        %v6197 = vsub.f32 %v4249, %v6196
        %v6198 = vand.u32 %v6197, 4294901760
        %v6199 = vsub.f32 %v6197, %v6198
        %v6200 = vand.u32 %v6199, 4294901760
        %6201 = vmatpush.msra.mxu0 %v6200
        %v6202 = vand.u32 %v4248, 4294901760
        %v6203 = vsub.f32 %v4248, %v6202
        %v6204 = vand.u32 %v6203, 4294901760
        %v6205 = vsub.f32 %v6203, %v6204
        %v6206 = vand.u32 %v6205, 4294901760
        %6207 = vmatpush.msra.mxu0 %v6206
        %v6208 = vand.u32 %v4247, 4294901760
        %v6209 = vsub.f32 %v4247, %v6208
        %v6210 = vand.u32 %v6209, 4294901760
        %v6211 = vsub.f32 %v6209, %v6210
        %v6212 = vand.u32 %v6211, 4294901760
        %6213 = vmatpush.msra.mxu0 %v6212
        %v6214 = vand.u32 %v4246, 4294901760
        %v6215 = vsub.f32 %v4246, %v6214
        %v6216 = vand.u32 %v6215, 4294901760
        %v6217 = vsub.f32 %v6215, %v6216
        %v6218 = vand.u32 %v6217, 4294901760
        %6219 = vmatpush.msra.mxu0 %v6218
        %v6220 = vand.u32 %v4245, 4294901760
        %v6221 = vsub.f32 %v4245, %v6220
        %v6222 = vand.u32 %v6221, 4294901760
        %v6223 = vsub.f32 %v6221, %v6222
        %v6224 = vand.u32 %v6223, 4294901760
        %6225 = vmatpush.msra.mxu0 %v6224
        %v6226 = vand.u32 %v4244, 4294901760
        %v6227 = vsub.f32 %v4244, %v6226
        %v6228 = vand.u32 %v6227, 4294901760
        %v6229 = vsub.f32 %v6227, %v6228
        %v6230 = vand.u32 %v6229, 4294901760
        %6231 = vmatpush.msra.mxu0 %v6230
        %v6232 = vand.u32 %v4243, 4294901760
        %v6233 = vsub.f32 %v4243, %v6232
        %v6234 = vand.u32 %v6233, 4294901760
        %v6235 = vsub.f32 %v6233, %v6234
        %v6236 = vand.u32 %v6235, 4294901760
        %6237 = vmatpush.msra.mxu0 %v6236
        %v6238 = vand.u32 %v4242, 4294901760
        %v6239 = vsub.f32 %v4242, %v6238
        %v6240 = vand.u32 %v6239, 4294901760
        %v6241 = vsub.f32 %v6239, %v6240
        %v6242 = vand.u32 %v6241, 4294901760
        %6243 = vmatpush.msra.mxu0 %v6242
        %v6244 = vand.u32 %v389, 4294901760
        %6245 = vmatmul.f32.gmra.mxu0 %v6244
        %v6246 = vpop.f32.mrf.mxu0
        %v6247 = vadd.f32 %v6074, %v6246
        %v6248 = vand.u32 %v391, 4294901760
        %6249 = vmatmul.f32.gmra.mxu0 %v6248
        %v6250 = vpop.f32.mrf.mxu0
        %v6251 = vadd.f32 %v6082, %v6250
        %v6252 = vand.u32 %v393, 4294901760
        %6253 = vmatmul.f32.gmra.mxu0 %v6252
        %v6254 = vpop.f32.mrf.mxu0
        %v6255 = vadd.f32 %v6090, %v6254
        %v6256 = vand.u32 %v395, 4294901760
        %6257 = vmatmul.f32.gmra.mxu0 %v6256
        %v6258 = vpop.f32.mrf.mxu0
        %v6259 = vadd.f32 %v6098, %v6258
        %v6260 = vand.u32 %v397, 4294901760
        %6261 = vmatmul.f32.gmra.mxu0 %v6260
        %v6262 = vpop.f32.mrf.mxu0
        %v6263 = vadd.f32 %v6106, %v6262
        %v6264 = vand.u32 %v399, 4294901760
        %6265 = vmatmul.f32.gmra.mxu0 %v6264
        %v6266 = vpop.f32.mrf.mxu0
        %v6267 = vadd.f32 %v6114, %v6266
        %v6268 = vand.u32 %v401, 4294901760
        %6269 = vmatmul.f32.gmra.mxu0 %v6268
        %v6270 = vpop.f32.mrf.mxu0
        %v6271 = vadd.f32 %v6122, %v6270
        %v6272 = vand.u32 %v403, 4294901760
        %6273 = vmatmul.f32.gmra.mxu0 %v6272
        %v6274 = vpop.f32.mrf.mxu0
        %v6275 = vadd.f32 %v6130, %v6274
        %v6276 = vand.u32 %v405, 4294901760
        %6277 = vmatmul.f32.gmra.mxu0 %v6276
        %v6278 = vpop.f32.mrf.mxu0
        %v6279 = vadd.f32 %v6138, %v6278
        %v6280 = vand.u32 %v407, 4294901760
        %6281 = vmatmul.f32.gmra.mxu0 %v6280
        %v6282 = vpop.f32.mrf.mxu0
        %v6283 = vadd.f32 %v6146, %v6282
        %6284 = vdwg.mxu0
        %v6285 = vand.u32 %v4257, 4294901760
        %v6286 = vsub.f32 %v4257, %v6285
        %6287 = vmatpush.msra.mxu0 %v6286
        %v6288 = vand.u32 %v4256, 4294901760
        %v6289 = vsub.f32 %v4256, %v6288
        %6290 = vmatpush.msra.mxu0 %v6289
        %v6291 = vand.u32 %v4255, 4294901760
        %v6292 = vsub.f32 %v4255, %v6291
        %6293 = vmatpush.msra.mxu0 %v6292
        %v6294 = vand.u32 %v4254, 4294901760
        %v6295 = vsub.f32 %v4254, %v6294
        %6296 = vmatpush.msra.mxu0 %v6295
        %v6297 = vand.u32 %v4253, 4294901760
        %v6298 = vsub.f32 %v4253, %v6297
        %6299 = vmatpush.msra.mxu0 %v6298
        %v6300 = vand.u32 %v4252, 4294901760
        %v6301 = vsub.f32 %v4252, %v6300
        %6302 = vmatpush.msra.mxu0 %v6301
        %v6303 = vand.u32 %v4251, 4294901760
        %v6304 = vsub.f32 %v4251, %v6303
        %6305 = vmatpush.msra.mxu0 %v6304
        %v6306 = vand.u32 %v4250, 4294901760
        %v6307 = vsub.f32 %v4250, %v6306
        %6308 = vmatpush.msra.mxu0 %v6307
        %v6309 = vand.u32 %v4249, 4294901760
        %v6310 = vsub.f32 %v4249, %v6309
        %6311 = vmatpush.msra.mxu0 %v6310
        %v6312 = vand.u32 %v4248, 4294901760
        %v6313 = vsub.f32 %v4248, %v6312
        %6314 = vmatpush.msra.mxu0 %v6313
        %v6315 = vand.u32 %v4247, 4294901760
        %v6316 = vsub.f32 %v4247, %v6315
        %6317 = vmatpush.msra.mxu0 %v6316
        %v6318 = vand.u32 %v4246, 4294901760
        %v6319 = vsub.f32 %v4246, %v6318
        %6320 = vmatpush.msra.mxu0 %v6319
        %v6321 = vand.u32 %v4245, 4294901760
        %v6322 = vsub.f32 %v4245, %v6321
        %6323 = vmatpush.msra.mxu0 %v6322
        %v6324 = vand.u32 %v4244, 4294901760
        %v6325 = vsub.f32 %v4244, %v6324
        %6326 = vmatpush.msra.mxu0 %v6325
        %v6327 = vand.u32 %v4243, 4294901760
        %v6328 = vsub.f32 %v4243, %v6327
        %6329 = vmatpush.msra.mxu0 %v6328
        %v6330 = vand.u32 %v4242, 4294901760
        %v6331 = vsub.f32 %v4242, %v6330
        %6332 = vmatpush.msra.mxu0 %v6331
        %v6333 = vand.u32 %v389, 4294901760
        %v6334 = vsub.f32 %v389, %v6333
        %6335 = vmatmul.f32.gmra.mxu0 %v6334
        %v6336 = vpop.f32.mrf.mxu0
        %v6337 = vadd.f32 %v6247, %v6336
        %v6338 = vand.u32 %v391, 4294901760
        %v6339 = vsub.f32 %v391, %v6338
        %6340 = vmatmul.f32.gmra.mxu0 %v6339
        %v6341 = vpop.f32.mrf.mxu0
        %v6342 = vadd.f32 %v6251, %v6341
        %v6343 = vand.u32 %v393, 4294901760
        %v6344 = vsub.f32 %v393, %v6343
        %6345 = vmatmul.f32.gmra.mxu0 %v6344
        %v6346 = vpop.f32.mrf.mxu0
        %v6347 = vadd.f32 %v6255, %v6346
        %v6348 = vand.u32 %v395, 4294901760
        %v6349 = vsub.f32 %v395, %v6348
        %6350 = vmatmul.f32.gmra.mxu0 %v6349
        %v6351 = vpop.f32.mrf.mxu0
        %v6352 = vadd.f32 %v6259, %v6351
        %v6353 = vand.u32 %v397, 4294901760
        %v6354 = vsub.f32 %v397, %v6353
        %6355 = vmatmul.f32.gmra.mxu0 %v6354
        %v6356 = vpop.f32.mrf.mxu0
        %v6357 = vadd.f32 %v6263, %v6356
        %v6358 = vand.u32 %v399, 4294901760
        %v6359 = vsub.f32 %v399, %v6358
        %6360 = vmatmul.f32.gmra.mxu0 %v6359
        %v6361 = vpop.f32.mrf.mxu0
        %v6362 = vadd.f32 %v6267, %v6361
        %v6363 = vand.u32 %v401, 4294901760
        %v6364 = vsub.f32 %v401, %v6363
        %6365 = vmatmul.f32.gmra.mxu0 %v6364
        %v6366 = vpop.f32.mrf.mxu0
        %v6367 = vadd.f32 %v6271, %v6366
        %v6368 = vand.u32 %v403, 4294901760
        %v6369 = vsub.f32 %v403, %v6368
        %6370 = vmatmul.f32.gmra.mxu0 %v6369
        %v6371 = vpop.f32.mrf.mxu0
        %v6372 = vadd.f32 %v6275, %v6371
        %v6373 = vand.u32 %v405, 4294901760
        %v6374 = vsub.f32 %v405, %v6373
        %6375 = vmatmul.f32.gmra.mxu0 %v6374
        %v6376 = vpop.f32.mrf.mxu0
        %v6377 = vadd.f32 %v6279, %v6376
        %v6378 = vand.u32 %v407, 4294901760
        %v6379 = vsub.f32 %v407, %v6378
        %6380 = vmatmul.f32.gmra.mxu0 %v6379
        %v6381 = vpop.f32.mrf.mxu0
        %v6382 = vadd.f32 %v6283, %v6381
        %6383 = vdwg.mxu0
        %v6384 = vand.u32 %v4257, 4294901760
        %6385 = vmatpush.msra.mxu0 %v6384
        %v6386 = vand.u32 %v4256, 4294901760
        %6387 = vmatpush.msra.mxu0 %v6386
        %v6388 = vand.u32 %v4255, 4294901760
        %6389 = vmatpush.msra.mxu0 %v6388
        %v6390 = vand.u32 %v4254, 4294901760
        %6391 = vmatpush.msra.mxu0 %v6390
        %v6392 = vand.u32 %v4253, 4294901760
        %6393 = vmatpush.msra.mxu0 %v6392
        %v6394 = vand.u32 %v4252, 4294901760
        %6395 = vmatpush.msra.mxu0 %v6394
        %v6396 = vand.u32 %v4251, 4294901760
        %6397 = vmatpush.msra.mxu0 %v6396
        %v6398 = vand.u32 %v4250, 4294901760
        %6399 = vmatpush.msra.mxu0 %v6398
        %v6400 = vand.u32 %v4249, 4294901760
        %6401 = vmatpush.msra.mxu0 %v6400
        %v6402 = vand.u32 %v4248, 4294901760
        %6403 = vmatpush.msra.mxu0 %v6402
        %v6404 = vand.u32 %v4247, 4294901760
        %6405 = vmatpush.msra.mxu0 %v6404
        %v6406 = vand.u32 %v4246, 4294901760
        %6407 = vmatpush.msra.mxu0 %v6406
        %v6408 = vand.u32 %v4245, 4294901760
        %6409 = vmatpush.msra.mxu0 %v6408
        %v6410 = vand.u32 %v4244, 4294901760
        %6411 = vmatpush.msra.mxu0 %v6410
        %v6412 = vand.u32 %v4243, 4294901760
        %6413 = vmatpush.msra.mxu0 %v6412
        %v6414 = vand.u32 %v4242, 4294901760
        %6415 = vmatpush.msra.mxu0 %v6414
        %v6416 = vand.u32 %v389, 4294901760
        %v6417 = vsub.f32 %v389, %v6416
        %v6418 = vand.u32 %v6417, 4294901760
        %6419 = vmatmul.f32.gmra.mxu0 %v6418
        %v6420 = vpop.f32.mrf.mxu0
        %v6421 = vadd.f32 %v6337, %v6420
        %v6422 = vand.u32 %v391, 4294901760
        %v6423 = vsub.f32 %v391, %v6422
        %v6424 = vand.u32 %v6423, 4294901760
        %6425 = vmatmul.f32.gmra.mxu0 %v6424
        %v6426 = vpop.f32.mrf.mxu0
        %v6427 = vadd.f32 %v6342, %v6426
        %v6428 = vand.u32 %v393, 4294901760
        %v6429 = vsub.f32 %v393, %v6428
        %v6430 = vand.u32 %v6429, 4294901760
        %6431 = vmatmul.f32.gmra.mxu0 %v6430
        %v6432 = vpop.f32.mrf.mxu0
        %v6433 = vadd.f32 %v6347, %v6432
        %v6434 = vand.u32 %v395, 4294901760
        %v6435 = vsub.f32 %v395, %v6434
        %v6436 = vand.u32 %v6435, 4294901760
        %6437 = vmatmul.f32.gmra.mxu0 %v6436
        %v6438 = vpop.f32.mrf.mxu0
        %v6439 = vadd.f32 %v6352, %v6438
        %v6440 = vand.u32 %v397, 4294901760
        %v6441 = vsub.f32 %v397, %v6440
        %v6442 = vand.u32 %v6441, 4294901760
        %6443 = vmatmul.f32.gmra.mxu0 %v6442
        %v6444 = vpop.f32.mrf.mxu0
        %v6445 = vadd.f32 %v6357, %v6444
        %v6446 = vand.u32 %v399, 4294901760
        %v6447 = vsub.f32 %v399, %v6446
        %v6448 = vand.u32 %v6447, 4294901760
        %6449 = vmatmul.f32.gmra.mxu0 %v6448
        %v6450 = vpop.f32.mrf.mxu0
        %v6451 = vadd.f32 %v6362, %v6450
        %v6452 = vand.u32 %v401, 4294901760
        %v6453 = vsub.f32 %v401, %v6452
        %v6454 = vand.u32 %v6453, 4294901760
        %6455 = vmatmul.f32.gmra.mxu0 %v6454
        %v6456 = vpop.f32.mrf.mxu0
        %v6457 = vadd.f32 %v6367, %v6456
        %v6458 = vand.u32 %v403, 4294901760
        %v6459 = vsub.f32 %v403, %v6458
        %v6460 = vand.u32 %v6459, 4294901760
        %6461 = vmatmul.f32.gmra.mxu0 %v6460
        %v6462 = vpop.f32.mrf.mxu0
        %v6463 = vadd.f32 %v6372, %v6462
        %v6464 = vand.u32 %v405, 4294901760
        %v6465 = vsub.f32 %v405, %v6464
        %v6466 = vand.u32 %v6465, 4294901760
        %6467 = vmatmul.f32.gmra.mxu0 %v6466
        %v6468 = vpop.f32.mrf.mxu0
        %v6469 = vadd.f32 %v6377, %v6468
        %v6470 = vand.u32 %v407, 4294901760
        %v6471 = vsub.f32 %v407, %v6470
        %v6472 = vand.u32 %v6471, 4294901760
        %6473 = vmatmul.f32.gmra.mxu0 %v6472
        %v6474 = vpop.f32.mrf.mxu0
        %v6475 = vadd.f32 %v6382, %v6474
        %6476 = vdwg.mxu0
        %v6477 = vand.u32 %v4257, 4294901760
        %v6478 = vsub.f32 %v4257, %v6477
        %v6479 = vand.u32 %v6478, 4294901760
        %6480 = vmatpush.msra.mxu0 %v6479
        %v6481 = vand.u32 %v4256, 4294901760
        %v6482 = vsub.f32 %v4256, %v6481
        %v6483 = vand.u32 %v6482, 4294901760
        %6484 = vmatpush.msra.mxu0 %v6483
        %v6485 = vand.u32 %v4255, 4294901760
        %v6486 = vsub.f32 %v4255, %v6485
        %v6487 = vand.u32 %v6486, 4294901760
        %6488 = vmatpush.msra.mxu0 %v6487
        %v6489 = vand.u32 %v4254, 4294901760
        %v6490 = vsub.f32 %v4254, %v6489
        %v6491 = vand.u32 %v6490, 4294901760
        %6492 = vmatpush.msra.mxu0 %v6491
        %v6493 = vand.u32 %v4253, 4294901760
        %v6494 = vsub.f32 %v4253, %v6493
        %v6495 = vand.u32 %v6494, 4294901760
        %6496 = vmatpush.msra.mxu0 %v6495
        %v6497 = vand.u32 %v4252, 4294901760
        %v6498 = vsub.f32 %v4252, %v6497
        %v6499 = vand.u32 %v6498, 4294901760
        %6500 = vmatpush.msra.mxu0 %v6499
        %v6501 = vand.u32 %v4251, 4294901760
        %v6502 = vsub.f32 %v4251, %v6501
        %v6503 = vand.u32 %v6502, 4294901760
        %6504 = vmatpush.msra.mxu0 %v6503
        %v6505 = vand.u32 %v4250, 4294901760
        %v6506 = vsub.f32 %v4250, %v6505
        %v6507 = vand.u32 %v6506, 4294901760
        %6508 = vmatpush.msra.mxu0 %v6507
        %v6509 = vand.u32 %v4249, 4294901760
        %v6510 = vsub.f32 %v4249, %v6509
        %v6511 = vand.u32 %v6510, 4294901760
        %6512 = vmatpush.msra.mxu0 %v6511
        %v6513 = vand.u32 %v4248, 4294901760
        %v6514 = vsub.f32 %v4248, %v6513
        %v6515 = vand.u32 %v6514, 4294901760
        %6516 = vmatpush.msra.mxu0 %v6515
        %v6517 = vand.u32 %v4247, 4294901760
        %v6518 = vsub.f32 %v4247, %v6517
        %v6519 = vand.u32 %v6518, 4294901760
        %6520 = vmatpush.msra.mxu0 %v6519
        %v6521 = vand.u32 %v4246, 4294901760
        %v6522 = vsub.f32 %v4246, %v6521
        %v6523 = vand.u32 %v6522, 4294901760
        %6524 = vmatpush.msra.mxu0 %v6523
        %v6525 = vand.u32 %v4245, 4294901760
        %v6526 = vsub.f32 %v4245, %v6525
        %v6527 = vand.u32 %v6526, 4294901760
        %6528 = vmatpush.msra.mxu0 %v6527
        %v6529 = vand.u32 %v4244, 4294901760
        %v6530 = vsub.f32 %v4244, %v6529
        %v6531 = vand.u32 %v6530, 4294901760
        %6532 = vmatpush.msra.mxu0 %v6531
        %v6533 = vand.u32 %v4243, 4294901760
        %v6534 = vsub.f32 %v4243, %v6533
        %v6535 = vand.u32 %v6534, 4294901760
        %6536 = vmatpush.msra.mxu0 %v6535
        %v6537 = vand.u32 %v4242, 4294901760
        %v6538 = vsub.f32 %v4242, %v6537
        %v6539 = vand.u32 %v6538, 4294901760
        %6540 = vmatpush.msra.mxu0 %v6539
        %v6541 = vand.u32 %v389, 4294901760
        %6542 = vmatmul.f32.gmra.mxu0 %v6541
        %v6543 = vpop.f32.mrf.mxu0
        %v6544 = vadd.f32 %v6421, %v6543
        %v6545 = vand.u32 %v391, 4294901760
        %6546 = vmatmul.f32.gmra.mxu0 %v6545
        %v6547 = vpop.f32.mrf.mxu0
        %v6548 = vadd.f32 %v6427, %v6547
        %v6549 = vand.u32 %v393, 4294901760
        %6550 = vmatmul.f32.gmra.mxu0 %v6549
        %v6551 = vpop.f32.mrf.mxu0
        %v6552 = vadd.f32 %v6433, %v6551
        %v6553 = vand.u32 %v395, 4294901760
        %6554 = vmatmul.f32.gmra.mxu0 %v6553
        %v6555 = vpop.f32.mrf.mxu0
        %v6556 = vadd.f32 %v6439, %v6555
        %v6557 = vand.u32 %v397, 4294901760
        %6558 = vmatmul.f32.gmra.mxu0 %v6557
        %v6559 = vpop.f32.mrf.mxu0
        %v6560 = vadd.f32 %v6445, %v6559
        %v6561 = vand.u32 %v399, 4294901760
        %6562 = vmatmul.f32.gmra.mxu0 %v6561
        %v6563 = vpop.f32.mrf.mxu0
        %v6564 = vadd.f32 %v6451, %v6563
        %v6565 = vand.u32 %v401, 4294901760
        %6566 = vmatmul.f32.gmra.mxu0 %v6565
        %v6567 = vpop.f32.mrf.mxu0
        %v6568 = vadd.f32 %v6457, %v6567
        %v6569 = vand.u32 %v403, 4294901760
        %6570 = vmatmul.f32.gmra.mxu0 %v6569
        %v6571 = vpop.f32.mrf.mxu0
        %v6572 = vadd.f32 %v6463, %v6571
        %v6573 = vand.u32 %v405, 4294901760
        %6574 = vmatmul.f32.gmra.mxu0 %v6573
        %v6575 = vpop.f32.mrf.mxu0
        %v6576 = vadd.f32 %v6469, %v6575
        %v6577 = vand.u32 %v407, 4294901760
        %6578 = vmatmul.f32.gmra.mxu0 %v6577
        %v6579 = vpop.f32.mrf.mxu0
        %v6580 = vadd.f32 %v6475, %v6579
        %6581 = vdwg.mxu0
        %v6582 = vand.u32 %v4257, 4294901760
        %6583 = vmatpush.msra.mxu0 %v6582
        %v6584 = vand.u32 %v4256, 4294901760
        %6585 = vmatpush.msra.mxu0 %v6584
        %v6586 = vand.u32 %v4255, 4294901760
        %6587 = vmatpush.msra.mxu0 %v6586
        %v6588 = vand.u32 %v4254, 4294901760
        %6589 = vmatpush.msra.mxu0 %v6588
        %v6590 = vand.u32 %v4253, 4294901760
        %6591 = vmatpush.msra.mxu0 %v6590
        %v6592 = vand.u32 %v4252, 4294901760
        %6593 = vmatpush.msra.mxu0 %v6592
        %v6594 = vand.u32 %v4251, 4294901760
        %6595 = vmatpush.msra.mxu0 %v6594
        %v6596 = vand.u32 %v4250, 4294901760
        %6597 = vmatpush.msra.mxu0 %v6596
        %v6598 = vand.u32 %v4249, 4294901760
        %6599 = vmatpush.msra.mxu0 %v6598
        %v6600 = vand.u32 %v4248, 4294901760
        %6601 = vmatpush.msra.mxu0 %v6600
        %v6602 = vand.u32 %v4247, 4294901760
        %6603 = vmatpush.msra.mxu0 %v6602
        %v6604 = vand.u32 %v4246, 4294901760
        %6605 = vmatpush.msra.mxu0 %v6604
        %v6606 = vand.u32 %v4245, 4294901760
        %6607 = vmatpush.msra.mxu0 %v6606
        %v6608 = vand.u32 %v4244, 4294901760
        %6609 = vmatpush.msra.mxu0 %v6608
        %v6610 = vand.u32 %v4243, 4294901760
        %6611 = vmatpush.msra.mxu0 %v6610
        %v6612 = vand.u32 %v4242, 4294901760
        %6613 = vmatpush.msra.mxu0 %v6612
        %v6614 = vand.u32 %v389, 4294901760
        %6615 = vmatmul.f32.gmra.mxu0 %v6614
        %v6616 = vpop.f32.mrf.mxu0
        %v6617 = vadd.f32 %v6544, %v6616
        %v6618 = vand.u32 %v391, 4294901760
        %6619 = vmatmul.f32.gmra.mxu0 %v6618
        %v6620 = vpop.f32.mrf.mxu0
        %v6621 = vadd.f32 %v6548, %v6620
        %v6622 = vand.u32 %v393, 4294901760
        %6623 = vmatmul.f32.gmra.mxu0 %v6622
        %v6624 = vpop.f32.mrf.mxu0
        %v6625 = vadd.f32 %v6552, %v6624
        %v6626 = vand.u32 %v395, 4294901760
        %6627 = vmatmul.f32.gmra.mxu0 %v6626
        %v6628 = vpop.f32.mrf.mxu0
        %v6629 = vadd.f32 %v6556, %v6628
        %v6630 = vand.u32 %v397, 4294901760
        %6631 = vmatmul.f32.gmra.mxu0 %v6630
        %v6632 = vpop.f32.mrf.mxu0
        %v6633 = vadd.f32 %v6560, %v6632
        %v6634 = vand.u32 %v399, 4294901760
        %6635 = vmatmul.f32.gmra.mxu0 %v6634
        %v6636 = vpop.f32.mrf.mxu0
        %v6637 = vadd.f32 %v6564, %v6636
        %v6638 = vand.u32 %v401, 4294901760
        %6639 = vmatmul.f32.gmra.mxu0 %v6638
        %v6640 = vpop.f32.mrf.mxu0
        %v6641 = vadd.f32 %v6568, %v6640
        %v6642 = vand.u32 %v403, 4294901760
        %6643 = vmatmul.f32.gmra.mxu0 %v6642
        %v6644 = vpop.f32.mrf.mxu0
        %v6645 = vadd.f32 %v6572, %v6644
        %v6646 = vand.u32 %v405, 4294901760
        %6647 = vmatmul.f32.gmra.mxu0 %v6646
        %v6648 = vpop.f32.mrf.mxu0
        %v6649 = vadd.f32 %v6576, %v6648
        %v6650 = vand.u32 %v407, 4294901760
        %6651 = vmatmul.f32.gmra.mxu0 %v6650
        %v6652 = vpop.f32.mrf.mxu0
        %v6653 = vadd.f32 %v6580, %v6652
        %6654 = vdwg.mxu0
        %6655 = vmatpush.msra.mxu0 0.0
        %6656 = vmatpush.msra.mxu0 0.0
        %6657 = vmatpush.msra.mxu0 0.0
        %6658 = vmatpush.msra.mxu0 0.0
        %6659 = vmatpush.msra.mxu0 0.0
        %6660 = vmatpush.msra.mxu0 0.0
        %6661 = vmatpush.msra.mxu0 0.0
        %6662 = vmatpush.msra.mxu0 0.0
        %6663 = vmatpush.msra.mxu0 0.0
        %6664 = vmatpush.msra.mxu0 0.0
        %6665 = vmatpush.msra.mxu0 0.0
        %6666 = vmatpush.msra.mxu0 0.0
        %6667 = vmatpush.msra.mxu0 0.0
        %v6668 = vand.u32 %v4260, 4294901760
        %6669 = vmatpush.msra.mxu0 %v6668
        %v6670 = vand.u32 %v4259, 4294901760
        %6671 = vmatpush.msra.mxu0 %v6670
        %v6672 = vand.u32 %v4258, 4294901760
        %6673 = vmatpush.msra.mxu0 %v6672
        %v6674 = vand.u32 %v4618, 4294901760
        %v6675 = vsub.f32 %v4618, %v6674
        %v6676 = vand.u32 %v6675, 4294901760
        %v6677 = vsub.f32 %v6675, %v6676
        %v6678 = vand.u32 %v6677, 4294901760
        %6679 = vmatmul.f32.gmra.mxu0 %v6678
        %v6680 = vpop.f32.mrf.mxu0
        %v6681 = vadd.f32 %v6617, %v6680
        %v6682 = vand.u32 %v4621, 4294901760
        %v6683 = vsub.f32 %v4621, %v6682
        %v6684 = vand.u32 %v6683, 4294901760
        %v6685 = vsub.f32 %v6683, %v6684
        %v6686 = vand.u32 %v6685, 4294901760
        %6687 = vmatmul.f32.gmra.mxu0 %v6686
        %v6688 = vpop.f32.mrf.mxu0
        %v6689 = vadd.f32 %v6621, %v6688
        %v6690 = vand.u32 %v4624, 4294901760
        %v6691 = vsub.f32 %v4624, %v6690
        %v6692 = vand.u32 %v6691, 4294901760
        %v6693 = vsub.f32 %v6691, %v6692
        %v6694 = vand.u32 %v6693, 4294901760
        %6695 = vmatmul.f32.gmra.mxu0 %v6694
        %v6696 = vpop.f32.mrf.mxu0
        %v6697 = vadd.f32 %v6625, %v6696
        %v6698 = vand.u32 %v4627, 4294901760
        %v6699 = vsub.f32 %v4627, %v6698
        %v6700 = vand.u32 %v6699, 4294901760
        %v6701 = vsub.f32 %v6699, %v6700
        %v6702 = vand.u32 %v6701, 4294901760
        %6703 = vmatmul.f32.gmra.mxu0 %v6702
        %v6704 = vpop.f32.mrf.mxu0
        %v6705 = vadd.f32 %v6629, %v6704
        %v6706 = vand.u32 %v4630, 4294901760
        %v6707 = vsub.f32 %v4630, %v6706
        %v6708 = vand.u32 %v6707, 4294901760
        %v6709 = vsub.f32 %v6707, %v6708
        %v6710 = vand.u32 %v6709, 4294901760
        %6711 = vmatmul.f32.gmra.mxu0 %v6710
        %v6712 = vpop.f32.mrf.mxu0
        %v6713 = vadd.f32 %v6633, %v6712
        %v6714 = vand.u32 %v4633, 4294901760
        %v6715 = vsub.f32 %v4633, %v6714
        %v6716 = vand.u32 %v6715, 4294901760
        %v6717 = vsub.f32 %v6715, %v6716
        %v6718 = vand.u32 %v6717, 4294901760
        %6719 = vmatmul.f32.gmra.mxu0 %v6718
        %v6720 = vpop.f32.mrf.mxu0
        %v6721 = vadd.f32 %v6637, %v6720
        %v6722 = vand.u32 %v4636, 4294901760
        %v6723 = vsub.f32 %v4636, %v6722
        %v6724 = vand.u32 %v6723, 4294901760
        %v6725 = vsub.f32 %v6723, %v6724
        %v6726 = vand.u32 %v6725, 4294901760
        %6727 = vmatmul.f32.gmra.mxu0 %v6726
        %v6728 = vpop.f32.mrf.mxu0
        %v6729 = vadd.f32 %v6641, %v6728
        %v6730 = vand.u32 %v4639, 4294901760
        %v6731 = vsub.f32 %v4639, %v6730
        %v6732 = vand.u32 %v6731, 4294901760
        %v6733 = vsub.f32 %v6731, %v6732
        %v6734 = vand.u32 %v6733, 4294901760
        %6735 = vmatmul.f32.gmra.mxu0 %v6734
        %v6736 = vpop.f32.mrf.mxu0
        %v6737 = vadd.f32 %v6645, %v6736
        %v6738 = vand.u32 %v4642, 4294901760
        %v6739 = vsub.f32 %v4642, %v6738
        %v6740 = vand.u32 %v6739, 4294901760
        %v6741 = vsub.f32 %v6739, %v6740
        %v6742 = vand.u32 %v6741, 4294901760
        %6743 = vmatmul.f32.gmra.mxu0 %v6742
        %v6744 = vpop.f32.mrf.mxu0
        %v6745 = vadd.f32 %v6649, %v6744
        %v6746 = vand.u32 %v4645, 4294901760
        %v6747 = vsub.f32 %v4645, %v6746
        %v6748 = vand.u32 %v6747, 4294901760
        %v6749 = vsub.f32 %v6747, %v6748
        %v6750 = vand.u32 %v6749, 4294901760
        %6751 = vmatmul.f32.gmra.mxu0 %v6750
        %v6752 = vpop.f32.mrf.mxu0
        %v6753 = vadd.f32 %v6653, %v6752
        %6754 = vdwg.mxu0
        %6755 = vmatpush.msra.mxu0 0.0
        %6756 = vmatpush.msra.mxu0 0.0
        %6757 = vmatpush.msra.mxu0 0.0
        %6758 = vmatpush.msra.mxu0 0.0
        %6759 = vmatpush.msra.mxu0 0.0
        %6760 = vmatpush.msra.mxu0 0.0
        %6761 = vmatpush.msra.mxu0 0.0
        %6762 = vmatpush.msra.mxu0 0.0
        %6763 = vmatpush.msra.mxu0 0.0
        %6764 = vmatpush.msra.mxu0 0.0
        %6765 = vmatpush.msra.mxu0 0.0
        %6766 = vmatpush.msra.mxu0 0.0
        %6767 = vmatpush.msra.mxu0 0.0
        %v6768 = vand.u32 %v4260, 4294901760
        %v6769 = vsub.f32 %v4260, %v6768
        %v6770 = vand.u32 %v6769, 4294901760
        %v6771 = vsub.f32 %v6769, %v6770
        %v6772 = vand.u32 %v6771, 4294901760
        %6773 = vmatpush.msra.mxu0 %v6772
        %v6774 = vand.u32 %v4259, 4294901760
        %v6775 = vsub.f32 %v4259, %v6774
        %v6776 = vand.u32 %v6775, 4294901760
        %v6777 = vsub.f32 %v6775, %v6776
        %v6778 = vand.u32 %v6777, 4294901760
        %6779 = vmatpush.msra.mxu0 %v6778
        %v6780 = vand.u32 %v4258, 4294901760
        %v6781 = vsub.f32 %v4258, %v6780
        %v6782 = vand.u32 %v6781, 4294901760
        %v6783 = vsub.f32 %v6781, %v6782
        %v6784 = vand.u32 %v6783, 4294901760
        %6785 = vmatpush.msra.mxu0 %v6784
        %v6786 = vand.u32 %v4618, 4294901760
        %6787 = vmatmul.f32.gmra.mxu0 %v6786
        %v6788 = vpop.f32.mrf.mxu0
        %v6789 = vadd.f32 %v6681, %v6788
        %v6790 = vand.u32 %v4621, 4294901760
        %6791 = vmatmul.f32.gmra.mxu0 %v6790
        %v6792 = vpop.f32.mrf.mxu0
        %v6793 = vadd.f32 %v6689, %v6792
        %v6794 = vand.u32 %v4624, 4294901760
        %6795 = vmatmul.f32.gmra.mxu0 %v6794
        %v6796 = vpop.f32.mrf.mxu0
        %v6797 = vadd.f32 %v6697, %v6796
        %v6798 = vand.u32 %v4627, 4294901760
        %6799 = vmatmul.f32.gmra.mxu0 %v6798
        %v6800 = vpop.f32.mrf.mxu0
        %v6801 = vadd.f32 %v6705, %v6800
        %v6802 = vand.u32 %v4630, 4294901760
        %6803 = vmatmul.f32.gmra.mxu0 %v6802
        %v6804 = vpop.f32.mrf.mxu0
        %v6805 = vadd.f32 %v6713, %v6804
        %v6806 = vand.u32 %v4633, 4294901760
        %6807 = vmatmul.f32.gmra.mxu0 %v6806
        %v6808 = vpop.f32.mrf.mxu0
        %v6809 = vadd.f32 %v6721, %v6808
        %v6810 = vand.u32 %v4636, 4294901760
        %6811 = vmatmul.f32.gmra.mxu0 %v6810
        %v6812 = vpop.f32.mrf.mxu0
        %v6813 = vadd.f32 %v6729, %v6812
        %v6814 = vand.u32 %v4639, 4294901760
        %6815 = vmatmul.f32.gmra.mxu0 %v6814
        %v6816 = vpop.f32.mrf.mxu0
        %v6817 = vadd.f32 %v6737, %v6816
        %v6818 = vand.u32 %v4642, 4294901760
        %6819 = vmatmul.f32.gmra.mxu0 %v6818
        %v6820 = vpop.f32.mrf.mxu0
        %v6821 = vadd.f32 %v6745, %v6820
        %v6822 = vand.u32 %v4645, 4294901760
        %6823 = vmatmul.f32.gmra.mxu0 %v6822
        %v6824 = vpop.f32.mrf.mxu0
        %v6825 = vadd.f32 %v6753, %v6824
        %6826 = vdwg.mxu0
        %6827 = vmatpush.msra.mxu0 0.0
        %6828 = vmatpush.msra.mxu0 0.0
        %6829 = vmatpush.msra.mxu0 0.0
        %6830 = vmatpush.msra.mxu0 0.0
        %6831 = vmatpush.msra.mxu0 0.0
        %6832 = vmatpush.msra.mxu0 0.0
        %6833 = vmatpush.msra.mxu0 0.0
        %6834 = vmatpush.msra.mxu0 0.0
        %6835 = vmatpush.msra.mxu0 0.0
        %6836 = vmatpush.msra.mxu0 0.0
        %6837 = vmatpush.msra.mxu0 0.0
        %6838 = vmatpush.msra.mxu0 0.0
        %6839 = vmatpush.msra.mxu0 0.0
        %v6840 = vand.u32 %v4260, 4294901760
        %v6841 = vsub.f32 %v4260, %v6840
        %6842 = vmatpush.msra.mxu0 %v6841
        %v6843 = vand.u32 %v4259, 4294901760
        %v6844 = vsub.f32 %v4259, %v6843
        %6845 = vmatpush.msra.mxu0 %v6844
        %v6846 = vand.u32 %v4258, 4294901760
        %v6847 = vsub.f32 %v4258, %v6846
        %6848 = vmatpush.msra.mxu0 %v6847
        %v6849 = vand.u32 %v4618, 4294901760
        %v6850 = vsub.f32 %v4618, %v6849
        %6851 = vmatmul.f32.gmra.mxu0 %v6850
        %v6852 = vpop.f32.mrf.mxu0
        %v6853 = vadd.f32 %v6789, %v6852
        %v6854 = vand.u32 %v4621, 4294901760
        %v6855 = vsub.f32 %v4621, %v6854
        %6856 = vmatmul.f32.gmra.mxu0 %v6855
        %v6857 = vpop.f32.mrf.mxu0
        %v6858 = vadd.f32 %v6793, %v6857
        %v6859 = vand.u32 %v4624, 4294901760
        %v6860 = vsub.f32 %v4624, %v6859
        %6861 = vmatmul.f32.gmra.mxu0 %v6860
        %v6862 = vpop.f32.mrf.mxu0
        %v6863 = vadd.f32 %v6797, %v6862
        %v6864 = vand.u32 %v4627, 4294901760
        %v6865 = vsub.f32 %v4627, %v6864
        %6866 = vmatmul.f32.gmra.mxu0 %v6865
        %v6867 = vpop.f32.mrf.mxu0
        %v6868 = vadd.f32 %v6801, %v6867
        %v6869 = vand.u32 %v4630, 4294901760
        %v6870 = vsub.f32 %v4630, %v6869
        %6871 = vmatmul.f32.gmra.mxu0 %v6870
        %v6872 = vpop.f32.mrf.mxu0
        %v6873 = vadd.f32 %v6805, %v6872
        %v6874 = vand.u32 %v4633, 4294901760
        %v6875 = vsub.f32 %v4633, %v6874
        %6876 = vmatmul.f32.gmra.mxu0 %v6875
        %v6877 = vpop.f32.mrf.mxu0
        %v6878 = vadd.f32 %v6809, %v6877
        %v6879 = vand.u32 %v4636, 4294901760
        %v6880 = vsub.f32 %v4636, %v6879
        %6881 = vmatmul.f32.gmra.mxu0 %v6880
        %v6882 = vpop.f32.mrf.mxu0
        %v6883 = vadd.f32 %v6813, %v6882
        %v6884 = vand.u32 %v4639, 4294901760
        %v6885 = vsub.f32 %v4639, %v6884
        %6886 = vmatmul.f32.gmra.mxu0 %v6885
        %v6887 = vpop.f32.mrf.mxu0
        %v6888 = vadd.f32 %v6817, %v6887
        %v6889 = vand.u32 %v4642, 4294901760
        %v6890 = vsub.f32 %v4642, %v6889
        %6891 = vmatmul.f32.gmra.mxu0 %v6890
        %v6892 = vpop.f32.mrf.mxu0
        %v6893 = vadd.f32 %v6821, %v6892
        %v6894 = vand.u32 %v4645, 4294901760
        %v6895 = vsub.f32 %v4645, %v6894
        %6896 = vmatmul.f32.gmra.mxu0 %v6895
        %v6897 = vpop.f32.mrf.mxu0
        %v6898 = vadd.f32 %v6825, %v6897
        %6899 = vdwg.mxu0
        %6900 = vmatpush.msra.mxu0 0.0
        %6901 = vmatpush.msra.mxu0 0.0
        %6902 = vmatpush.msra.mxu0 0.0
        %6903 = vmatpush.msra.mxu0 0.0
        %6904 = vmatpush.msra.mxu0 0.0
        %6905 = vmatpush.msra.mxu0 0.0
        %6906 = vmatpush.msra.mxu0 0.0
        %6907 = vmatpush.msra.mxu0 0.0
        %6908 = vmatpush.msra.mxu0 0.0
        %6909 = vmatpush.msra.mxu0 0.0
        %6910 = vmatpush.msra.mxu0 0.0
        %6911 = vmatpush.msra.mxu0 0.0
        %6912 = vmatpush.msra.mxu0 0.0
        %v6913 = vand.u32 %v4260, 4294901760
        %6914 = vmatpush.msra.mxu0 %v6913
        %v6915 = vand.u32 %v4259, 4294901760
        %6916 = vmatpush.msra.mxu0 %v6915
        %v6917 = vand.u32 %v4258, 4294901760
        %6918 = vmatpush.msra.mxu0 %v6917
        %v6919 = vand.u32 %v4618, 4294901760
        %v6920 = vsub.f32 %v4618, %v6919
        %v6921 = vand.u32 %v6920, 4294901760
        %6922 = vmatmul.f32.gmra.mxu0 %v6921
        %v6923 = vpop.f32.mrf.mxu0
        %v6924 = vadd.f32 %v6853, %v6923
        %v6925 = vand.u32 %v4621, 4294901760
        %v6926 = vsub.f32 %v4621, %v6925
        %v6927 = vand.u32 %v6926, 4294901760
        %6928 = vmatmul.f32.gmra.mxu0 %v6927
        %v6929 = vpop.f32.mrf.mxu0
        %v6930 = vadd.f32 %v6858, %v6929
        %v6931 = vand.u32 %v4624, 4294901760
        %v6932 = vsub.f32 %v4624, %v6931
        %v6933 = vand.u32 %v6932, 4294901760
        %6934 = vmatmul.f32.gmra.mxu0 %v6933
        %v6935 = vpop.f32.mrf.mxu0
        %v6936 = vadd.f32 %v6863, %v6935
        %v6937 = vand.u32 %v4627, 4294901760
        %v6938 = vsub.f32 %v4627, %v6937
        %v6939 = vand.u32 %v6938, 4294901760
        %6940 = vmatmul.f32.gmra.mxu0 %v6939
        %v6941 = vpop.f32.mrf.mxu0
        %v6942 = vadd.f32 %v6868, %v6941
        %v6943 = vand.u32 %v4630, 4294901760
        %v6944 = vsub.f32 %v4630, %v6943
        %v6945 = vand.u32 %v6944, 4294901760
        %6946 = vmatmul.f32.gmra.mxu0 %v6945
        %v6947 = vpop.f32.mrf.mxu0
        %v6948 = vadd.f32 %v6873, %v6947
        %v6949 = vand.u32 %v4633, 4294901760
        %v6950 = vsub.f32 %v4633, %v6949
        %v6951 = vand.u32 %v6950, 4294901760
        %6952 = vmatmul.f32.gmra.mxu0 %v6951
        %v6953 = vpop.f32.mrf.mxu0
        %v6954 = vadd.f32 %v6878, %v6953
        %v6955 = vand.u32 %v4636, 4294901760
        %v6956 = vsub.f32 %v4636, %v6955
        %v6957 = vand.u32 %v6956, 4294901760
        %6958 = vmatmul.f32.gmra.mxu0 %v6957
        %v6959 = vpop.f32.mrf.mxu0
        %v6960 = vadd.f32 %v6883, %v6959
        %v6961 = vand.u32 %v4639, 4294901760
        %v6962 = vsub.f32 %v4639, %v6961
        %v6963 = vand.u32 %v6962, 4294901760
        %6964 = vmatmul.f32.gmra.mxu0 %v6963
        %v6965 = vpop.f32.mrf.mxu0
        %v6966 = vadd.f32 %v6888, %v6965
        %v6967 = vand.u32 %v4642, 4294901760
        %v6968 = vsub.f32 %v4642, %v6967
        %v6969 = vand.u32 %v6968, 4294901760
        %6970 = vmatmul.f32.gmra.mxu0 %v6969
        %v6971 = vpop.f32.mrf.mxu0
        %v6972 = vadd.f32 %v6893, %v6971
        %v6973 = vand.u32 %v4645, 4294901760
        %v6974 = vsub.f32 %v4645, %v6973
        %v6975 = vand.u32 %v6974, 4294901760
        %6976 = vmatmul.f32.gmra.mxu0 %v6975
        %v6977 = vpop.f32.mrf.mxu0
        %v6978 = vadd.f32 %v6898, %v6977
        %6979 = vdwg.mxu0
        %6980 = vmatpush.msra.mxu0 0.0
        %6981 = vmatpush.msra.mxu0 0.0
        %6982 = vmatpush.msra.mxu0 0.0
        %6983 = vmatpush.msra.mxu0 0.0
        %6984 = vmatpush.msra.mxu0 0.0
        %6985 = vmatpush.msra.mxu0 0.0
        %6986 = vmatpush.msra.mxu0 0.0
        %6987 = vmatpush.msra.mxu0 0.0
        %6988 = vmatpush.msra.mxu0 0.0
        %6989 = vmatpush.msra.mxu0 0.0
        %6990 = vmatpush.msra.mxu0 0.0
        %6991 = vmatpush.msra.mxu0 0.0
        %6992 = vmatpush.msra.mxu0 0.0
        %v6993 = vand.u32 %v4260, 4294901760
        %v6994 = vsub.f32 %v4260, %v6993
        %v6995 = vand.u32 %v6994, 4294901760
        %6996 = vmatpush.msra.mxu0 %v6995
        %v6997 = vand.u32 %v4259, 4294901760
        %v6998 = vsub.f32 %v4259, %v6997
        %v6999 = vand.u32 %v6998, 4294901760
        %7000 = vmatpush.msra.mxu0 %v6999
        %v7001 = vand.u32 %v4258, 4294901760
        %v7002 = vsub.f32 %v4258, %v7001
        %v7003 = vand.u32 %v7002, 4294901760
        %7004 = vmatpush.msra.mxu0 %v7003
        %v7005 = vand.u32 %v4618, 4294901760
        %7006 = vmatmul.f32.gmra.mxu0 %v7005
        %v7007 = vpop.f32.mrf.mxu0
        %v7008 = vadd.f32 %v6924, %v7007
        %v7009 = vand.u32 %v4621, 4294901760
        %7010 = vmatmul.f32.gmra.mxu0 %v7009
        %v7011 = vpop.f32.mrf.mxu0
        %v7012 = vadd.f32 %v6930, %v7011
        %v7013 = vand.u32 %v4624, 4294901760
        %7014 = vmatmul.f32.gmra.mxu0 %v7013
        %v7015 = vpop.f32.mrf.mxu0
        %v7016 = vadd.f32 %v6936, %v7015
        %v7017 = vand.u32 %v4627, 4294901760
        %7018 = vmatmul.f32.gmra.mxu0 %v7017
        %v7019 = vpop.f32.mrf.mxu0
        %v7020 = vadd.f32 %v6942, %v7019
        %v7021 = vand.u32 %v4630, 4294901760
        %7022 = vmatmul.f32.gmra.mxu0 %v7021
        %v7023 = vpop.f32.mrf.mxu0
        %v7024 = vadd.f32 %v6948, %v7023
        %v7025 = vand.u32 %v4633, 4294901760
        %7026 = vmatmul.f32.gmra.mxu0 %v7025
        %v7027 = vpop.f32.mrf.mxu0
        %v7028 = vadd.f32 %v6954, %v7027
        %v7029 = vand.u32 %v4636, 4294901760
        %7030 = vmatmul.f32.gmra.mxu0 %v7029
        %v7031 = vpop.f32.mrf.mxu0
        %v7032 = vadd.f32 %v6960, %v7031
        %v7033 = vand.u32 %v4639, 4294901760
        %7034 = vmatmul.f32.gmra.mxu0 %v7033
        %v7035 = vpop.f32.mrf.mxu0
        %v7036 = vadd.f32 %v6966, %v7035
        %v7037 = vand.u32 %v4642, 4294901760
        %7038 = vmatmul.f32.gmra.mxu0 %v7037
        %v7039 = vpop.f32.mrf.mxu0
        %v7040 = vadd.f32 %v6972, %v7039
        %v7041 = vand.u32 %v4645, 4294901760
        %7042 = vmatmul.f32.gmra.mxu0 %v7041
        %v7043 = vpop.f32.mrf.mxu0
        %v7044 = vadd.f32 %v6978, %v7043
        %7045 = vdwg.mxu0
        %7046 = vmatpush.msra.mxu0 0.0
        %7047 = vmatpush.msra.mxu0 0.0
        %7048 = vmatpush.msra.mxu0 0.0
        %7049 = vmatpush.msra.mxu0 0.0
        %7050 = vmatpush.msra.mxu0 0.0
        %7051 = vmatpush.msra.mxu0 0.0
        %7052 = vmatpush.msra.mxu0 0.0
        %7053 = vmatpush.msra.mxu0 0.0
        %7054 = vmatpush.msra.mxu0 0.0
        %7055 = vmatpush.msra.mxu0 0.0
        %7056 = vmatpush.msra.mxu0 0.0
        %7057 = vmatpush.msra.mxu0 0.0
        %7058 = vmatpush.msra.mxu0 0.0
        %v7059 = vand.u32 %v4260, 4294901760
        %7060 = vmatpush.msra.mxu0 %v7059
        %v7061 = vand.u32 %v4259, 4294901760
        %7062 = vmatpush.msra.mxu0 %v7061
        %v7063 = vand.u32 %v4258, 4294901760
        %7064 = vmatpush.msra.mxu0 %v7063
        %v7065 = vand.u32 %v4618, 4294901760
        %7066 = vmatmul.f32.gmra.mxu0 %v7065
        %v7067 = vpop.f32.mrf.mxu0
        %v7068 = vadd.f32 %v7008, %v7067
        %v7069 = vand.u32 %v4621, 4294901760
        %7070 = vmatmul.f32.gmra.mxu0 %v7069
        %v7071 = vpop.f32.mrf.mxu0
        %v7072 = vadd.f32 %v7012, %v7071
        %v7073 = vand.u32 %v4624, 4294901760
        %7074 = vmatmul.f32.gmra.mxu0 %v7073
        %v7075 = vpop.f32.mrf.mxu0
        %v7076 = vadd.f32 %v7016, %v7075
        %v7077 = vand.u32 %v4627, 4294901760
        %7078 = vmatmul.f32.gmra.mxu0 %v7077
        %v7079 = vpop.f32.mrf.mxu0
        %v7080 = vadd.f32 %v7020, %v7079
        %v7081 = vand.u32 %v4630, 4294901760
        %7082 = vmatmul.f32.gmra.mxu0 %v7081
        %v7083 = vpop.f32.mrf.mxu0
        %v7084 = vadd.f32 %v7024, %v7083
        %v7085 = vand.u32 %v4633, 4294901760
        %7086 = vmatmul.f32.gmra.mxu0 %v7085
        %v7087 = vpop.f32.mrf.mxu0
        %v7088 = vadd.f32 %v7028, %v7087
        %v7089 = vand.u32 %v4636, 4294901760
        %7090 = vmatmul.f32.gmra.mxu0 %v7089
        %v7091 = vpop.f32.mrf.mxu0
        %v7092 = vadd.f32 %v7032, %v7091
        %v7093 = vand.u32 %v4639, 4294901760
        %7094 = vmatmul.f32.gmra.mxu0 %v7093
        %v7095 = vpop.f32.mrf.mxu0
        %v7096 = vadd.f32 %v7036, %v7095
        %v7097 = vand.u32 %v4642, 4294901760
        %7098 = vmatmul.f32.gmra.mxu0 %v7097
        %v7099 = vpop.f32.mrf.mxu0
        %v7100 = vadd.f32 %v7040, %v7099
        %v7101 = vand.u32 %v4645, 4294901760
        %7102 = vmatmul.f32.gmra.mxu0 %v7101
        %v7103 = vpop.f32.mrf.mxu0
        %v7104 = vadd.f32 %v7044, %v7103
        %7105 = vdwg.mxu0
        %v7106 = vld [vmem:[%s5 + $0x120] sm:$0xf]
        %v7107 = vld [vmem:[%s5 + $0x124] sm:$0xf]
        %v7108 = vld [vmem:[%s5 + $0x128] sm:$0xf]
        %v7109 = vld [vmem:[%s5 + $0x12c] sm:$0xf]
        %v7110 = vld [vmem:[%s5 + $0x130] sm:$0xf]
        %v7111 = vld [vmem:[%s5 + $0x134] sm:$0xf]
        %v7112 = vld [vmem:[%s5 + $0x138] sm:$0xf]
        %v7113 = vld [vmem:[%s5 + $0x13c] sm:$0xf]
        %v7114 = vpack.c.bf16 %v7072, %v7068
        %v7115 = vpack.c.bf16 %v7080, %v7076
        %v7116 = vpack.c.bf16 %v7088, %v7084
        %v7117 = vpack.c.bf16 %v7096, %v7092
        %v7118 = vpack.c.bf16 %v7104, %v7100
        %v7119 = vld [vmem:[%s8 + $0x6] sm:$0x1]
        %v7120 = vperm.slane %v7119, 0
        %v7129 = vunpack.c.l.b16 %v7106
        %v7130 = vunpack.c.l.b16 %v7107
        %v7131 = vunpack.c.l.b16 %v7108
        %v7132 = vunpack.c.l.b16 %v7109
        %v7133 = vunpack.c.l.b16 %v7110
        %v7134 = vunpack.c.l.b16 %v7111
        %v7135 = vunpack.c.l.b16 %v7112
        %v7136 = vunpack.c.l.b16 %v7113
        %v7137 = vpack.c.b16 %v7130, %v7129
        %v7138 = vpack.c.b16 %v7132, %v7131
        %v7139 = vpack.c.b16 %v7134, %v7133
        %v7140 = vpack.c.b16 %v7136, %v7135
        %v7146 = vsel %vm3572, %v7114, 0
        %v7149 = vsel %vm3572, %v7115, 0
        %v7152 = vsel %vm3572, %v7116, 0
        %v7155 = vsel %vm3572, %v7117, 0
        %v7158 = vsel %vm3572, %v7118, 0
        %7160 = vmatpush.bf16.msra.mxu0 0
        %7161 = vmatpush.bf16.msra.mxu0 0
        %7162 = vmatpush.bf16.msra.mxu0 0
        %7163 = vmatpush.bf16.msra.mxu0 0
        %7164 = vmatpush.bf16.msra.mxu0 %v7140
        %7165 = vmatpush.bf16.msra.mxu0 %v7139
        %7166 = vmatpush.bf16.msra.mxu0 %v7138
        %7167 = vmatpush.bf16.msra.mxu0 %v7137
        %7168 = vmatmul.bf16.gmra.mxu0 %v7146
        %v7169 = vpop.f32.mrf.mxu0
        %v7170 = vadd.f32 %v7120, %v7169
        %v7171 = vpop.f32.mrf.mxu0
        %v7172 = vadd.f32 %v7120, %v7171
        %7173 = vmatmul.bf16.gmra.mxu0 %v7149
        %v7174 = vpop.f32.mrf.mxu0
        %v7175 = vadd.f32 %v7120, %v7174
        %v7176 = vpop.f32.mrf.mxu0
        %v7177 = vadd.f32 %v7120, %v7176
        %7178 = vmatmul.bf16.gmra.mxu0 %v7152
        %v7179 = vpop.f32.mrf.mxu0
        %v7180 = vadd.f32 %v7120, %v7179
        %v7181 = vpop.f32.mrf.mxu0
        %v7182 = vadd.f32 %v7120, %v7181
        %7183 = vmatmul.bf16.gmra.mxu0 %v7155
        %v7184 = vpop.f32.mrf.mxu0
        %v7185 = vadd.f32 %v7120, %v7184
        %v7186 = vpop.f32.mrf.mxu0
        %v7187 = vadd.f32 %v7120, %v7186
        %7188 = vmatmul.bf16.gmra.mxu0 %v7158
        %v7189 = vpop.f32.mrf.mxu0
        %v7190 = vadd.f32 %v7120, %v7189
        %v7191 = vpop.f32.mrf.mxu0
        %v7192 = vadd.f32 %v7120, %v7191
        %7193 = vdwg.mxu0
        %v7194 = vadd.f32 %v6011, %v7170
        %v7195 = vadd.f32 %v6013, %v7172
        %v7196 = vadd.f32 %v6016, %v7175
        %v7197 = vadd.f32 %v6018, %v7177
        %v7198 = vadd.f32 %v6021, %v7180
        %v7199 = vadd.f32 %v6023, %v7182
        %v7200 = vadd.f32 %v6026, %v7185
        %v7201 = vadd.f32 %v6028, %v7187
        %v7202 = vadd.f32 %v6031, %v7190
        %v7203 = vadd.f32 %v6033, %v7192
        %v7204 = vmax.f32 %v7194, 0.0
        %v7205 = vmax.f32 %v7195, 0.0
        %v7206 = vmax.f32 %v7196, 0.0
        %v7207 = vmax.f32 %v7197, 0.0
        %v7208 = vmax.f32 %v7198, 0.0
        %v7209 = vmax.f32 %v7199, 0.0
        %v7210 = vmax.f32 %v7200, 0.0
        %v7211 = vmax.f32 %v7201, 0.0
        %v7212 = vmax.f32 %v7202, 0.0
        %v7213 = vmax.f32 %v7203, 0.0
        %v7214 = vld [vmem:[%s6] sm:$0xf]
        %v7215 = vld [vmem:[%s6 + $0x4] sm:$0xf]
        %v7216 = vld [vmem:[%s6 + $0x8] sm:$0xf]
        %v7217 = vld [vmem:[%s6 + $0xc] sm:$0xf]
        %v7218 = vld [vmem:[%s6 + $0x10] sm:$0xf]
        %v7219 = vld [vmem:[%s6 + $0x14] sm:$0xf]
        %v7220 = vld [vmem:[%s6 + $0x18] sm:$0xf]
        %v7221 = vld [vmem:[%s6 + $0x1c] sm:$0xf]
        %v7222 = vld [vmem:[%s6 + $0x20] sm:$0xf]
        %v7223 = vld [vmem:[%s6 + $0x24] sm:$0xf]
        %v7224 = vld [vmem:[%s6 + $0x28] sm:$0xf]
        %v7225 = vld [vmem:[%s6 + $0x2c] sm:$0xf]
        %v7226 = vld [vmem:[%s6 + $0x30] sm:$0xf]
        %v7227 = vld [vmem:[%s6 + $0x34] sm:$0xf]
        %v7228 = vld [vmem:[%s6 + $0x38] sm:$0xf]
        %v7229 = vld [vmem:[%s6 + $0x3c] sm:$0xf]
        %v7230 = vld [vmem:[%s6 + $0x40] sm:$0xf]
        %v7231 = vld [vmem:[%s6 + $0x44] sm:$0xf]
        %v7232 = vld [vmem:[%s6 + $0x48] sm:$0xf]
        %v7233 = vld [vmem:[%s6 + $0x4c] sm:$0xf]
        %v7234 = vld [vmem:[%s6 + $0x50] sm:$0xf]
        %v7235 = vld [vmem:[%s6 + $0x54] sm:$0xf]
        %v7236 = vld [vmem:[%s6 + $0x58] sm:$0xf]
        %v7237 = vld [vmem:[%s6 + $0x5c] sm:$0xf]
        %v7238 = vld [vmem:[%s6 + $0x60] sm:$0xf]
        %v7239 = vld [vmem:[%s6 + $0x64] sm:$0xf]
        %v7240 = vld [vmem:[%s6 + $0x68] sm:$0xf]
        %v7241 = vld [vmem:[%s6 + $0x6c] sm:$0xf]
        %v7242 = vld [vmem:[%s6 + $0x70] sm:$0xf]
        %v7243 = vld [vmem:[%s6 + $0x74] sm:$0xf]
        %v7244 = vld [vmem:[%s6 + $0x78] sm:$0xf]
        %v7245 = vld [vmem:[%s6 + $0x7c] sm:$0xf]
        %v7246 = vld [vmem:[%s6 + $0x80] sm:$0xf]
        %v7247 = vld [vmem:[%s6 + $0x84] sm:$0xf]
        %v7248 = vld [vmem:[%s6 + $0x88] sm:$0xf]
        %v7249 = vld [vmem:[%s6 + $0x8c] sm:$0xf]
        %v7250 = vld [vmem:[%s6 + $0x90] sm:$0xf]
        %v7251 = vld [vmem:[%s6 + $0x94] sm:$0xf]
        %v7252 = vld [vmem:[%s6 + $0x98] sm:$0xf]
        %v7253 = vld [vmem:[%s6 + $0x9c] sm:$0xf]
        %v7254 = vld [vmem:[%s6 + $0xa0] sm:$0xf]
        %v7255 = vld [vmem:[%s6 + $0xa4] sm:$0xf]
        %v7256 = vld [vmem:[%s6 + $0xa8] sm:$0xf]
        %v7257 = vld [vmem:[%s6 + $0xac] sm:$0xf]
        %v7258 = vld [vmem:[%s6 + $0xb0] sm:$0xf]
        %v7259 = vld [vmem:[%s6 + $0xb4] sm:$0xf]
        %v7260 = vld [vmem:[%s6 + $0xb8] sm:$0xf]
        %v7261 = vld [vmem:[%s6 + $0xbc] sm:$0xf]
        %v7262 = vld [vmem:[%s6 + $0xc0] sm:$0xf]
        %v7263 = vld [vmem:[%s6 + $0xc4] sm:$0xf]
        %v7264 = vld [vmem:[%s6 + $0xc8] sm:$0xf]
        %v7265 = vld [vmem:[%s6 + $0xcc] sm:$0xf]
        %v7266 = vld [vmem:[%s6 + $0xd0] sm:$0xf]
        %v7267 = vld [vmem:[%s6 + $0xd4] sm:$0xf]
        %v7268 = vld [vmem:[%s6 + $0xd8] sm:$0xf]
        %v7269 = vld [vmem:[%s6 + $0xdc] sm:$0xf]
        %v7270 = vld [vmem:[%s6 + $0xe0] sm:$0xf]
        %v7271 = vld [vmem:[%s6 + $0xe4] sm:$0xf]
        %v7272 = vld [vmem:[%s6 + $0xe8] sm:$0xf]
        %v7273 = vld [vmem:[%s6 + $0xec] sm:$0xf]
        %v7274 = vld [vmem:[%s6 + $0xf0] sm:$0xf]
        %v7275 = vld [vmem:[%s6 + $0xf4] sm:$0xf]
        %v7276 = vld [vmem:[%s6 + $0xf8] sm:$0xf]
        %v7277 = vld [vmem:[%s6 + $0xfc] sm:$0xf]
        %v7278 = vld [vmem:[%s6 + $0x100] sm:$0xf]
        %v7279 = vld [vmem:[%s6 + $0x104] sm:$0xf]
        %v7280 = vld [vmem:[%s6 + $0x108] sm:$0xf]
        %v7281 = vld [vmem:[%s6 + $0x10c] sm:$0xf]
        %v7282 = vld [vmem:[%s6 + $0x110] sm:$0xf]
        %v7283 = vld [vmem:[%s6 + $0x114] sm:$0xf]
        %v7284 = vld [vmem:[%s6 + $0x118] sm:$0xf]
        %v7285 = vld [vmem:[%s6 + $0x11c] sm:$0xf]
        %v7286 = vld [vmem:[%s6 + $0x120] sm:$0xf]
        %v7287 = vld [vmem:[%s6 + $0x124] sm:$0xf]
        %v7288 = vld [vmem:[%s6 + $0x128] sm:$0xf]
        %v7289 = vld [vmem:[%s6 + $0x12c] sm:$0xf]
        %v7290 = vld [vmem:[%s6 + $0x130] sm:$0xf]
        %v7291 = vld [vmem:[%s6 + $0x134] sm:$0xf]
        %v7292 = vld [vmem:[%s6 + $0x138] sm:$0xf]
        %v7293 = vld [vmem:[%s6 + $0x13c] sm:$0xf]
        %v7294 = vld [vmem:[%s6 + $0x140] sm:$0xf]
        %v7295 = vld [vmem:[%s6 + $0x144] sm:$0xf]
        %v7296 = vld [vmem:[%s6 + $0x148] sm:$0xf]
        %v7297 = vld [vmem:[%s6 + $0x14c] sm:$0xf]
        %v7298 = vld [vmem:[%s6 + $0x150] sm:$0xf]
        %v7299 = vld [vmem:[%s6 + $0x154] sm:$0xf]
        %v7300 = vld [vmem:[%s6 + $0x158] sm:$0xf]
        %v7301 = vld [vmem:[%s6 + $0x15c] sm:$0xf]
        %v7302 = vld [vmem:[%s6 + $0x160] sm:$0xf]
        %v7303 = vld [vmem:[%s6 + $0x164] sm:$0xf]
        %v7304 = vld [vmem:[%s6 + $0x168] sm:$0xf]
        %v7305 = vld [vmem:[%s6 + $0x16c] sm:$0xf]
        %v7306 = vld [vmem:[%s6 + $0x170] sm:$0xf]
        %v7307 = vld [vmem:[%s6 + $0x174] sm:$0xf]
        %v7308 = vld [vmem:[%s6 + $0x178] sm:$0xf]
        %v7309 = vld [vmem:[%s6 + $0x17c] sm:$0xf]
        %v7310 = vld [vmem:[%s6 + $0x180] sm:$0xf]
        %v7311 = vld [vmem:[%s6 + $0x184] sm:$0xf]
        %v7312 = vld [vmem:[%s6 + $0x188] sm:$0xf]
        %v7313 = vld [vmem:[%s6 + $0x18c] sm:$0xf]
        %v7314 = vld [vmem:[%s6 + $0x190] sm:$0xf]
        %v7315 = vld [vmem:[%s6 + $0x194] sm:$0xf]
        %v7316 = vld [vmem:[%s6 + $0x198] sm:$0xf]
        %v7317 = vld [vmem:[%s6 + $0x19c] sm:$0xf]
        %v7318 = vld [vmem:[%s6 + $0x1a0] sm:$0xf]
        %v7319 = vld [vmem:[%s6 + $0x1a4] sm:$0xf]
        %v7320 = vld [vmem:[%s6 + $0x1a8] sm:$0xf]
        %v7321 = vld [vmem:[%s6 + $0x1ac] sm:$0xf]
        %v7322 = vld [vmem:[%s6 + $0x1b0] sm:$0xf]
        %v7323 = vld [vmem:[%s6 + $0x1b4] sm:$0xf]
        %v7324 = vld [vmem:[%s6 + $0x1b8] sm:$0xf]
        %v7325 = vld [vmem:[%s6 + $0x1bc] sm:$0xf]
        %v7326 = vld [vmem:[%s6 + $0x1c0] sm:$0xf]
        %v7327 = vld [vmem:[%s6 + $0x1c4] sm:$0xf]
        %v7328 = vld [vmem:[%s6 + $0x1c8] sm:$0xf]
        %v7329 = vld [vmem:[%s6 + $0x1cc] sm:$0xf]
        %v7330 = vld [vmem:[%s6 + $0x1d0] sm:$0xf]
        %v7331 = vld [vmem:[%s6 + $0x1d4] sm:$0xf]
        %v7332 = vld [vmem:[%s6 + $0x1d8] sm:$0xf]
        %v7333 = vld [vmem:[%s6 + $0x1dc] sm:$0xf]
        %v7334 = vld [vmem:[%s6 + $0x1e0] sm:$0xf]
        %v7335 = vld [vmem:[%s6 + $0x1e4] sm:$0xf]
        %v7336 = vld [vmem:[%s6 + $0x1e8] sm:$0xf]
        %v7337 = vld [vmem:[%s6 + $0x1ec] sm:$0xf]
        %v7338 = vld [vmem:[%s6 + $0x1f0] sm:$0xf]
        %v7339 = vld [vmem:[%s6 + $0x1f4] sm:$0xf]
        %v7340 = vld [vmem:[%s6 + $0x1f8] sm:$0xf]
        %v7341 = vld [vmem:[%s6 + $0x1fc] sm:$0xf]
        %v7342 = vld [vmem:[%s6 + $0x200] sm:$0xf]
        %v7343 = vld [vmem:[%s6 + $0x204] sm:$0xf]
        %v7344 = vld [vmem:[%s6 + $0x208] sm:$0xf]
        %v7345 = vld [vmem:[%s6 + $0x20c] sm:$0xf]
        %v7346 = vld [vmem:[%s6 + $0x210] sm:$0xf]
        %v7347 = vld [vmem:[%s6 + $0x214] sm:$0xf]
        %v7348 = vld [vmem:[%s6 + $0x218] sm:$0xf]
        %v7349 = vld [vmem:[%s6 + $0x21c] sm:$0xf]
        %v7350 = vld [vmem:[%s6 + $0x220] sm:$0xf]
        %v7351 = vld [vmem:[%s6 + $0x224] sm:$0xf]
        %v7352 = vld [vmem:[%s6 + $0x228] sm:$0xf]
        %v7353 = vld [vmem:[%s6 + $0x22c] sm:$0xf]
        %v7354 = vld [vmem:[%s6 + $0x230] sm:$0xf]
        %v7355 = vld [vmem:[%s6 + $0x234] sm:$0xf]
        %v7356 = vld [vmem:[%s6 + $0x238] sm:$0xf]
        %v7357 = vld [vmem:[%s6 + $0x23c] sm:$0xf]
        %v7358 = vld [vmem:[%s6 + $0x240] sm:$0xf]
        %v7359 = vld [vmem:[%s6 + $0x244] sm:$0xf]
        %v7360 = vld [vmem:[%s6 + $0x248] sm:$0xf]
        %v7361 = vld [vmem:[%s6 + $0x24c] sm:$0xf]
        %v7362 = vld [vmem:[%s6 + $0x250] sm:$0xf]
        %v7363 = vld [vmem:[%s6 + $0x254] sm:$0xf]
        %v7364 = vld [vmem:[%s6 + $0x258] sm:$0xf]
        %v7365 = vld [vmem:[%s6 + $0x25c] sm:$0xf]
        %v7366 = vld [vmem:[%s6 + $0x260] sm:$0xf]
        %v7367 = vld [vmem:[%s6 + $0x264] sm:$0xf]
        %v7368 = vld [vmem:[%s6 + $0x268] sm:$0xf]
        %v7369 = vld [vmem:[%s6 + $0x26c] sm:$0xf]
        %v7370 = vld [vmem:[%s6 + $0x270] sm:$0xf]
        %v7371 = vld [vmem:[%s6 + $0x274] sm:$0xf]
        %v7372 = vld [vmem:[%s6 + $0x278] sm:$0xf]
        %v7373 = vld [vmem:[%s6 + $0x27c] sm:$0xf]
        %v7374 = vpack.c.bf16 %v7204, %v7204
        %v7375 = vpack.c.bf16 %v7205, %v7205
        %v7376 = vpack.c.bf16 %v7206, %v7206
        %v7377 = vpack.c.bf16 %v7207, %v7207
        %v7378 = vpack.c.bf16 %v7208, %v7208
        %v7379 = vpack.c.bf16 %v7209, %v7209
        %v7380 = vpack.c.bf16 %v7210, %v7210
        %v7381 = vpack.c.bf16 %v7211, %v7211
        %v7382 = vpack.c.bf16 %v7212, %v7212
        %v7383 = vpack.c.bf16 %v7213, %v7213
        %v7384 = vld [vmem:[%s8 + $0x7] sm:$0x1]
        %v7385 = vperm.slane %v7384, 0
        %v7546 = vunpack.c.l.b16 %v7214
        %v7547 = vunpack.c.l.b16 %v7215
        %v7548 = vunpack.c.l.b16 %v7216
        %v7549 = vunpack.c.l.b16 %v7217
        %v7550 = vunpack.c.l.b16 %v7218
        %v7551 = vunpack.c.l.b16 %v7219
        %v7552 = vunpack.c.l.b16 %v7220
        %v7553 = vunpack.c.l.b16 %v7221
        %v7554 = vunpack.c.l.b16 %v7222
        %v7555 = vunpack.c.l.b16 %v7223
        %v7556 = vunpack.c.l.b16 %v7224
        %v7557 = vunpack.c.l.b16 %v7225
        %v7558 = vunpack.c.l.b16 %v7226
        %v7559 = vunpack.c.l.b16 %v7227
        %v7560 = vunpack.c.l.b16 %v7228
        %v7561 = vunpack.c.l.b16 %v7229
        %v7562 = vunpack.c.l.b16 %v7230
        %v7563 = vunpack.c.l.b16 %v7231
        %v7564 = vunpack.c.l.b16 %v7232
        %v7565 = vunpack.c.l.b16 %v7233
        %v7566 = vunpack.c.l.b16 %v7234
        %v7567 = vunpack.c.l.b16 %v7235
        %v7568 = vunpack.c.l.b16 %v7236
        %v7569 = vunpack.c.l.b16 %v7237
        %v7570 = vunpack.c.l.b16 %v7238
        %v7571 = vunpack.c.l.b16 %v7239
        %v7572 = vunpack.c.l.b16 %v7240
        %v7573 = vunpack.c.l.b16 %v7241
        %v7574 = vunpack.c.l.b16 %v7242
        %v7575 = vunpack.c.l.b16 %v7243
        %v7576 = vunpack.c.l.b16 %v7244
        %v7577 = vunpack.c.l.b16 %v7245
        %v7578 = vunpack.c.l.b16 %v7246
        %v7579 = vunpack.c.l.b16 %v7247
        %v7580 = vunpack.c.l.b16 %v7248
        %v7581 = vunpack.c.l.b16 %v7249
        %v7582 = vunpack.c.l.b16 %v7250
        %v7583 = vunpack.c.l.b16 %v7251
        %v7584 = vunpack.c.l.b16 %v7252
        %v7585 = vunpack.c.l.b16 %v7253
        %v7586 = vunpack.c.l.b16 %v7254
        %v7587 = vunpack.c.l.b16 %v7255
        %v7588 = vunpack.c.l.b16 %v7256
        %v7589 = vunpack.c.l.b16 %v7257
        %v7590 = vunpack.c.l.b16 %v7258
        %v7591 = vunpack.c.l.b16 %v7259
        %v7592 = vunpack.c.l.b16 %v7260
        %v7593 = vunpack.c.l.b16 %v7261
        %v7594 = vunpack.c.l.b16 %v7262
        %v7595 = vunpack.c.l.b16 %v7263
        %v7596 = vunpack.c.l.b16 %v7264
        %v7597 = vunpack.c.l.b16 %v7265
        %v7598 = vunpack.c.l.b16 %v7266
        %v7599 = vunpack.c.l.b16 %v7267
        %v7600 = vunpack.c.l.b16 %v7268
        %v7601 = vunpack.c.l.b16 %v7269
        %v7602 = vunpack.c.l.b16 %v7270
        %v7603 = vunpack.c.l.b16 %v7271
        %v7604 = vunpack.c.l.b16 %v7272
        %v7605 = vunpack.c.l.b16 %v7273
        %v7606 = vunpack.c.l.b16 %v7274
        %v7607 = vunpack.c.l.b16 %v7275
        %v7608 = vunpack.c.l.b16 %v7276
        %v7609 = vunpack.c.l.b16 %v7277
        %v7610 = vunpack.c.l.b16 %v7278
        %v7611 = vunpack.c.l.b16 %v7279
        %v7612 = vunpack.c.l.b16 %v7280
        %v7613 = vunpack.c.l.b16 %v7281
        %v7614 = vunpack.c.l.b16 %v7282
        %v7615 = vunpack.c.l.b16 %v7283
        %v7616 = vunpack.c.l.b16 %v7284
        %v7617 = vunpack.c.l.b16 %v7285
        %v7618 = vunpack.c.l.b16 %v7286
        %v7619 = vunpack.c.l.b16 %v7287
        %v7620 = vunpack.c.l.b16 %v7288
        %v7621 = vunpack.c.l.b16 %v7289
        %v7622 = vunpack.c.l.b16 %v7290
        %v7623 = vunpack.c.l.b16 %v7291
        %v7624 = vunpack.c.l.b16 %v7292
        %v7625 = vunpack.c.l.b16 %v7293
        %v7626 = vunpack.c.l.b16 %v7294
        %v7627 = vunpack.c.l.b16 %v7295
        %v7628 = vunpack.c.l.b16 %v7296
        %v7629 = vunpack.c.l.b16 %v7297
        %v7630 = vunpack.c.l.b16 %v7298
        %v7631 = vunpack.c.l.b16 %v7299
        %v7632 = vunpack.c.l.b16 %v7300
        %v7633 = vunpack.c.l.b16 %v7301
        %v7634 = vunpack.c.l.b16 %v7302
        %v7635 = vunpack.c.l.b16 %v7303
        %v7636 = vunpack.c.l.b16 %v7304
        %v7637 = vunpack.c.l.b16 %v7305
        %v7638 = vunpack.c.l.b16 %v7306
        %v7639 = vunpack.c.l.b16 %v7307
        %v7640 = vunpack.c.l.b16 %v7308
        %v7641 = vunpack.c.l.b16 %v7309
        %v7642 = vunpack.c.l.b16 %v7310
        %v7643 = vunpack.c.l.b16 %v7311
        %v7644 = vunpack.c.l.b16 %v7312
        %v7645 = vunpack.c.l.b16 %v7313
        %v7646 = vunpack.c.l.b16 %v7314
        %v7647 = vunpack.c.l.b16 %v7315
        %v7648 = vunpack.c.l.b16 %v7316
        %v7649 = vunpack.c.l.b16 %v7317
        %v7650 = vunpack.c.l.b16 %v7318
        %v7651 = vunpack.c.l.b16 %v7319
        %v7652 = vunpack.c.l.b16 %v7320
        %v7653 = vunpack.c.l.b16 %v7321
        %v7654 = vunpack.c.l.b16 %v7322
        %v7655 = vunpack.c.l.b16 %v7323
        %v7656 = vunpack.c.l.b16 %v7324
        %v7657 = vunpack.c.l.b16 %v7325
        %v7658 = vunpack.c.l.b16 %v7326
        %v7659 = vunpack.c.l.b16 %v7327
        %v7660 = vunpack.c.l.b16 %v7328
        %v7661 = vunpack.c.l.b16 %v7329
        %v7662 = vunpack.c.l.b16 %v7330
        %v7663 = vunpack.c.l.b16 %v7331
        %v7664 = vunpack.c.l.b16 %v7332
        %v7665 = vunpack.c.l.b16 %v7333
        %v7666 = vunpack.c.l.b16 %v7334
        %v7667 = vunpack.c.l.b16 %v7335
        %v7668 = vunpack.c.l.b16 %v7336
        %v7669 = vunpack.c.l.b16 %v7337
        %v7670 = vunpack.c.l.b16 %v7338
        %v7671 = vunpack.c.l.b16 %v7339
        %v7672 = vunpack.c.l.b16 %v7340
        %v7673 = vunpack.c.l.b16 %v7341
        %v7674 = vunpack.c.l.b16 %v7342
        %v7675 = vunpack.c.l.b16 %v7343
        %v7676 = vunpack.c.l.b16 %v7344
        %v7677 = vunpack.c.l.b16 %v7345
        %v7678 = vunpack.c.l.b16 %v7346
        %v7679 = vunpack.c.l.b16 %v7347
        %v7680 = vunpack.c.l.b16 %v7348
        %v7681 = vunpack.c.l.b16 %v7349
        %v7682 = vunpack.c.l.b16 %v7350
        %v7683 = vunpack.c.l.b16 %v7351
        %v7684 = vunpack.c.l.b16 %v7352
        %v7685 = vunpack.c.l.b16 %v7353
        %v7686 = vunpack.c.l.b16 %v7354
        %v7687 = vunpack.c.l.b16 %v7355
        %v7688 = vunpack.c.l.b16 %v7356
        %v7689 = vunpack.c.l.b16 %v7357
        %v7690 = vunpack.c.l.b16 %v7358
        %v7691 = vunpack.c.l.b16 %v7359
        %v7692 = vunpack.c.l.b16 %v7360
        %v7693 = vunpack.c.l.b16 %v7361
        %v7694 = vunpack.c.l.b16 %v7362
        %v7695 = vunpack.c.l.b16 %v7363
        %v7696 = vunpack.c.l.b16 %v7364
        %v7697 = vunpack.c.l.b16 %v7365
        %v7698 = vunpack.c.l.b16 %v7366
        %v7699 = vunpack.c.l.b16 %v7367
        %v7700 = vunpack.c.l.b16 %v7368
        %v7701 = vunpack.c.l.b16 %v7369
        %v7702 = vunpack.c.l.b16 %v7370
        %v7703 = vunpack.c.l.b16 %v7371
        %v7704 = vunpack.c.l.b16 %v7372
        %v7705 = vunpack.c.l.b16 %v7373
        %v7706 = vpack.c.b16 %v7547, %v7546
        %v7707 = vpack.c.b16 %v7549, %v7548
        %v7708 = vpack.c.b16 %v7551, %v7550
        %v7709 = vpack.c.b16 %v7553, %v7552
        %v7710 = vpack.c.b16 %v7555, %v7554
        %v7711 = vpack.c.b16 %v7557, %v7556
        %v7712 = vpack.c.b16 %v7559, %v7558
        %v7713 = vpack.c.b16 %v7561, %v7560
        %v7714 = vpack.c.b16 %v7563, %v7562
        %v7715 = vpack.c.b16 %v7565, %v7564
        %v7716 = vpack.c.b16 %v7567, %v7566
        %v7717 = vpack.c.b16 %v7569, %v7568
        %v7718 = vpack.c.b16 %v7571, %v7570
        %v7719 = vpack.c.b16 %v7573, %v7572
        %v7720 = vpack.c.b16 %v7575, %v7574
        %v7721 = vpack.c.b16 %v7577, %v7576
        %v7722 = vpack.c.b16 %v7579, %v7578
        %v7723 = vpack.c.b16 %v7581, %v7580
        %v7724 = vpack.c.b16 %v7583, %v7582
        %v7725 = vpack.c.b16 %v7585, %v7584
        %v7726 = vpack.c.b16 %v7587, %v7586
        %v7727 = vpack.c.b16 %v7589, %v7588
        %v7728 = vpack.c.b16 %v7591, %v7590
        %v7729 = vpack.c.b16 %v7593, %v7592
        %v7730 = vpack.c.b16 %v7595, %v7594
        %v7731 = vpack.c.b16 %v7597, %v7596
        %v7732 = vpack.c.b16 %v7599, %v7598
        %v7733 = vpack.c.b16 %v7601, %v7600
        %v7734 = vpack.c.b16 %v7603, %v7602
        %v7735 = vpack.c.b16 %v7605, %v7604
        %v7736 = vpack.c.b16 %v7607, %v7606
        %v7737 = vpack.c.b16 %v7609, %v7608
        %v7738 = vpack.c.b16 %v7611, %v7610
        %v7739 = vpack.c.b16 %v7613, %v7612
        %v7740 = vpack.c.b16 %v7615, %v7614
        %v7741 = vpack.c.b16 %v7617, %v7616
        %v7742 = vpack.c.b16 %v7619, %v7618
        %v7743 = vpack.c.b16 %v7621, %v7620
        %v7744 = vpack.c.b16 %v7623, %v7622
        %v7745 = vpack.c.b16 %v7625, %v7624
        %v7746 = vpack.c.b16 %v7627, %v7626
        %v7747 = vpack.c.b16 %v7629, %v7628
        %v7748 = vpack.c.b16 %v7631, %v7630
        %v7749 = vpack.c.b16 %v7633, %v7632
        %v7750 = vpack.c.b16 %v7635, %v7634
        %v7751 = vpack.c.b16 %v7637, %v7636
        %v7752 = vpack.c.b16 %v7639, %v7638
        %v7753 = vpack.c.b16 %v7641, %v7640
        %v7754 = vpack.c.b16 %v7643, %v7642
        %v7755 = vpack.c.b16 %v7645, %v7644
        %v7756 = vpack.c.b16 %v7647, %v7646
        %v7757 = vpack.c.b16 %v7649, %v7648
        %v7758 = vpack.c.b16 %v7651, %v7650
        %v7759 = vpack.c.b16 %v7653, %v7652
        %v7760 = vpack.c.b16 %v7655, %v7654
        %v7761 = vpack.c.b16 %v7657, %v7656
        %v7762 = vpack.c.b16 %v7659, %v7658
        %v7763 = vpack.c.b16 %v7661, %v7660
        %v7764 = vpack.c.b16 %v7663, %v7662
        %v7765 = vpack.c.b16 %v7665, %v7664
        %v7766 = vpack.c.b16 %v7667, %v7666
        %v7767 = vpack.c.b16 %v7669, %v7668
        %v7768 = vpack.c.b16 %v7671, %v7670
        %v7769 = vpack.c.b16 %v7673, %v7672
        %v7770 = vpack.c.b16 %v7675, %v7674
        %v7771 = vpack.c.b16 %v7677, %v7676
        %v7772 = vpack.c.b16 %v7679, %v7678
        %v7773 = vpack.c.b16 %v7681, %v7680
        %v7774 = vpack.c.b16 %v7683, %v7682
        %v7775 = vpack.c.b16 %v7685, %v7684
        %v7776 = vpack.c.b16 %v7687, %v7686
        %v7777 = vpack.c.b16 %v7689, %v7688
        %v7778 = vpack.c.b16 %v7691, %v7690
        %v7779 = vpack.c.b16 %v7693, %v7692
        %v7780 = vpack.c.b16 %v7695, %v7694
        %v7781 = vpack.c.b16 %v7697, %v7696
        %v7782 = vpack.c.b16 %v7699, %v7698
        %v7783 = vpack.c.b16 %v7701, %v7700
        %v7784 = vpack.c.b16 %v7703, %v7702
        %v7785 = vpack.c.b16 %v7705, %v7704
        %7866 = vmatpush.bf16.msra.mxu0 %v7713
        %7867 = vmatpush.bf16.msra.mxu0 %v7712
        %7868 = vmatpush.bf16.msra.mxu0 %v7711
        %7869 = vmatpush.bf16.msra.mxu0 %v7710
        %7870 = vmatpush.bf16.msra.mxu0 %v7709
        %7871 = vmatpush.bf16.msra.mxu0 %v7708
        %7872 = vmatpush.bf16.msra.mxu0 %v7707
        %7873 = vmatpush.bf16.msra.mxu0 %v7706
        %7874 = vmatmul.bf16.gmra.mxu0 %v7374
        %v7875 = vpop.f32.mrf.mxu0
        %v7876 = vadd.f32 %v7385, %v7875
        %v7877 = vpop.f32.mrf.mxu0
        %7878 = vdwg.mxu0
        %7879 = vmatpush.bf16.msra.mxu0 %v7721
        %7880 = vmatpush.bf16.msra.mxu0 %v7720
        %7881 = vmatpush.bf16.msra.mxu0 %v7719
        %7882 = vmatpush.bf16.msra.mxu0 %v7718
        %7883 = vmatpush.bf16.msra.mxu0 %v7717
        %7884 = vmatpush.bf16.msra.mxu0 %v7716
        %7885 = vmatpush.bf16.msra.mxu0 %v7715
        %7886 = vmatpush.bf16.msra.mxu0 %v7714
        %7887 = vmatmul.bf16.gmra.mxu0 %v7375
        %v7888 = vpop.f32.mrf.mxu0
        %v7889 = vadd.f32 %v7876, %v7888
        %v7890 = vpop.f32.mrf.mxu0
        %7891 = vdwg.mxu0
        %7892 = vmatpush.bf16.msra.mxu0 %v7729
        %7893 = vmatpush.bf16.msra.mxu0 %v7728
        %7894 = vmatpush.bf16.msra.mxu0 %v7727
        %7895 = vmatpush.bf16.msra.mxu0 %v7726
        %7896 = vmatpush.bf16.msra.mxu0 %v7725
        %7897 = vmatpush.bf16.msra.mxu0 %v7724
        %7898 = vmatpush.bf16.msra.mxu0 %v7723
        %7899 = vmatpush.bf16.msra.mxu0 %v7722
        %7900 = vmatmul.bf16.gmra.mxu0 %v7376
        %v7901 = vpop.f32.mrf.mxu0
        %v7902 = vadd.f32 %v7889, %v7901
        %v7903 = vpop.f32.mrf.mxu0
        %7904 = vdwg.mxu0
        %7905 = vmatpush.bf16.msra.mxu0 %v7737
        %7906 = vmatpush.bf16.msra.mxu0 %v7736
        %7907 = vmatpush.bf16.msra.mxu0 %v7735
        %7908 = vmatpush.bf16.msra.mxu0 %v7734
        %7909 = vmatpush.bf16.msra.mxu0 %v7733
        %7910 = vmatpush.bf16.msra.mxu0 %v7732
        %7911 = vmatpush.bf16.msra.mxu0 %v7731
        %7912 = vmatpush.bf16.msra.mxu0 %v7730
        %7913 = vmatmul.bf16.gmra.mxu0 %v7377
        %v7914 = vpop.f32.mrf.mxu0
        %v7915 = vadd.f32 %v7902, %v7914
        %v7916 = vpop.f32.mrf.mxu0
        %7917 = vdwg.mxu0
        %7918 = vmatpush.bf16.msra.mxu0 %v7745
        %7919 = vmatpush.bf16.msra.mxu0 %v7744
        %7920 = vmatpush.bf16.msra.mxu0 %v7743
        %7921 = vmatpush.bf16.msra.mxu0 %v7742
        %7922 = vmatpush.bf16.msra.mxu0 %v7741
        %7923 = vmatpush.bf16.msra.mxu0 %v7740
        %7924 = vmatpush.bf16.msra.mxu0 %v7739
        %7925 = vmatpush.bf16.msra.mxu0 %v7738
        %7926 = vmatmul.bf16.gmra.mxu0 %v7378
        %v7927 = vpop.f32.mrf.mxu0
        %v7928 = vadd.f32 %v7915, %v7927
        %v7929 = vpop.f32.mrf.mxu0
        %7930 = vdwg.mxu0
        %7931 = vmatpush.bf16.msra.mxu0 %v7753
        %7932 = vmatpush.bf16.msra.mxu0 %v7752
        %7933 = vmatpush.bf16.msra.mxu0 %v7751
        %7934 = vmatpush.bf16.msra.mxu0 %v7750
        %7935 = vmatpush.bf16.msra.mxu0 %v7749
        %7936 = vmatpush.bf16.msra.mxu0 %v7748
        %7937 = vmatpush.bf16.msra.mxu0 %v7747
        %7938 = vmatpush.bf16.msra.mxu0 %v7746
        %7939 = vmatmul.bf16.gmra.mxu0 %v7379
        %v7940 = vpop.f32.mrf.mxu0
        %v7941 = vadd.f32 %v7928, %v7940
        %v7942 = vpop.f32.mrf.mxu0
        %7943 = vdwg.mxu0
        %7944 = vmatpush.bf16.msra.mxu0 %v7761
        %7945 = vmatpush.bf16.msra.mxu0 %v7760
        %7946 = vmatpush.bf16.msra.mxu0 %v7759
        %7947 = vmatpush.bf16.msra.mxu0 %v7758
        %7948 = vmatpush.bf16.msra.mxu0 %v7757
        %7949 = vmatpush.bf16.msra.mxu0 %v7756
        %7950 = vmatpush.bf16.msra.mxu0 %v7755
        %7951 = vmatpush.bf16.msra.mxu0 %v7754
        %7952 = vmatmul.bf16.gmra.mxu0 %v7380
        %v7953 = vpop.f32.mrf.mxu0
        %v7954 = vadd.f32 %v7941, %v7953
        %v7955 = vpop.f32.mrf.mxu0
        %7956 = vdwg.mxu0
        %7957 = vmatpush.bf16.msra.mxu0 %v7769
        %7958 = vmatpush.bf16.msra.mxu0 %v7768
        %7959 = vmatpush.bf16.msra.mxu0 %v7767
        %7960 = vmatpush.bf16.msra.mxu0 %v7766
        %7961 = vmatpush.bf16.msra.mxu0 %v7765
        %7962 = vmatpush.bf16.msra.mxu0 %v7764
        %7963 = vmatpush.bf16.msra.mxu0 %v7763
        %7964 = vmatpush.bf16.msra.mxu0 %v7762
        %7965 = vmatmul.bf16.gmra.mxu0 %v7381
        %v7966 = vpop.f32.mrf.mxu0
        %v7967 = vadd.f32 %v7954, %v7966
        %v7968 = vpop.f32.mrf.mxu0
        %7969 = vdwg.mxu0
        %7970 = vmatpush.bf16.msra.mxu0 %v7777
        %7971 = vmatpush.bf16.msra.mxu0 %v7776
        %7972 = vmatpush.bf16.msra.mxu0 %v7775
        %7973 = vmatpush.bf16.msra.mxu0 %v7774
        %7974 = vmatpush.bf16.msra.mxu0 %v7773
        %7975 = vmatpush.bf16.msra.mxu0 %v7772
        %7976 = vmatpush.bf16.msra.mxu0 %v7771
        %7977 = vmatpush.bf16.msra.mxu0 %v7770
        %7978 = vmatmul.bf16.gmra.mxu0 %v7382
        %v7979 = vpop.f32.mrf.mxu0
        %v7980 = vadd.f32 %v7967, %v7979
        %v7981 = vpop.f32.mrf.mxu0
        %7982 = vdwg.mxu0
        %7983 = vmatpush.bf16.msra.mxu0 %v7785
        %7984 = vmatpush.bf16.msra.mxu0 %v7784
        %7985 = vmatpush.bf16.msra.mxu0 %v7783
        %7986 = vmatpush.bf16.msra.mxu0 %v7782
        %7987 = vmatpush.bf16.msra.mxu0 %v7781
        %7988 = vmatpush.bf16.msra.mxu0 %v7780
        %7989 = vmatpush.bf16.msra.mxu0 %v7779
        %7990 = vmatpush.bf16.msra.mxu0 %v7778
        %7991 = vmatmul.bf16.gmra.mxu0 %v7383
        %v7992 = vpop.f32.mrf.mxu0
        %v7993 = vadd.f32 %v7980, %v7992
        %v7994 = vpop.f32.mrf.mxu0
        %7995 = vdwg.mxu0
        %v7996 = vmax.f32 %v7993, 0.0
        %v7997 = vld [vmem:[%s7] sm:$0xf]
        %v7998 = vld [vmem:[%s7 + $0x4] sm:$0xf]
        %v7999 = vld [vmem:[%s7 + $0x8] sm:$0xf]
        %v8000 = vld [vmem:[%s7 + $0xc] sm:$0xf]
        %v8001 = vld [vmem:[%s7 + $0x10] sm:$0xf]
        %v8002 = vld [vmem:[%s7 + $0x14] sm:$0xf]
        %v8003 = vld [vmem:[%s7 + $0x18] sm:$0xf]
        %v8004 = vld [vmem:[%s7 + $0x1c] sm:$0xf]
        %v8005 = vld [vmem:[%s7 + $0x20] sm:$0xf]
        %v8006 = vld [vmem:[%s7 + $0x24] sm:$0xf]
        %v8007 = vld [vmem:[%s7 + $0x28] sm:$0xf]
        %v8008 = vld [vmem:[%s7 + $0x2c] sm:$0xf]
        %v8009 = vld [vmem:[%s7 + $0x30] sm:$0xf]
        %v8010 = vld [vmem:[%s7 + $0x34] sm:$0xf]
        %v8011 = vld [vmem:[%s7 + $0x38] sm:$0xf]
        %v8012 = vld [vmem:[%s7 + $0x3c] sm:$0xf]
        %v8013 = vpack.c.bf16 %v7996, %v7996
        %v8014 = vld [vmem:[%s8 + $0x8] sm:$0x1]
        %v8015 = vperm.slane %v8014, 0
        %v8032 = vunpack.c.l.b16 %v7997
        %v8033 = vunpack.c.l.b16 %v7998
        %v8034 = vunpack.c.l.b16 %v7999
        %v8035 = vunpack.c.l.b16 %v8000
        %v8036 = vunpack.c.l.b16 %v8001
        %v8037 = vunpack.c.l.b16 %v8002
        %v8038 = vunpack.c.l.b16 %v8003
        %v8039 = vunpack.c.l.b16 %v8004
        %v8040 = vunpack.c.l.b16 %v8005
        %v8041 = vunpack.c.l.b16 %v8006
        %v8042 = vunpack.c.l.b16 %v8007
        %v8043 = vunpack.c.l.b16 %v8008
        %v8044 = vunpack.c.l.b16 %v8009
        %v8045 = vunpack.c.l.b16 %v8010
        %v8046 = vunpack.c.l.b16 %v8011
        %v8047 = vunpack.c.l.b16 %v8012
        %v8048 = vpack.c.b16 %v8033, %v8032
        %v8049 = vpack.c.b16 %v8035, %v8034
        %v8050 = vpack.c.b16 %v8037, %v8036
        %v8051 = vpack.c.b16 %v8039, %v8038
        %v8052 = vpack.c.b16 %v8041, %v8040
        %v8053 = vpack.c.b16 %v8043, %v8042
        %v8054 = vpack.c.b16 %v8045, %v8044
        %v8055 = vpack.c.b16 %v8047, %v8046
        %8064 = vmatpush.bf16.msra.mxu0 %v8055
        %8065 = vmatpush.bf16.msra.mxu0 %v8054
        %8066 = vmatpush.bf16.msra.mxu0 %v8053
        %8067 = vmatpush.bf16.msra.mxu0 %v8052
        %8068 = vmatpush.bf16.msra.mxu0 %v8051
        %8069 = vmatpush.bf16.msra.mxu0 %v8050
        %8070 = vmatpush.bf16.msra.mxu0 %v8049
        %8071 = vmatpush.bf16.msra.mxu0 %v8048
        %8072 = vmatmul.bf16.gmra.mxu0 %v8013
        %v8073 = vpop.f32.mrf.mxu0
        %v8074 = vadd.f32 %v8015, %v8073
        %v8075 = vpop.f32.mrf.mxu0
        %8076 = vdwg.mxu0
        %8077 = vst [vmem:[%s325] sm:$0xff] %v8074
        %s8078 = sand.u32 %s225, 1
        %s8079 = scalar_lea.sflag [#allocation3], %s8078
        %s8080 = sand.u32 %s225, 1
        %s8081 = smul.addr %s8080, 8
        %s8082 = scalar_lea.vmem [#allocation2], %s8081
        // Predicated region
        $region57: #{amcnet1d_forward.1} parent=55 // pred_check
          %p8083 = pneg %p235
        $region58: #{amcnet1d_forward.1} parent=55 // pred_check_branch
          %8085 = sbr.rel (%p8083) target = $region60
        $region59: #{amcnet1d_forward.1} parent=55 // pred_region
          %8087 = vsyncadd %s8079, 0
          %s8088 = smul.addr %s23, 8
          %s8089 = scalar_lea.hbm %s9, %s8088
          %s8091 = sshll.u32 %s8082, 4
          %s8092 = int_to_ptr.vmem [resolvable:$true] %s8091
          %s8093 = sshll.u32 %s8089, 4
          %s8094 = int_to_ptr.hbm [resolvable:$true] %s8093
          %8096 = dma.vmem_to_hbm [thread:$0]  %s8092, 128, %s8094, %s8079
        $region60: #{amcnet1d_forward.1} parent=55 // pred_fallthru
          _
      $region56: #{amcnet1d_forward.1} parent=5 // pred_fallthru
        _
      %p8097 = scmp.le.s32.totalorder 2, %s18
      // Predicated region
      $region61: #{amcnet1d_forward.1} parent=5 // pred_check
        %p8098 = pneg %p8097
      $region62: #{amcnet1d_forward.1} parent=5 // pred_check_branch
        %8100 = sbr.rel (%p8098) target = $region64
      $region63: #{amcnet1d_forward.1} parent=5 // pred_region
        %s8101 = ssub.s32 %s18, 2
        // Predicated region
        $region65: #{amcnet1d_forward.1} parent=63 // pred_check
          %p8102 = pneg %p241
        $region66: #{amcnet1d_forward.1} parent=63 // pred_check_branch
          %8104 = sbr.rel (%p8102) target = $region68
        $region67: #{amcnet1d_forward.1} parent=63 // pred_region
          %s8105 = sand.u32 %s226, 1
          %s8106 = scalar_lea.sflag [#allocation3], %s8105
          %s8107 = sand.u32 %s226, 1
          %s8108 = smul.addr %s8107, 8
          %s8109 = scalar_lea.vmem [#allocation2], %s8108
          %8111 = dma.done %s8106, 128
        $region68: #{amcnet1d_forward.1} parent=63 // pred_fallthru
          _
      $region64: #{amcnet1d_forward.1} parent=5 // pred_fallthru
        _
    $region6: #{amcnet1d_forward.1} parent=1 // loop_footer
      %s22 = sadd.s32 1, %s18
    $region7: #{amcnet1d_forward.1} parent=1 // loop_footer_branch
      %17 = sbr.rel target = $region3
    $region8: #{amcnet1d_forward.1} parent=1 // loop_exit
      _
    %8112 = vsyncpa [#allocation3], 1
    %s8113 = scalar_lea.sflag [#allocation3], 1
    %8114 = vsyncpa %s8113, 1

</llo_original>
